<compile_context>
chip_gen: v5e
topology: v5e:2x2
jax: 0.10.0
libtpu: 0.0.40
codegen_flags: <defaults>
</compile_context>

<pallas_src>
import functools

import jax
import jax.numpy as jnp
from jax.experimental import pallas as pl
from jax.experimental.pallas import tpu as pltpu

LANE = 128


def _rup(c):
    return ((c + LANE - 1) // LANE) * LANE


# ---------------------------------------------------------------------------
# Fused DCABlock kernel (one batch element per grid step)
# ---------------------------------------------------------------------------
def _dca_kernel(x1_ref, x2_ref, wcb_ref, bcb_ref,
                wa1_ref, ba1_ref, wa2_ref, ba2_ref,
                wb1_ref, bb1_ref, wb2_ref, bb2_ref,
                wf1a_ref, wf1b_ref, bf1_ref,
                wf2a_ref, wf2b_ref, bf2_ref,
                wfup_ref, wfuq_ref, bfu_ref,
                o_ref,
                pad_a, pad_b, y3_ref,
                *, H, W, RB, C1P, C2P, CFP, slope):
    def mm(a, b):
        return jnp.dot(a, b, preferred_element_type=jnp.float32)

    def leaky(v):
        return jnp.maximum(v, slope * v)

    # ---- convblock: three 3x3 convs (pad=1), im2col-free, ping-pong pads ----
    pad_a[...] = jnp.zeros_like(pad_a)
    pad_b[...] = jnp.zeros_like(pad_b)
    for r0 in range(0, H, RB):
        pad_a[r0 + 1:r0 + 1 + RB, 1:W + 1, :] = x1_ref[0, r0:r0 + RB, :, :]

    def store_pad_a(r0, v):
        pad_a[r0 + 1:r0 + 1 + RB, 1:W + 1, :] = v

    def store_pad_b(r0, v):
        pad_b[r0 + 1:r0 + 1 + RB, 1:W + 1, :] = v

    def store_y3(r0, v):
        y3_ref[r0:r0 + RB, :, :] = v

    def conv3x3(src, conv_idx, act, store):
        for r0 in range(0, H, RB):
            acc = jnp.zeros((RB * W, C1P), jnp.float32)
            for t in range(9):
                ky, kx = t // 3, t % 3
                win = src[r0 + ky:r0 + ky + RB, kx:kx + W, :]
                acc = acc + mm(win.reshape(RB * W, C1P), wcb_ref[conv_idx, t])
            acc = acc + bcb_ref[conv_idx]
            if act:
                acc = leaky(acc)
            store(r0, acc.reshape(RB, W, C1P))

    conv3x3(pad_a, 0, True, store_pad_b)   # conv1 + LeakyReLU
    conv3x3(pad_b, 1, True, store_pad_a)   # conv2 + LeakyReLU
    conv3x3(pad_a, 2, False, store_y3)     # conv3 -> new x1 in y3_ref

    # ---- CALayer attention vectors: global avg pool + tiny MLPs ----
    inv_hw = 1.0 / float(H * W)
    s_a = jnp.zeros((1, C1P), jnp.float32)
    s_b = jnp.zeros((1, C2P), jnp.float32)
    for r0 in range(0, H, RB):
        s_a = s_a + jnp.sum(y3_ref[r0:r0 + RB, :, :].reshape(RB * W, C1P),
                            axis=0, keepdims=True)
        s_b = s_b + jnp.sum(x2_ref[0, r0:r0 + RB, :, :].reshape(RB * W, C2P),
                            axis=0, keepdims=True)
    m_a = s_a * inv_hw
    m_b = s_b * inv_hw
    t_a = jnp.maximum(mm(m_a, wa1_ref[...]) + ba1_ref[...], 0.0)
    a_vec = jax.nn.sigmoid(mm(t_a, wa2_ref[...]) + ba2_ref[...])   # (1, C1P)
    t_b = jnp.maximum(mm(m_b, wb1_ref[...]) + bb1_ref[...], 0.0)
    b_vec = jax.nn.sigmoid(mm(t_b, wb2_ref[...]) + bb2_ref[...])   # (1, C2P)

    # ---- fused concat + 1x1 convs (split-weight matmul sums) ----
    for r0 in range(0, H, RB):
        x1b = y3_ref[r0:r0 + RB, :, :].reshape(RB * W, C1P)
        x2b = x2_ref[0, r0:r0 + RB, :, :].reshape(RB * W, C2P)
        # fuse1(cat(x2, A*x1)), fuse2(cat(x1, B*x2)), fuse(cat(p, q))
        p = mm(x2b, wf1a_ref[...]) + mm(x1b * a_vec, wf1b_ref[...]) + bf1_ref[...]
        q = mm(x1b, wf2a_ref[...]) + mm(x2b * b_vec, wf2b_ref[...]) + bf2_ref[...]
        o = mm(p, wfup_ref[...]) + mm(q, wfuq_ref[...]) + bfu_ref[...]
        o_ref[0, r0:r0 + RB, :, :] = o.reshape(RB, W, CFP).astype(o_ref.dtype)


# ---------------------------------------------------------------------------
# Wrapper: NCHW boundary, channel padding, weight repacking, pallas_call
# ---------------------------------------------------------------------------
def dcablock_forward(x_nchw, params):
    N, C, H, W = x_nchw.shape
    c1 = C // 2
    c2 = C - c1
    r1 = params["a1_w"].shape[0]
    r2 = params["b1_w"].shape[0]
    C1P, C2P, CFP = _rup(c1), _rup(c2), _rup(C)
    R1P, R2P = _rup(r1), _rup(r2)
    RB = 8 if H % 8 == 0 else (4 if H % 4 == 0 else (2 if H % 2 == 0 else 1))

    x = jnp.transpose(x_nchw, (0, 2, 3, 1)).astype(jnp.float32)   # NHWC
    x1 = jnp.pad(x[..., :c1], ((0, 0), (0, 0), (0, 0), (0, C1P - c1)))
    x2 = jnp.pad(x[..., c1:], ((0, 0), (0, 0), (0, 0), (0, C2P - c2)))

    def pad2(m, r, c):
        return jnp.pad(m, ((0, r - m.shape[0]), (0, c - m.shape[1])))

    def w1x1(w, rows, cols):            # (O, I, 1, 1) -> padded (I, O)
        return pad2(w[:, :, 0, 0].T, rows, cols)

    def brow(b, cols):
        return jnp.pad(b.reshape(1, -1), ((0, 0), (0, cols - b.shape[0])))

    def w3x3(w):                        # (O, I, 3, 3) -> (9, C1P, C1P) taps
        t = jnp.transpose(w, (2, 3, 1, 0)).reshape(9, w.shape[1], w.shape[0])
        return jnp.pad(t, ((0, 0), (0, C1P - w.shape[1]), (0, C1P - w.shape[0])))

    wcb = jnp.stack([w3x3(params["cb0_w"]), w3x3(params["cb1_w"]),
                     w3x3(params["cb2_w"])])                       # (3,9,C1P,C1P)
    bcb = jnp.stack([brow(params["cb0_b"], C1P), brow(params["cb1_b"], C1P),
                     brow(params["cb2_b"], C1P)])                  # (3,1,C1P)

    wa1, ba1 = w1x1(params["a1_w"], C1P, R1P), brow(params["a1_b"], R1P)
    wa2, ba2 = w1x1(params["a2_w"], R1P, C1P), brow(params["a2_b"], C1P)
    wb1, bb1 = w1x1(params["b1_w"], C2P, R2P), brow(params["b1_b"], R2P)
    wb2, bb2 = w1x1(params["b2_w"], R2P, C2P), brow(params["b2_b"], C2P)

    wf1 = params["fuse1_w"][:, :, 0, 0].T          # (num_fea, c1); P = [x2, A*x1]
    wf2 = params["fuse2_w"][:, :, 0, 0].T          # (num_fea, c2); Q = [x1, B*x2]
    wfu = params["fuse_w"][:, :, 0, 0].T           # (num_fea, num_fea); c = [p, q]
    wf1a, wf1b = pad2(wf1[:c2], C2P, C1P), pad2(wf1[c2:], C1P, C1P)
    wf2a, wf2b = pad2(wf2[:c1], C1P, C2P), pad2(wf2[c1:], C2P, C2P)
    wfup, wfuq = pad2(wfu[:c1], C1P, CFP), pad2(wfu[c1:], C2P, CFP)
    bf1 = brow(params["fuse1_b"], C1P)
    bf2 = brow(params["fuse2_b"], C2P)
    bfu = brow(params["fuse_b"], CFP)

    kern = functools.partial(_dca_kernel, H=H, W=W, RB=RB,
                             C1P=C1P, C2P=C2P, CFP=CFP, slope=0.05)

    def full(shape):
        return pl.BlockSpec(shape, lambda n, _s=shape: (0,) * len(_s))

    out = pl.pallas_call(
        kern,
        out_shape=jax.ShapeDtypeStruct((N, H, W, CFP), jnp.float32),
        grid=(N,),
        in_specs=[
            pl.BlockSpec((1, H, W, C1P), lambda n: (n, 0, 0, 0)),
            pl.BlockSpec((1, H, W, C2P), lambda n: (n, 0, 0, 0)),
            full((3, 9, C1P, C1P)), full((3, 1, C1P)),
            full((C1P, R1P)), full((1, R1P)), full((R1P, C1P)), full((1, C1P)),
            full((C2P, R2P)), full((1, R2P)), full((R2P, C2P)), full((1, C2P)),
            full((C2P, C1P)), full((C1P, C1P)), full((1, C1P)),
            full((C1P, C2P)), full((C2P, C2P)), full((1, C2P)),
            full((C1P, CFP)), full((C2P, CFP)), full((1, CFP)),
        ],
        out_specs=pl.BlockSpec((1, H, W, CFP), lambda n: (n, 0, 0, 0)),
        scratch_shapes=[
            pltpu.VMEM((H + 2, W + 2, C1P), jnp.float32),   # ping pad buffer
            pltpu.VMEM((H + 2, W + 2, C1P), jnp.float32),   # pong pad buffer
            pltpu.VMEM((H, W, C1P), jnp.float32),           # convblock output
        ],
        compiler_params=pltpu.CompilerParams(
            dimension_semantics=("parallel",),
            vmem_limit_bytes=32 * 1024 * 1024),
    )(x1, x2, wcb, bcb, wa1, ba1, wa2, ba2, wb1, bb1, wb2, bb2,
      wf1a, wf1b, bf1, wf2a, wf2b, bf2, wfup, wfuq, bfu)

    return jnp.transpose(out[..., :C], (0, 3, 1, 2))


# ---------------------------------------------------------------------------
# Parameters (PyTorch layouts) and a pure-JAX reference for verification
# ---------------------------------------------------------------------------
def make_dca_params(key, num_fea):
    c1 = num_fea // 2
    c2 = num_fea - c1
    r1 = c1 // 8
    r2 = c2 // 8
    assert r1 >= 1 and r2 >= 1, "num_fea must be >= 16 (CALayer reduction)"
    ks = iter(jax.random.split(key, 24))

    def w(shape):
        return jax.random.normal(next(ks), shape, jnp.float32) * 0.1

    return {
        "cb0_w": w((c1, c1, 3, 3)), "cb0_b": w((c1,)),
        "cb1_w": w((c1, c1, 3, 3)), "cb1_b": w((c1,)),
        "cb2_w": w((c1, c1, 3, 3)), "cb2_b": w((c1,)),
        "a1_w": w((r1, c1, 1, 1)), "a1_b": w((r1,)),
        "a2_w": w((c1, r1, 1, 1)), "a2_b": w((c1,)),
        "b1_w": w((r2, c2, 1, 1)), "b1_b": w((r2,)),
        "b2_w": w((c2, r2, 1, 1)), "b2_b": w((c2,)),
        "fuse1_w": w((c1, num_fea, 1, 1)), "fuse1_b": w((c1,)),
        "fuse2_w": w((c2, num_fea, 1, 1)), "fuse2_b": w((c2,)),
        "fuse_w": w((num_fea, num_fea, 1, 1)), "fuse_b": w((num_fea,)),
    }


def _conv_ref(x, w, b, pad=0):
    y = jax.lax.conv_general_dilated(
        x, w, (1, 1), [(pad, pad), (pad, pad)],
        dimension_numbers=("NCHW", "OIHW", "NCHW"),
        precision=jax.lax.Precision.HIGHEST)
    return y + b.reshape(1, -1, 1, 1)


def dcablock_ref(x, params):
    C = x.shape[1]
    c1 = C // 2
    slope = 0.05
    x1, x2 = x[:, :c1], x[:, c1:]
    y = _conv_ref(x1, params["cb0_w"], params["cb0_b"], 1)
    y = jnp.where(y >= 0, y, slope * y)
    y = _conv_ref(y, params["cb1_w"], params["cb1_b"], 1)
    y = jnp.where(y >= 0, y, slope * y)
    x1n = _conv_ref(y, params["cb2_w"], params["cb2_b"], 1)

    def calayer(f, w1, b1, w2, b2):
        m = jnp.mean(f, axis=(2, 3), keepdims=True)
        t = jax.nn.relu(_conv_ref(m, w1, b1))
        return jax.nn.sigmoid(_conv_ref(t, w2, b2))

    A = calayer(x1n, params["a1_w"], params["a1_b"], params["a2_w"], params["a2_b"])
    B = calayer(x2, params["b1_w"], params["b1_b"], params["b2_w"], params["b2_b"])
    P = jnp.concatenate([x2, A * x1n], axis=1)
    Q = jnp.concatenate([x1n, B * x2], axis=1)
    c = jnp.concatenate([_conv_ref(P, params["fuse1_w"], params["fuse1_b"]),
                         _conv_ref(Q, params["fuse2_w"], params["fuse2_b"])], axis=1)
    return _conv_ref(c, params["fuse_w"], params["fuse_b"])


if __name__ == "__main__":
    key = jax.random.PRNGKey(0)
    k_x, k_p = jax.random.split(key)

    num_fea, N, H, W = 16, 2, 16, 16       # c1 = c2 = 8, reduction = 1
    x = jax.random.normal(k_x, (N, num_fea, H, W), jnp.float32)
    params = make_dca_params(k_p, num_fea)

    out = jax.jit(dcablock_forward)(x, params)
    jax.block_until_ready(out)
    assert out.shape == (N, num_fea, H, W)

    ref = dcablock_ref(x, params)
    err = float(jnp.max(jnp.abs(out - ref)))
    # tolerance covers MXU f32-via-bf16-pass differences; real bugs are >> this
    assert err < 2e-2, f"max abs err {err}"
    print("KERNEL_OK")
</pallas_src>

<mosaic_0001>
module attributes {stable_mosaic.version = 11 : i64} {
  func.func @_dca_kernel(%arg0: i32, %arg1: memref<1x16x16x128xf32, #tpu.memory_space<vmem>>, %arg2: memref<1x16x16x128xf32, #tpu.memory_space<vmem>>, %arg3: memref<3x9x128x128xf32, #tpu.memory_space<vmem>>, %arg4: memref<3x1x128xf32, #tpu.memory_space<vmem>>, %arg5: memref<128x128xf32, #tpu.memory_space<vmem>>, %arg6: memref<1x128xf32, #tpu.memory_space<vmem>>, %arg7: memref<128x128xf32, #tpu.memory_space<vmem>>, %arg8: memref<1x128xf32, #tpu.memory_space<vmem>>, %arg9: memref<128x128xf32, #tpu.memory_space<vmem>>, %arg10: memref<1x128xf32, #tpu.memory_space<vmem>>, %arg11: memref<128x128xf32, #tpu.memory_space<vmem>>, %arg12: memref<1x128xf32, #tpu.memory_space<vmem>>, %arg13: memref<128x128xf32, #tpu.memory_space<vmem>>, %arg14: memref<128x128xf32, #tpu.memory_space<vmem>>, %arg15: memref<1x128xf32, #tpu.memory_space<vmem>>, %arg16: memref<128x128xf32, #tpu.memory_space<vmem>>, %arg17: memref<128x128xf32, #tpu.memory_space<vmem>>, %arg18: memref<1x128xf32, #tpu.memory_space<vmem>>, %arg19: memref<128x128xf32, #tpu.memory_space<vmem>>, %arg20: memref<128x128xf32, #tpu.memory_space<vmem>>, %arg21: memref<1x128xf32, #tpu.memory_space<vmem>>, %arg22: memref<1x16x16x128xf32, #tpu.memory_space<vmem>>, %arg23: memref<18x18x128xf32, #tpu.memory_space<vmem>>, %arg24: memref<18x18x128xf32, #tpu.memory_space<vmem>>, %arg25: memref<16x16x128xf32, #tpu.memory_space<vmem>>) attributes {dimension_semantics = [#tpu.dimension_semantics<parallel>], iteration_bounds = array<i64: 2>, scalar_prefetch = 0 : i64, scratch_operands = 3 : i64, tpu.core_type = #tpu.core_type<tc>, window_params = [{transform_indices = @transform_0, window_bounds = array<i64: 1, 16, 16, 128>}, {transform_indices = @transform_1, window_bounds = array<i64: 1, 16, 16, 128>}, {pipeline_mode = #tpu.pipeline_mode<synchronous>, transform_indices = @transform_2, window_bounds = array<i64: 3, 9, 128, 128>}, {pipeline_mode = #tpu.pipeline_mode<synchronous>, transform_indices = @transform_3, window_bounds = array<i64: 3, 1, 128>}, {pipeline_mode = #tpu.pipeline_mode<synchronous>, transform_indices = @transform_4, window_bounds = array<i64: 128, 128>}, {pipeline_mode = #tpu.pipeline_mode<synchronous>, transform_indices = @transform_5, window_bounds = array<i64: 1, 128>}, {pipeline_mode = #tpu.pipeline_mode<synchronous>, transform_indices = @transform_6, window_bounds = array<i64: 128, 128>}, {pipeline_mode = #tpu.pipeline_mode<synchronous>, transform_indices = @transform_7, window_bounds = array<i64: 1, 128>}, {pipeline_mode = #tpu.pipeline_mode<synchronous>, transform_indices = @transform_8, window_bounds = array<i64: 128, 128>}, {pipeline_mode = #tpu.pipeline_mode<synchronous>, transform_indices = @transform_9, window_bounds = array<i64: 1, 128>}, {pipeline_mode = #tpu.pipeline_mode<synchronous>, transform_indices = @transform_10, window_bounds = array<i64: 128, 128>}, {pipeline_mode = #tpu.pipeline_mode<synchronous>, transform_indices = @transform_11, window_bounds = array<i64: 1, 128>}, {pipeline_mode = #tpu.pipeline_mode<synchronous>, transform_indices = @transform_12, window_bounds = array<i64: 128, 128>}, {pipeline_mode = #tpu.pipeline_mode<synchronous>, transform_indices = @transform_13, window_bounds = array<i64: 128, 128>}, {pipeline_mode = #tpu.pipeline_mode<synchronous>, transform_indices = @transform_14, window_bounds = array<i64: 1, 128>}, {pipeline_mode = #tpu.pipeline_mode<synchronous>, transform_indices = @transform_15, window_bounds = array<i64: 128, 128>}, {pipeline_mode = #tpu.pipeline_mode<synchronous>, transform_indices = @transform_16, window_bounds = array<i64: 128, 128>}, {pipeline_mode = #tpu.pipeline_mode<synchronous>, transform_indices = @transform_17, window_bounds = array<i64: 1, 128>}, {pipeline_mode = #tpu.pipeline_mode<synchronous>, transform_indices = @transform_18, window_bounds = array<i64: 128, 128>}, {pipeline_mode = #tpu.pipeline_mode<synchronous>, transform_indices = @transform_19, window_bounds = array<i64: 128, 128>}, {pipeline_mode = #tpu.pipeline_mode<synchronous>, transform_indices = @transform_20, window_bounds = array<i64: 1, 128>}, {transform_indices = @transform_21, window_bounds = array<i64: 1, 16, 16, 128>}]} {
    %cst = arith.constant 0.000000e+00 : f32
    %0 = vector.broadcast %cst : f32 to vector<18x18x128xf32>
    %c0 = arith.constant 0 : index
    %c0_0 = arith.constant 0 : index
    %c0_1 = arith.constant 0 : index
    %1 = vector.load %arg23[%c0, %c0_0, %c0_1] : memref<18x18x128xf32, #tpu.memory_space<vmem>>, vector<18x18x128xf32>
    tpu.vector_store %arg23[%c0, %c0_0, %c0_1], %0 {strides = array<i32>} : memref<18x18x128xf32, #tpu.memory_space<vmem>>, vector<18x18x128xf32>,
    %cst_2 = arith.constant 0.000000e+00 : f32
    %2 = vector.broadcast %cst_2 : f32 to vector<18x18x128xf32>
    %c0_3 = arith.constant 0 : index
    %c0_4 = arith.constant 0 : index
    %c0_5 = arith.constant 0 : index
    %3 = vector.load %arg24[%c0_3, %c0_4, %c0_5] : memref<18x18x128xf32, #tpu.memory_space<vmem>>, vector<18x18x128xf32>
    tpu.vector_store %arg24[%c0_3, %c0_4, %c0_5], %2 {strides = array<i32>} : memref<18x18x128xf32, #tpu.memory_space<vmem>>, vector<18x18x128xf32>,
    %c0_6 = arith.constant 0 : index
    %c0_7 = arith.constant 0 : index
    %c0_8 = arith.constant 0 : index
    %c0_9 = arith.constant 0 : index
    %4 = vector.load %arg1[%c0_6, %c0_7, %c0_8, %c0_9] : memref<1x16x16x128xf32, #tpu.memory_space<vmem>>, vector<1x8x16x128xf32>
    %5 = vector.shape_cast %4 : vector<1x8x16x128xf32> to vector<8x16x128xf32>
    %c1 = arith.constant 1 : index
    %c1_10 = arith.constant 1 : index
    %c0_11 = arith.constant 0 : index
    %6 = vector.load %arg23[%c1, %c1_10, %c0_11] : memref<18x18x128xf32, #tpu.memory_space<vmem>>, vector<8x16x128xf32>
    tpu.vector_store %arg23[%c1, %c1_10, %c0_11], %5 {strides = array<i32>} : memref<18x18x128xf32, #tpu.memory_space<vmem>>, vector<8x16x128xf32>,
    %c0_12 = arith.constant 0 : index
    %c8 = arith.constant 8 : index
    %c0_13 = arith.constant 0 : index
    %c0_14 = arith.constant 0 : index
    %7 = vector.load %arg1[%c0_12, %c8, %c0_13, %c0_14] : memref<1x16x16x128xf32, #tpu.memory_space<vmem>>, vector<1x8x16x128xf32>
    %8 = vector.shape_cast %7 : vector<1x8x16x128xf32> to vector<8x16x128xf32>
    %c9 = arith.constant 9 : index
    %c1_15 = arith.constant 1 : index
    %c0_16 = arith.constant 0 : index
    %9 = vector.load %arg23[%c9, %c1_15, %c0_16] : memref<18x18x128xf32, #tpu.memory_space<vmem>>, vector<8x16x128xf32>
    tpu.vector_store %arg23[%c9, %c1_15, %c0_16], %8 {strides = array<i32>} : memref<18x18x128xf32, #tpu.memory_space<vmem>>, vector<8x16x128xf32>,
    %cst_17 = arith.constant 0.000000e+00 : f32
    %10 = vector.broadcast %cst_17 : f32 to vector<128x128xf32>
    %c0_18 = arith.constant 0 : index
    %c0_19 = arith.constant 0 : index
    %c0_20 = arith.constant 0 : index
    %11 = vector.load %arg23[%c0_18, %c0_19, %c0_20] : memref<18x18x128xf32, #tpu.memory_space<vmem>>, vector<8x16x128xf32>
    %12 = vector.shape_cast %11 : vector<8x16x128xf32> to vector<128x128xf32>
    %c0_21 = arith.constant 0 : index
    %c0_22 = arith.constant 0 : index
    %c0_23 = arith.constant 0 : index
    %c0_24 = arith.constant 0 : index
    %13 = vector.load %arg3[%c0_21, %c0_22, %c0_23, %c0_24] : memref<3x9x128x128xf32, #tpu.memory_space<vmem>>, vector<1x1x128x128xf32>
    %14 = vector.shape_cast %13 : vector<1x1x128x128xf32> to vector<128x128xf32>
    %cst_25 = arith.constant dense<0.000000e+00> : vector<128x128xf32>
    %15 = tpu.matmul %12, %14, %cst_25 {dimension_numbers = #tpu.dot_dimension_numbers<[1], [0], [0], [1], [0, 0, 1, 1], [], []>} : vector<128x128xf32>, vector<128x128xf32>, vector<128x128xf32> -> vector<128x128xf32>
    %16 = arith.addf %10, %15 : vector<128x128xf32>
    %c0_26 = arith.constant 0 : index
    %c1_27 = arith.constant 1 : index
    %c0_28 = arith.constant 0 : index
    %17 = vector.load %arg23[%c0_26, %c1_27, %c0_28] : memref<18x18x128xf32, #tpu.memory_space<vmem>>, vector<8x16x128xf32>
    %18 = vector.shape_cast %17 : vector<8x16x128xf32> to vector<128x128xf32>
    %c0_29 = arith.constant 0 : index
    %c1_30 = arith.constant 1 : index
    %c0_31 = arith.constant 0 : index
    %c0_32 = arith.constant 0 : index
    %19 = vector.load %arg3[%c0_29, %c1_30, %c0_31, %c0_32] : memref<3x9x128x128xf32, #tpu.memory_space<vmem>>, vector<1x1x128x128xf32>
    %20 = vector.shape_cast %19 : vector<1x1x128x128xf32> to vector<128x128xf32>
    %cst_33 = arith.constant dense<0.000000e+00> : vector<128x128xf32>
    %21 = tpu.matmul %18, %20, %cst_33 {dimension_numbers = #tpu.dot_dimension_numbers<[1], [0], [0], [1], [0, 0, 1, 1], [], []>} : vector<128x128xf32>, vector<128x128xf32>, vector<128x128xf32> -> vector<128x128xf32>
    %22 = arith.addf %16, %21 : vector<128x128xf32>
    %c0_34 = arith.constant 0 : index
    %c2 = arith.constant 2 : index
    %c0_35 = arith.constant 0 : index
    %23 = vector.load %arg23[%c0_34, %c2, %c0_35] : memref<18x18x128xf32, #tpu.memory_space<vmem>>, vector<8x16x128xf32>
    %24 = vector.shape_cast %23 : vector<8x16x128xf32> to vector<128x128xf32>
    %c0_36 = arith.constant 0 : index
    %c2_37 = arith.constant 2 : index
    %c0_38 = arith.constant 0 : index
    %c0_39 = arith.constant 0 : index
    %25 = vector.load %arg3[%c0_36, %c2_37, %c0_38, %c0_39] : memref<3x9x128x128xf32, #tpu.memory_space<vmem>>, vector<1x1x128x128xf32>
    %26 = vector.shape_cast %25 : vector<1x1x128x128xf32> to vector<128x128xf32>
    %cst_40 = arith.constant dense<0.000000e+00> : vector<128x128xf32>
    %27 = tpu.matmul %24, %26, %cst_40 {dimension_numbers = #tpu.dot_dimension_numbers<[1], [0], [0], [1], [0, 0, 1, 1], [], []>} : vector<128x128xf32>, vector<128x128xf32>, vector<128x128xf32> -> vector<128x128xf32>
    %28 = arith.addf %22, %27 : vector<128x128xf32>
    %c1_41 = arith.constant 1 : index
    %c0_42 = arith.constant 0 : index
    %c0_43 = arith.constant 0 : index
    %29 = vector.load %arg23[%c1_41, %c0_42, %c0_43] : memref<18x18x128xf32, #tpu.memory_space<vmem>>, vector<8x16x128xf32>
    %30 = vector.shape_cast %29 : vector<8x16x128xf32> to vector<128x128xf32>
    %c0_44 = arith.constant 0 : index
    %c3 = arith.constant 3 : index
    %c0_45 = arith.constant 0 : index
    %c0_46 = arith.constant 0 : index
    %31 = vector.load %arg3[%c0_44, %c3, %c0_45, %c0_46] : memref<3x9x128x128xf32, #tpu.memory_space<vmem>>, vector<1x1x128x128xf32>
    %32 = vector.shape_cast %31 : vector<1x1x128x128xf32> to vector<128x128xf32>
    %cst_47 = arith.constant dense<0.000000e+00> : vector<128x128xf32>
    %33 = tpu.matmul %30, %32, %cst_47 {dimension_numbers = #tpu.dot_dimension_numbers<[1], [0], [0], [1], [0, 0, 1, 1], [], []>} : vector<128x128xf32>, vector<128x128xf32>, vector<128x128xf32> -> vector<128x128xf32>
    %34 = arith.addf %28, %33 : vector<128x128xf32>
    %c1_48 = arith.constant 1 : index
    %c1_49 = arith.constant 1 : index
    %c0_50 = arith.constant 0 : index
    %35 = vector.load %arg23[%c1_48, %c1_49, %c0_50] : memref<18x18x128xf32, #tpu.memory_space<vmem>>, vector<8x16x128xf32>
    %36 = vector.shape_cast %35 : vector<8x16x128xf32> to vector<128x128xf32>
    %c0_51 = arith.constant 0 : index
    %c4 = arith.constant 4 : index
    %c0_52 = arith.constant 0 : index
    %c0_53 = arith.constant 0 : index
    %37 = vector.load %arg3[%c0_51, %c4, %c0_52, %c0_53] : memref<3x9x128x128xf32, #tpu.memory_space<vmem>>, vector<1x1x128x128xf32>
    %38 = vector.shape_cast %37 : vector<1x1x128x128xf32> to vector<128x128xf32>
    %cst_54 = arith.constant dense<0.000000e+00> : vector<128x128xf32>
    %39 = tpu.matmul %36, %38, %cst_54 {dimension_numbers = #tpu.dot_dimension_numbers<[1], [0], [0], [1], [0, 0, 1, 1], [], []>} : vector<128x128xf32>, vector<128x128xf32>, vector<128x128xf32> -> vector<128x128xf32>
    %40 = arith.addf %34, %39 : vector<128x128xf32>
    %c1_55 = arith.constant 1 : index
    %c2_56 = arith.constant 2 : index
    %c0_57 = arith.constant 0 : index
    %41 = vector.load %arg23[%c1_55, %c2_56, %c0_57] : memref<18x18x128xf32, #tpu.memory_space<vmem>>, vector<8x16x128xf32>
    %42 = vector.shape_cast %41 : vector<8x16x128xf32> to vector<128x128xf32>
    %c0_58 = arith.constant 0 : index
    %c5 = arith.constant 5 : index
    %c0_59 = arith.constant 0 : index
    %c0_60 = arith.constant 0 : index
    %43 = vector.load %arg3[%c0_58, %c5, %c0_59, %c0_60] : memref<3x9x128x128xf32, #tpu.memory_space<vmem>>, vector<1x1x128x128xf32>
    %44 = vector.shape_cast %43 : vector<1x1x128x128xf32> to vector<128x128xf32>
    %cst_61 = arith.constant dense<0.000000e+00> : vector<128x128xf32>
    %45 = tpu.matmul %42, %44, %cst_61 {dimension_numbers = #tpu.dot_dimension_numbers<[1], [0], [0], [1], [0, 0, 1, 1], [], []>} : vector<128x128xf32>, vector<128x128xf32>, vector<128x128xf32> -> vector<128x128xf32>
    %46 = arith.addf %40, %45 : vector<128x128xf32>
    %c2_62 = arith.constant 2 : index
    %c0_63 = arith.constant 0 : index
    %c0_64 = arith.constant 0 : index
    %47 = vector.load %arg23[%c2_62, %c0_63, %c0_64] : memref<18x18x128xf32, #tpu.memory_space<vmem>>, vector<8x16x128xf32>
    %48 = vector.shape_cast %47 : vector<8x16x128xf32> to vector<128x128xf32>
    %c0_65 = arith.constant 0 : index
    %c6 = arith.constant 6 : index
    %c0_66 = arith.constant 0 : index
    %c0_67 = arith.constant 0 : index
    %49 = vector.load %arg3[%c0_65, %c6, %c0_66, %c0_67] : memref<3x9x128x128xf32, #tpu.memory_space<vmem>>, vector<1x1x128x128xf32>
    %50 = vector.shape_cast %49 : vector<1x1x128x128xf32> to vector<128x128xf32>
    %cst_68 = arith.constant dense<0.000000e+00> : vector<128x128xf32>
    %51 = tpu.matmul %48, %50, %cst_68 {dimension_numbers = #tpu.dot_dimension_numbers<[1], [0], [0], [1], [0, 0, 1, 1], [], []>} : vector<128x128xf32>, vector<128x128xf32>, vector<128x128xf32> -> vector<128x128xf32>
    %52 = arith.addf %46, %51 : vector<128x128xf32>
    %c2_69 = arith.constant 2 : index
    %c1_70 = arith.constant 1 : index
    %c0_71 = arith.constant 0 : index
    %53 = vector.load %arg23[%c2_69, %c1_70, %c0_71] : memref<18x18x128xf32, #tpu.memory_space<vmem>>, vector<8x16x128xf32>
    %54 = vector.shape_cast %53 : vector<8x16x128xf32> to vector<128x128xf32>
    %c0_72 = arith.constant 0 : index
    %c7 = arith.constant 7 : index
    %c0_73 = arith.constant 0 : index
    %c0_74 = arith.constant 0 : index
    %55 = vector.load %arg3[%c0_72, %c7, %c0_73, %c0_74] : memref<3x9x128x128xf32, #tpu.memory_space<vmem>>, vector<1x1x128x128xf32>
    %56 = vector.shape_cast %55 : vector<1x1x128x128xf32> to vector<128x128xf32>
    %cst_75 = arith.constant dense<0.000000e+00> : vector<128x128xf32>
    %57 = tpu.matmul %54, %56, %cst_75 {dimension_numbers = #tpu.dot_dimension_numbers<[1], [0], [0], [1], [0, 0, 1, 1], [], []>} : vector<128x128xf32>, vector<128x128xf32>, vector<128x128xf32> -> vector<128x128xf32>
    %58 = arith.addf %52, %57 : vector<128x128xf32>
    %c2_76 = arith.constant 2 : index
    %c2_77 = arith.constant 2 : index
    %c0_78 = arith.constant 0 : index
    %59 = vector.load %arg23[%c2_76, %c2_77, %c0_78] : memref<18x18x128xf32, #tpu.memory_space<vmem>>, vector<8x16x128xf32>
    %60 = vector.shape_cast %59 : vector<8x16x128xf32> to vector<128x128xf32>
    %c0_79 = arith.constant 0 : index
    %c8_80 = arith.constant 8 : index
    %c0_81 = arith.constant 0 : index
    %c0_82 = arith.constant 0 : index
    %61 = vector.load %arg3[%c0_79, %c8_80, %c0_81, %c0_82] : memref<3x9x128x128xf32, #tpu.memory_space<vmem>>, vector<1x1x128x128xf32>
    %62 = vector.shape_cast %61 : vector<1x1x128x128xf32> to vector<128x128xf32>
    %cst_83 = arith.constant dense<0.000000e+00> : vector<128x128xf32>
    %63 = tpu.matmul %60, %62, %cst_83 {dimension_numbers = #tpu.dot_dimension_numbers<[1], [0], [0], [1], [0, 0, 1, 1], [], []>} : vector<128x128xf32>, vector<128x128xf32>, vector<128x128xf32> -> vector<128x128xf32>
    %64 = arith.addf %58, %63 : vector<128x128xf32>
    %c0_84 = arith.constant 0 : index
    %c0_85 = arith.constant 0 : index
    %c0_86 = arith.constant 0 : index
    %65 = vector.load %arg4[%c0_84, %c0_85, %c0_86] : memref<3x1x128xf32, #tpu.memory_space<vmem>>, vector<1x1x128xf32>
    %66 = vector.shape_cast %65 : vector<1x1x128xf32> to vector<1x128xf32>
    %67 = vector.broadcast %66 : vector<1x128xf32> to vector<128x128xf32>
    %68 = arith.addf %64, %67 : vector<128x128xf32>
    %cst_87 = arith.constant 5.000000e-02 : f32
    %69 = vector.broadcast %cst_87 : f32 to vector<128x128xf32>
    %70 = arith.mulf %69, %68 : vector<128x128xf32>
    %71 = arith.maximumf %68, %70 : vector<128x128xf32>
    %72 = vector.shape_cast %71 : vector<128x128xf32> to vector<8x16x128xf32>
    %c1_88 = arith.constant 1 : index
    %c1_89 = arith.constant 1 : index
    %c0_90 = arith.constant 0 : index
    %73 = vector.load %arg24[%c1_88, %c1_89, %c0_90] : memref<18x18x128xf32, #tpu.memory_space<vmem>>, vector<8x16x128xf32>
    tpu.vector_store %arg24[%c1_88, %c1_89, %c0_90], %72 {strides = array<i32>} : memref<18x18x128xf32, #tpu.memory_space<vmem>>, vector<8x16x128xf32>,
    %cst_91 = arith.constant 0.000000e+00 : f32
    %74 = vector.broadcast %cst_91 : f32 to vector<128x128xf32>
    %c8_92 = arith.constant 8 : index
    %c0_93 = arith.constant 0 : index
    %c0_94 = arith.constant 0 : index
    %75 = vector.load %arg23[%c8_92, %c0_93, %c0_94] : memref<18x18x128xf32, #tpu.memory_space<vmem>>, vector<8x16x128xf32>
    %76 = vector.shape_cast %75 : vector<8x16x128xf32> to vector<128x128xf32>
    %c0_95 = arith.constant 0 : index
    %c0_96 = arith.constant 0 : index
    %c0_97 = arith.constant 0 : index
    %c0_98 = arith.constant 0 : index
    %77 = vector.load %arg3[%c0_95, %c0_96, %c0_97, %c0_98] : memref<3x9x128x128xf32, #tpu.memory_space<vmem>>, vector<1x1x128x128xf32>
    %78 = vector.shape_cast %77 : vector<1x1x128x128xf32> to vector<128x128xf32>
    %cst_99 = arith.constant dense<0.000000e+00> : vector<128x128xf32>
    %79 = tpu.matmul %76, %78, %cst_99 {dimension_numbers = #tpu.dot_dimension_numbers<[1], [0], [0], [1], [0, 0, 1, 1], [], []>} : vector<128x128xf32>, vector<128x128xf32>, vector<128x128xf32> -> vector<128x128xf32>
    %80 = arith.addf %74, %79 : vector<128x128xf32>
    %c8_100 = arith.constant 8 : index
    %c1_101 = arith.constant 1 : index
    %c0_102 = arith.constant 0 : index
    %81 = vector.load %arg23[%c8_100, %c1_101, %c0_102] : memref<18x18x128xf32, #tpu.memory_space<vmem>>, vector<8x16x128xf32>
    %82 = vector.shape_cast %81 : vector<8x16x128xf32> to vector<128x128xf32>
    %c0_103 = arith.constant 0 : index
    %c1_104 = arith.constant 1 : index
    %c0_105 = arith.constant 0 : index
    %c0_106 = arith.constant 0 : index
    %83 = vector.load %arg3[%c0_103, %c1_104, %c0_105, %c0_106] : memref<3x9x128x128xf32, #tpu.memory_space<vmem>>, vector<1x1x128x128xf32>
    %84 = vector.shape_cast %83 : vector<1x1x128x128xf32> to vector<128x128xf32>
    %cst_107 = arith.constant dense<0.000000e+00> : vector<128x128xf32>
    %85 = tpu.matmul %82, %84, %cst_107 {dimension_numbers = #tpu.dot_dimension_numbers<[1], [0], [0], [1], [0, 0, 1, 1], [], []>} : vector<128x128xf32>, vector<128x128xf32>, vector<128x128xf32> -> vector<128x128xf32>
    %86 = arith.addf %80, %85 : vector<128x128xf32>
    %c8_108 = arith.constant 8 : index
    %c2_109 = arith.constant 2 : index
    %c0_110 = arith.constant 0 : index
    %87 = vector.load %arg23[%c8_108, %c2_109, %c0_110] : memref<18x18x128xf32, #tpu.memory_space<vmem>>, vector<8x16x128xf32>
    %88 = vector.shape_cast %87 : vector<8x16x128xf32> to vector<128x128xf32>
    %c0_111 = arith.constant 0 : index
    %c2_112 = arith.constant 2 : index
    %c0_113 = arith.constant 0 : index
    %c0_114 = arith.constant 0 : index
    %89 = vector.load %arg3[%c0_111, %c2_112, %c0_113, %c0_114] : memref<3x9x128x128xf32, #tpu.memory_space<vmem>>, vector<1x1x128x128xf32>
    %90 = vector.shape_cast %89 : vector<1x1x128x128xf32> to vector<128x128xf32>
    %cst_115 = arith.constant dense<0.000000e+00> : vector<128x128xf32>
    %91 = tpu.matmul %88, %90, %cst_115 {dimension_numbers = #tpu.dot_dimension_numbers<[1], [0], [0], [1], [0, 0, 1, 1], [], []>} : vector<128x128xf32>, vector<128x128xf32>, vector<128x128xf32> -> vector<128x128xf32>
    %92 = arith.addf %86, %91 : vector<128x128xf32>
    %c9_116 = arith.constant 9 : index
    %c0_117 = arith.constant 0 : index
    %c0_118 = arith.constant 0 : index
    %93 = vector.load %arg23[%c9_116, %c0_117, %c0_118] : memref<18x18x128xf32, #tpu.memory_space<vmem>>, vector<8x16x128xf32>
    %94 = vector.shape_cast %93 : vector<8x16x128xf32> to vector<128x128xf32>
    %c0_119 = arith.constant 0 : index
    %c3_120 = arith.constant 3 : index
    %c0_121 = arith.constant 0 : index
    %c0_122 = arith.constant 0 : index
    %95 = vector.load %arg3[%c0_119, %c3_120, %c0_121, %c0_122] : memref<3x9x128x128xf32, #tpu.memory_space<vmem>>, vector<1x1x128x128xf32>
    %96 = vector.shape_cast %95 : vector<1x1x128x128xf32> to vector<128x128xf32>
    %cst_123 = arith.constant dense<0.000000e+00> : vector<128x128xf32>
    %97 = tpu.matmul %94, %96, %cst_123 {dimension_numbers = #tpu.dot_dimension_numbers<[1], [0], [0], [1], [0, 0, 1, 1], [], []>} : vector<128x128xf32>, vector<128x128xf32>, vector<128x128xf32> -> vector<128x128xf32>
    %98 = arith.addf %92, %97 : vector<128x128xf32>
    %c9_124 = arith.constant 9 : index
    %c1_125 = arith.constant 1 : index
    %c0_126 = arith.constant 0 : index
    %99 = vector.load %arg23[%c9_124, %c1_125, %c0_126] : memref<18x18x128xf32, #tpu.memory_space<vmem>>, vector<8x16x128xf32>
    %100 = vector.shape_cast %99 : vector<8x16x128xf32> to vector<128x128xf32>
    %c0_127 = arith.constant 0 : index
    %c4_128 = arith.constant 4 : index
    %c0_129 = arith.constant 0 : index
    %c0_130 = arith.constant 0 : index
    %101 = vector.load %arg3[%c0_127, %c4_128, %c0_129, %c0_130] : memref<3x9x128x128xf32, #tpu.memory_space<vmem>>, vector<1x1x128x128xf32>
    %102 = vector.shape_cast %101 : vector<1x1x128x128xf32> to vector<128x128xf32>
    %cst_131 = arith.constant dense<0.000000e+00> : vector<128x128xf32>
    %103 = tpu.matmul %100, %102, %cst_131 {dimension_numbers = #tpu.dot_dimension_numbers<[1], [0], [0], [1], [0, 0, 1, 1], [], []>} : vector<128x128xf32>, vector<128x128xf32>, vector<128x128xf32> -> vector<128x128xf32>
    %104 = arith.addf %98, %103 : vector<128x128xf32>
    %c9_132 = arith.constant 9 : index
    %c2_133 = arith.constant 2 : index
    %c0_134 = arith.constant 0 : index
    %105 = vector.load %arg23[%c9_132, %c2_133, %c0_134] : memref<18x18x128xf32, #tpu.memory_space<vmem>>, vector<8x16x128xf32>
    %106 = vector.shape_cast %105 : vector<8x16x128xf32> to vector<128x128xf32>
    %c0_135 = arith.constant 0 : index
    %c5_136 = arith.constant 5 : index
    %c0_137 = arith.constant 0 : index
    %c0_138 = arith.constant 0 : index
    %107 = vector.load %arg3[%c0_135, %c5_136, %c0_137, %c0_138] : memref<3x9x128x128xf32, #tpu.memory_space<vmem>>, vector<1x1x128x128xf32>
    %108 = vector.shape_cast %107 : vector<1x1x128x128xf32> to vector<128x128xf32>
    %cst_139 = arith.constant dense<0.000000e+00> : vector<128x128xf32>
    %109 = tpu.matmul %106, %108, %cst_139 {dimension_numbers = #tpu.dot_dimension_numbers<[1], [0], [0], [1], [0, 0, 1, 1], [], []>} : vector<128x128xf32>, vector<128x128xf32>, vector<128x128xf32> -> vector<128x128xf32>
    %110 = arith.addf %104, %109 : vector<128x128xf32>
    %c10 = arith.constant 10 : index
    %c0_140 = arith.constant 0 : index
    %c0_141 = arith.constant 0 : index
    %111 = vector.load %arg23[%c10, %c0_140, %c0_141] : memref<18x18x128xf32, #tpu.memory_space<vmem>>, vector<8x16x128xf32>
    %112 = vector.shape_cast %111 : vector<8x16x128xf32> to vector<128x128xf32>
    %c0_142 = arith.constant 0 : index
    %c6_143 = arith.constant 6 : index
    %c0_144 = arith.constant 0 : index
    %c0_145 = arith.constant 0 : index
    %113 = vector.load %arg3[%c0_142, %c6_143, %c0_144, %c0_145] : memref<3x9x128x128xf32, #tpu.memory_space<vmem>>, vector<1x1x128x128xf32>
    %114 = vector.shape_cast %113 : vector<1x1x128x128xf32> to vector<128x128xf32>
    %cst_146 = arith.constant dense<0.000000e+00> : vector<128x128xf32>
    %115 = tpu.matmul %112, %114, %cst_146 {dimension_numbers = #tpu.dot_dimension_numbers<[1], [0], [0], [1], [0, 0, 1, 1], [], []>} : vector<128x128xf32>, vector<128x128xf32>, vector<128x128xf32> -> vector<128x128xf32>
    %116 = arith.addf %110, %115 : vector<128x128xf32>
    %c10_147 = arith.constant 10 : index
    %c1_148 = arith.constant 1 : index
    %c0_149 = arith.constant 0 : index
    %117 = vector.load %arg23[%c10_147, %c1_148, %c0_149] : memref<18x18x128xf32, #tpu.memory_space<vmem>>, vector<8x16x128xf32>
    %118 = vector.shape_cast %117 : vector<8x16x128xf32> to vector<128x128xf32>
    %c0_150 = arith.constant 0 : index
    %c7_151 = arith.constant 7 : index
    %c0_152 = arith.constant 0 : index
    %c0_153 = arith.constant 0 : index
    %119 = vector.load %arg3[%c0_150, %c7_151, %c0_152, %c0_153] : memref<3x9x128x128xf32, #tpu.memory_space<vmem>>, vector<1x1x128x128xf32>
    %120 = vector.shape_cast %119 : vector<1x1x128x128xf32> to vector<128x128xf32>
    %cst_154 = arith.constant dense<0.000000e+00> : vector<128x128xf32>
    %121 = tpu.matmul %118, %120, %cst_154 {dimension_numbers = #tpu.dot_dimension_numbers<[1], [0], [0], [1], [0, 0, 1, 1], [], []>} : vector<128x128xf32>, vector<128x128xf32>, vector<128x128xf32> -> vector<128x128xf32>
    %122 = arith.addf %116, %121 : vector<128x128xf32>
    %c10_155 = arith.constant 10 : index
    %c2_156 = arith.constant 2 : index
    %c0_157 = arith.constant 0 : index
    %123 = vector.load %arg23[%c10_155, %c2_156, %c0_157] : memref<18x18x128xf32, #tpu.memory_space<vmem>>, vector<8x16x128xf32>
    %124 = vector.shape_cast %123 : vector<8x16x128xf32> to vector<128x128xf32>
    %c0_158 = arith.constant 0 : index
    %c8_159 = arith.constant 8 : index
    %c0_160 = arith.constant 0 : index
    %c0_161 = arith.constant 0 : index
    %125 = vector.load %arg3[%c0_158, %c8_159, %c0_160, %c0_161] : memref<3x9x128x128xf32, #tpu.memory_space<vmem>>, vector<1x1x128x128xf32>
    %126 = vector.shape_cast %125 : vector<1x1x128x128xf32> to vector<128x128xf32>
    %cst_162 = arith.constant dense<0.000000e+00> : vector<128x128xf32>
    %127 = tpu.matmul %124, %126, %cst_162 {dimension_numbers = #tpu.dot_dimension_numbers<[1], [0], [0], [1], [0, 0, 1, 1], [], []>} : vector<128x128xf32>, vector<128x128xf32>, vector<128x128xf32> -> vector<128x128xf32>
    %128 = arith.addf %122, %127 : vector<128x128xf32>
    %c0_163 = arith.constant 0 : index
    %c0_164 = arith.constant 0 : index
    %c0_165 = arith.constant 0 : index
    %129 = vector.load %arg4[%c0_163, %c0_164, %c0_165] : memref<3x1x128xf32, #tpu.memory_space<vmem>>, vector<1x1x128xf32>
    %130 = vector.shape_cast %129 : vector<1x1x128xf32> to vector<1x128xf32>
    %131 = vector.broadcast %130 : vector<1x128xf32> to vector<128x128xf32>
    %132 = arith.addf %128, %131 : vector<128x128xf32>
    %cst_166 = arith.constant 5.000000e-02 : f32
    %133 = vector.broadcast %cst_166 : f32 to vector<128x128xf32>
    %134 = arith.mulf %133, %132 : vector<128x128xf32>
    %135 = arith.maximumf %132, %134 : vector<128x128xf32>
    %136 = vector.shape_cast %135 : vector<128x128xf32> to vector<8x16x128xf32>
    %c9_167 = arith.constant 9 : index
    %c1_168 = arith.constant 1 : index
    %c0_169 = arith.constant 0 : index
    %137 = vector.load %arg24[%c9_167, %c1_168, %c0_169] : memref<18x18x128xf32, #tpu.memory_space<vmem>>, vector<8x16x128xf32>
    tpu.vector_store %arg24[%c9_167, %c1_168, %c0_169], %136 {strides = array<i32>} : memref<18x18x128xf32, #tpu.memory_space<vmem>>, vector<8x16x128xf32>,
    %cst_170 = arith.constant 0.000000e+00 : f32
    %138 = vector.broadcast %cst_170 : f32 to vector<128x128xf32>
    %c0_171 = arith.constant 0 : index
    %c0_172 = arith.constant 0 : index
    %c0_173 = arith.constant 0 : index
    %139 = vector.load %arg24[%c0_171, %c0_172, %c0_173] : memref<18x18x128xf32, #tpu.memory_space<vmem>>, vector<8x16x128xf32>
    %140 = vector.shape_cast %139 : vector<8x16x128xf32> to vector<128x128xf32>
    %c1_174 = arith.constant 1 : index
    %c0_175 = arith.constant 0 : index
    %c0_176 = arith.constant 0 : index
    %c0_177 = arith.constant 0 : index
    %141 = vector.load %arg3[%c1_174, %c0_175, %c0_176, %c0_177] : memref<3x9x128x128xf32, #tpu.memory_space<vmem>>, vector<1x1x128x128xf32>
    %142 = vector.shape_cast %141 : vector<1x1x128x128xf32> to vector<128x128xf32>
    %cst_178 = arith.constant dense<0.000000e+00> : vector<128x128xf32>
    %143 = tpu.matmul %140, %142, %cst_178 {dimension_numbers = #tpu.dot_dimension_numbers<[1], [0], [0], [1], [0, 0, 1, 1], [], []>} : vector<128x128xf32>, vector<128x128xf32>, vector<128x128xf32> -> vector<128x128xf32>
    %144 = arith.addf %138, %143 : vector<128x128xf32>
    %c0_179 = arith.constant 0 : index
    %c1_180 = arith.constant 1 : index
    %c0_181 = arith.constant 0 : index
    %145 = vector.load %arg24[%c0_179, %c1_180, %c0_181] : memref<18x18x128xf32, #tpu.memory_space<vmem>>, vector<8x16x128xf32>
    %146 = vector.shape_cast %145 : vector<8x16x128xf32> to vector<128x128xf32>
    %c1_182 = arith.constant 1 : index
    %c1_183 = arith.constant 1 : index
    %c0_184 = arith.constant 0 : index
    %c0_185 = arith.constant 0 : index
    %147 = vector.load %arg3[%c1_182, %c1_183, %c0_184, %c0_185] : memref<3x9x128x128xf32, #tpu.memory_space<vmem>>, vector<1x1x128x128xf32>
    %148 = vector.shape_cast %147 : vector<1x1x128x128xf32> to vector<128x128xf32>
    %cst_186 = arith.constant dense<0.000000e+00> : vector<128x128xf32>
    %149 = tpu.matmul %146, %148, %cst_186 {dimension_numbers = #tpu.dot_dimension_numbers<[1], [0], [0], [1], [0, 0, 1, 1], [], []>} : vector<128x128xf32>, vector<128x128xf32>, vector<128x128xf32> -> vector<128x128xf32>
    %150 = arith.addf %144, %149 : vector<128x128xf32>
    %c0_187 = arith.constant 0 : index
    %c2_188 = arith.constant 2 : index
    %c0_189 = arith.constant 0 : index
    %151 = vector.load %arg24[%c0_187, %c2_188, %c0_189] : memref<18x18x128xf32, #tpu.memory_space<vmem>>, vector<8x16x128xf32>
    %152 = vector.shape_cast %151 : vector<8x16x128xf32> to vector<128x128xf32>
    %c1_190 = arith.constant 1 : index
    %c2_191 = arith.constant 2 : index
    %c0_192 = arith.constant 0 : index
    %c0_193 = arith.constant 0 : index
    %153 = vector.load %arg3[%c1_190, %c2_191, %c0_192, %c0_193] : memref<3x9x128x128xf32, #tpu.memory_space<vmem>>, vector<1x1x128x128xf32>
    %154 = vector.shape_cast %153 : vector<1x1x128x128xf32> to vector<128x128xf32>
    %cst_194 = arith.constant dense<0.000000e+00> : vector<128x128xf32>
    %155 = tpu.matmul %152, %154, %cst_194 {dimension_numbers = #tpu.dot_dimension_numbers<[1], [0], [0], [1], [0, 0, 1, 1], [], []>} : vector<128x128xf32>, vector<128x128xf32>, vector<128x128xf32> -> vector<128x128xf32>
    %156 = arith.addf %150, %155 : vector<128x128xf32>
    %c1_195 = arith.constant 1 : index
    %c0_196 = arith.constant 0 : index
    %c0_197 = arith.constant 0 : index
    %157 = vector.load %arg24[%c1_195, %c0_196, %c0_197] : memref<18x18x128xf32, #tpu.memory_space<vmem>>, vector<8x16x128xf32>
    %158 = vector.shape_cast %157 : vector<8x16x128xf32> to vector<128x128xf32>
    %c1_198 = arith.constant 1 : index
    %c3_199 = arith.constant 3 : index
    %c0_200 = arith.constant 0 : index
    %c0_201 = arith.constant 0 : index
    %159 = vector.load %arg3[%c1_198, %c3_199, %c0_200, %c0_201] : memref<3x9x128x128xf32, #tpu.memory_space<vmem>>, vector<1x1x128x128xf32>
    %160 = vector.shape_cast %159 : vector<1x1x128x128xf32> to vector<128x128xf32>
    %cst_202 = arith.constant dense<0.000000e+00> : vector<128x128xf32>
    %161 = tpu.matmul %158, %160, %cst_202 {dimension_numbers = #tpu.dot_dimension_numbers<[1], [0], [0], [1], [0, 0, 1, 1], [], []>} : vector<128x128xf32>, vector<128x128xf32>, vector<128x128xf32> -> vector<128x128xf32>
    %162 = arith.addf %156, %161 : vector<128x128xf32>
    %c1_203 = arith.constant 1 : index
    %c1_204 = arith.constant 1 : index
    %c0_205 = arith.constant 0 : index
    %163 = vector.load %arg24[%c1_203, %c1_204, %c0_205] : memref<18x18x128xf32, #tpu.memory_space<vmem>>, vector<8x16x128xf32>
    %164 = vector.shape_cast %163 : vector<8x16x128xf32> to vector<128x128xf32>
    %c1_206 = arith.constant 1 : index
    %c4_207 = arith.constant 4 : index
    %c0_208 = arith.constant 0 : index
    %c0_209 = arith.constant 0 : index
    %165 = vector.load %arg3[%c1_206, %c4_207, %c0_208, %c0_209] : memref<3x9x128x128xf32, #tpu.memory_space<vmem>>, vector<1x1x128x128xf32>
    %166 = vector.shape_cast %165 : vector<1x1x128x128xf32> to vector<128x128xf32>
    %cst_210 = arith.constant dense<0.000000e+00> : vector<128x128xf32>
    %167 = tpu.matmul %164, %166, %cst_210 {dimension_numbers = #tpu.dot_dimension_numbers<[1], [0], [0], [1], [0, 0, 1, 1], [], []>} : vector<128x128xf32>, vector<128x128xf32>, vector<128x128xf32> -> vector<128x128xf32>
    %168 = arith.addf %162, %167 : vector<128x128xf32>
    %c1_211 = arith.constant 1 : index
    %c2_212 = arith.constant 2 : index
    %c0_213 = arith.constant 0 : index
    %169 = vector.load %arg24[%c1_211, %c2_212, %c0_213] : memref<18x18x128xf32, #tpu.memory_space<vmem>>, vector<8x16x128xf32>
    %170 = vector.shape_cast %169 : vector<8x16x128xf32> to vector<128x128xf32>
    %c1_214 = arith.constant 1 : index
    %c5_215 = arith.constant 5 : index
    %c0_216 = arith.constant 0 : index
    %c0_217 = arith.constant 0 : index
    %171 = vector.load %arg3[%c1_214, %c5_215, %c0_216, %c0_217] : memref<3x9x128x128xf32, #tpu.memory_space<vmem>>, vector<1x1x128x128xf32>
    %172 = vector.shape_cast %171 : vector<1x1x128x128xf32> to vector<128x128xf32>
    %cst_218 = arith.constant dense<0.000000e+00> : vector<128x128xf32>
    %173 = tpu.matmul %170, %172, %cst_218 {dimension_numbers = #tpu.dot_dimension_numbers<[1], [0], [0], [1], [0, 0, 1, 1], [], []>} : vector<128x128xf32>, vector<128x128xf32>, vector<128x128xf32> -> vector<128x128xf32>
    %174 = arith.addf %168, %173 : vector<128x128xf32>
    %c2_219 = arith.constant 2 : index
    %c0_220 = arith.constant 0 : index
    %c0_221 = arith.constant 0 : index
    %175 = vector.load %arg24[%c2_219, %c0_220, %c0_221] : memref<18x18x128xf32, #tpu.memory_space<vmem>>, vector<8x16x128xf32>
    %176 = vector.shape_cast %175 : vector<8x16x128xf32> to vector<128x128xf32>
    %c1_222 = arith.constant 1 : index
    %c6_223 = arith.constant 6 : index
    %c0_224 = arith.constant 0 : index
    %c0_225 = arith.constant 0 : index
    %177 = vector.load %arg3[%c1_222, %c6_223, %c0_224, %c0_225] : memref<3x9x128x128xf32, #tpu.memory_space<vmem>>, vector<1x1x128x128xf32>
    %178 = vector.shape_cast %177 : vector<1x1x128x128xf32> to vector<128x128xf32>
    %cst_226 = arith.constant dense<0.000000e+00> : vector<128x128xf32>
    %179 = tpu.matmul %176, %178, %cst_226 {dimension_numbers = #tpu.dot_dimension_numbers<[1], [0], [0], [1], [0, 0, 1, 1], [], []>} : vector<128x128xf32>, vector<128x128xf32>, vector<128x128xf32> -> vector<128x128xf32>
    %180 = arith.addf %174, %179 : vector<128x128xf32>
    %c2_227 = arith.constant 2 : index
    %c1_228 = arith.constant 1 : index
    %c0_229 = arith.constant 0 : index
    %181 = vector.load %arg24[%c2_227, %c1_228, %c0_229] : memref<18x18x128xf32, #tpu.memory_space<vmem>>, vector<8x16x128xf32>
    %182 = vector.shape_cast %181 : vector<8x16x128xf32> to vector<128x128xf32>
    %c1_230 = arith.constant 1 : index
    %c7_231 = arith.constant 7 : index
    %c0_232 = arith.constant 0 : index
    %c0_233 = arith.constant 0 : index
    %183 = vector.load %arg3[%c1_230, %c7_231, %c0_232, %c0_233] : memref<3x9x128x128xf32, #tpu.memory_space<vmem>>, vector<1x1x128x128xf32>
    %184 = vector.shape_cast %183 : vector<1x1x128x128xf32> to vector<128x128xf32>
    %cst_234 = arith.constant dense<0.000000e+00> : vector<128x128xf32>
    %185 = tpu.matmul %182, %184, %cst_234 {dimension_numbers = #tpu.dot_dimension_numbers<[1], [0], [0], [1], [0, 0, 1, 1], [], []>} : vector<128x128xf32>, vector<128x128xf32>, vector<128x128xf32> -> vector<128x128xf32>
    %186 = arith.addf %180, %185 : vector<128x128xf32>
    %c2_235 = arith.constant 2 : index
    %c2_236 = arith.constant 2 : index
    %c0_237 = arith.constant 0 : index
    %187 = vector.load %arg24[%c2_235, %c2_236, %c0_237] : memref<18x18x128xf32, #tpu.memory_space<vmem>>, vector<8x16x128xf32>
    %188 = vector.shape_cast %187 : vector<8x16x128xf32> to vector<128x128xf32>
    %c1_238 = arith.constant 1 : index
    %c8_239 = arith.constant 8 : index
    %c0_240 = arith.constant 0 : index
    %c0_241 = arith.constant 0 : index
    %189 = vector.load %arg3[%c1_238, %c8_239, %c0_240, %c0_241] : memref<3x9x128x128xf32, #tpu.memory_space<vmem>>, vector<1x1x128x128xf32>
    %190 = vector.shape_cast %189 : vector<1x1x128x128xf32> to vector<128x128xf32>
    %cst_242 = arith.constant dense<0.000000e+00> : vector<128x128xf32>
    %191 = tpu.matmul %188, %190, %cst_242 {dimension_numbers = #tpu.dot_dimension_numbers<[1], [0], [0], [1], [0, 0, 1, 1], [], []>} : vector<128x128xf32>, vector<128x128xf32>, vector<128x128xf32> -> vector<128x128xf32>
    %192 = arith.addf %186, %191 : vector<128x128xf32>
    %c1_243 = arith.constant 1 : index
    %c0_244 = arith.constant 0 : index
    %c0_245 = arith.constant 0 : index
    %193 = vector.load %arg4[%c1_243, %c0_244, %c0_245] : memref<3x1x128xf32, #tpu.memory_space<vmem>>, vector<1x1x128xf32>
    %194 = vector.shape_cast %193 : vector<1x1x128xf32> to vector<1x128xf32>
    %195 = vector.broadcast %194 : vector<1x128xf32> to vector<128x128xf32>
    %196 = arith.addf %192, %195 : vector<128x128xf32>
    %cst_246 = arith.constant 5.000000e-02 : f32
    %197 = vector.broadcast %cst_246 : f32 to vector<128x128xf32>
    %198 = arith.mulf %197, %196 : vector<128x128xf32>
    %199 = arith.maximumf %196, %198 : vector<128x128xf32>
    %200 = vector.shape_cast %199 : vector<128x128xf32> to vector<8x16x128xf32>
    %c1_247 = arith.constant 1 : index
    %c1_248 = arith.constant 1 : index
    %c0_249 = arith.constant 0 : index
    %201 = vector.load %arg23[%c1_247, %c1_248, %c0_249] : memref<18x18x128xf32, #tpu.memory_space<vmem>>, vector<8x16x128xf32>
    tpu.vector_store %arg23[%c1_247, %c1_248, %c0_249], %200 {strides = array<i32>} : memref<18x18x128xf32, #tpu.memory_space<vmem>>, vector<8x16x128xf32>,
    %cst_250 = arith.constant 0.000000e+00 : f32
    %202 = vector.broadcast %cst_250 : f32 to vector<128x128xf32>
    %c8_251 = arith.constant 8 : index
    %c0_252 = arith.constant 0 : index
    %c0_253 = arith.constant 0 : index
    %203 = vector.load %arg24[%c8_251, %c0_252, %c0_253] : memref<18x18x128xf32, #tpu.memory_space<vmem>>, vector<8x16x128xf32>
    %204 = vector.shape_cast %203 : vector<8x16x128xf32> to vector<128x128xf32>
    %c1_254 = arith.constant 1 : index
    %c0_255 = arith.constant 0 : index
    %c0_256 = arith.constant 0 : index
    %c0_257 = arith.constant 0 : index
    %205 = vector.load %arg3[%c1_254, %c0_255, %c0_256, %c0_257] : memref<3x9x128x128xf32, #tpu.memory_space<vmem>>, vector<1x1x128x128xf32>
    %206 = vector.shape_cast %205 : vector<1x1x128x128xf32> to vector<128x128xf32>
    %cst_258 = arith.constant dense<0.000000e+00> : vector<128x128xf32>
    %207 = tpu.matmul %204, %206, %cst_258 {dimension_numbers = #tpu.dot_dimension_numbers<[1], [0], [0], [1], [0, 0, 1, 1], [], []>} : vector<128x128xf32>, vector<128x128xf32>, vector<128x128xf32> -> vector<128x128xf32>
    %208 = arith.addf %202, %207 : vector<128x128xf32>
    %c8_259 = arith.constant 8 : index
    %c1_260 = arith.constant 1 : index
    %c0_261 = arith.constant 0 : index
    %209 = vector.load %arg24[%c8_259, %c1_260, %c0_261] : memref<18x18x128xf32, #tpu.memory_space<vmem>>, vector<8x16x128xf32>
    %210 = vector.shape_cast %209 : vector<8x16x128xf32> to vector<128x128xf32>
    %c1_262 = arith.constant 1 : index
    %c1_263 = arith.constant 1 : index
    %c0_264 = arith.constant 0 : index
    %c0_265 = arith.constant 0 : index
    %211 = vector.load %arg3[%c1_262, %c1_263, %c0_264, %c0_265] : memref<3x9x128x128xf32, #tpu.memory_space<vmem>>, vector<1x1x128x128xf32>
    %212 = vector.shape_cast %211 : vector<1x1x128x128xf32> to vector<128x128xf32>
    %cst_266 = arith.constant dense<0.000000e+00> : vector<128x128xf32>
    %213 = tpu.matmul %210, %212, %cst_266 {dimension_numbers = #tpu.dot_dimension_numbers<[1], [0], [0], [1], [0, 0, 1, 1], [], []>} : vector<128x128xf32>, vector<128x128xf32>, vector<128x128xf32> -> vector<128x128xf32>
    %214 = arith.addf %208, %213 : vector<128x128xf32>
    %c8_267 = arith.constant 8 : index
    %c2_268 = arith.constant 2 : index
    %c0_269 = arith.constant 0 : index
    %215 = vector.load %arg24[%c8_267, %c2_268, %c0_269] : memref<18x18x128xf32, #tpu.memory_space<vmem>>, vector<8x16x128xf32>
    %216 = vector.shape_cast %215 : vector<8x16x128xf32> to vector<128x128xf32>
    %c1_270 = arith.constant 1 : index
    %c2_271 = arith.constant 2 : index
    %c0_272 = arith.constant 0 : index
    %c0_273 = arith.constant 0 : index
    %217 = vector.load %arg3[%c1_270, %c2_271, %c0_272, %c0_273] : memref<3x9x128x128xf32, #tpu.memory_space<vmem>>, vector<1x1x128x128xf32>
    %218 = vector.shape_cast %217 : vector<1x1x128x128xf32> to vector<128x128xf32>
    %cst_274 = arith.constant dense<0.000000e+00> : vector<128x128xf32>
    %219 = tpu.matmul %216, %218, %cst_274 {dimension_numbers = #tpu.dot_dimension_numbers<[1], [0], [0], [1], [0, 0, 1, 1], [], []>} : vector<128x128xf32>, vector<128x128xf32>, vector<128x128xf32> -> vector<128x128xf32>
    %220 = arith.addf %214, %219 : vector<128x128xf32>
    %c9_275 = arith.constant 9 : index
    %c0_276 = arith.constant 0 : index
    %c0_277 = arith.constant 0 : index
    %221 = vector.load %arg24[%c9_275, %c0_276, %c0_277] : memref<18x18x128xf32, #tpu.memory_space<vmem>>, vector<8x16x128xf32>
    %222 = vector.shape_cast %221 : vector<8x16x128xf32> to vector<128x128xf32>
    %c1_278 = arith.constant 1 : index
    %c3_279 = arith.constant 3 : index
    %c0_280 = arith.constant 0 : index
    %c0_281 = arith.constant 0 : index
    %223 = vector.load %arg3[%c1_278, %c3_279, %c0_280, %c0_281] : memref<3x9x128x128xf32, #tpu.memory_space<vmem>>, vector<1x1x128x128xf32>
    %224 = vector.shape_cast %223 : vector<1x1x128x128xf32> to vector<128x128xf32>
    %cst_282 = arith.constant dense<0.000000e+00> : vector<128x128xf32>
    %225 = tpu.matmul %222, %224, %cst_282 {dimension_numbers = #tpu.dot_dimension_numbers<[1], [0], [0], [1], [0, 0, 1, 1], [], []>} : vector<128x128xf32>, vector<128x128xf32>, vector<128x128xf32> -> vector<128x128xf32>
    %226 = arith.addf %220, %225 : vector<128x128xf32>
    %c9_283 = arith.constant 9 : index
    %c1_284 = arith.constant 1 : index
    %c0_285 = arith.constant 0 : index
    %227 = vector.load %arg24[%c9_283, %c1_284, %c0_285] : memref<18x18x128xf32, #tpu.memory_space<vmem>>, vector<8x16x128xf32>
    %228 = vector.shape_cast %227 : vector<8x16x128xf32> to vector<128x128xf32>
    %c1_286 = arith.constant 1 : index
    %c4_287 = arith.constant 4 : index
    %c0_288 = arith.constant 0 : index
    %c0_289 = arith.constant 0 : index
    %229 = vector.load %arg3[%c1_286, %c4_287, %c0_288, %c0_289] : memref<3x9x128x128xf32, #tpu.memory_space<vmem>>, vector<1x1x128x128xf32>
    %230 = vector.shape_cast %229 : vector<1x1x128x128xf32> to vector<128x128xf32>
    %cst_290 = arith.constant dense<0.000000e+00> : vector<128x128xf32>
    %231 = tpu.matmul %228, %230, %cst_290 {dimension_numbers = #tpu.dot_dimension_numbers<[1], [0], [0], [1], [0, 0, 1, 1], [], []>} : vector<128x128xf32>, vector<128x128xf32>, vector<128x128xf32> -> vector<128x128xf32>
    %232 = arith.addf %226, %231 : vector<128x128xf32>
    %c9_291 = arith.constant 9 : index
    %c2_292 = arith.constant 2 : index
    %c0_293 = arith.constant 0 : index
    %233 = vector.load %arg24[%c9_291, %c2_292, %c0_293] : memref<18x18x128xf32, #tpu.memory_space<vmem>>, vector<8x16x128xf32>
    %234 = vector.shape_cast %233 : vector<8x16x128xf32> to vector<128x128xf32>
    %c1_294 = arith.constant 1 : index
    %c5_295 = arith.constant 5 : index
    %c0_296 = arith.constant 0 : index
    %c0_297 = arith.constant 0 : index
    %235 = vector.load %arg3[%c1_294, %c5_295, %c0_296, %c0_297] : memref<3x9x128x128xf32, #tpu.memory_space<vmem>>, vector<1x1x128x128xf32>
    %236 = vector.shape_cast %235 : vector<1x1x128x128xf32> to vector<128x128xf32>
    %cst_298 = arith.constant dense<0.000000e+00> : vector<128x128xf32>
    %237 = tpu.matmul %234, %236, %cst_298 {dimension_numbers = #tpu.dot_dimension_numbers<[1], [0], [0], [1], [0, 0, 1, 1], [], []>} : vector<128x128xf32>, vector<128x128xf32>, vector<128x128xf32> -> vector<128x128xf32>
    %238 = arith.addf %232, %237 : vector<128x128xf32>
    %c10_299 = arith.constant 10 : index
    %c0_300 = arith.constant 0 : index
    %c0_301 = arith.constant 0 : index
    %239 = vector.load %arg24[%c10_299, %c0_300, %c0_301] : memref<18x18x128xf32, #tpu.memory_space<vmem>>, vector<8x16x128xf32>
    %240 = vector.shape_cast %239 : vector<8x16x128xf32> to vector<128x128xf32>
    %c1_302 = arith.constant 1 : index
    %c6_303 = arith.constant 6 : index
    %c0_304 = arith.constant 0 : index
    %c0_305 = arith.constant 0 : index
    %241 = vector.load %arg3[%c1_302, %c6_303, %c0_304, %c0_305] : memref<3x9x128x128xf32, #tpu.memory_space<vmem>>, vector<1x1x128x128xf32>
    %242 = vector.shape_cast %241 : vector<1x1x128x128xf32> to vector<128x128xf32>
    %cst_306 = arith.constant dense<0.000000e+00> : vector<128x128xf32>
    %243 = tpu.matmul %240, %242, %cst_306 {dimension_numbers = #tpu.dot_dimension_numbers<[1], [0], [0], [1], [0, 0, 1, 1], [], []>} : vector<128x128xf32>, vector<128x128xf32>, vector<128x128xf32> -> vector<128x128xf32>
    %244 = arith.addf %238, %243 : vector<128x128xf32>
    %c10_307 = arith.constant 10 : index
    %c1_308 = arith.constant 1 : index
    %c0_309 = arith.constant 0 : index
    %245 = vector.load %arg24[%c10_307, %c1_308, %c0_309] : memref<18x18x128xf32, #tpu.memory_space<vmem>>, vector<8x16x128xf32>
    %246 = vector.shape_cast %245 : vector<8x16x128xf32> to vector<128x128xf32>
    %c1_310 = arith.constant 1 : index
    %c7_311 = arith.constant 7 : index
    %c0_312 = arith.constant 0 : index
    %c0_313 = arith.constant 0 : index
    %247 = vector.load %arg3[%c1_310, %c7_311, %c0_312, %c0_313] : memref<3x9x128x128xf32, #tpu.memory_space<vmem>>, vector<1x1x128x128xf32>
    %248 = vector.shape_cast %247 : vector<1x1x128x128xf32> to vector<128x128xf32>
    %cst_314 = arith.constant dense<0.000000e+00> : vector<128x128xf32>
    %249 = tpu.matmul %246, %248, %cst_314 {dimension_numbers = #tpu.dot_dimension_numbers<[1], [0], [0], [1], [0, 0, 1, 1], [], []>} : vector<128x128xf32>, vector<128x128xf32>, vector<128x128xf32> -> vector<128x128xf32>
    %250 = arith.addf %244, %249 : vector<128x128xf32>
    %c10_315 = arith.constant 10 : index
    %c2_316 = arith.constant 2 : index
    %c0_317 = arith.constant 0 : index
    %251 = vector.load %arg24[%c10_315, %c2_316, %c0_317] : memref<18x18x128xf32, #tpu.memory_space<vmem>>, vector<8x16x128xf32>
    %252 = vector.shape_cast %251 : vector<8x16x128xf32> to vector<128x128xf32>
    %c1_318 = arith.constant 1 : index
    %c8_319 = arith.constant 8 : index
    %c0_320 = arith.constant 0 : index
    %c0_321 = arith.constant 0 : index
    %253 = vector.load %arg3[%c1_318, %c8_319, %c0_320, %c0_321] : memref<3x9x128x128xf32, #tpu.memory_space<vmem>>, vector<1x1x128x128xf32>
    %254 = vector.shape_cast %253 : vector<1x1x128x128xf32> to vector<128x128xf32>
    %cst_322 = arith.constant dense<0.000000e+00> : vector<128x128xf32>
    %255 = tpu.matmul %252, %254, %cst_322 {dimension_numbers = #tpu.dot_dimension_numbers<[1], [0], [0], [1], [0, 0, 1, 1], [], []>} : vector<128x128xf32>, vector<128x128xf32>, vector<128x128xf32> -> vector<128x128xf32>
    %256 = arith.addf %250, %255 : vector<128x128xf32>
    %c1_323 = arith.constant 1 : index
    %c0_324 = arith.constant 0 : index
    %c0_325 = arith.constant 0 : index
    %257 = vector.load %arg4[%c1_323, %c0_324, %c0_325] : memref<3x1x128xf32, #tpu.memory_space<vmem>>, vector<1x1x128xf32>
    %258 = vector.shape_cast %257 : vector<1x1x128xf32> to vector<1x128xf32>
    %259 = vector.broadcast %258 : vector<1x128xf32> to vector<128x128xf32>
    %260 = arith.addf %256, %259 : vector<128x128xf32>
    %cst_326 = arith.constant 5.000000e-02 : f32
    %261 = vector.broadcast %cst_326 : f32 to vector<128x128xf32>
    %262 = arith.mulf %261, %260 : vector<128x128xf32>
    %263 = arith.maximumf %260, %262 : vector<128x128xf32>
    %264 = vector.shape_cast %263 : vector<128x128xf32> to vector<8x16x128xf32>
    %c9_327 = arith.constant 9 : index
    %c1_328 = arith.constant 1 : index
    %c0_329 = arith.constant 0 : index
    %265 = vector.load %arg23[%c9_327, %c1_328, %c0_329] : memref<18x18x128xf32, #tpu.memory_space<vmem>>, vector<8x16x128xf32>
    tpu.vector_store %arg23[%c9_327, %c1_328, %c0_329], %264 {strides = array<i32>} : memref<18x18x128xf32, #tpu.memory_space<vmem>>, vector<8x16x128xf32>,
    %cst_330 = arith.constant 0.000000e+00 : f32
    %266 = vector.broadcast %cst_330 : f32 to vector<128x128xf32>
    %c0_331 = arith.constant 0 : index
    %c0_332 = arith.constant 0 : index
    %c0_333 = arith.constant 0 : index
    %267 = vector.load %arg23[%c0_331, %c0_332, %c0_333] : memref<18x18x128xf32, #tpu.memory_space<vmem>>, vector<8x16x128xf32>
    %268 = vector.shape_cast %267 : vector<8x16x128xf32> to vector<128x128xf32>
    %c2_334 = arith.constant 2 : index
    %c0_335 = arith.constant 0 : index
    %c0_336 = arith.constant 0 : index
    %c0_337 = arith.constant 0 : index
    %269 = vector.load %arg3[%c2_334, %c0_335, %c0_336, %c0_337] : memref<3x9x128x128xf32, #tpu.memory_space<vmem>>, vector<1x1x128x128xf32>
    %270 = vector.shape_cast %269 : vector<1x1x128x128xf32> to vector<128x128xf32>
    %cst_338 = arith.constant dense<0.000000e+00> : vector<128x128xf32>
    %271 = tpu.matmul %268, %270, %cst_338 {dimension_numbers = #tpu.dot_dimension_numbers<[1], [0], [0], [1], [0, 0, 1, 1], [], []>} : vector<128x128xf32>, vector<128x128xf32>, vector<128x128xf32> -> vector<128x128xf32>
    %272 = arith.addf %266, %271 : vector<128x128xf32>
    %c0_339 = arith.constant 0 : index
    %c1_340 = arith.constant 1 : index
    %c0_341 = arith.constant 0 : index
    %273 = vector.load %arg23[%c0_339, %c1_340, %c0_341] : memref<18x18x128xf32, #tpu.memory_space<vmem>>, vector<8x16x128xf32>
    %274 = vector.shape_cast %273 : vector<8x16x128xf32> to vector<128x128xf32>
    %c2_342 = arith.constant 2 : index
    %c1_343 = arith.constant 1 : index
    %c0_344 = arith.constant 0 : index
    %c0_345 = arith.constant 0 : index
    %275 = vector.load %arg3[%c2_342, %c1_343, %c0_344, %c0_345] : memref<3x9x128x128xf32, #tpu.memory_space<vmem>>, vector<1x1x128x128xf32>
    %276 = vector.shape_cast %275 : vector<1x1x128x128xf32> to vector<128x128xf32>
    %cst_346 = arith.constant dense<0.000000e+00> : vector<128x128xf32>
    %277 = tpu.matmul %274, %276, %cst_346 {dimension_numbers = #tpu.dot_dimension_numbers<[1], [0], [0], [1], [0, 0, 1, 1], [], []>} : vector<128x128xf32>, vector<128x128xf32>, vector<128x128xf32> -> vector<128x128xf32>
    %278 = arith.addf %272, %277 : vector<128x128xf32>
    %c0_347 = arith.constant 0 : index
    %c2_348 = arith.constant 2 : index
    %c0_349 = arith.constant 0 : index
    %279 = vector.load %arg23[%c0_347, %c2_348, %c0_349] : memref<18x18x128xf32, #tpu.memory_space<vmem>>, vector<8x16x128xf32>
    %280 = vector.shape_cast %279 : vector<8x16x128xf32> to vector<128x128xf32>
    %c2_350 = arith.constant 2 : index
    %c2_351 = arith.constant 2 : index
    %c0_352 = arith.constant 0 : index
    %c0_353 = arith.constant 0 : index
    %281 = vector.load %arg3[%c2_350, %c2_351, %c0_352, %c0_353] : memref<3x9x128x128xf32, #tpu.memory_space<vmem>>, vector<1x1x128x128xf32>
    %282 = vector.shape_cast %281 : vector<1x1x128x128xf32> to vector<128x128xf32>
    %cst_354 = arith.constant dense<0.000000e+00> : vector<128x128xf32>
    %283 = tpu.matmul %280, %282, %cst_354 {dimension_numbers = #tpu.dot_dimension_numbers<[1], [0], [0], [1], [0, 0, 1, 1], [], []>} : vector<128x128xf32>, vector<128x128xf32>, vector<128x128xf32> -> vector<128x128xf32>
    %284 = arith.addf %278, %283 : vector<128x128xf32>
    %c1_355 = arith.constant 1 : index
    %c0_356 = arith.constant 0 : index
    %c0_357 = arith.constant 0 : index
    %285 = vector.load %arg23[%c1_355, %c0_356, %c0_357] : memref<18x18x128xf32, #tpu.memory_space<vmem>>, vector<8x16x128xf32>
    %286 = vector.shape_cast %285 : vector<8x16x128xf32> to vector<128x128xf32>
    %c2_358 = arith.constant 2 : index
    %c3_359 = arith.constant 3 : index
    %c0_360 = arith.constant 0 : index
    %c0_361 = arith.constant 0 : index
    %287 = vector.load %arg3[%c2_358, %c3_359, %c0_360, %c0_361] : memref<3x9x128x128xf32, #tpu.memory_space<vmem>>, vector<1x1x128x128xf32>
    %288 = vector.shape_cast %287 : vector<1x1x128x128xf32> to vector<128x128xf32>
    %cst_362 = arith.constant dense<0.000000e+00> : vector<128x128xf32>
    %289 = tpu.matmul %286, %288, %cst_362 {dimension_numbers = #tpu.dot_dimension_numbers<[1], [0], [0], [1], [0, 0, 1, 1], [], []>} : vector<128x128xf32>, vector<128x128xf32>, vector<128x128xf32> -> vector<128x128xf32>
    %290 = arith.addf %284, %289 : vector<128x128xf32>
    %c1_363 = arith.constant 1 : index
    %c1_364 = arith.constant 1 : index
    %c0_365 = arith.constant 0 : index
    %291 = vector.load %arg23[%c1_363, %c1_364, %c0_365] : memref<18x18x128xf32, #tpu.memory_space<vmem>>, vector<8x16x128xf32>
    %292 = vector.shape_cast %291 : vector<8x16x128xf32> to vector<128x128xf32>
    %c2_366 = arith.constant 2 : index
    %c4_367 = arith.constant 4 : index
    %c0_368 = arith.constant 0 : index
    %c0_369 = arith.constant 0 : index
    %293 = vector.load %arg3[%c2_366, %c4_367, %c0_368, %c0_369] : memref<3x9x128x128xf32, #tpu.memory_space<vmem>>, vector<1x1x128x128xf32>
    %294 = vector.shape_cast %293 : vector<1x1x128x128xf32> to vector<128x128xf32>
    %cst_370 = arith.constant dense<0.000000e+00> : vector<128x128xf32>
    %295 = tpu.matmul %292, %294, %cst_370 {dimension_numbers = #tpu.dot_dimension_numbers<[1], [0], [0], [1], [0, 0, 1, 1], [], []>} : vector<128x128xf32>, vector<128x128xf32>, vector<128x128xf32> -> vector<128x128xf32>
    %296 = arith.addf %290, %295 : vector<128x128xf32>
    %c1_371 = arith.constant 1 : index
    %c2_372 = arith.constant 2 : index
    %c0_373 = arith.constant 0 : index
    %297 = vector.load %arg23[%c1_371, %c2_372, %c0_373] : memref<18x18x128xf32, #tpu.memory_space<vmem>>, vector<8x16x128xf32>
    %298 = vector.shape_cast %297 : vector<8x16x128xf32> to vector<128x128xf32>
    %c2_374 = arith.constant 2 : index
    %c5_375 = arith.constant 5 : index
    %c0_376 = arith.constant 0 : index
    %c0_377 = arith.constant 0 : index
    %299 = vector.load %arg3[%c2_374, %c5_375, %c0_376, %c0_377] : memref<3x9x128x128xf32, #tpu.memory_space<vmem>>, vector<1x1x128x128xf32>
    %300 = vector.shape_cast %299 : vector<1x1x128x128xf32> to vector<128x128xf32>
    %cst_378 = arith.constant dense<0.000000e+00> : vector<128x128xf32>
    %301 = tpu.matmul %298, %300, %cst_378 {dimension_numbers = #tpu.dot_dimension_numbers<[1], [0], [0], [1], [0, 0, 1, 1], [], []>} : vector<128x128xf32>, vector<128x128xf32>, vector<128x128xf32> -> vector<128x128xf32>
    %302 = arith.addf %296, %301 : vector<128x128xf32>
    %c2_379 = arith.constant 2 : index
    %c0_380 = arith.constant 0 : index
    %c0_381 = arith.constant 0 : index
    %303 = vector.load %arg23[%c2_379, %c0_380, %c0_381] : memref<18x18x128xf32, #tpu.memory_space<vmem>>, vector<8x16x128xf32>
    %304 = vector.shape_cast %303 : vector<8x16x128xf32> to vector<128x128xf32>
    %c2_382 = arith.constant 2 : index
    %c6_383 = arith.constant 6 : index
    %c0_384 = arith.constant 0 : index
    %c0_385 = arith.constant 0 : index
    %305 = vector.load %arg3[%c2_382, %c6_383, %c0_384, %c0_385] : memref<3x9x128x128xf32, #tpu.memory_space<vmem>>, vector<1x1x128x128xf32>
    %306 = vector.shape_cast %305 : vector<1x1x128x128xf32> to vector<128x128xf32>
    %cst_386 = arith.constant dense<0.000000e+00> : vector<128x128xf32>
    %307 = tpu.matmul %304, %306, %cst_386 {dimension_numbers = #tpu.dot_dimension_numbers<[1], [0], [0], [1], [0, 0, 1, 1], [], []>} : vector<128x128xf32>, vector<128x128xf32>, vector<128x128xf32> -> vector<128x128xf32>
    %308 = arith.addf %302, %307 : vector<128x128xf32>
    %c2_387 = arith.constant 2 : index
    %c1_388 = arith.constant 1 : index
    %c0_389 = arith.constant 0 : index
    %309 = vector.load %arg23[%c2_387, %c1_388, %c0_389] : memref<18x18x128xf32, #tpu.memory_space<vmem>>, vector<8x16x128xf32>
    %310 = vector.shape_cast %309 : vector<8x16x128xf32> to vector<128x128xf32>
    %c2_390 = arith.constant 2 : index
    %c7_391 = arith.constant 7 : index
    %c0_392 = arith.constant 0 : index
    %c0_393 = arith.constant 0 : index
    %311 = vector.load %arg3[%c2_390, %c7_391, %c0_392, %c0_393] : memref<3x9x128x128xf32, #tpu.memory_space<vmem>>, vector<1x1x128x128xf32>
    %312 = vector.shape_cast %311 : vector<1x1x128x128xf32> to vector<128x128xf32>
    %cst_394 = arith.constant dense<0.000000e+00> : vector<128x128xf32>
    %313 = tpu.matmul %310, %312, %cst_394 {dimension_numbers = #tpu.dot_dimension_numbers<[1], [0], [0], [1], [0, 0, 1, 1], [], []>} : vector<128x128xf32>, vector<128x128xf32>, vector<128x128xf32> -> vector<128x128xf32>
    %314 = arith.addf %308, %313 : vector<128x128xf32>
    %c2_395 = arith.constant 2 : index
    %c2_396 = arith.constant 2 : index
    %c0_397 = arith.constant 0 : index
    %315 = vector.load %arg23[%c2_395, %c2_396, %c0_397] : memref<18x18x128xf32, #tpu.memory_space<vmem>>, vector<8x16x128xf32>
    %316 = vector.shape_cast %315 : vector<8x16x128xf32> to vector<128x128xf32>
    %c2_398 = arith.constant 2 : index
    %c8_399 = arith.constant 8 : index
    %c0_400 = arith.constant 0 : index
    %c0_401 = arith.constant 0 : index
    %317 = vector.load %arg3[%c2_398, %c8_399, %c0_400, %c0_401] : memref<3x9x128x128xf32, #tpu.memory_space<vmem>>, vector<1x1x128x128xf32>
    %318 = vector.shape_cast %317 : vector<1x1x128x128xf32> to vector<128x128xf32>
    %cst_402 = arith.constant dense<0.000000e+00> : vector<128x128xf32>
    %319 = tpu.matmul %316, %318, %cst_402 {dimension_numbers = #tpu.dot_dimension_numbers<[1], [0], [0], [1], [0, 0, 1, 1], [], []>} : vector<128x128xf32>, vector<128x128xf32>, vector<128x128xf32> -> vector<128x128xf32>
    %320 = arith.addf %314, %319 : vector<128x128xf32>
    %c2_403 = arith.constant 2 : index
    %c0_404 = arith.constant 0 : index
    %c0_405 = arith.constant 0 : index
    %321 = vector.load %arg4[%c2_403, %c0_404, %c0_405] : memref<3x1x128xf32, #tpu.memory_space<vmem>>, vector<1x1x128xf32>
    %322 = vector.shape_cast %321 : vector<1x1x128xf32> to vector<1x128xf32>
    %323 = vector.broadcast %322 : vector<1x128xf32> to vector<128x128xf32>
    %324 = arith.addf %320, %323 : vector<128x128xf32>
    %325 = vector.shape_cast %324 : vector<128x128xf32> to vector<8x16x128xf32>
    %c0_406 = arith.constant 0 : index
    %c0_407 = arith.constant 0 : index
    %c0_408 = arith.constant 0 : index
    %326 = vector.load %arg25[%c0_406, %c0_407, %c0_408] : memref<16x16x128xf32, #tpu.memory_space<vmem>>, vector<8x16x128xf32>
    tpu.vector_store %arg25[%c0_406, %c0_407, %c0_408], %325 {strides = array<i32>} : memref<16x16x128xf32, #tpu.memory_space<vmem>>, vector<8x16x128xf32>,
    %cst_409 = arith.constant 0.000000e+00 : f32
    %327 = vector.broadcast %cst_409 : f32 to vector<128x128xf32>
    %c8_410 = arith.constant 8 : index
    %c0_411 = arith.constant 0 : index
    %c0_412 = arith.constant 0 : index
    %328 = vector.load %arg23[%c8_410, %c0_411, %c0_412] : memref<18x18x128xf32, #tpu.memory_space<vmem>>, vector<8x16x128xf32>
    %329 = vector.shape_cast %328 : vector<8x16x128xf32> to vector<128x128xf32>
    %c2_413 = arith.constant 2 : index
    %c0_414 = arith.constant 0 : index
    %c0_415 = arith.constant 0 : index
    %c0_416 = arith.constant 0 : index
    %330 = vector.load %arg3[%c2_413, %c0_414, %c0_415, %c0_416] : memref<3x9x128x128xf32, #tpu.memory_space<vmem>>, vector<1x1x128x128xf32>
    %331 = vector.shape_cast %330 : vector<1x1x128x128xf32> to vector<128x128xf32>
    %cst_417 = arith.constant dense<0.000000e+00> : vector<128x128xf32>
    %332 = tpu.matmul %329, %331, %cst_417 {dimension_numbers = #tpu.dot_dimension_numbers<[1], [0], [0], [1], [0, 0, 1, 1], [], []>} : vector<128x128xf32>, vector<128x128xf32>, vector<128x128xf32> -> vector<128x128xf32>
    %333 = arith.addf %327, %332 : vector<128x128xf32>
    %c8_418 = arith.constant 8 : index
    %c1_419 = arith.constant 1 : index
    %c0_420 = arith.constant 0 : index
    %334 = vector.load %arg23[%c8_418, %c1_419, %c0_420] : memref<18x18x128xf32, #tpu.memory_space<vmem>>, vector<8x16x128xf32>
    %335 = vector.shape_cast %334 : vector<8x16x128xf32> to vector<128x128xf32>
    %c2_421 = arith.constant 2 : index
    %c1_422 = arith.constant 1 : index
    %c0_423 = arith.constant 0 : index
    %c0_424 = arith.constant 0 : index
    %336 = vector.load %arg3[%c2_421, %c1_422, %c0_423, %c0_424] : memref<3x9x128x128xf32, #tpu.memory_space<vmem>>, vector<1x1x128x128xf32>
    %337 = vector.shape_cast %336 : vector<1x1x128x128xf32> to vector<128x128xf32>
    %cst_425 = arith.constant dense<0.000000e+00> : vector<128x128xf32>
    %338 = tpu.matmul %335, %337, %cst_425 {dimension_numbers = #tpu.dot_dimension_numbers<[1], [0], [0], [1], [0, 0, 1, 1], [], []>} : vector<128x128xf32>, vector<128x128xf32>, vector<128x128xf32> -> vector<128x128xf32>
    %339 = arith.addf %333, %338 : vector<128x128xf32>
    %c8_426 = arith.constant 8 : index
    %c2_427 = arith.constant 2 : index
    %c0_428 = arith.constant 0 : index
    %340 = vector.load %arg23[%c8_426, %c2_427, %c0_428] : memref<18x18x128xf32, #tpu.memory_space<vmem>>, vector<8x16x128xf32>
    %341 = vector.shape_cast %340 : vector<8x16x128xf32> to vector<128x128xf32>
    %c2_429 = arith.constant 2 : index
    %c2_430 = arith.constant 2 : index
    %c0_431 = arith.constant 0 : index
    %c0_432 = arith.constant 0 : index
    %342 = vector.load %arg3[%c2_429, %c2_430, %c0_431, %c0_432] : memref<3x9x128x128xf32, #tpu.memory_space<vmem>>, vector<1x1x128x128xf32>
    %343 = vector.shape_cast %342 : vector<1x1x128x128xf32> to vector<128x128xf32>
    %cst_433 = arith.constant dense<0.000000e+00> : vector<128x128xf32>
    %344 = tpu.matmul %341, %343, %cst_433 {dimension_numbers = #tpu.dot_dimension_numbers<[1], [0], [0], [1], [0, 0, 1, 1], [], []>} : vector<128x128xf32>, vector<128x128xf32>, vector<128x128xf32> -> vector<128x128xf32>
    %345 = arith.addf %339, %344 : vector<128x128xf32>
    %c9_434 = arith.constant 9 : index
    %c0_435 = arith.constant 0 : index
    %c0_436 = arith.constant 0 : index
    %346 = vector.load %arg23[%c9_434, %c0_435, %c0_436] : memref<18x18x128xf32, #tpu.memory_space<vmem>>, vector<8x16x128xf32>
    %347 = vector.shape_cast %346 : vector<8x16x128xf32> to vector<128x128xf32>
    %c2_437 = arith.constant 2 : index
    %c3_438 = arith.constant 3 : index
    %c0_439 = arith.constant 0 : index
    %c0_440 = arith.constant 0 : index
    %348 = vector.load %arg3[%c2_437, %c3_438, %c0_439, %c0_440] : memref<3x9x128x128xf32, #tpu.memory_space<vmem>>, vector<1x1x128x128xf32>
    %349 = vector.shape_cast %348 : vector<1x1x128x128xf32> to vector<128x128xf32>
    %cst_441 = arith.constant dense<0.000000e+00> : vector<128x128xf32>
    %350 = tpu.matmul %347, %349, %cst_441 {dimension_numbers = #tpu.dot_dimension_numbers<[1], [0], [0], [1], [0, 0, 1, 1], [], []>} : vector<128x128xf32>, vector<128x128xf32>, vector<128x128xf32> -> vector<128x128xf32>
    %351 = arith.addf %345, %350 : vector<128x128xf32>
    %c9_442 = arith.constant 9 : index
    %c1_443 = arith.constant 1 : index
    %c0_444 = arith.constant 0 : index
    %352 = vector.load %arg23[%c9_442, %c1_443, %c0_444] : memref<18x18x128xf32, #tpu.memory_space<vmem>>, vector<8x16x128xf32>
    %353 = vector.shape_cast %352 : vector<8x16x128xf32> to vector<128x128xf32>
    %c2_445 = arith.constant 2 : index
    %c4_446 = arith.constant 4 : index
    %c0_447 = arith.constant 0 : index
    %c0_448 = arith.constant 0 : index
    %354 = vector.load %arg3[%c2_445, %c4_446, %c0_447, %c0_448] : memref<3x9x128x128xf32, #tpu.memory_space<vmem>>, vector<1x1x128x128xf32>
    %355 = vector.shape_cast %354 : vector<1x1x128x128xf32> to vector<128x128xf32>
    %cst_449 = arith.constant dense<0.000000e+00> : vector<128x128xf32>
    %356 = tpu.matmul %353, %355, %cst_449 {dimension_numbers = #tpu.dot_dimension_numbers<[1], [0], [0], [1], [0, 0, 1, 1], [], []>} : vector<128x128xf32>, vector<128x128xf32>, vector<128x128xf32> -> vector<128x128xf32>
    %357 = arith.addf %351, %356 : vector<128x128xf32>
    %c9_450 = arith.constant 9 : index
    %c2_451 = arith.constant 2 : index
    %c0_452 = arith.constant 0 : index
    %358 = vector.load %arg23[%c9_450, %c2_451, %c0_452] : memref<18x18x128xf32, #tpu.memory_space<vmem>>, vector<8x16x128xf32>
    %359 = vector.shape_cast %358 : vector<8x16x128xf32> to vector<128x128xf32>
    %c2_453 = arith.constant 2 : index
    %c5_454 = arith.constant 5 : index
    %c0_455 = arith.constant 0 : index
    %c0_456 = arith.constant 0 : index
    %360 = vector.load %arg3[%c2_453, %c5_454, %c0_455, %c0_456] : memref<3x9x128x128xf32, #tpu.memory_space<vmem>>, vector<1x1x128x128xf32>
    %361 = vector.shape_cast %360 : vector<1x1x128x128xf32> to vector<128x128xf32>
    %cst_457 = arith.constant dense<0.000000e+00> : vector<128x128xf32>
    %362 = tpu.matmul %359, %361, %cst_457 {dimension_numbers = #tpu.dot_dimension_numbers<[1], [0], [0], [1], [0, 0, 1, 1], [], []>} : vector<128x128xf32>, vector<128x128xf32>, vector<128x128xf32> -> vector<128x128xf32>
    %363 = arith.addf %357, %362 : vector<128x128xf32>
    %c10_458 = arith.constant 10 : index
    %c0_459 = arith.constant 0 : index
    %c0_460 = arith.constant 0 : index
    %364 = vector.load %arg23[%c10_458, %c0_459, %c0_460] : memref<18x18x128xf32, #tpu.memory_space<vmem>>, vector<8x16x128xf32>
    %365 = vector.shape_cast %364 : vector<8x16x128xf32> to vector<128x128xf32>
    %c2_461 = arith.constant 2 : index
    %c6_462 = arith.constant 6 : index
    %c0_463 = arith.constant 0 : index
    %c0_464 = arith.constant 0 : index
    %366 = vector.load %arg3[%c2_461, %c6_462, %c0_463, %c0_464] : memref<3x9x128x128xf32, #tpu.memory_space<vmem>>, vector<1x1x128x128xf32>
    %367 = vector.shape_cast %366 : vector<1x1x128x128xf32> to vector<128x128xf32>
    %cst_465 = arith.constant dense<0.000000e+00> : vector<128x128xf32>
    %368 = tpu.matmul %365, %367, %cst_465 {dimension_numbers = #tpu.dot_dimension_numbers<[1], [0], [0], [1], [0, 0, 1, 1], [], []>} : vector<128x128xf32>, vector<128x128xf32>, vector<128x128xf32> -> vector<128x128xf32>
    %369 = arith.addf %363, %368 : vector<128x128xf32>
    %c10_466 = arith.constant 10 : index
    %c1_467 = arith.constant 1 : index
    %c0_468 = arith.constant 0 : index
    %370 = vector.load %arg23[%c10_466, %c1_467, %c0_468] : memref<18x18x128xf32, #tpu.memory_space<vmem>>, vector<8x16x128xf32>
    %371 = vector.shape_cast %370 : vector<8x16x128xf32> to vector<128x128xf32>
    %c2_469 = arith.constant 2 : index
    %c7_470 = arith.constant 7 : index
    %c0_471 = arith.constant 0 : index
    %c0_472 = arith.constant 0 : index
    %372 = vector.load %arg3[%c2_469, %c7_470, %c0_471, %c0_472] : memref<3x9x128x128xf32, #tpu.memory_space<vmem>>, vector<1x1x128x128xf32>
    %373 = vector.shape_cast %372 : vector<1x1x128x128xf32> to vector<128x128xf32>
    %cst_473 = arith.constant dense<0.000000e+00> : vector<128x128xf32>
    %374 = tpu.matmul %371, %373, %cst_473 {dimension_numbers = #tpu.dot_dimension_numbers<[1], [0], [0], [1], [0, 0, 1, 1], [], []>} : vector<128x128xf32>, vector<128x128xf32>, vector<128x128xf32> -> vector<128x128xf32>
    %375 = arith.addf %369, %374 : vector<128x128xf32>
    %c10_474 = arith.constant 10 : index
    %c2_475 = arith.constant 2 : index
    %c0_476 = arith.constant 0 : index
    %376 = vector.load %arg23[%c10_474, %c2_475, %c0_476] : memref<18x18x128xf32, #tpu.memory_space<vmem>>, vector<8x16x128xf32>
    %377 = vector.shape_cast %376 : vector<8x16x128xf32> to vector<128x128xf32>
    %c2_477 = arith.constant 2 : index
    %c8_478 = arith.constant 8 : index
    %c0_479 = arith.constant 0 : index
    %c0_480 = arith.constant 0 : index
    %378 = vector.load %arg3[%c2_477, %c8_478, %c0_479, %c0_480] : memref<3x9x128x128xf32, #tpu.memory_space<vmem>>, vector<1x1x128x128xf32>
    %379 = vector.shape_cast %378 : vector<1x1x128x128xf32> to vector<128x128xf32>
    %cst_481 = arith.constant dense<0.000000e+00> : vector<128x128xf32>
    %380 = tpu.matmul %377, %379, %cst_481 {dimension_numbers = #tpu.dot_dimension_numbers<[1], [0], [0], [1], [0, 0, 1, 1], [], []>} : vector<128x128xf32>, vector<128x128xf32>, vector<128x128xf32> -> vector<128x128xf32>
    %381 = arith.addf %375, %380 : vector<128x128xf32>
    %c2_482 = arith.constant 2 : index
    %c0_483 = arith.constant 0 : index
    %c0_484 = arith.constant 0 : index
    %382 = vector.load %arg4[%c2_482, %c0_483, %c0_484] : memref<3x1x128xf32, #tpu.memory_space<vmem>>, vector<1x1x128xf32>
    %383 = vector.shape_cast %382 : vector<1x1x128xf32> to vector<1x128xf32>
    %384 = vector.broadcast %383 : vector<1x128xf32> to vector<128x128xf32>
    %385 = arith.addf %381, %384 : vector<128x128xf32>
    %386 = vector.shape_cast %385 : vector<128x128xf32> to vector<8x16x128xf32>
    %c8_485 = arith.constant 8 : index
    %c0_486 = arith.constant 0 : index
    %c0_487 = arith.constant 0 : index
    %387 = vector.load %arg25[%c8_485, %c0_486, %c0_487] : memref<16x16x128xf32, #tpu.memory_space<vmem>>, vector<8x16x128xf32>
    tpu.vector_store %arg25[%c8_485, %c0_486, %c0_487], %386 {strides = array<i32>} : memref<16x16x128xf32, #tpu.memory_space<vmem>>, vector<8x16x128xf32>,
    %cst_488 = arith.constant 0.000000e+00 : f32
    %388 = vector.broadcast %cst_488 : f32 to vector<1x128xf32>
    %cst_489 = arith.constant 0.000000e+00 : f32
    %389 = vector.broadcast %cst_489 : f32 to vector<1x128xf32>
    %c0_490 = arith.constant 0 : index
    %c0_491 = arith.constant 0 : index
    %c0_492 = arith.constant 0 : index
    %390 = vector.load %arg25[%c0_490, %c0_491, %c0_492] : memref<16x16x128xf32, #tpu.memory_space<vmem>>, vector<8x16x128xf32>
    %391 = vector.shape_cast %390 : vector<8x16x128xf32> to vector<128x128xf32>
    %cst_493 = arith.constant dense<0.000000e+00> : vector<128xf32>
    %392 = vector.multi_reduction <add>, %391, %cst_493 [0] : vector<128x128xf32> to vector<128xf32>
    %393 = vector.shape_cast %392 : vector<128xf32> to vector<1x128xf32>
    %394 = arith.addf %388, %393 : vector<1x128xf32>
    %c0_494 = arith.constant 0 : index
    %c0_495 = arith.constant 0 : index
    %c0_496 = arith.constant 0 : index
    %c0_497 = arith.constant 0 : index
    %395 = vector.load %arg2[%c0_494, %c0_495, %c0_496, %c0_497] : memref<1x16x16x128xf32, #tpu.memory_space<vmem>>, vector<1x8x16x128xf32>
    %396 = vector.shape_cast %395 : vector<1x8x16x128xf32> to vector<8x16x128xf32>
    %397 = vector.shape_cast %396 : vector<8x16x128xf32> to vector<128x128xf32>
    %cst_498 = arith.constant dense<0.000000e+00> : vector<128xf32>
    %398 = vector.multi_reduction <add>, %397, %cst_498 [0] : vector<128x128xf32> to vector<128xf32>
    %399 = vector.shape_cast %398 : vector<128xf32> to vector<1x128xf32>
    %400 = arith.addf %389, %399 : vector<1x128xf32>
    %c8_499 = arith.constant 8 : index
    %c0_500 = arith.constant 0 : index
    %c0_501 = arith.constant 0 : index
    %401 = vector.load %arg25[%c8_499, %c0_500, %c0_501] : memref<16x16x128xf32, #tpu.memory_space<vmem>>, vector<8x16x128xf32>
    %402 = vector.shape_cast %401 : vector<8x16x128xf32> to vector<128x128xf32>
    %cst_502 = arith.constant dense<0.000000e+00> : vector<128xf32>
    %403 = vector.multi_reduction <add>, %402, %cst_502 [0] : vector<128x128xf32> to vector<128xf32>
    %404 = vector.shape_cast %403 : vector<128xf32> to vector<1x128xf32>
    %405 = arith.addf %394, %404 : vector<1x128xf32>
    %c0_503 = arith.constant 0 : index
    %c8_504 = arith.constant 8 : index
    %c0_505 = arith.constant 0 : index
    %c0_506 = arith.constant 0 : index
    %406 = vector.load %arg2[%c0_503, %c8_504, %c0_505, %c0_506] : memref<1x16x16x128xf32, #tpu.memory_space<vmem>>, vector<1x8x16x128xf32>
    %407 = vector.shape_cast %406 : vector<1x8x16x128xf32> to vector<8x16x128xf32>
    %408 = vector.shape_cast %407 : vector<8x16x128xf32> to vector<128x128xf32>
    %cst_507 = arith.constant dense<0.000000e+00> : vector<128xf32>
    %409 = vector.multi_reduction <add>, %408, %cst_507 [0] : vector<128x128xf32> to vector<128xf32>
    %410 = vector.shape_cast %409 : vector<128xf32> to vector<1x128xf32>
    %411 = arith.addf %400, %410 : vector<1x128xf32>
    %cst_508 = arith.constant 3.906250e-03 : f32
    %412 = vector.broadcast %cst_508 : f32 to vector<1x128xf32>
    %413 = arith.mulf %405, %412 : vector<1x128xf32>
    %cst_509 = arith.constant 3.906250e-03 : f32
    %414 = vector.broadcast %cst_509 : f32 to vector<1x128xf32>
    %415 = arith.mulf %411, %414 : vector<1x128xf32>
    %c0_510 = arith.constant 0 : index
    %c0_511 = arith.constant 0 : index
    %416 = vector.load %arg5[%c0_510, %c0_511] : memref<128x128xf32, #tpu.memory_space<vmem>>, vector<128x128xf32>
    %cst_512 = arith.constant dense<0.000000e+00> : vector<1x128xf32>
    %417 = tpu.matmul %413, %416, %cst_512 {dimension_numbers = #tpu.dot_dimension_numbers<[1], [0], [0], [1], [0, 0, 1, 1], [], []>} : vector<1x128xf32>, vector<128x128xf32>, vector<1x128xf32> -> vector<1x128xf32>
    %c0_513 = arith.constant 0 : index
    %c0_514 = arith.constant 0 : index
    %418 = vector.load %arg6[%c0_513, %c0_514] : memref<1x128xf32, #tpu.memory_space<vmem>>, vector<1x128xf32>
    %419 = arith.addf %417, %418 : vector<1x128xf32>
    %cst_515 = arith.constant 0.000000e+00 : f32
    %420 = vector.broadcast %cst_515 : f32 to vector<1x128xf32>
    %421 = arith.maximumf %419, %420 : vector<1x128xf32>
    %c0_516 = arith.constant 0 : index
    %c0_517 = arith.constant 0 : index
    %422 = vector.load %arg7[%c0_516, %c0_517] : memref<128x128xf32, #tpu.memory_space<vmem>>, vector<128x128xf32>
    %cst_518 = arith.constant dense<0.000000e+00> : vector<1x128xf32>
    %423 = tpu.matmul %421, %422, %cst_518 {dimension_numbers = #tpu.dot_dimension_numbers<[1], [0], [0], [1], [0, 0, 1, 1], [], []>} : vector<1x128xf32>, vector<128x128xf32>, vector<1x128xf32> -> vector<1x128xf32>
    %c0_519 = arith.constant 0 : index
    %c0_520 = arith.constant 0 : index
    %424 = vector.load %arg8[%c0_519, %c0_520] : memref<1x128xf32, #tpu.memory_space<vmem>>, vector<1x128xf32>
    %425 = arith.addf %423, %424 : vector<1x128xf32>
    %426 = arith.negf %425 : vector<1x128xf32>
    %427 = math.exp %426 : vector<1x128xf32>
    %cst_521 = arith.constant 1.000000e+00 : f32
    %428 = vector.broadcast %cst_521 : f32 to vector<1x128xf32>
    %429 = arith.addf %428, %427 : vector<1x128xf32>
    %430 = arith.divf %428, %429 : vector<1x128xf32>
    %c0_522 = arith.constant 0 : index
    %c0_523 = arith.constant 0 : index
    %431 = vector.load %arg9[%c0_522, %c0_523] : memref<128x128xf32, #tpu.memory_space<vmem>>, vector<128x128xf32>
    %cst_524 = arith.constant dense<0.000000e+00> : vector<1x128xf32>
    %432 = tpu.matmul %415, %431, %cst_524 {dimension_numbers = #tpu.dot_dimension_numbers<[1], [0], [0], [1], [0, 0, 1, 1], [], []>} : vector<1x128xf32>, vector<128x128xf32>, vector<1x128xf32> -> vector<1x128xf32>
    %c0_525 = arith.constant 0 : index
    %c0_526 = arith.constant 0 : index
    %433 = vector.load %arg10[%c0_525, %c0_526] : memref<1x128xf32, #tpu.memory_space<vmem>>, vector<1x128xf32>
    %434 = arith.addf %432, %433 : vector<1x128xf32>
    %cst_527 = arith.constant 0.000000e+00 : f32
    %435 = vector.broadcast %cst_527 : f32 to vector<1x128xf32>
    %436 = arith.maximumf %434, %435 : vector<1x128xf32>
    %c0_528 = arith.constant 0 : index
    %c0_529 = arith.constant 0 : index
    %437 = vector.load %arg11[%c0_528, %c0_529] : memref<128x128xf32, #tpu.memory_space<vmem>>, vector<128x128xf32>
    %cst_530 = arith.constant dense<0.000000e+00> : vector<1x128xf32>
    %438 = tpu.matmul %436, %437, %cst_530 {dimension_numbers = #tpu.dot_dimension_numbers<[1], [0], [0], [1], [0, 0, 1, 1], [], []>} : vector<1x128xf32>, vector<128x128xf32>, vector<1x128xf32> -> vector<1x128xf32>
    %c0_531 = arith.constant 0 : index
    %c0_532 = arith.constant 0 : index
    %439 = vector.load %arg12[%c0_531, %c0_532] : memref<1x128xf32, #tpu.memory_space<vmem>>, vector<1x128xf32>
    %440 = arith.addf %438, %439 : vector<1x128xf32>
    %441 = arith.negf %440 : vector<1x128xf32>
    %442 = math.exp %441 : vector<1x128xf32>
    %cst_533 = arith.constant 1.000000e+00 : f32
    %443 = vector.broadcast %cst_533 : f32 to vector<1x128xf32>
    %444 = arith.addf %443, %442 : vector<1x128xf32>
    %445 = arith.divf %443, %444 : vector<1x128xf32>
    %c0_534 = arith.constant 0 : index
    %c0_535 = arith.constant 0 : index
    %c0_536 = arith.constant 0 : index
    %446 = vector.load %arg25[%c0_534, %c0_535, %c0_536] : memref<16x16x128xf32, #tpu.memory_space<vmem>>, vector<8x16x128xf32>
    %447 = vector.shape_cast %446 : vector<8x16x128xf32> to vector<128x128xf32>
    %c0_537 = arith.constant 0 : index
    %c0_538 = arith.constant 0 : index
    %c0_539 = arith.constant 0 : index
    %c0_540 = arith.constant 0 : index
    %448 = vector.load %arg2[%c0_537, %c0_538, %c0_539, %c0_540] : memref<1x16x16x128xf32, #tpu.memory_space<vmem>>, vector<1x8x16x128xf32>
    %449 = vector.shape_cast %448 : vector<1x8x16x128xf32> to vector<8x16x128xf32>
    %450 = vector.shape_cast %449 : vector<8x16x128xf32> to vector<128x128xf32>
    %c0_541 = arith.constant 0 : index
    %c0_542 = arith.constant 0 : index
    %451 = vector.load %arg13[%c0_541, %c0_542] : memref<128x128xf32, #tpu.memory_space<vmem>>, vector<128x128xf32>
    %cst_543 = arith.constant dense<0.000000e+00> : vector<128x128xf32>
    %452 = tpu.matmul %450, %451, %cst_543 {dimension_numbers = #tpu.dot_dimension_numbers<[1], [0], [0], [1], [0, 0, 1, 1], [], []>} : vector<128x128xf32>, vector<128x128xf32>, vector<128x128xf32> -> vector<128x128xf32>
    %453 = vector.broadcast %430 : vector<1x128xf32> to vector<128x128xf32>
    %454 = arith.mulf %447, %453 : vector<128x128xf32>
    %c0_544 = arith.constant 0 : index
    %c0_545 = arith.constant 0 : index
    %455 = vector.load %arg14[%c0_544, %c0_545] : memref<128x128xf32, #tpu.memory_space<vmem>>, vector<128x128xf32>
    %cst_546 = arith.constant dense<0.000000e+00> : vector<128x128xf32>
    %456 = tpu.matmul %454, %455, %cst_546 {dimension_numbers = #tpu.dot_dimension_numbers<[1], [0], [0], [1], [0, 0, 1, 1], [], []>} : vector<128x128xf32>, vector<128x128xf32>, vector<128x128xf32> -> vector<128x128xf32>
    %457 = arith.addf %452, %456 : vector<128x128xf32>
    %c0_547 = arith.constant 0 : index
    %c0_548 = arith.constant 0 : index
    %458 = vector.load %arg15[%c0_547, %c0_548] : memref<1x128xf32, #tpu.memory_space<vmem>>, vector<1x128xf32>
    %459 = vector.broadcast %458 : vector<1x128xf32> to vector<128x128xf32>
    %460 = arith.addf %457, %459 : vector<128x128xf32>
    %c0_549 = arith.constant 0 : index
    %c0_550 = arith.constant 0 : index
    %461 = vector.load %arg16[%c0_549, %c0_550] : memref<128x128xf32, #tpu.memory_space<vmem>>, vector<128x128xf32>
    %cst_551 = arith.constant dense<0.000000e+00> : vector<128x128xf32>
    %462 = tpu.matmul %447, %461, %cst_551 {dimension_numbers = #tpu.dot_dimension_numbers<[1], [0], [0], [1], [0, 0, 1, 1], [], []>} : vector<128x128xf32>, vector<128x128xf32>, vector<128x128xf32> -> vector<128x128xf32>
    %463 = vector.broadcast %445 : vector<1x128xf32> to vector<128x128xf32>
    %464 = arith.mulf %450, %463 : vector<128x128xf32>
    %c0_552 = arith.constant 0 : index
    %c0_553 = arith.constant 0 : index
    %465 = vector.load %arg17[%c0_552, %c0_553] : memref<128x128xf32, #tpu.memory_space<vmem>>, vector<128x128xf32>
    %cst_554 = arith.constant dense<0.000000e+00> : vector<128x128xf32>
    %466 = tpu.matmul %464, %465, %cst_554 {dimension_numbers = #tpu.dot_dimension_numbers<[1], [0], [0], [1], [0, 0, 1, 1], [], []>} : vector<128x128xf32>, vector<128x128xf32>, vector<128x128xf32> -> vector<128x128xf32>
    %467 = arith.addf %462, %466 : vector<128x128xf32>
    %c0_555 = arith.constant 0 : index
    %c0_556 = arith.constant 0 : index
    %468 = vector.load %arg18[%c0_555, %c0_556] : memref<1x128xf32, #tpu.memory_space<vmem>>, vector<1x128xf32>
    %469 = vector.broadcast %468 : vector<1x128xf32> to vector<128x128xf32>
    %470 = arith.addf %467, %469 : vector<128x128xf32>
    %c0_557 = arith.constant 0 : index
    %c0_558 = arith.constant 0 : index
    %471 = vector.load %arg19[%c0_557, %c0_558] : memref<128x128xf32, #tpu.memory_space<vmem>>, vector<128x128xf32>
    %cst_559 = arith.constant dense<0.000000e+00> : vector<128x128xf32>
    %472 = tpu.matmul %460, %471, %cst_559 {dimension_numbers = #tpu.dot_dimension_numbers<[1], [0], [0], [1], [0, 0, 1, 1], [], []>} : vector<128x128xf32>, vector<128x128xf32>, vector<128x128xf32> -> vector<128x128xf32>
    %c0_560 = arith.constant 0 : index
    %c0_561 = arith.constant 0 : index
    %473 = vector.load %arg20[%c0_560, %c0_561] : memref<128x128xf32, #tpu.memory_space<vmem>>, vector<128x128xf32>
    %cst_562 = arith.constant dense<0.000000e+00> : vector<128x128xf32>
    %474 = tpu.matmul %470, %473, %cst_562 {dimension_numbers = #tpu.dot_dimension_numbers<[1], [0], [0], [1], [0, 0, 1, 1], [], []>} : vector<128x128xf32>, vector<128x128xf32>, vector<128x128xf32> -> vector<128x128xf32>
    %475 = arith.addf %472, %474 : vector<128x128xf32>
    %c0_563 = arith.constant 0 : index
    %c0_564 = arith.constant 0 : index
    %476 = vector.load %arg21[%c0_563, %c0_564] : memref<1x128xf32, #tpu.memory_space<vmem>>, vector<1x128xf32>
    %477 = vector.broadcast %476 : vector<1x128xf32> to vector<128x128xf32>
    %478 = arith.addf %475, %477 : vector<128x128xf32>
    %479 = vector.shape_cast %478 : vector<128x128xf32> to vector<8x16x128xf32>
    %c0_565 = arith.constant 0 : index
    %c0_566 = arith.constant 0 : index
    %c0_567 = arith.constant 0 : index
    %c0_568 = arith.constant 0 : index
    %480 = vector.load %arg22[%c0_565, %c0_566, %c0_567, %c0_568] : memref<1x16x16x128xf32, #tpu.memory_space<vmem>>, vector<1x8x16x128xf32>
    %481 = vector.shape_cast %480 : vector<1x8x16x128xf32> to vector<8x16x128xf32>
    %482 = vector.shape_cast %479 : vector<8x16x128xf32> to vector<1x8x16x128xf32>
    tpu.vector_store %arg22[%c0_565, %c0_566, %c0_567, %c0_568], %482 {strides = array<i32>} : memref<1x16x16x128xf32, #tpu.memory_space<vmem>>, vector<1x8x16x128xf32>,
    %c8_569 = arith.constant 8 : index
    %c0_570 = arith.constant 0 : index
    %c0_571 = arith.constant 0 : index
    %483 = vector.load %arg25[%c8_569, %c0_570, %c0_571] : memref<16x16x128xf32, #tpu.memory_space<vmem>>, vector<8x16x128xf32>
    %484 = vector.shape_cast %483 : vector<8x16x128xf32> to vector<128x128xf32>
    %c0_572 = arith.constant 0 : index
    %c8_573 = arith.constant 8 : index
    %c0_574 = arith.constant 0 : index
    %c0_575 = arith.constant 0 : index
    %485 = vector.load %arg2[%c0_572, %c8_573, %c0_574, %c0_575] : memref<1x16x16x128xf32, #tpu.memory_space<vmem>>, vector<1x8x16x128xf32>
    %486 = vector.shape_cast %485 : vector<1x8x16x128xf32> to vector<8x16x128xf32>
    %487 = vector.shape_cast %486 : vector<8x16x128xf32> to vector<128x128xf32>
    %c0_576 = arith.constant 0 : index
    %c0_577 = arith.constant 0 : index
    %488 = vector.load %arg13[%c0_576, %c0_577] : memref<128x128xf32, #tpu.memory_space<vmem>>, vector<128x128xf32>
    %cst_578 = arith.constant dense<0.000000e+00> : vector<128x128xf32>
    %489 = tpu.matmul %487, %488, %cst_578 {dimension_numbers = #tpu.dot_dimension_numbers<[1], [0], [0], [1], [0, 0, 1, 1], [], []>} : vector<128x128xf32>, vector<128x128xf32>, vector<128x128xf32> -> vector<128x128xf32>
    %490 = vector.broadcast %430 : vector<1x128xf32> to vector<128x128xf32>
    %491 = arith.mulf %484, %490 : vector<128x128xf32>
    %c0_579 = arith.constant 0 : index
    %c0_580 = arith.constant 0 : index
    %492 = vector.load %arg14[%c0_579, %c0_580] : memref<128x128xf32, #tpu.memory_space<vmem>>, vector<128x128xf32>
    %cst_581 = arith.constant dense<0.000000e+00> : vector<128x128xf32>
    %493 = tpu.matmul %491, %492, %cst_581 {dimension_numbers = #tpu.dot_dimension_numbers<[1], [0], [0], [1], [0, 0, 1, 1], [], []>} : vector<128x128xf32>, vector<128x128xf32>, vector<128x128xf32> -> vector<128x128xf32>
    %494 = arith.addf %489, %493 : vector<128x128xf32>
    %c0_582 = arith.constant 0 : index
    %c0_583 = arith.constant 0 : index
    %495 = vector.load %arg15[%c0_582, %c0_583] : memref<1x128xf32, #tpu.memory_space<vmem>>, vector<1x128xf32>
    %496 = vector.broadcast %495 : vector<1x128xf32> to vector<128x128xf32>
    %497 = arith.addf %494, %496 : vector<128x128xf32>
    %c0_584 = arith.constant 0 : index
    %c0_585 = arith.constant 0 : index
    %498 = vector.load %arg16[%c0_584, %c0_585] : memref<128x128xf32, #tpu.memory_space<vmem>>, vector<128x128xf32>
    %cst_586 = arith.constant dense<0.000000e+00> : vector<128x128xf32>
    %499 = tpu.matmul %484, %498, %cst_586 {dimension_numbers = #tpu.dot_dimension_numbers<[1], [0], [0], [1], [0, 0, 1, 1], [], []>} : vector<128x128xf32>, vector<128x128xf32>, vector<128x128xf32> -> vector<128x128xf32>
    %500 = vector.broadcast %445 : vector<1x128xf32> to vector<128x128xf32>
    %501 = arith.mulf %487, %500 : vector<128x128xf32>
    %c0_587 = arith.constant 0 : index
    %c0_588 = arith.constant 0 : index
    %502 = vector.load %arg17[%c0_587, %c0_588] : memref<128x128xf32, #tpu.memory_space<vmem>>, vector<128x128xf32>
    %cst_589 = arith.constant dense<0.000000e+00> : vector<128x128xf32>
    %503 = tpu.matmul %501, %502, %cst_589 {dimension_numbers = #tpu.dot_dimension_numbers<[1], [0], [0], [1], [0, 0, 1, 1], [], []>} : vector<128x128xf32>, vector<128x128xf32>, vector<128x128xf32> -> vector<128x128xf32>
    %504 = arith.addf %499, %503 : vector<128x128xf32>
    %c0_590 = arith.constant 0 : index
    %c0_591 = arith.constant 0 : index
    %505 = vector.load %arg18[%c0_590, %c0_591] : memref<1x128xf32, #tpu.memory_space<vmem>>, vector<1x128xf32>
    %506 = vector.broadcast %505 : vector<1x128xf32> to vector<128x128xf32>
    %507 = arith.addf %504, %506 : vector<128x128xf32>
    %c0_592 = arith.constant 0 : index
    %c0_593 = arith.constant 0 : index
    %508 = vector.load %arg19[%c0_592, %c0_593] : memref<128x128xf32, #tpu.memory_space<vmem>>, vector<128x128xf32>
    %cst_594 = arith.constant dense<0.000000e+00> : vector<128x128xf32>
    %509 = tpu.matmul %497, %508, %cst_594 {dimension_numbers = #tpu.dot_dimension_numbers<[1], [0], [0], [1], [0, 0, 1, 1], [], []>} : vector<128x128xf32>, vector<128x128xf32>, vector<128x128xf32> -> vector<128x128xf32>
    %c0_595 = arith.constant 0 : index
    %c0_596 = arith.constant 0 : index
    %510 = vector.load %arg20[%c0_595, %c0_596] : memref<128x128xf32, #tpu.memory_space<vmem>>, vector<128x128xf32>
    %cst_597 = arith.constant dense<0.000000e+00> : vector<128x128xf32>
    %511 = tpu.matmul %507, %510, %cst_597 {dimension_numbers = #tpu.dot_dimension_numbers<[1], [0], [0], [1], [0, 0, 1, 1], [], []>} : vector<128x128xf32>, vector<128x128xf32>, vector<128x128xf32> -> vector<128x128xf32>
    %512 = arith.addf %509, %511 : vector<128x128xf32>
    %c0_598 = arith.constant 0 : index
    %c0_599 = arith.constant 0 : index
    %513 = vector.load %arg21[%c0_598, %c0_599] : memref<1x128xf32, #tpu.memory_space<vmem>>, vector<1x128xf32>
    %514 = vector.broadcast %513 : vector<1x128xf32> to vector<128x128xf32>
    %515 = arith.addf %512, %514 : vector<128x128xf32>
    %516 = vector.shape_cast %515 : vector<128x128xf32> to vector<8x16x128xf32>
    %c0_600 = arith.constant 0 : index
    %c8_601 = arith.constant 8 : index
    %c0_602 = arith.constant 0 : index
    %c0_603 = arith.constant 0 : index
    %517 = vector.load %arg22[%c0_600, %c8_601, %c0_602, %c0_603] : memref<1x16x16x128xf32, #tpu.memory_space<vmem>>, vector<1x8x16x128xf32>
    %518 = vector.shape_cast %517 : vector<1x8x16x128xf32> to vector<8x16x128xf32>
    %519 = vector.shape_cast %516 : vector<8x16x128xf32> to vector<1x8x16x128xf32>
    tpu.vector_store %arg22[%c0_600, %c8_601, %c0_602, %c0_603], %519 {strides = array<i32>} : memref<1x16x16x128xf32, #tpu.memory_space<vmem>>, vector<1x8x16x128xf32>,
    return
  }
  func.func @transform_0(%arg0: i32) -> (i32, i32, i32, i32) {
    %c0_i32 = arith.constant 0 : i32
    %c0_i32_0 = arith.constant 0 : i32
    %c0_i32_1 = arith.constant 0 : i32
    %c0_i32_2 = arith.constant 0 : i32
    return %arg0, %c0_i32, %c0_i32_0, %c0_i32_1 : i32, i32, i32, i32
  }
  func.func @transform_1(%arg0: i32) -> (i32, i32, i32, i32) {
    %c0_i32 = arith.constant 0 : i32
    %c0_i32_0 = arith.constant 0 : i32
    %c0_i32_1 = arith.constant 0 : i32
    %c0_i32_2 = arith.constant 0 : i32
    return %arg0, %c0_i32, %c0_i32_0, %c0_i32_1 : i32, i32, i32, i32
  }
  func.func @transform_2(%arg0: i32) -> (i32, i32, i32, i32) {
    %c0_i32 = arith.constant 0 : i32
    %c0_i32_0 = arith.constant 0 : i32
    %c0_i32_1 = arith.constant 0 : i32
    %c0_i32_2 = arith.constant 0 : i32
    %c0_i32_3 = arith.constant 0 : i32
    return %c0_i32, %c0_i32_0, %c0_i32_1, %c0_i32_2 : i32, i32, i32, i32
  }
  func.func @transform_3(%arg0: i32) -> (i32, i32, i32) {
    %c0_i32 = arith.constant 0 : i32
    %c0_i32_0 = arith.constant 0 : i32
    %c0_i32_1 = arith.constant 0 : i32
    %c0_i32_2 = arith.constant 0 : i32
    return %c0_i32, %c0_i32_0, %c0_i32_1 : i32, i32, i32
  }
  func.func @transform_4(%arg0: i32) -> (i32, i32) {
    %c0_i32 = arith.constant 0 : i32
    %c0_i32_0 = arith.constant 0 : i32
    %c0_i32_1 = arith.constant 0 : i32
    return %c0_i32, %c0_i32_0 : i32, i32
  }
  func.func @transform_5(%arg0: i32) -> (i32, i32) {
    %c0_i32 = arith.constant 0 : i32
    %c0_i32_0 = arith.constant 0 : i32
    %c0_i32_1 = arith.constant 0 : i32
    return %c0_i32, %c0_i32_0 : i32, i32
  }
  func.func @transform_6(%arg0: i32) -> (i32, i32) {
    %c0_i32 = arith.constant 0 : i32
    %c0_i32_0 = arith.constant 0 : i32
    %c0_i32_1 = arith.constant 0 : i32
    return %c0_i32, %c0_i32_0 : i32, i32
  }
  func.func @transform_7(%arg0: i32) -> (i32, i32) {
    %c0_i32 = arith.constant 0 : i32
    %c0_i32_0 = arith.constant 0 : i32
    %c0_i32_1 = arith.constant 0 : i32
    return %c0_i32, %c0_i32_0 : i32, i32
  }
  func.func @transform_8(%arg0: i32) -> (i32, i32) {
    %c0_i32 = arith.constant 0 : i32
    %c0_i32_0 = arith.constant 0 : i32
    %c0_i32_1 = arith.constant 0 : i32
    return %c0_i32, %c0_i32_0 : i32, i32
  }
  func.func @transform_9(%arg0: i32) -> (i32, i32) {
    %c0_i32 = arith.constant 0 : i32
    %c0_i32_0 = arith.constant 0 : i32
    %c0_i32_1 = arith.constant 0 : i32
    return %c0_i32, %c0_i32_0 : i32, i32
  }
  func.func @transform_10(%arg0: i32) -> (i32, i32) {
    %c0_i32 = arith.constant 0 : i32
    %c0_i32_0 = arith.constant 0 : i32
    %c0_i32_1 = arith.constant 0 : i32
    return %c0_i32, %c0_i32_0 : i32, i32
  }
  func.func @transform_11(%arg0: i32) -> (i32, i32) {
    %c0_i32 = arith.constant 0 : i32
    %c0_i32_0 = arith.constant 0 : i32
    %c0_i32_1 = arith.constant 0 : i32
    return %c0_i32, %c0_i32_0 : i32, i32
  }
  func.func @transform_12(%arg0: i32) -> (i32, i32) {
    %c0_i32 = arith.constant 0 : i32
    %c0_i32_0 = arith.constant 0 : i32
    %c0_i32_1 = arith.constant 0 : i32
    return %c0_i32, %c0_i32_0 : i32, i32
  }
  func.func @transform_13(%arg0: i32) -> (i32, i32) {
    %c0_i32 = arith.constant 0 : i32
    %c0_i32_0 = arith.constant 0 : i32
    %c0_i32_1 = arith.constant 0 : i32
    return %c0_i32, %c0_i32_0 : i32, i32
  }
  func.func @transform_14(%arg0: i32) -> (i32, i32) {
    %c0_i32 = arith.constant 0 : i32
    %c0_i32_0 = arith.constant 0 : i32
    %c0_i32_1 = arith.constant 0 : i32
    return %c0_i32, %c0_i32_0 : i32, i32
  }
  func.func @transform_15(%arg0: i32) -> (i32, i32) {
    %c0_i32 = arith.constant 0 : i32
    %c0_i32_0 = arith.constant 0 : i32
    %c0_i32_1 = arith.constant 0 : i32
    return %c0_i32, %c0_i32_0 : i32, i32
  }
  func.func @transform_16(%arg0: i32) -> (i32, i32) {
    %c0_i32 = arith.constant 0 : i32
    %c0_i32_0 = arith.constant 0 : i32
    %c0_i32_1 = arith.constant 0 : i32
    return %c0_i32, %c0_i32_0 : i32, i32
  }
  func.func @transform_17(%arg0: i32) -> (i32, i32) {
    %c0_i32 = arith.constant 0 : i32
    %c0_i32_0 = arith.constant 0 : i32
    %c0_i32_1 = arith.constant 0 : i32
    return %c0_i32, %c0_i32_0 : i32, i32
  }
  func.func @transform_18(%arg0: i32) -> (i32, i32) {
    %c0_i32 = arith.constant 0 : i32
    %c0_i32_0 = arith.constant 0 : i32
    %c0_i32_1 = arith.constant 0 : i32
    return %c0_i32, %c0_i32_0 : i32, i32
  }
  func.func @transform_19(%arg0: i32) -> (i32, i32) {
    %c0_i32 = arith.constant 0 : i32
    %c0_i32_0 = arith.constant 0 : i32
    %c0_i32_1 = arith.constant 0 : i32
    return %c0_i32, %c0_i32_0 : i32, i32
  }
  func.func @transform_20(%arg0: i32) -> (i32, i32) {
    %c0_i32 = arith.constant 0 : i32
    %c0_i32_0 = arith.constant 0 : i32
    %c0_i32_1 = arith.constant 0 : i32
    return %c0_i32, %c0_i32_0 : i32, i32
  }
  func.func @transform_21(%arg0: i32) -> (i32, i32, i32, i32) {
    %c0_i32 = arith.constant 0 : i32
    %c0_i32_0 = arith.constant 0 : i32
    %c0_i32_1 = arith.constant 0 : i32
    %c0_i32_2 = arith.constant 0 : i32
    return %arg0, %c0_i32, %c0_i32_0, %c0_i32_1 : i32, i32, i32, i32
  }
}

</mosaic_0001>

<llo_original>
// kernel: dcablock_forward.1
$region0: #{dcablock_forward.1}
  #allocation0 [shape = 'u32[]', space=smem, size = 0x4, offset = 0x4, fixed_abs, tag = 'smem constant byte address 0x4 - core index']
  #allocation1 [shape = 'u32[72,128]{1,0:T(1,128)}', space=vmem, size = 0x9000, scoped, tag = 'internal scratch']
  #allocation2 [shape = 'f32[18,18,128]{2,1,0:T(8,128)}', space=vmem, size = 0x36000, scoped, tag = 'scratch operand']
  #allocation3 [shape = 'f32[18,18,128]{2,1,0:T(8,128)}', space=vmem, size = 0x36000, scoped, tag = 'scratch operand']
  #allocation4 [shape = 'f32[16,16,128]{2,1,0:T(8,128)}', space=vmem, size = 0x20000, scoped, tag = 'scratch operand']
  %s0 = inlined_call_operand.vmem [shape: f32[2,16,16,128], index: 0, kind: input, shape index: {}]
  %s1 = inlined_call_operand.vmem [shape: f32[2,16,16,128], index: 1, kind: input, shape index: {}]
  %s2 = inlined_call_operand.vmem [shape: f32[3,9,128,128], index: 2, kind: input, shape index: {}]
  %s3 = inlined_call_operand.vmem [shape: f32[3,1,128], index: 3, kind: input, shape index: {}]
  %s4 = inlined_call_operand.vmem [shape: f32[128,128], index: 4, kind: input, shape index: {}]
  %s5 = inlined_call_operand.vmem [shape: f32[1,128], index: 5, kind: input, shape index: {}]
  %s6 = inlined_call_operand.vmem [shape: f32[128,128], index: 6, kind: input, shape index: {}]
  %s7 = inlined_call_operand.vmem [shape: f32[1,128], index: 7, kind: input, shape index: {}]
  %s8 = inlined_call_operand.vmem [shape: f32[128,128], index: 8, kind: input, shape index: {}]
  %s9 = inlined_call_operand.vmem [shape: f32[1,128], index: 9, kind: input, shape index: {}]
  %s10 = inlined_call_operand.vmem [shape: f32[128,128], index: 10, kind: input, shape index: {}]
  %s11 = inlined_call_operand.vmem [shape: f32[1,128], index: 11, kind: input, shape index: {}]
  %s12 = inlined_call_operand.vmem [shape: f32[128,128], index: 12, kind: input, shape index: {}]
  %s13 = inlined_call_operand.vmem [shape: f32[128,128], index: 13, kind: input, shape index: {}]
  %s14 = inlined_call_operand.vmem [shape: f32[1,128], index: 14, kind: input, shape index: {}]
  %s15 = inlined_call_operand.vmem [shape: f32[128,128], index: 15, kind: input, shape index: {}]
  %s16 = inlined_call_operand.vmem [shape: f32[128,128], index: 16, kind: input, shape index: {}]
  %s17 = inlined_call_operand.vmem [shape: f32[1,128], index: 17, kind: input, shape index: {}]
  %s18 = inlined_call_operand.vmem [shape: f32[128,128], index: 18, kind: input, shape index: {}]
  %s19 = inlined_call_operand.vmem [shape: f32[128,128], index: 19, kind: input, shape index: {}]
  %s20 = inlined_call_operand.vmem [shape: f32[1,128], index: 20, kind: input, shape index: {}]
  %s21 = inlined_call_operand.vmem [shape: f32[2,16,16,128], index: 21, kind: output, shape index: {}]
  %s22 = sld [smem:[#allocation0]]
  $region117: #{dcablock_forward.1} parent=0
    _
  %s24 = ssub.s32 1, %s22
  %s25 = scalar_select 0, %s24, %s22
  loop: start=0, step=1, limit=4
  $region2: #{dcablock_forward.1} parent=0 // loop_pre_header
    _
  $region3: #{dcablock_forward.1} parent=0 // loop_header
    %s27 = sphi 0, %s31
    %p28 = scmp.ge.s32.totalorder %s27, 4
    %s37 = sphi 0, %s39
    %s40 = sphi 0, %s37
    %s41 = sphi 0, %s40
    %s57 = sphi 0, %s41
    %s63 = sphi 0, %s65
    %s66 = sphi 0, %s63
    %s67 = sphi 0, %s66
    %s83 = sphi 0, %s67
    %s87 = sphi 0, %s87
    %s89 = sphi 0, %s87
    %s90 = sphi 0, %s89
    %s104 = sphi 0, %s90
    %s108 = sphi 0, %s108
    %s110 = sphi 0, %s108
    %s111 = sphi 0, %s110
    %s125 = sphi 0, %s111
    %s129 = sphi 0, %s129
    %s131 = sphi 0, %s129
    %s132 = sphi 0, %s131
    %s146 = sphi 0, %s132
    %s150 = sphi 0, %s150
    %s152 = sphi 0, %s150
    %s153 = sphi 0, %s152
    %s167 = sphi 0, %s153
    %s171 = sphi 0, %s171
    %s173 = sphi 0, %s171
    %s174 = sphi 0, %s173
    %s188 = sphi 0, %s174
    %s192 = sphi 0, %s192
    %s194 = sphi 0, %s192
    %s195 = sphi 0, %s194
    %s209 = sphi 0, %s195
    %s213 = sphi 0, %s213
    %s215 = sphi 0, %s213
    %s216 = sphi 0, %s215
    %s230 = sphi 0, %s216
    %s234 = sphi 0, %s234
    %s236 = sphi 0, %s234
    %s237 = sphi 0, %s236
    %s251 = sphi 0, %s237
    %s255 = sphi 0, %s255
    %s257 = sphi 0, %s255
    %s258 = sphi 0, %s257
    %s272 = sphi 0, %s258
    %s276 = sphi 0, %s276
    %s278 = sphi 0, %s276
    %s279 = sphi 0, %s278
    %s293 = sphi 0, %s279
    %s297 = sphi 0, %s297
    %s299 = sphi 0, %s297
    %s300 = sphi 0, %s299
    %s314 = sphi 0, %s300
    %s318 = sphi 0, %s318
    %s320 = sphi 0, %s318
    %s321 = sphi 0, %s320
    %s335 = sphi 0, %s321
    %s339 = sphi 0, %s339
    %s341 = sphi 0, %s339
    %s342 = sphi 0, %s341
    %s356 = sphi 0, %s342
    %s360 = sphi 0, %s360
    %s362 = sphi 0, %s360
    %s363 = sphi 0, %s362
    %s377 = sphi 0, %s363
    %s381 = sphi 0, %s381
    %s383 = sphi 0, %s381
    %s384 = sphi 0, %s383
    %s398 = sphi 0, %s384
    %s402 = sphi 0, %s402
    %s404 = sphi 0, %s402
    %s405 = sphi 0, %s404
    %s419 = sphi 0, %s405
    %s423 = sphi 0, %s423
    %s425 = sphi 0, %s423
    %s426 = sphi 0, %s425
    %s440 = sphi 0, %s426
    %s444 = sphi 0, %s444
    %s446 = sphi 0, %s444
    %s447 = sphi 0, %s446
    %s461 = sphi 0, %s447
    %s465 = sphi 0, %s465
    %s467 = sphi 0, %s465
    %s468 = sphi 0, %s467
    %s482 = sphi 0, %s468
    %s488 = sphi 0, %s490
    %s491 = sphi 0, %s488
    %s492 = sphi 0, %s491
    %s508 = sphi 0, %s492
  $region4: #{dcablock_forward.1} parent=0 // loop_header_branch
    %30 = sbr.rel (%p28) target = $region8
  $region5: #{dcablock_forward.1} parent=0 // loop_body
    %s32 = ssub.s32 %s27, 1
    %s33 = ssub.s32 %s27, 2
    %s34 = sadd.s32 %s27, 1
    %s35 = ssub.s32 %s27, %s34
    %p36 = scmp.eq.s32.totalorder %s35, 0
    %s38 = sadd.s32 %s37, 1
    %s39 = scalar_select %p36, %s37, %s38
    %p42 = pneg %p36
    %p43 = scmp.eq.s32.totalorder %s27, 1
    %p44 = por %p42, %p43
    %p45 = scmp.ne.s32.totalorder %s37, %s40
    %p46 = scmp.eq.s32.totalorder %s27, 0
    %p47 = por %p45, %p46
    %p48 = scmp.ne.s32.totalorder %s37, %s40
    %p49 = scmp.eq.s32.totalorder %s32, 1
    %p50 = por %p48, %p49
    %p51 = scmp.ne.s32.totalorder %s40, %s41
    %p52 = scmp.eq.s32.totalorder %s32, 0
    %p53 = por %p51, %p52
    %p54 = scmp.ne.s32.totalorder %s40, %s41
    %p55 = scmp.eq.s32.totalorder %s33, 1
    %p56 = por %p54, %p55
    %p58 = scmp.ne.s32.totalorder %s41, %s57
    %p59 = scmp.eq.s32.totalorder %s33, 0
    %p60 = por %p58, %p59
    %s61 = ssub.s32 %s27, %s34
    %p62 = scmp.eq.s32.totalorder %s61, 0
    %s64 = sadd.s32 %s63, 1
    %s65 = scalar_select %p62, %s63, %s64
    %p68 = pneg %p62
    %p69 = scmp.eq.s32.totalorder %s27, 1
    %p70 = por %p68, %p69
    %p71 = scmp.ne.s32.totalorder %s63, %s66
    %p72 = scmp.eq.s32.totalorder %s27, 0
    %p73 = por %p71, %p72
    %p74 = scmp.ne.s32.totalorder %s63, %s66
    %p75 = scmp.eq.s32.totalorder %s32, 1
    %p76 = por %p74, %p75
    %p77 = scmp.ne.s32.totalorder %s66, %s67
    %p78 = scmp.eq.s32.totalorder %s32, 0
    %p79 = por %p77, %p78
    %p80 = scmp.ne.s32.totalorder %s66, %s67
    %p81 = scmp.eq.s32.totalorder %s33, 1
    %p82 = por %p80, %p81
    %p84 = scmp.ne.s32.totalorder %s67, %s83
    %p85 = scmp.eq.s32.totalorder %s33, 0
    %p86 = por %p84, %p85
    %s88 = sadd.s32 %s87, 1
    %p91 = scmp.eq.s32.totalorder %s27, 1
    %p92 = scmp.ne.s32.totalorder %s87, %s89
    %p93 = scmp.eq.s32.totalorder %s27, 0
    %p94 = por %p92, %p93
    %p95 = scmp.ne.s32.totalorder %s87, %s89
    %p96 = scmp.eq.s32.totalorder %s32, 1
    %p97 = por %p95, %p96
    %p98 = scmp.ne.s32.totalorder %s89, %s90
    %p99 = scmp.eq.s32.totalorder %s32, 0
    %p100 = por %p98, %p99
    %p101 = scmp.ne.s32.totalorder %s89, %s90
    %p102 = scmp.eq.s32.totalorder %s33, 1
    %p103 = por %p101, %p102
    %p105 = scmp.ne.s32.totalorder %s90, %s104
    %p106 = scmp.eq.s32.totalorder %s33, 0
    %p107 = por %p105, %p106
    %s109 = sadd.s32 %s108, 1
    %p112 = scmp.eq.s32.totalorder %s27, 1
    %p113 = scmp.ne.s32.totalorder %s108, %s110
    %p114 = scmp.eq.s32.totalorder %s27, 0
    %p115 = por %p113, %p114
    %p116 = scmp.ne.s32.totalorder %s108, %s110
    %p117 = scmp.eq.s32.totalorder %s32, 1
    %p118 = por %p116, %p117
    %p119 = scmp.ne.s32.totalorder %s110, %s111
    %p120 = scmp.eq.s32.totalorder %s32, 0
    %p121 = por %p119, %p120
    %p122 = scmp.ne.s32.totalorder %s110, %s111
    %p123 = scmp.eq.s32.totalorder %s33, 1
    %p124 = por %p122, %p123
    %p126 = scmp.ne.s32.totalorder %s111, %s125
    %p127 = scmp.eq.s32.totalorder %s33, 0
    %p128 = por %p126, %p127
    %s130 = sadd.s32 %s129, 1
    %p133 = scmp.eq.s32.totalorder %s27, 1
    %p134 = scmp.ne.s32.totalorder %s129, %s131
    %p135 = scmp.eq.s32.totalorder %s27, 0
    %p136 = por %p134, %p135
    %p137 = scmp.ne.s32.totalorder %s129, %s131
    %p138 = scmp.eq.s32.totalorder %s32, 1
    %p139 = por %p137, %p138
    %p140 = scmp.ne.s32.totalorder %s131, %s132
    %p141 = scmp.eq.s32.totalorder %s32, 0
    %p142 = por %p140, %p141
    %p143 = scmp.ne.s32.totalorder %s131, %s132
    %p144 = scmp.eq.s32.totalorder %s33, 1
    %p145 = por %p143, %p144
    %p147 = scmp.ne.s32.totalorder %s132, %s146
    %p148 = scmp.eq.s32.totalorder %s33, 0
    %p149 = por %p147, %p148
    %s151 = sadd.s32 %s150, 1
    %p154 = scmp.eq.s32.totalorder %s27, 1
    %p155 = scmp.ne.s32.totalorder %s150, %s152
    %p156 = scmp.eq.s32.totalorder %s27, 0
    %p157 = por %p155, %p156
    %p158 = scmp.ne.s32.totalorder %s150, %s152
    %p159 = scmp.eq.s32.totalorder %s32, 1
    %p160 = por %p158, %p159
    %p161 = scmp.ne.s32.totalorder %s152, %s153
    %p162 = scmp.eq.s32.totalorder %s32, 0
    %p163 = por %p161, %p162
    %p164 = scmp.ne.s32.totalorder %s152, %s153
    %p165 = scmp.eq.s32.totalorder %s33, 1
    %p166 = por %p164, %p165
    %p168 = scmp.ne.s32.totalorder %s153, %s167
    %p169 = scmp.eq.s32.totalorder %s33, 0
    %p170 = por %p168, %p169
    %s172 = sadd.s32 %s171, 1
    %p175 = scmp.eq.s32.totalorder %s27, 1
    %p176 = scmp.ne.s32.totalorder %s171, %s173
    %p177 = scmp.eq.s32.totalorder %s27, 0
    %p178 = por %p176, %p177
    %p179 = scmp.ne.s32.totalorder %s171, %s173
    %p180 = scmp.eq.s32.totalorder %s32, 1
    %p181 = por %p179, %p180
    %p182 = scmp.ne.s32.totalorder %s173, %s174
    %p183 = scmp.eq.s32.totalorder %s32, 0
    %p184 = por %p182, %p183
    %p185 = scmp.ne.s32.totalorder %s173, %s174
    %p186 = scmp.eq.s32.totalorder %s33, 1
    %p187 = por %p185, %p186
    %p189 = scmp.ne.s32.totalorder %s174, %s188
    %p190 = scmp.eq.s32.totalorder %s33, 0
    %p191 = por %p189, %p190
    %s193 = sadd.s32 %s192, 1
    %p196 = scmp.eq.s32.totalorder %s27, 1
    %p197 = scmp.ne.s32.totalorder %s192, %s194
    %p198 = scmp.eq.s32.totalorder %s27, 0
    %p199 = por %p197, %p198
    %p200 = scmp.ne.s32.totalorder %s192, %s194
    %p201 = scmp.eq.s32.totalorder %s32, 1
    %p202 = por %p200, %p201
    %p203 = scmp.ne.s32.totalorder %s194, %s195
    %p204 = scmp.eq.s32.totalorder %s32, 0
    %p205 = por %p203, %p204
    %p206 = scmp.ne.s32.totalorder %s194, %s195
    %p207 = scmp.eq.s32.totalorder %s33, 1
    %p208 = por %p206, %p207
    %p210 = scmp.ne.s32.totalorder %s195, %s209
    %p211 = scmp.eq.s32.totalorder %s33, 0
    %p212 = por %p210, %p211
    %s214 = sadd.s32 %s213, 1
    %p217 = scmp.eq.s32.totalorder %s27, 1
    %p218 = scmp.ne.s32.totalorder %s213, %s215
    %p219 = scmp.eq.s32.totalorder %s27, 0
    %p220 = por %p218, %p219
    %p221 = scmp.ne.s32.totalorder %s213, %s215
    %p222 = scmp.eq.s32.totalorder %s32, 1
    %p223 = por %p221, %p222
    %p224 = scmp.ne.s32.totalorder %s215, %s216
    %p225 = scmp.eq.s32.totalorder %s32, 0
    %p226 = por %p224, %p225
    %p227 = scmp.ne.s32.totalorder %s215, %s216
    %p228 = scmp.eq.s32.totalorder %s33, 1
    %p229 = por %p227, %p228
    %p231 = scmp.ne.s32.totalorder %s216, %s230
    %p232 = scmp.eq.s32.totalorder %s33, 0
    %p233 = por %p231, %p232
    %s235 = sadd.s32 %s234, 1
    %p238 = scmp.eq.s32.totalorder %s27, 1
    %p239 = scmp.ne.s32.totalorder %s234, %s236
    %p240 = scmp.eq.s32.totalorder %s27, 0
    %p241 = por %p239, %p240
    %p242 = scmp.ne.s32.totalorder %s234, %s236
    %p243 = scmp.eq.s32.totalorder %s32, 1
    %p244 = por %p242, %p243
    %p245 = scmp.ne.s32.totalorder %s236, %s237
    %p246 = scmp.eq.s32.totalorder %s32, 0
    %p247 = por %p245, %p246
    %p248 = scmp.ne.s32.totalorder %s236, %s237
    %p249 = scmp.eq.s32.totalorder %s33, 1
    %p250 = por %p248, %p249
    %p252 = scmp.ne.s32.totalorder %s237, %s251
    %p253 = scmp.eq.s32.totalorder %s33, 0
    %p254 = por %p252, %p253
    %s256 = sadd.s32 %s255, 1
    %p259 = scmp.eq.s32.totalorder %s27, 1
    %p260 = scmp.ne.s32.totalorder %s255, %s257
    %p261 = scmp.eq.s32.totalorder %s27, 0
    %p262 = por %p260, %p261
    %p263 = scmp.ne.s32.totalorder %s255, %s257
    %p264 = scmp.eq.s32.totalorder %s32, 1
    %p265 = por %p263, %p264
    %p266 = scmp.ne.s32.totalorder %s257, %s258
    %p267 = scmp.eq.s32.totalorder %s32, 0
    %p268 = por %p266, %p267
    %p269 = scmp.ne.s32.totalorder %s257, %s258
    %p270 = scmp.eq.s32.totalorder %s33, 1
    %p271 = por %p269, %p270
    %p273 = scmp.ne.s32.totalorder %s258, %s272
    %p274 = scmp.eq.s32.totalorder %s33, 0
    %p275 = por %p273, %p274
    %s277 = sadd.s32 %s276, 1
    %p280 = scmp.eq.s32.totalorder %s27, 1
    %p281 = scmp.ne.s32.totalorder %s276, %s278
    %p282 = scmp.eq.s32.totalorder %s27, 0
    %p283 = por %p281, %p282
    %p284 = scmp.ne.s32.totalorder %s276, %s278
    %p285 = scmp.eq.s32.totalorder %s32, 1
    %p286 = por %p284, %p285
    %p287 = scmp.ne.s32.totalorder %s278, %s279
    %p288 = scmp.eq.s32.totalorder %s32, 0
    %p289 = por %p287, %p288
    %p290 = scmp.ne.s32.totalorder %s278, %s279
    %p291 = scmp.eq.s32.totalorder %s33, 1
    %p292 = por %p290, %p291
    %p294 = scmp.ne.s32.totalorder %s279, %s293
    %p295 = scmp.eq.s32.totalorder %s33, 0
    %p296 = por %p294, %p295
    %s298 = sadd.s32 %s297, 1
    %p301 = scmp.eq.s32.totalorder %s27, 1
    %p302 = scmp.ne.s32.totalorder %s297, %s299
    %p303 = scmp.eq.s32.totalorder %s27, 0
    %p304 = por %p302, %p303
    %p305 = scmp.ne.s32.totalorder %s297, %s299
    %p306 = scmp.eq.s32.totalorder %s32, 1
    %p307 = por %p305, %p306
    %p308 = scmp.ne.s32.totalorder %s299, %s300
    %p309 = scmp.eq.s32.totalorder %s32, 0
    %p310 = por %p308, %p309
    %p311 = scmp.ne.s32.totalorder %s299, %s300
    %p312 = scmp.eq.s32.totalorder %s33, 1
    %p313 = por %p311, %p312
    %p315 = scmp.ne.s32.totalorder %s300, %s314
    %p316 = scmp.eq.s32.totalorder %s33, 0
    %p317 = por %p315, %p316
    %s319 = sadd.s32 %s318, 1
    %p322 = scmp.eq.s32.totalorder %s27, 1
    %p323 = scmp.ne.s32.totalorder %s318, %s320
    %p324 = scmp.eq.s32.totalorder %s27, 0
    %p325 = por %p323, %p324
    %p326 = scmp.ne.s32.totalorder %s318, %s320
    %p327 = scmp.eq.s32.totalorder %s32, 1
    %p328 = por %p326, %p327
    %p329 = scmp.ne.s32.totalorder %s320, %s321
    %p330 = scmp.eq.s32.totalorder %s32, 0
    %p331 = por %p329, %p330
    %p332 = scmp.ne.s32.totalorder %s320, %s321
    %p333 = scmp.eq.s32.totalorder %s33, 1
    %p334 = por %p332, %p333
    %p336 = scmp.ne.s32.totalorder %s321, %s335
    %p337 = scmp.eq.s32.totalorder %s33, 0
    %p338 = por %p336, %p337
    %s340 = sadd.s32 %s339, 1
    %p343 = scmp.eq.s32.totalorder %s27, 1
    %p344 = scmp.ne.s32.totalorder %s339, %s341
    %p345 = scmp.eq.s32.totalorder %s27, 0
    %p346 = por %p344, %p345
    %p347 = scmp.ne.s32.totalorder %s339, %s341
    %p348 = scmp.eq.s32.totalorder %s32, 1
    %p349 = por %p347, %p348
    %p350 = scmp.ne.s32.totalorder %s341, %s342
    %p351 = scmp.eq.s32.totalorder %s32, 0
    %p352 = por %p350, %p351
    %p353 = scmp.ne.s32.totalorder %s341, %s342
    %p354 = scmp.eq.s32.totalorder %s33, 1
    %p355 = por %p353, %p354
    %p357 = scmp.ne.s32.totalorder %s342, %s356
    %p358 = scmp.eq.s32.totalorder %s33, 0
    %p359 = por %p357, %p358
    %s361 = sadd.s32 %s360, 1
    %p364 = scmp.eq.s32.totalorder %s27, 1
    %p365 = scmp.ne.s32.totalorder %s360, %s362
    %p366 = scmp.eq.s32.totalorder %s27, 0
    %p367 = por %p365, %p366
    %p368 = scmp.ne.s32.totalorder %s360, %s362
    %p369 = scmp.eq.s32.totalorder %s32, 1
    %p370 = por %p368, %p369
    %p371 = scmp.ne.s32.totalorder %s362, %s363
    %p372 = scmp.eq.s32.totalorder %s32, 0
    %p373 = por %p371, %p372
    %p374 = scmp.ne.s32.totalorder %s362, %s363
    %p375 = scmp.eq.s32.totalorder %s33, 1
    %p376 = por %p374, %p375
    %p378 = scmp.ne.s32.totalorder %s363, %s377
    %p379 = scmp.eq.s32.totalorder %s33, 0
    %p380 = por %p378, %p379
    %s382 = sadd.s32 %s381, 1
    %p385 = scmp.eq.s32.totalorder %s27, 1
    %p386 = scmp.ne.s32.totalorder %s381, %s383
    %p387 = scmp.eq.s32.totalorder %s27, 0
    %p388 = por %p386, %p387
    %p389 = scmp.ne.s32.totalorder %s381, %s383
    %p390 = scmp.eq.s32.totalorder %s32, 1
    %p391 = por %p389, %p390
    %p392 = scmp.ne.s32.totalorder %s383, %s384
    %p393 = scmp.eq.s32.totalorder %s32, 0
    %p394 = por %p392, %p393
    %p395 = scmp.ne.s32.totalorder %s383, %s384
    %p396 = scmp.eq.s32.totalorder %s33, 1
    %p397 = por %p395, %p396
    %p399 = scmp.ne.s32.totalorder %s384, %s398
    %p400 = scmp.eq.s32.totalorder %s33, 0
    %p401 = por %p399, %p400
    %s403 = sadd.s32 %s402, 1
    %p406 = scmp.eq.s32.totalorder %s27, 1
    %p407 = scmp.ne.s32.totalorder %s402, %s404
    %p408 = scmp.eq.s32.totalorder %s27, 0
    %p409 = por %p407, %p408
    %p410 = scmp.ne.s32.totalorder %s402, %s404
    %p411 = scmp.eq.s32.totalorder %s32, 1
    %p412 = por %p410, %p411
    %p413 = scmp.ne.s32.totalorder %s404, %s405
    %p414 = scmp.eq.s32.totalorder %s32, 0
    %p415 = por %p413, %p414
    %p416 = scmp.ne.s32.totalorder %s404, %s405
    %p417 = scmp.eq.s32.totalorder %s33, 1
    %p418 = por %p416, %p417
    %p420 = scmp.ne.s32.totalorder %s405, %s419
    %p421 = scmp.eq.s32.totalorder %s33, 0
    %p422 = por %p420, %p421
    %s424 = sadd.s32 %s423, 1
    %p427 = scmp.eq.s32.totalorder %s27, 1
    %p428 = scmp.ne.s32.totalorder %s423, %s425
    %p429 = scmp.eq.s32.totalorder %s27, 0
    %p430 = por %p428, %p429
    %p431 = scmp.ne.s32.totalorder %s423, %s425
    %p432 = scmp.eq.s32.totalorder %s32, 1
    %p433 = por %p431, %p432
    %p434 = scmp.ne.s32.totalorder %s425, %s426
    %p435 = scmp.eq.s32.totalorder %s32, 0
    %p436 = por %p434, %p435
    %p437 = scmp.ne.s32.totalorder %s425, %s426
    %p438 = scmp.eq.s32.totalorder %s33, 1
    %p439 = por %p437, %p438
    %p441 = scmp.ne.s32.totalorder %s426, %s440
    %p442 = scmp.eq.s32.totalorder %s33, 0
    %p443 = por %p441, %p442
    %s445 = sadd.s32 %s444, 1
    %p448 = scmp.eq.s32.totalorder %s27, 1
    %p449 = scmp.ne.s32.totalorder %s444, %s446
    %p450 = scmp.eq.s32.totalorder %s27, 0
    %p451 = por %p449, %p450
    %p452 = scmp.ne.s32.totalorder %s444, %s446
    %p453 = scmp.eq.s32.totalorder %s32, 1
    %p454 = por %p452, %p453
    %p455 = scmp.ne.s32.totalorder %s446, %s447
    %p456 = scmp.eq.s32.totalorder %s32, 0
    %p457 = por %p455, %p456
    %p458 = scmp.ne.s32.totalorder %s446, %s447
    %p459 = scmp.eq.s32.totalorder %s33, 1
    %p460 = por %p458, %p459
    %p462 = scmp.ne.s32.totalorder %s447, %s461
    %p463 = scmp.eq.s32.totalorder %s33, 0
    %p464 = por %p462, %p463
    %s466 = sadd.s32 %s465, 1
    %p469 = scmp.eq.s32.totalorder %s27, 1
    %p470 = scmp.ne.s32.totalorder %s465, %s467
    %p471 = scmp.eq.s32.totalorder %s27, 0
    %p472 = por %p470, %p471
    %p473 = scmp.ne.s32.totalorder %s465, %s467
    %p474 = scmp.eq.s32.totalorder %s32, 1
    %p475 = por %p473, %p474
    %p476 = scmp.ne.s32.totalorder %s467, %s468
    %p477 = scmp.eq.s32.totalorder %s32, 0
    %p478 = por %p476, %p477
    %p479 = scmp.ne.s32.totalorder %s467, %s468
    %p480 = scmp.eq.s32.totalorder %s33, 1
    %p481 = por %p479, %p480
    %p483 = scmp.ne.s32.totalorder %s468, %s482
    %p484 = scmp.eq.s32.totalorder %s33, 0
    %p485 = por %p483, %p484
    %s486 = ssub.s32 %s27, %s34
    %p487 = scmp.eq.s32.totalorder %s486, 0
    %s489 = sadd.s32 %s488, 1
    %s490 = scalar_select %p487, %s488, %s489
    %p493 = pneg %p487
    %p494 = scmp.eq.s32.totalorder %s27, 1
    %p495 = por %p493, %p494
    %p496 = scmp.ne.s32.totalorder %s488, %s491
    %p497 = scmp.eq.s32.totalorder %s27, 0
    %p498 = por %p496, %p497
    %p499 = scmp.ne.s32.totalorder %s488, %s491
    %p500 = scmp.eq.s32.totalorder %s32, 1
    %p501 = por %p499, %p500
    %p502 = scmp.ne.s32.totalorder %s491, %s492
    %p503 = scmp.eq.s32.totalorder %s32, 0
    %p504 = por %p502, %p503
    %p505 = scmp.ne.s32.totalorder %s491, %s492
    %p506 = scmp.eq.s32.totalorder %s33, 1
    %p507 = por %p505, %p506
    %p509 = scmp.ne.s32.totalorder %s492, %s508
    %p510 = scmp.eq.s32.totalorder %s33, 0
    %p511 = por %p509, %p510
    %p512 = scmp.le.s32.totalorder 1, %s27
    %p513 = scmp.lt.s32.totalorder %s27, 3
    %p514 = pnand %p512, %p513
    %p515 = pneg %p514
    // Predicated region
    $region9: #{dcablock_forward.1} parent=5 // pred_check
      _
    $region10: #{dcablock_forward.1} parent=5 // pred_check_branch
      %517 = sbr.rel (%p514) target = $region12
    $region11: #{dcablock_forward.1} parent=5 // pred_region
      %s518 = ssub.s32 %s27, 1
      // Predicated region
      $region13: #{dcablock_forward.1} parent=11 // pred_check
        %p519 = pneg %p100
      $region14: #{dcablock_forward.1} parent=11 // pred_check_branch
        %521 = sbr.rel (%p519) target = $region16
      $region15: #{dcablock_forward.1} parent=11 // pred_region
        _
      $region16: #{dcablock_forward.1} parent=11 // pred_fallthru
        _
      // Predicated region
      $region17: #{dcablock_forward.1} parent=11 // pred_check
        %p522 = pneg %p121
      $region18: #{dcablock_forward.1} parent=11 // pred_check_branch
        %524 = sbr.rel (%p522) target = $region20
      $region19: #{dcablock_forward.1} parent=11 // pred_region
        _
      $region20: #{dcablock_forward.1} parent=11 // pred_fallthru
        _
      // Predicated region
      $region21: #{dcablock_forward.1} parent=11 // pred_check
        %p525 = pneg %p142
      $region22: #{dcablock_forward.1} parent=11 // pred_check_branch
        %527 = sbr.rel (%p525) target = $region24
      $region23: #{dcablock_forward.1} parent=11 // pred_region
        _
      $region24: #{dcablock_forward.1} parent=11 // pred_fallthru
        _
      // Predicated region
      $region25: #{dcablock_forward.1} parent=11 // pred_check
        %p528 = pneg %p163
      $region26: #{dcablock_forward.1} parent=11 // pred_check_branch
        %530 = sbr.rel (%p528) target = $region28
      $region27: #{dcablock_forward.1} parent=11 // pred_region
        _
      $region28: #{dcablock_forward.1} parent=11 // pred_fallthru
        _
      // Predicated region
      $region29: #{dcablock_forward.1} parent=11 // pred_check
        %p531 = pneg %p184
      $region30: #{dcablock_forward.1} parent=11 // pred_check_branch
        %533 = sbr.rel (%p531) target = $region32
      $region31: #{dcablock_forward.1} parent=11 // pred_region
        _
      $region32: #{dcablock_forward.1} parent=11 // pred_fallthru
        _
      // Predicated region
      $region33: #{dcablock_forward.1} parent=11 // pred_check
        %p534 = pneg %p205
      $region34: #{dcablock_forward.1} parent=11 // pred_check_branch
        %536 = sbr.rel (%p534) target = $region36
      $region35: #{dcablock_forward.1} parent=11 // pred_region
        _
      $region36: #{dcablock_forward.1} parent=11 // pred_fallthru
        _
      // Predicated region
      $region37: #{dcablock_forward.1} parent=11 // pred_check
        %p537 = pneg %p226
      $region38: #{dcablock_forward.1} parent=11 // pred_check_branch
        %539 = sbr.rel (%p537) target = $region40
      $region39: #{dcablock_forward.1} parent=11 // pred_region
        _
      $region40: #{dcablock_forward.1} parent=11 // pred_fallthru
        _
      // Predicated region
      $region41: #{dcablock_forward.1} parent=11 // pred_check
        %p540 = pneg %p247
      $region42: #{dcablock_forward.1} parent=11 // pred_check_branch
        %542 = sbr.rel (%p540) target = $region44
      $region43: #{dcablock_forward.1} parent=11 // pred_region
        _
      $region44: #{dcablock_forward.1} parent=11 // pred_fallthru
        _
      // Predicated region
      $region45: #{dcablock_forward.1} parent=11 // pred_check
        %p543 = pneg %p268
      $region46: #{dcablock_forward.1} parent=11 // pred_check_branch
        %545 = sbr.rel (%p543) target = $region48
      $region47: #{dcablock_forward.1} parent=11 // pred_region
        _
      $region48: #{dcablock_forward.1} parent=11 // pred_fallthru
        _
      // Predicated region
      $region49: #{dcablock_forward.1} parent=11 // pred_check
        %p546 = pneg %p289
      $region50: #{dcablock_forward.1} parent=11 // pred_check_branch
        %548 = sbr.rel (%p546) target = $region52
      $region51: #{dcablock_forward.1} parent=11 // pred_region
        _
      $region52: #{dcablock_forward.1} parent=11 // pred_fallthru
        _
      // Predicated region
      $region53: #{dcablock_forward.1} parent=11 // pred_check
        %p549 = pneg %p310
      $region54: #{dcablock_forward.1} parent=11 // pred_check_branch
        %551 = sbr.rel (%p549) target = $region56
      $region55: #{dcablock_forward.1} parent=11 // pred_region
        _
      $region56: #{dcablock_forward.1} parent=11 // pred_fallthru
        _
      // Predicated region
      $region57: #{dcablock_forward.1} parent=11 // pred_check
        %p552 = pneg %p331
      $region58: #{dcablock_forward.1} parent=11 // pred_check_branch
        %554 = sbr.rel (%p552) target = $region60
      $region59: #{dcablock_forward.1} parent=11 // pred_region
        _
      $region60: #{dcablock_forward.1} parent=11 // pred_fallthru
        _
      // Predicated region
      $region61: #{dcablock_forward.1} parent=11 // pred_check
        %p555 = pneg %p352
      $region62: #{dcablock_forward.1} parent=11 // pred_check_branch
        %557 = sbr.rel (%p555) target = $region64
      $region63: #{dcablock_forward.1} parent=11 // pred_region
        _
      $region64: #{dcablock_forward.1} parent=11 // pred_fallthru
        _
      // Predicated region
      $region65: #{dcablock_forward.1} parent=11 // pred_check
        %p558 = pneg %p373
      $region66: #{dcablock_forward.1} parent=11 // pred_check_branch
        %560 = sbr.rel (%p558) target = $region68
      $region67: #{dcablock_forward.1} parent=11 // pred_region
        _
      $region68: #{dcablock_forward.1} parent=11 // pred_fallthru
        _
      // Predicated region
      $region69: #{dcablock_forward.1} parent=11 // pred_check
        %p561 = pneg %p394
      $region70: #{dcablock_forward.1} parent=11 // pred_check_branch
        %563 = sbr.rel (%p561) target = $region72
      $region71: #{dcablock_forward.1} parent=11 // pred_region
        _
      $region72: #{dcablock_forward.1} parent=11 // pred_fallthru
        _
      // Predicated region
      $region73: #{dcablock_forward.1} parent=11 // pred_check
        %p564 = pneg %p415
      $region74: #{dcablock_forward.1} parent=11 // pred_check_branch
        %566 = sbr.rel (%p564) target = $region76
      $region75: #{dcablock_forward.1} parent=11 // pred_region
        _
      $region76: #{dcablock_forward.1} parent=11 // pred_fallthru
        _
      // Predicated region
      $region77: #{dcablock_forward.1} parent=11 // pred_check
        %p567 = pneg %p436
      $region78: #{dcablock_forward.1} parent=11 // pred_check_branch
        %569 = sbr.rel (%p567) target = $region80
      $region79: #{dcablock_forward.1} parent=11 // pred_region
        _
      $region80: #{dcablock_forward.1} parent=11 // pred_fallthru
        _
      // Predicated region
      $region81: #{dcablock_forward.1} parent=11 // pred_check
        %p570 = pneg %p457
      $region82: #{dcablock_forward.1} parent=11 // pred_check_branch
        %572 = sbr.rel (%p570) target = $region84
      $region83: #{dcablock_forward.1} parent=11 // pred_region
        _
      $region84: #{dcablock_forward.1} parent=11 // pred_fallthru
        _
      // Predicated region
      $region85: #{dcablock_forward.1} parent=11 // pred_check
        %p573 = pneg %p478
      $region86: #{dcablock_forward.1} parent=11 // pred_check_branch
        %575 = sbr.rel (%p573) target = $region88
      $region87: #{dcablock_forward.1} parent=11 // pred_region
        _
      $region88: #{dcablock_forward.1} parent=11 // pred_fallthru
        _
    $region12: #{dcablock_forward.1} parent=5 // pred_fallthru
      _
    %p576 = scmp.lt.s32.totalorder %s27, 2
    // Predicated region
    $region89: #{dcablock_forward.1} parent=5 // pred_check
      %p577 = pneg %p576
    $region90: #{dcablock_forward.1} parent=5 // pred_check_branch
      %579 = sbr.rel (%p577) target = $region92
    $region91: #{dcablock_forward.1} parent=5 // pred_region
      // Predicated region
      $region93: #{dcablock_forward.1} parent=91 // pred_check
        %p580 = pneg %p47
      $region94: #{dcablock_forward.1} parent=91 // pred_check_branch
        %582 = sbr.rel (%p580) target = $region96
      $region95: #{dcablock_forward.1} parent=91 // pred_region
        %p583 = scmp.lt.s32.totalorder %s27, 1
        %s584 = scalar_select %p583, %s27, 1
        %s585 = smul.addr %s584, 32
        %s586 = smul.addr %s585, 8
        %s587 = scalar_lea.vmem %s0, %s586
      $region96: #{dcablock_forward.1} parent=91 // pred_fallthru
        _
      // Predicated region
      $region97: #{dcablock_forward.1} parent=91 // pred_check
        %p588 = pneg %p73
      $region98: #{dcablock_forward.1} parent=91 // pred_check_branch
        %590 = sbr.rel (%p588) target = $region100
      $region99: #{dcablock_forward.1} parent=91 // pred_region
        %p591 = scmp.lt.s32.totalorder %s27, 1
        %s592 = scalar_select %p591, %s27, 1
        %s593 = smul.addr %s592, 32
        %s594 = smul.addr %s593, 8
        %s595 = scalar_lea.vmem %s1, %s594
      $region100: #{dcablock_forward.1} parent=91 // pred_fallthru
        _
    $region92: #{dcablock_forward.1} parent=5 // pred_fallthru
      _
    %p596 = scmp.le.s32.totalorder 1, %s27
    %p597 = scmp.lt.s32.totalorder %s27, 3
    %p598 = pnand %p596, %p597
    %p599 = pneg %p598
    // Predicated region
    $region101: #{dcablock_forward.1} parent=5 // pred_check
      _
    $region102: #{dcablock_forward.1} parent=5 // pred_check_branch
      %601 = sbr.rel (%p598) target = $region104
    $region103: #{dcablock_forward.1} parent=5 // pred_region
      %s602 = ssub.s32 %s27, 1
      %p603 = scmp.lt.s32.totalorder %s32, 1
      %s604 = scalar_select %p603, %s32, 1
      %s605 = smul.addr %s604, 32
      %s606 = smul.addr %s605, 8
      %s607 = scalar_lea.vmem %s0, %s606
      %p608 = pneg %p53
      %p609 = pneg %p50
      %p610 = scmp.lt.s32.totalorder %s32, 1
      %s611 = scalar_select %p610, %s32, 1
      %s612 = smul.addr %s611, 32
      %s613 = smul.addr %s612, 8
      %s614 = scalar_lea.vmem %s1, %s613
      %p615 = pneg %p79
      %p616 = pneg %p76
      %p617 = pneg %p100
      %p618 = pneg %p97
      %p619 = pneg %p121
      %p620 = pneg %p118
      %p621 = pneg %p142
      %p622 = pneg %p139
      %p623 = pneg %p163
      %p624 = pneg %p160
      %p625 = pneg %p184
      %p626 = pneg %p181
      %p627 = pneg %p205
      %p628 = pneg %p202
      %p629 = pneg %p226
      %p630 = pneg %p223
      %p631 = pneg %p247
      %p632 = pneg %p244
      %p633 = pneg %p268
      %p634 = pneg %p265
      %p635 = pneg %p289
      %p636 = pneg %p286
      %p637 = pneg %p310
      %p638 = pneg %p307
      %p639 = pneg %p331
      %p640 = pneg %p328
      %p641 = pneg %p352
      %p642 = pneg %p349
      %p643 = pneg %p373
      %p644 = pneg %p370
      %p645 = pneg %p394
      %p646 = pneg %p391
      %p647 = pneg %p415
      %p648 = pneg %p412
      %p649 = pneg %p436
      %p650 = pneg %p433
      %p651 = pneg %p457
      %p652 = pneg %p454
      %p653 = pneg %p478
      %p654 = pneg %p475
      %p655 = pneg %p504
      %p656 = pneg %p501
      %p657 = scmp.lt.s32.totalorder %s32, 1
      %s658 = scalar_select %p657, %s32, 1
      %s659 = smul.addr %s658, 32
      %s660 = smul.addr %s659, 8
      %s661 = scalar_lea.vmem %s21, %s660
      %p662 = scmp.lt.s32.totalorder %s32, 1
      %s663 = scalar_select %p662, %s32, 1
      %s664 = smul.addr %s663, 32
      %s665 = smul.addr %s664, 8
      %s666 = scalar_lea.vmem %s0, %s665
      %p667 = scmp.lt.s32.totalorder %s32, 1
      %s668 = scalar_select %p667, %s32, 1
      %s669 = smul.addr %s668, 32
      %s670 = smul.addr %s669, 8
      %s671 = scalar_lea.vmem %s1, %s670
      %p672 = scmp.lt.s32.totalorder %s32, 1
      %s673 = scalar_select %p672, %s32, 1
      %s674 = smul.addr %s673, 32
      %s675 = smul.addr %s674, 8
      %s676 = scalar_lea.vmem %s21, %s675
      %677 = vst [vmem:[#allocation2] sm:$0xff] 0.0
      %678 = vst [vmem:[#allocation2 + $0x8] sm:$0xff] 0.0
      %679 = vst [vmem:[#allocation2 + $0x10] sm:$0x3] 0.0
      %680 = vst [vmem:[#allocation2 + $0x18] sm:$0xff] 0.0
      %681 = vst [vmem:[#allocation2 + $0x20] sm:$0xff] 0.0
      %682 = vst [vmem:[#allocation2 + $0x28] sm:$0x3] 0.0
      %683 = vst [vmem:[#allocation2 + $0x30] sm:$0xff] 0.0
      %684 = vst [vmem:[#allocation2 + $0x38] sm:$0xff] 0.0
      %685 = vst [vmem:[#allocation2 + $0x40] sm:$0x3] 0.0
      %686 = vst [vmem:[#allocation2 + $0x48] sm:$0xff] 0.0
      %687 = vst [vmem:[#allocation2 + $0x50] sm:$0xff] 0.0
      %688 = vst [vmem:[#allocation2 + $0x58] sm:$0x3] 0.0
      %689 = vst [vmem:[#allocation2 + $0x60] sm:$0xff] 0.0
      %690 = vst [vmem:[#allocation2 + $0x68] sm:$0xff] 0.0
      %691 = vst [vmem:[#allocation2 + $0x70] sm:$0x3] 0.0
      %692 = vst [vmem:[#allocation2 + $0x78] sm:$0xff] 0.0
      %693 = vst [vmem:[#allocation2 + $0x80] sm:$0xff] 0.0
      %694 = vst [vmem:[#allocation2 + $0x88] sm:$0x3] 0.0
      %695 = vst [vmem:[#allocation2 + $0x90] sm:$0xff] 0.0
      %696 = vst [vmem:[#allocation2 + $0x98] sm:$0xff] 0.0
      %697 = vst [vmem:[#allocation2 + $0xa0] sm:$0x3] 0.0
      %698 = vst [vmem:[#allocation2 + $0xa8] sm:$0xff] 0.0
      %699 = vst [vmem:[#allocation2 + $0xb0] sm:$0xff] 0.0
      %700 = vst [vmem:[#allocation2 + $0xb8] sm:$0x3] 0.0
      %701 = vst [vmem:[#allocation2 + $0xc0] sm:$0xff] 0.0
      %702 = vst [vmem:[#allocation2 + $0xc8] sm:$0xff] 0.0
      %703 = vst [vmem:[#allocation2 + $0xd0] sm:$0x3] 0.0
      %704 = vst [vmem:[#allocation2 + $0xd8] sm:$0xff] 0.0
      %705 = vst [vmem:[#allocation2 + $0xe0] sm:$0xff] 0.0
      %706 = vst [vmem:[#allocation2 + $0xe8] sm:$0x3] 0.0
      %707 = vst [vmem:[#allocation2 + $0xf0] sm:$0xff] 0.0
      %708 = vst [vmem:[#allocation2 + $0xf8] sm:$0xff] 0.0
      %709 = vst [vmem:[#allocation2 + $0x100] sm:$0x3] 0.0
      %710 = vst [vmem:[#allocation2 + $0x108] sm:$0xff] 0.0
      %711 = vst [vmem:[#allocation2 + $0x110] sm:$0xff] 0.0
      %712 = vst [vmem:[#allocation2 + $0x118] sm:$0x3] 0.0
      %713 = vst [vmem:[#allocation2 + $0x120] sm:$0xff] 0.0
      %714 = vst [vmem:[#allocation2 + $0x128] sm:$0xff] 0.0
      %715 = vst [vmem:[#allocation2 + $0x130] sm:$0x3] 0.0
      %716 = vst [vmem:[#allocation2 + $0x138] sm:$0xff] 0.0
      %717 = vst [vmem:[#allocation2 + $0x140] sm:$0xff] 0.0
      %718 = vst [vmem:[#allocation2 + $0x148] sm:$0x3] 0.0
      %719 = vst [vmem:[#allocation2 + $0x150] sm:$0xff] 0.0
      %720 = vst [vmem:[#allocation2 + $0x158] sm:$0xff] 0.0
      %721 = vst [vmem:[#allocation2 + $0x160] sm:$0x3] 0.0
      %722 = vst [vmem:[#allocation2 + $0x168] sm:$0xff] 0.0
      %723 = vst [vmem:[#allocation2 + $0x170] sm:$0xff] 0.0
      %724 = vst [vmem:[#allocation2 + $0x178] sm:$0x3] 0.0
      %725 = vst [vmem:[#allocation2 + $0x180] sm:$0xff] 0.0
      %726 = vst [vmem:[#allocation2 + $0x188] sm:$0xff] 0.0
      %727 = vst [vmem:[#allocation2 + $0x190] sm:$0x3] 0.0
      %728 = vst [vmem:[#allocation2 + $0x198] sm:$0xff] 0.0
      %729 = vst [vmem:[#allocation2 + $0x1a0] sm:$0xff] 0.0
      %730 = vst [vmem:[#allocation2 + $0x1a8] sm:$0x3] 0.0
      %731 = vst [vmem:[#allocation3] sm:$0xff] 0.0
      %732 = vst [vmem:[#allocation3 + $0x8] sm:$0xff] 0.0
      %733 = vst [vmem:[#allocation3 + $0x10] sm:$0x3] 0.0
      %734 = vst [vmem:[#allocation3 + $0x18] sm:$0xff] 0.0
      %735 = vst [vmem:[#allocation3 + $0x20] sm:$0xff] 0.0
      %736 = vst [vmem:[#allocation3 + $0x28] sm:$0x3] 0.0
      %737 = vst [vmem:[#allocation3 + $0x30] sm:$0xff] 0.0
      %738 = vst [vmem:[#allocation3 + $0x38] sm:$0xff] 0.0
      %739 = vst [vmem:[#allocation3 + $0x40] sm:$0x3] 0.0
      %740 = vst [vmem:[#allocation3 + $0x48] sm:$0xff] 0.0
      %741 = vst [vmem:[#allocation3 + $0x50] sm:$0xff] 0.0
      %742 = vst [vmem:[#allocation3 + $0x58] sm:$0x3] 0.0
      %743 = vst [vmem:[#allocation3 + $0x60] sm:$0xff] 0.0
      %744 = vst [vmem:[#allocation3 + $0x68] sm:$0xff] 0.0
      %745 = vst [vmem:[#allocation3 + $0x70] sm:$0x3] 0.0
      %746 = vst [vmem:[#allocation3 + $0x78] sm:$0xff] 0.0
      %747 = vst [vmem:[#allocation3 + $0x80] sm:$0xff] 0.0
      %748 = vst [vmem:[#allocation3 + $0x88] sm:$0x3] 0.0
      %749 = vst [vmem:[#allocation3 + $0x90] sm:$0xff] 0.0
      %750 = vst [vmem:[#allocation3 + $0x98] sm:$0xff] 0.0
      %751 = vst [vmem:[#allocation3 + $0xa0] sm:$0x3] 0.0
      %752 = vst [vmem:[#allocation3 + $0xa8] sm:$0xff] 0.0
      %753 = vst [vmem:[#allocation3 + $0xb0] sm:$0xff] 0.0
      %754 = vst [vmem:[#allocation3 + $0xb8] sm:$0x3] 0.0
      %755 = vst [vmem:[#allocation3 + $0xc0] sm:$0xff] 0.0
      %756 = vst [vmem:[#allocation3 + $0xc8] sm:$0xff] 0.0
      %757 = vst [vmem:[#allocation3 + $0xd0] sm:$0x3] 0.0
      %758 = vst [vmem:[#allocation3 + $0xd8] sm:$0xff] 0.0
      %759 = vst [vmem:[#allocation3 + $0xe0] sm:$0xff] 0.0
      %760 = vst [vmem:[#allocation3 + $0xe8] sm:$0x3] 0.0
      %761 = vst [vmem:[#allocation3 + $0xf0] sm:$0xff] 0.0
      %762 = vst [vmem:[#allocation3 + $0xf8] sm:$0xff] 0.0
      %763 = vst [vmem:[#allocation3 + $0x100] sm:$0x3] 0.0
      %764 = vst [vmem:[#allocation3 + $0x108] sm:$0xff] 0.0
      %765 = vst [vmem:[#allocation3 + $0x110] sm:$0xff] 0.0
      %766 = vst [vmem:[#allocation3 + $0x118] sm:$0x3] 0.0
      %767 = vst [vmem:[#allocation3 + $0x120] sm:$0xff] 0.0
      %768 = vst [vmem:[#allocation3 + $0x128] sm:$0xff] 0.0
      %769 = vst [vmem:[#allocation3 + $0x130] sm:$0x3] 0.0
      %770 = vst [vmem:[#allocation3 + $0x138] sm:$0xff] 0.0
      %771 = vst [vmem:[#allocation3 + $0x140] sm:$0xff] 0.0
      %772 = vst [vmem:[#allocation3 + $0x148] sm:$0x3] 0.0
      %773 = vst [vmem:[#allocation3 + $0x150] sm:$0xff] 0.0
      %774 = vst [vmem:[#allocation3 + $0x158] sm:$0xff] 0.0
      %775 = vst [vmem:[#allocation3 + $0x160] sm:$0x3] 0.0
      %776 = vst [vmem:[#allocation3 + $0x168] sm:$0xff] 0.0
      %777 = vst [vmem:[#allocation3 + $0x170] sm:$0xff] 0.0
      %778 = vst [vmem:[#allocation3 + $0x178] sm:$0x3] 0.0
      %779 = vst [vmem:[#allocation3 + $0x180] sm:$0xff] 0.0
      %780 = vst [vmem:[#allocation3 + $0x188] sm:$0xff] 0.0
      %781 = vst [vmem:[#allocation3 + $0x190] sm:$0x3] 0.0
      %782 = vst [vmem:[#allocation3 + $0x198] sm:$0xff] 0.0
      %783 = vst [vmem:[#allocation3 + $0x1a0] sm:$0xff] 0.0
      %784 = vst [vmem:[#allocation3 + $0x1a8] sm:$0x3] 0.0
      %v785 = vld [vmem:[%s666] sm:$0xff]
      %v786 = vld [vmem:[%s666 + $0x8] sm:$0xff]
      %v787 = vld [vmem:[%s666 + $0x10] sm:$0xff]
      %v788 = vld [vmem:[%s666 + $0x18] sm:$0xff]
      %v789 = vld [vmem:[%s666 + $0x20] sm:$0xff]
      %v790 = vld [vmem:[%s666 + $0x28] sm:$0xff]
      %v791 = vld [vmem:[%s666 + $0x30] sm:$0xff]
      %v792 = vld [vmem:[%s666 + $0x38] sm:$0xff]
      %v793 = vld [vmem:[%s666 + $0x40] sm:$0xff]
      %v794 = vld [vmem:[%s666 + $0x48] sm:$0xff]
      %v795 = vld [vmem:[%s666 + $0x50] sm:$0xff]
      %v796 = vld [vmem:[%s666 + $0x58] sm:$0xff]
      %v797 = vld [vmem:[%s666 + $0x60] sm:$0xff]
      %v798 = vld [vmem:[%s666 + $0x68] sm:$0xff]
      %v799 = vld [vmem:[%s666 + $0x70] sm:$0xff]
      %v800 = vld [vmem:[%s666 + $0x78] sm:$0xff]
      %s801 = scalar_lea.vmem [#allocation2], 24
      %802 = vst [vmem:[%s801 + $0x1] sm:$0xff] %v785
      %803 = vst [vmem:[%s801 + $0x9] sm:$0xff] %v786
      %804 = vst [vmem:[%s801 + $0x19] sm:$0xff] %v787
      %805 = vst [vmem:[%s801 + $0x21] sm:$0xff] %v788
      %806 = vst [vmem:[%s801 + $0x31] sm:$0xff] %v789
      %807 = vst [vmem:[%s801 + $0x39] sm:$0xff] %v790
      %808 = vst [vmem:[%s801 + $0x49] sm:$0xff] %v791
      %809 = vst [vmem:[%s801 + $0x51] sm:$0xff] %v792
      %810 = vst [vmem:[%s801 + $0x61] sm:$0xff] %v793
      %811 = vst [vmem:[%s801 + $0x69] sm:$0xff] %v794
      %812 = vst [vmem:[%s801 + $0x79] sm:$0xff] %v795
      %813 = vst [vmem:[%s801 + $0x81] sm:$0xff] %v796
      %814 = vst [vmem:[%s801 + $0x91] sm:$0xff] %v797
      %815 = vst [vmem:[%s801 + $0x99] sm:$0xff] %v798
      %816 = vst [vmem:[%s801 + $0xa9] sm:$0xff] %v799
      %817 = vst [vmem:[%s801 + $0xb1] sm:$0xff] %v800
      %s818 = scalar_lea.vmem %s666, 128
      %v819 = vld [vmem:[%s818] sm:$0xff]
      %v820 = vld [vmem:[%s818 + $0x8] sm:$0xff]
      %v821 = vld [vmem:[%s818 + $0x10] sm:$0xff]
      %v822 = vld [vmem:[%s818 + $0x18] sm:$0xff]
      %v823 = vld [vmem:[%s818 + $0x20] sm:$0xff]
      %v824 = vld [vmem:[%s818 + $0x28] sm:$0xff]
      %v825 = vld [vmem:[%s818 + $0x30] sm:$0xff]
      %v826 = vld [vmem:[%s818 + $0x38] sm:$0xff]
      %v827 = vld [vmem:[%s818 + $0x40] sm:$0xff]
      %v828 = vld [vmem:[%s818 + $0x48] sm:$0xff]
      %v829 = vld [vmem:[%s818 + $0x50] sm:$0xff]
      %v830 = vld [vmem:[%s818 + $0x58] sm:$0xff]
      %v831 = vld [vmem:[%s818 + $0x60] sm:$0xff]
      %v832 = vld [vmem:[%s818 + $0x68] sm:$0xff]
      %v833 = vld [vmem:[%s818 + $0x70] sm:$0xff]
      %v834 = vld [vmem:[%s818 + $0x78] sm:$0xff]
      %s835 = scalar_lea.vmem [#allocation2], 216
      %836 = vst [vmem:[%s835 + $0x1] sm:$0xff] %v819
      %837 = vst [vmem:[%s835 + $0x9] sm:$0xff] %v820
      %838 = vst [vmem:[%s835 + $0x19] sm:$0xff] %v821
      %839 = vst [vmem:[%s835 + $0x21] sm:$0xff] %v822
      %840 = vst [vmem:[%s835 + $0x31] sm:$0xff] %v823
      %841 = vst [vmem:[%s835 + $0x39] sm:$0xff] %v824
      %842 = vst [vmem:[%s835 + $0x49] sm:$0xff] %v825
      %843 = vst [vmem:[%s835 + $0x51] sm:$0xff] %v826
      %844 = vst [vmem:[%s835 + $0x61] sm:$0xff] %v827
      %845 = vst [vmem:[%s835 + $0x69] sm:$0xff] %v828
      %846 = vst [vmem:[%s835 + $0x79] sm:$0xff] %v829
      %847 = vst [vmem:[%s835 + $0x81] sm:$0xff] %v830
      %848 = vst [vmem:[%s835 + $0x91] sm:$0xff] %v831
      %849 = vst [vmem:[%s835 + $0x99] sm:$0xff] %v832
      %850 = vst [vmem:[%s835 + $0xa9] sm:$0xff] %v833
      %851 = vst [vmem:[%s835 + $0xb1] sm:$0xff] %v834
      %v852 = vld [vmem:[#allocation2] sm:$0xff]
      %v853 = vld [vmem:[#allocation2 + $0x8] sm:$0xff]
      %v854 = vld [vmem:[#allocation2 + $0x18] sm:$0xff]
      %v855 = vld [vmem:[#allocation2 + $0x20] sm:$0xff]
      %v856 = vld [vmem:[#allocation2 + $0x30] sm:$0xff]
      %v857 = vld [vmem:[#allocation2 + $0x38] sm:$0xff]
      %v858 = vld [vmem:[#allocation2 + $0x48] sm:$0xff]
      %v859 = vld [vmem:[#allocation2 + $0x50] sm:$0xff]
      %v860 = vld [vmem:[#allocation2 + $0x60] sm:$0xff]
      %v861 = vld [vmem:[#allocation2 + $0x68] sm:$0xff]
      %v862 = vld [vmem:[#allocation2 + $0x78] sm:$0xff]
      %v863 = vld [vmem:[#allocation2 + $0x80] sm:$0xff]
      %v864 = vld [vmem:[#allocation2 + $0x90] sm:$0xff]
      %v865 = vld [vmem:[#allocation2 + $0x98] sm:$0xff]
      %v866 = vld [vmem:[#allocation2 + $0xa8] sm:$0xff]
      %v867 = vld [vmem:[#allocation2 + $0xb0] sm:$0xff]
      %v868 = vld [vmem:[%s2] sm:$0xff]
      %v869 = vld [vmem:[%s2 + $0x8] sm:$0xff]
      %v870 = vld [vmem:[%s2 + $0x10] sm:$0xff]
      %v871 = vld [vmem:[%s2 + $0x18] sm:$0xff]
      %v872 = vld [vmem:[%s2 + $0x20] sm:$0xff]
      %v873 = vld [vmem:[%s2 + $0x28] sm:$0xff]
      %v874 = vld [vmem:[%s2 + $0x30] sm:$0xff]
      %v875 = vld [vmem:[%s2 + $0x38] sm:$0xff]
      %v876 = vld [vmem:[%s2 + $0x40] sm:$0xff]
      %v877 = vld [vmem:[%s2 + $0x48] sm:$0xff]
      %v878 = vld [vmem:[%s2 + $0x50] sm:$0xff]
      %v879 = vld [vmem:[%s2 + $0x58] sm:$0xff]
      %v880 = vld [vmem:[%s2 + $0x60] sm:$0xff]
      %v881 = vld [vmem:[%s2 + $0x68] sm:$0xff]
      %v882 = vld [vmem:[%s2 + $0x70] sm:$0xff]
      %v883 = vld [vmem:[%s2 + $0x78] sm:$0xff]
      %v884 = vld [vmem:[#allocation2 + $0x1] sm:$0xff]
      %v885 = vld [vmem:[#allocation2 + $0x9] sm:$0xff]
      %v886 = vld [vmem:[#allocation2 + $0x19] sm:$0xff]
      %v887 = vld [vmem:[#allocation2 + $0x21] sm:$0xff]
      %v888 = vld [vmem:[#allocation2 + $0x31] sm:$0xff]
      %v889 = vld [vmem:[#allocation2 + $0x39] sm:$0xff]
      %v890 = vld [vmem:[#allocation2 + $0x49] sm:$0xff]
      %v891 = vld [vmem:[#allocation2 + $0x51] sm:$0xff]
      %v892 = vld [vmem:[#allocation2 + $0x61] sm:$0xff]
      %v893 = vld [vmem:[#allocation2 + $0x69] sm:$0xff]
      %v894 = vld [vmem:[#allocation2 + $0x79] sm:$0xff]
      %v895 = vld [vmem:[#allocation2 + $0x81] sm:$0xff]
      %v896 = vld [vmem:[#allocation2 + $0x91] sm:$0xff]
      %v897 = vld [vmem:[#allocation2 + $0x99] sm:$0xff]
      %v898 = vld [vmem:[#allocation2 + $0xa9] sm:$0xff]
      %v899 = vld [vmem:[#allocation2 + $0xb1] sm:$0xff]
      %s900 = scalar_lea.vmem %s2, 128
      %v901 = vld [vmem:[%s900] sm:$0xff]
      %v902 = vld [vmem:[%s900 + $0x8] sm:$0xff]
      %v903 = vld [vmem:[%s900 + $0x10] sm:$0xff]
      %v904 = vld [vmem:[%s900 + $0x18] sm:$0xff]
      %v905 = vld [vmem:[%s900 + $0x20] sm:$0xff]
      %v906 = vld [vmem:[%s900 + $0x28] sm:$0xff]
      %v907 = vld [vmem:[%s900 + $0x30] sm:$0xff]
      %v908 = vld [vmem:[%s900 + $0x38] sm:$0xff]
      %v909 = vld [vmem:[%s900 + $0x40] sm:$0xff]
      %v910 = vld [vmem:[%s900 + $0x48] sm:$0xff]
      %v911 = vld [vmem:[%s900 + $0x50] sm:$0xff]
      %v912 = vld [vmem:[%s900 + $0x58] sm:$0xff]
      %v913 = vld [vmem:[%s900 + $0x60] sm:$0xff]
      %v914 = vld [vmem:[%s900 + $0x68] sm:$0xff]
      %v915 = vld [vmem:[%s900 + $0x70] sm:$0xff]
      %v916 = vld [vmem:[%s900 + $0x78] sm:$0xff]
      %917 = vmatpush.msra.mxu0 %v916
      %918 = vmatpush.msra.mxu0 %v915
      %919 = vmatpush.msra.mxu0 %v914
      %920 = vmatpush.msra.mxu0 %v913
      %921 = vmatpush.msra.mxu0 %v912
      %922 = vmatpush.msra.mxu0 %v911
      %923 = vmatpush.msra.mxu0 %v910
      %924 = vmatpush.msra.mxu0 %v909
      %925 = vmatpush.msra.mxu0 %v908
      %926 = vmatpush.msra.mxu0 %v907
      %927 = vmatpush.msra.mxu0 %v906
      %928 = vmatpush.msra.mxu0 %v905
      %929 = vmatpush.msra.mxu0 %v904
      %930 = vmatpush.msra.mxu0 %v903
      %931 = vmatpush.msra.mxu0 %v902
      %932 = vmatpush.msra.mxu0 %v901
      %933 = vmatmul.f32.gmra.mxu0 %v884
      %v934 = vpop.f32.mrf.mxu0
      %v935 = vadd.f32 0.0, %v934
      %936 = vmatmul.f32.gmra.mxu0 %v885
      %v937 = vpop.f32.mrf.mxu0
      %v938 = vadd.f32 0.0, %v937
      %939 = vmatmul.f32.gmra.mxu0 %v886
      %v940 = vpop.f32.mrf.mxu0
      %v941 = vadd.f32 0.0, %v940
      %942 = vmatmul.f32.gmra.mxu0 %v887
      %v943 = vpop.f32.mrf.mxu0
      %v944 = vadd.f32 0.0, %v943
      %945 = vmatmul.f32.gmra.mxu0 %v888
      %v946 = vpop.f32.mrf.mxu0
      %v947 = vadd.f32 0.0, %v946
      %948 = vmatmul.f32.gmra.mxu0 %v889
      %v949 = vpop.f32.mrf.mxu0
      %v950 = vadd.f32 0.0, %v949
      %951 = vmatmul.f32.gmra.mxu0 %v890
      %v952 = vpop.f32.mrf.mxu0
      %v953 = vadd.f32 0.0, %v952
      %954 = vmatmul.f32.gmra.mxu0 %v891
      %v955 = vpop.f32.mrf.mxu0
      %v956 = vadd.f32 0.0, %v955
      %957 = vmatmul.f32.gmra.mxu0 %v892
      %v958 = vpop.f32.mrf.mxu0
      %v959 = vadd.f32 0.0, %v958
      %960 = vmatmul.f32.gmra.mxu0 %v893
      %v961 = vpop.f32.mrf.mxu0
      %v962 = vadd.f32 0.0, %v961
      %963 = vmatmul.f32.gmra.mxu0 %v894
      %v964 = vpop.f32.mrf.mxu0
      %v965 = vadd.f32 0.0, %v964
      %966 = vmatmul.f32.gmra.mxu0 %v895
      %v967 = vpop.f32.mrf.mxu0
      %v968 = vadd.f32 0.0, %v967
      %969 = vmatmul.f32.gmra.mxu0 %v896
      %v970 = vpop.f32.mrf.mxu0
      %v971 = vadd.f32 0.0, %v970
      %972 = vmatmul.f32.gmra.mxu0 %v897
      %v973 = vpop.f32.mrf.mxu0
      %v974 = vadd.f32 0.0, %v973
      %975 = vmatmul.f32.gmra.mxu0 %v898
      %v976 = vpop.f32.mrf.mxu0
      %v977 = vadd.f32 0.0, %v976
      %978 = vmatmul.f32.gmra.mxu0 %v899
      %v979 = vpop.f32.mrf.mxu0
      %v980 = vadd.f32 0.0, %v979
      %981 = vdwg.mxu0
      %982 = vmatpush.msra.mxu0 %v883
      %983 = vmatpush.msra.mxu0 %v882
      %984 = vmatpush.msra.mxu0 %v881
      %985 = vmatpush.msra.mxu0 %v880
      %986 = vmatpush.msra.mxu0 %v879
      %987 = vmatpush.msra.mxu0 %v878
      %988 = vmatpush.msra.mxu0 %v877
      %989 = vmatpush.msra.mxu0 %v876
      %990 = vmatpush.msra.mxu0 %v875
      %991 = vmatpush.msra.mxu0 %v874
      %992 = vmatpush.msra.mxu0 %v873
      %993 = vmatpush.msra.mxu0 %v872
      %994 = vmatpush.msra.mxu0 %v871
      %995 = vmatpush.msra.mxu0 %v870
      %996 = vmatpush.msra.mxu0 %v869
      %997 = vmatpush.msra.mxu0 %v868
      %998 = vmatmul.f32.gmra.mxu0 %v852
      %v999 = vpop.f32.mrf.mxu0
      %v1000 = vadd.f32 %v935, %v999
      %1001 = vmatmul.f32.gmra.mxu0 %v853
      %v1002 = vpop.f32.mrf.mxu0
      %v1003 = vadd.f32 %v938, %v1002
      %1004 = vmatmul.f32.gmra.mxu0 %v854
      %v1005 = vpop.f32.mrf.mxu0
      %v1006 = vadd.f32 %v941, %v1005
      %1007 = vmatmul.f32.gmra.mxu0 %v855
      %v1008 = vpop.f32.mrf.mxu0
      %v1009 = vadd.f32 %v944, %v1008
      %1010 = vmatmul.f32.gmra.mxu0 %v856
      %v1011 = vpop.f32.mrf.mxu0
      %v1012 = vadd.f32 %v947, %v1011
      %1013 = vmatmul.f32.gmra.mxu0 %v857
      %v1014 = vpop.f32.mrf.mxu0
      %v1015 = vadd.f32 %v950, %v1014
      %1016 = vmatmul.f32.gmra.mxu0 %v858
      %v1017 = vpop.f32.mrf.mxu0
      %v1018 = vadd.f32 %v953, %v1017
      %1019 = vmatmul.f32.gmra.mxu0 %v859
      %v1020 = vpop.f32.mrf.mxu0
      %v1021 = vadd.f32 %v956, %v1020
      %1022 = vmatmul.f32.gmra.mxu0 %v860
      %v1023 = vpop.f32.mrf.mxu0
      %v1024 = vadd.f32 %v959, %v1023
      %1025 = vmatmul.f32.gmra.mxu0 %v861
      %v1026 = vpop.f32.mrf.mxu0
      %v1027 = vadd.f32 %v962, %v1026
      %1028 = vmatmul.f32.gmra.mxu0 %v862
      %v1029 = vpop.f32.mrf.mxu0
      %v1030 = vadd.f32 %v965, %v1029
      %1031 = vmatmul.f32.gmra.mxu0 %v863
      %v1032 = vpop.f32.mrf.mxu0
      %v1033 = vadd.f32 %v968, %v1032
      %1034 = vmatmul.f32.gmra.mxu0 %v864
      %v1035 = vpop.f32.mrf.mxu0
      %v1036 = vadd.f32 %v971, %v1035
      %1037 = vmatmul.f32.gmra.mxu0 %v865
      %v1038 = vpop.f32.mrf.mxu0
      %v1039 = vadd.f32 %v974, %v1038
      %1040 = vmatmul.f32.gmra.mxu0 %v866
      %v1041 = vpop.f32.mrf.mxu0
      %v1042 = vadd.f32 %v977, %v1041
      %1043 = vmatmul.f32.gmra.mxu0 %v867
      %v1044 = vpop.f32.mrf.mxu0
      %v1045 = vadd.f32 %v980, %v1044
      %1046 = vdwg.mxu0
      %v1047 = vld [vmem:[#allocation2 + $0x2] sm:$0xff]
      %v1048 = vld [vmem:[#allocation2 + $0xa] sm:$0xff]
      %v1049 = vld [vmem:[#allocation2 + $0x1a] sm:$0xff]
      %v1050 = vld [vmem:[#allocation2 + $0x22] sm:$0xff]
      %v1051 = vld [vmem:[#allocation2 + $0x32] sm:$0xff]
      %v1052 = vld [vmem:[#allocation2 + $0x3a] sm:$0xff]
      %v1053 = vld [vmem:[#allocation2 + $0x4a] sm:$0xff]
      %v1054 = vld [vmem:[#allocation2 + $0x52] sm:$0xff]
      %v1055 = vld [vmem:[#allocation2 + $0x62] sm:$0xff]
      %v1056 = vld [vmem:[#allocation2 + $0x6a] sm:$0xff]
      %v1057 = vld [vmem:[#allocation2 + $0x7a] sm:$0xff]
      %v1058 = vld [vmem:[#allocation2 + $0x82] sm:$0xff]
      %v1059 = vld [vmem:[#allocation2 + $0x92] sm:$0xff]
      %v1060 = vld [vmem:[#allocation2 + $0x9a] sm:$0xff]
      %v1061 = vld [vmem:[#allocation2 + $0xaa] sm:$0xff]
      %v1062 = vld [vmem:[#allocation2 + $0xb2] sm:$0xff]
      %s1063 = scalar_lea.vmem %s2, 256
      %v1064 = vld [vmem:[%s1063] sm:$0xff]
      %v1065 = vld [vmem:[%s1063 + $0x8] sm:$0xff]
      %v1066 = vld [vmem:[%s1063 + $0x10] sm:$0xff]
      %v1067 = vld [vmem:[%s1063 + $0x18] sm:$0xff]
      %v1068 = vld [vmem:[%s1063 + $0x20] sm:$0xff]
      %v1069 = vld [vmem:[%s1063 + $0x28] sm:$0xff]
      %v1070 = vld [vmem:[%s1063 + $0x30] sm:$0xff]
      %v1071 = vld [vmem:[%s1063 + $0x38] sm:$0xff]
      %v1072 = vld [vmem:[%s1063 + $0x40] sm:$0xff]
      %v1073 = vld [vmem:[%s1063 + $0x48] sm:$0xff]
      %v1074 = vld [vmem:[%s1063 + $0x50] sm:$0xff]
      %v1075 = vld [vmem:[%s1063 + $0x58] sm:$0xff]
      %v1076 = vld [vmem:[%s1063 + $0x60] sm:$0xff]
      %v1077 = vld [vmem:[%s1063 + $0x68] sm:$0xff]
      %v1078 = vld [vmem:[%s1063 + $0x70] sm:$0xff]
      %v1079 = vld [vmem:[%s1063 + $0x78] sm:$0xff]
      %1080 = vmatpush.msra.mxu0 %v1079
      %1081 = vmatpush.msra.mxu0 %v1078
      %1082 = vmatpush.msra.mxu0 %v1077
      %1083 = vmatpush.msra.mxu0 %v1076
      %1084 = vmatpush.msra.mxu0 %v1075
      %1085 = vmatpush.msra.mxu0 %v1074
      %1086 = vmatpush.msra.mxu0 %v1073
      %1087 = vmatpush.msra.mxu0 %v1072
      %1088 = vmatpush.msra.mxu0 %v1071
      %1089 = vmatpush.msra.mxu0 %v1070
      %1090 = vmatpush.msra.mxu0 %v1069
      %1091 = vmatpush.msra.mxu0 %v1068
      %1092 = vmatpush.msra.mxu0 %v1067
      %1093 = vmatpush.msra.mxu0 %v1066
      %1094 = vmatpush.msra.mxu0 %v1065
      %1095 = vmatpush.msra.mxu0 %v1064
      %1096 = vmatmul.f32.gmra.mxu0 %v1047
      %v1097 = vpop.f32.mrf.mxu0
      %v1098 = vadd.f32 0.0, %v1097
      %1099 = vmatmul.f32.gmra.mxu0 %v1048
      %v1100 = vpop.f32.mrf.mxu0
      %v1101 = vadd.f32 0.0, %v1100
      %1102 = vmatmul.f32.gmra.mxu0 %v1049
      %v1103 = vpop.f32.mrf.mxu0
      %v1104 = vadd.f32 0.0, %v1103
      %1105 = vmatmul.f32.gmra.mxu0 %v1050
      %v1106 = vpop.f32.mrf.mxu0
      %v1107 = vadd.f32 0.0, %v1106
      %1108 = vmatmul.f32.gmra.mxu0 %v1051
      %v1109 = vpop.f32.mrf.mxu0
      %v1110 = vadd.f32 0.0, %v1109
      %1111 = vmatmul.f32.gmra.mxu0 %v1052
      %v1112 = vpop.f32.mrf.mxu0
      %v1113 = vadd.f32 0.0, %v1112
      %1114 = vmatmul.f32.gmra.mxu0 %v1053
      %v1115 = vpop.f32.mrf.mxu0
      %v1116 = vadd.f32 0.0, %v1115
      %1117 = vmatmul.f32.gmra.mxu0 %v1054
      %v1118 = vpop.f32.mrf.mxu0
      %v1119 = vadd.f32 0.0, %v1118
      %1120 = vmatmul.f32.gmra.mxu0 %v1055
      %v1121 = vpop.f32.mrf.mxu0
      %v1122 = vadd.f32 0.0, %v1121
      %1123 = vmatmul.f32.gmra.mxu0 %v1056
      %v1124 = vpop.f32.mrf.mxu0
      %v1125 = vadd.f32 0.0, %v1124
      %1126 = vmatmul.f32.gmra.mxu0 %v1057
      %v1127 = vpop.f32.mrf.mxu0
      %v1128 = vadd.f32 0.0, %v1127
      %1129 = vmatmul.f32.gmra.mxu0 %v1058
      %v1130 = vpop.f32.mrf.mxu0
      %v1131 = vadd.f32 0.0, %v1130
      %1132 = vmatmul.f32.gmra.mxu0 %v1059
      %v1133 = vpop.f32.mrf.mxu0
      %v1134 = vadd.f32 0.0, %v1133
      %1135 = vmatmul.f32.gmra.mxu0 %v1060
      %v1136 = vpop.f32.mrf.mxu0
      %v1137 = vadd.f32 0.0, %v1136
      %1138 = vmatmul.f32.gmra.mxu0 %v1061
      %v1139 = vpop.f32.mrf.mxu0
      %v1140 = vadd.f32 0.0, %v1139
      %1141 = vmatmul.f32.gmra.mxu0 %v1062
      %v1142 = vpop.f32.mrf.mxu0
      %v1143 = vadd.f32 0.0, %v1142
      %1144 = vdwg.mxu0
      %v1145 = vadd.f32 %v1000, %v1098
      %v1146 = vadd.f32 %v1003, %v1101
      %v1147 = vadd.f32 %v1006, %v1104
      %v1148 = vadd.f32 %v1009, %v1107
      %v1149 = vadd.f32 %v1012, %v1110
      %v1150 = vadd.f32 %v1015, %v1113
      %v1151 = vadd.f32 %v1018, %v1116
      %v1152 = vadd.f32 %v1021, %v1119
      %v1153 = vadd.f32 %v1024, %v1122
      %v1154 = vadd.f32 %v1027, %v1125
      %v1155 = vadd.f32 %v1030, %v1128
      %v1156 = vadd.f32 %v1033, %v1131
      %v1157 = vadd.f32 %v1036, %v1134
      %v1158 = vadd.f32 %v1039, %v1137
      %v1159 = vadd.f32 %v1042, %v1140
      %v1160 = vadd.f32 %v1045, %v1143
      %v1161 = vld [vmem:[%s801] sm:$0xff]
      %v1162 = vld [vmem:[%s801 + $0x8] sm:$0xff]
      %v1163 = vld [vmem:[%s801 + $0x18] sm:$0xff]
      %v1164 = vld [vmem:[%s801 + $0x20] sm:$0xff]
      %v1165 = vld [vmem:[%s801 + $0x30] sm:$0xff]
      %v1166 = vld [vmem:[%s801 + $0x38] sm:$0xff]
      %v1167 = vld [vmem:[%s801 + $0x48] sm:$0xff]
      %v1168 = vld [vmem:[%s801 + $0x50] sm:$0xff]
      %v1169 = vld [vmem:[%s801 + $0x60] sm:$0xff]
      %v1170 = vld [vmem:[%s801 + $0x68] sm:$0xff]
      %v1171 = vld [vmem:[%s801 + $0x78] sm:$0xff]
      %v1172 = vld [vmem:[%s801 + $0x80] sm:$0xff]
      %v1173 = vld [vmem:[%s801 + $0x90] sm:$0xff]
      %v1174 = vld [vmem:[%s801 + $0x98] sm:$0xff]
      %v1175 = vld [vmem:[%s801 + $0xa8] sm:$0xff]
      %v1176 = vld [vmem:[%s801 + $0xb0] sm:$0xff]
      %s1177 = scalar_lea.vmem %s2, 384
      %v1178 = vld [vmem:[%s1177] sm:$0xff]
      %v1179 = vld [vmem:[%s1177 + $0x8] sm:$0xff]
      %v1180 = vld [vmem:[%s1177 + $0x10] sm:$0xff]
      %v1181 = vld [vmem:[%s1177 + $0x18] sm:$0xff]
      %v1182 = vld [vmem:[%s1177 + $0x20] sm:$0xff]
      %v1183 = vld [vmem:[%s1177 + $0x28] sm:$0xff]
      %v1184 = vld [vmem:[%s1177 + $0x30] sm:$0xff]
      %v1185 = vld [vmem:[%s1177 + $0x38] sm:$0xff]
      %v1186 = vld [vmem:[%s1177 + $0x40] sm:$0xff]
      %v1187 = vld [vmem:[%s1177 + $0x48] sm:$0xff]
      %v1188 = vld [vmem:[%s1177 + $0x50] sm:$0xff]
      %v1189 = vld [vmem:[%s1177 + $0x58] sm:$0xff]
      %v1190 = vld [vmem:[%s1177 + $0x60] sm:$0xff]
      %v1191 = vld [vmem:[%s1177 + $0x68] sm:$0xff]
      %v1192 = vld [vmem:[%s1177 + $0x70] sm:$0xff]
      %v1193 = vld [vmem:[%s1177 + $0x78] sm:$0xff]
      %1194 = vmatpush.msra.mxu0 %v1193
      %1195 = vmatpush.msra.mxu0 %v1192
      %1196 = vmatpush.msra.mxu0 %v1191
      %1197 = vmatpush.msra.mxu0 %v1190
      %1198 = vmatpush.msra.mxu0 %v1189
      %1199 = vmatpush.msra.mxu0 %v1188
      %1200 = vmatpush.msra.mxu0 %v1187
      %1201 = vmatpush.msra.mxu0 %v1186
      %1202 = vmatpush.msra.mxu0 %v1185
      %1203 = vmatpush.msra.mxu0 %v1184
      %1204 = vmatpush.msra.mxu0 %v1183
      %1205 = vmatpush.msra.mxu0 %v1182
      %1206 = vmatpush.msra.mxu0 %v1181
      %1207 = vmatpush.msra.mxu0 %v1180
      %1208 = vmatpush.msra.mxu0 %v1179
      %1209 = vmatpush.msra.mxu0 %v1178
      %1210 = vmatmul.f32.gmra.mxu0 %v1161
      %v1211 = vpop.f32.mrf.mxu0
      %v1212 = vadd.f32 0.0, %v1211
      %1213 = vmatmul.f32.gmra.mxu0 %v1162
      %v1214 = vpop.f32.mrf.mxu0
      %v1215 = vadd.f32 0.0, %v1214
      %1216 = vmatmul.f32.gmra.mxu0 %v1163
      %v1217 = vpop.f32.mrf.mxu0
      %v1218 = vadd.f32 0.0, %v1217
      %1219 = vmatmul.f32.gmra.mxu0 %v1164
      %v1220 = vpop.f32.mrf.mxu0
      %v1221 = vadd.f32 0.0, %v1220
      %1222 = vmatmul.f32.gmra.mxu0 %v1165
      %v1223 = vpop.f32.mrf.mxu0
      %v1224 = vadd.f32 0.0, %v1223
      %1225 = vmatmul.f32.gmra.mxu0 %v1166
      %v1226 = vpop.f32.mrf.mxu0
      %v1227 = vadd.f32 0.0, %v1226
      %1228 = vmatmul.f32.gmra.mxu0 %v1167
      %v1229 = vpop.f32.mrf.mxu0
      %v1230 = vadd.f32 0.0, %v1229
      %1231 = vmatmul.f32.gmra.mxu0 %v1168
      %v1232 = vpop.f32.mrf.mxu0
      %v1233 = vadd.f32 0.0, %v1232
      %1234 = vmatmul.f32.gmra.mxu0 %v1169
      %v1235 = vpop.f32.mrf.mxu0
      %v1236 = vadd.f32 0.0, %v1235
      %1237 = vmatmul.f32.gmra.mxu0 %v1170
      %v1238 = vpop.f32.mrf.mxu0
      %v1239 = vadd.f32 0.0, %v1238
      %1240 = vmatmul.f32.gmra.mxu0 %v1171
      %v1241 = vpop.f32.mrf.mxu0
      %v1242 = vadd.f32 0.0, %v1241
      %1243 = vmatmul.f32.gmra.mxu0 %v1172
      %v1244 = vpop.f32.mrf.mxu0
      %v1245 = vadd.f32 0.0, %v1244
      %1246 = vmatmul.f32.gmra.mxu0 %v1173
      %v1247 = vpop.f32.mrf.mxu0
      %v1248 = vadd.f32 0.0, %v1247
      %1249 = vmatmul.f32.gmra.mxu0 %v1174
      %v1250 = vpop.f32.mrf.mxu0
      %v1251 = vadd.f32 0.0, %v1250
      %1252 = vmatmul.f32.gmra.mxu0 %v1175
      %v1253 = vpop.f32.mrf.mxu0
      %v1254 = vadd.f32 0.0, %v1253
      %1255 = vmatmul.f32.gmra.mxu0 %v1176
      %v1256 = vpop.f32.mrf.mxu0
      %v1257 = vadd.f32 0.0, %v1256
      %1258 = vdwg.mxu0
      %v1259 = vadd.f32 %v1145, %v1212
      %v1260 = vadd.f32 %v1146, %v1215
      %v1261 = vadd.f32 %v1147, %v1218
      %v1262 = vadd.f32 %v1148, %v1221
      %v1263 = vadd.f32 %v1149, %v1224
      %v1264 = vadd.f32 %v1150, %v1227
      %v1265 = vadd.f32 %v1151, %v1230
      %v1266 = vadd.f32 %v1152, %v1233
      %v1267 = vadd.f32 %v1153, %v1236
      %v1268 = vadd.f32 %v1154, %v1239
      %v1269 = vadd.f32 %v1155, %v1242
      %v1270 = vadd.f32 %v1156, %v1245
      %v1271 = vadd.f32 %v1157, %v1248
      %v1272 = vadd.f32 %v1158, %v1251
      %v1273 = vadd.f32 %v1159, %v1254
      %v1274 = vadd.f32 %v1160, %v1257
      %v1275 = vld [vmem:[%s801 + $0x1] sm:$0xff]
      %v1276 = vld [vmem:[%s801 + $0x9] sm:$0xff]
      %v1277 = vld [vmem:[%s801 + $0x19] sm:$0xff]
      %v1278 = vld [vmem:[%s801 + $0x21] sm:$0xff]
      %v1279 = vld [vmem:[%s801 + $0x31] sm:$0xff]
      %v1280 = vld [vmem:[%s801 + $0x39] sm:$0xff]
      %v1281 = vld [vmem:[%s801 + $0x49] sm:$0xff]
      %v1282 = vld [vmem:[%s801 + $0x51] sm:$0xff]
      %v1283 = vld [vmem:[%s801 + $0x61] sm:$0xff]
      %v1284 = vld [vmem:[%s801 + $0x69] sm:$0xff]
      %v1285 = vld [vmem:[%s801 + $0x79] sm:$0xff]
      %v1286 = vld [vmem:[%s801 + $0x81] sm:$0xff]
      %v1287 = vld [vmem:[%s801 + $0x91] sm:$0xff]
      %v1288 = vld [vmem:[%s801 + $0x99] sm:$0xff]
      %v1289 = vld [vmem:[%s801 + $0xa9] sm:$0xff]
      %v1290 = vld [vmem:[%s801 + $0xb1] sm:$0xff]
      %s1291 = scalar_lea.vmem %s2, 512
      %v1292 = vld [vmem:[%s1291] sm:$0xff]
      %v1293 = vld [vmem:[%s1291 + $0x8] sm:$0xff]
      %v1294 = vld [vmem:[%s1291 + $0x10] sm:$0xff]
      %v1295 = vld [vmem:[%s1291 + $0x18] sm:$0xff]
      %v1296 = vld [vmem:[%s1291 + $0x20] sm:$0xff]
      %v1297 = vld [vmem:[%s1291 + $0x28] sm:$0xff]
      %v1298 = vld [vmem:[%s1291 + $0x30] sm:$0xff]
      %v1299 = vld [vmem:[%s1291 + $0x38] sm:$0xff]
      %v1300 = vld [vmem:[%s1291 + $0x40] sm:$0xff]
      %v1301 = vld [vmem:[%s1291 + $0x48] sm:$0xff]
      %v1302 = vld [vmem:[%s1291 + $0x50] sm:$0xff]
      %v1303 = vld [vmem:[%s1291 + $0x58] sm:$0xff]
      %v1304 = vld [vmem:[%s1291 + $0x60] sm:$0xff]
      %v1305 = vld [vmem:[%s1291 + $0x68] sm:$0xff]
      %v1306 = vld [vmem:[%s1291 + $0x70] sm:$0xff]
      %v1307 = vld [vmem:[%s1291 + $0x78] sm:$0xff]
      %1308 = vmatpush.msra.mxu0 %v1307
      %1309 = vmatpush.msra.mxu0 %v1306
      %1310 = vmatpush.msra.mxu0 %v1305
      %1311 = vmatpush.msra.mxu0 %v1304
      %1312 = vmatpush.msra.mxu0 %v1303
      %1313 = vmatpush.msra.mxu0 %v1302
      %1314 = vmatpush.msra.mxu0 %v1301
      %1315 = vmatpush.msra.mxu0 %v1300
      %1316 = vmatpush.msra.mxu0 %v1299
      %1317 = vmatpush.msra.mxu0 %v1298
      %1318 = vmatpush.msra.mxu0 %v1297
      %1319 = vmatpush.msra.mxu0 %v1296
      %1320 = vmatpush.msra.mxu0 %v1295
      %1321 = vmatpush.msra.mxu0 %v1294
      %1322 = vmatpush.msra.mxu0 %v1293
      %1323 = vmatpush.msra.mxu0 %v1292
      %1324 = vmatmul.f32.gmra.mxu0 %v1275
      %v1325 = vpop.f32.mrf.mxu0
      %v1326 = vadd.f32 0.0, %v1325
      %1327 = vmatmul.f32.gmra.mxu0 %v1276
      %v1328 = vpop.f32.mrf.mxu0
      %v1329 = vadd.f32 0.0, %v1328
      %1330 = vmatmul.f32.gmra.mxu0 %v1277
      %v1331 = vpop.f32.mrf.mxu0
      %v1332 = vadd.f32 0.0, %v1331
      %1333 = vmatmul.f32.gmra.mxu0 %v1278
      %v1334 = vpop.f32.mrf.mxu0
      %v1335 = vadd.f32 0.0, %v1334
      %1336 = vmatmul.f32.gmra.mxu0 %v1279
      %v1337 = vpop.f32.mrf.mxu0
      %v1338 = vadd.f32 0.0, %v1337
      %1339 = vmatmul.f32.gmra.mxu0 %v1280
      %v1340 = vpop.f32.mrf.mxu0
      %v1341 = vadd.f32 0.0, %v1340
      %1342 = vmatmul.f32.gmra.mxu0 %v1281
      %v1343 = vpop.f32.mrf.mxu0
      %v1344 = vadd.f32 0.0, %v1343
      %1345 = vmatmul.f32.gmra.mxu0 %v1282
      %v1346 = vpop.f32.mrf.mxu0
      %v1347 = vadd.f32 0.0, %v1346
      %1348 = vmatmul.f32.gmra.mxu0 %v1283
      %v1349 = vpop.f32.mrf.mxu0
      %v1350 = vadd.f32 0.0, %v1349
      %1351 = vmatmul.f32.gmra.mxu0 %v1284
      %v1352 = vpop.f32.mrf.mxu0
      %v1353 = vadd.f32 0.0, %v1352
      %1354 = vmatmul.f32.gmra.mxu0 %v1285
      %v1355 = vpop.f32.mrf.mxu0
      %v1356 = vadd.f32 0.0, %v1355
      %1357 = vmatmul.f32.gmra.mxu0 %v1286
      %v1358 = vpop.f32.mrf.mxu0
      %v1359 = vadd.f32 0.0, %v1358
      %1360 = vmatmul.f32.gmra.mxu0 %v1287
      %v1361 = vpop.f32.mrf.mxu0
      %v1362 = vadd.f32 0.0, %v1361
      %1363 = vmatmul.f32.gmra.mxu0 %v1288
      %v1364 = vpop.f32.mrf.mxu0
      %v1365 = vadd.f32 0.0, %v1364
      %1366 = vmatmul.f32.gmra.mxu0 %v1289
      %v1367 = vpop.f32.mrf.mxu0
      %v1368 = vadd.f32 0.0, %v1367
      %1369 = vmatmul.f32.gmra.mxu0 %v1290
      %v1370 = vpop.f32.mrf.mxu0
      %v1371 = vadd.f32 0.0, %v1370
      %1372 = vdwg.mxu0
      %v1373 = vadd.f32 %v1259, %v1326
      %v1374 = vadd.f32 %v1260, %v1329
      %v1375 = vadd.f32 %v1261, %v1332
      %v1376 = vadd.f32 %v1262, %v1335
      %v1377 = vadd.f32 %v1263, %v1338
      %v1378 = vadd.f32 %v1264, %v1341
      %v1379 = vadd.f32 %v1265, %v1344
      %v1380 = vadd.f32 %v1266, %v1347
      %v1381 = vadd.f32 %v1267, %v1350
      %v1382 = vadd.f32 %v1268, %v1353
      %v1383 = vadd.f32 %v1269, %v1356
      %v1384 = vadd.f32 %v1270, %v1359
      %v1385 = vadd.f32 %v1271, %v1362
      %v1386 = vadd.f32 %v1272, %v1365
      %v1387 = vadd.f32 %v1273, %v1368
      %v1388 = vadd.f32 %v1274, %v1371
      %v1389 = vld [vmem:[%s801 + $0x2] sm:$0xff]
      %v1390 = vld [vmem:[%s801 + $0xa] sm:$0xff]
      %v1391 = vld [vmem:[%s801 + $0x1a] sm:$0xff]
      %v1392 = vld [vmem:[%s801 + $0x22] sm:$0xff]
      %v1393 = vld [vmem:[%s801 + $0x32] sm:$0xff]
      %v1394 = vld [vmem:[%s801 + $0x3a] sm:$0xff]
      %v1395 = vld [vmem:[%s801 + $0x4a] sm:$0xff]
      %v1396 = vld [vmem:[%s801 + $0x52] sm:$0xff]
      %v1397 = vld [vmem:[%s801 + $0x62] sm:$0xff]
      %v1398 = vld [vmem:[%s801 + $0x6a] sm:$0xff]
      %v1399 = vld [vmem:[%s801 + $0x7a] sm:$0xff]
      %v1400 = vld [vmem:[%s801 + $0x82] sm:$0xff]
      %v1401 = vld [vmem:[%s801 + $0x92] sm:$0xff]
      %v1402 = vld [vmem:[%s801 + $0x9a] sm:$0xff]
      %v1403 = vld [vmem:[%s801 + $0xaa] sm:$0xff]
      %v1404 = vld [vmem:[%s801 + $0xb2] sm:$0xff]
      %s1405 = scalar_lea.vmem %s2, 640
      %v1406 = vld [vmem:[%s1405] sm:$0xff]
      %v1407 = vld [vmem:[%s1405 + $0x8] sm:$0xff]
      %v1408 = vld [vmem:[%s1405 + $0x10] sm:$0xff]
      %v1409 = vld [vmem:[%s1405 + $0x18] sm:$0xff]
      %v1410 = vld [vmem:[%s1405 + $0x20] sm:$0xff]
      %v1411 = vld [vmem:[%s1405 + $0x28] sm:$0xff]
      %v1412 = vld [vmem:[%s1405 + $0x30] sm:$0xff]
      %v1413 = vld [vmem:[%s1405 + $0x38] sm:$0xff]
      %v1414 = vld [vmem:[%s1405 + $0x40] sm:$0xff]
      %v1415 = vld [vmem:[%s1405 + $0x48] sm:$0xff]
      %v1416 = vld [vmem:[%s1405 + $0x50] sm:$0xff]
      %v1417 = vld [vmem:[%s1405 + $0x58] sm:$0xff]
      %v1418 = vld [vmem:[%s1405 + $0x60] sm:$0xff]
      %v1419 = vld [vmem:[%s1405 + $0x68] sm:$0xff]
      %v1420 = vld [vmem:[%s1405 + $0x70] sm:$0xff]
      %v1421 = vld [vmem:[%s1405 + $0x78] sm:$0xff]
      %1422 = vmatpush.msra.mxu0 %v1421
      %1423 = vmatpush.msra.mxu0 %v1420
      %1424 = vmatpush.msra.mxu0 %v1419
      %1425 = vmatpush.msra.mxu0 %v1418
      %1426 = vmatpush.msra.mxu0 %v1417
      %1427 = vmatpush.msra.mxu0 %v1416
      %1428 = vmatpush.msra.mxu0 %v1415
      %1429 = vmatpush.msra.mxu0 %v1414
      %1430 = vmatpush.msra.mxu0 %v1413
      %1431 = vmatpush.msra.mxu0 %v1412
      %1432 = vmatpush.msra.mxu0 %v1411
      %1433 = vmatpush.msra.mxu0 %v1410
      %1434 = vmatpush.msra.mxu0 %v1409
      %1435 = vmatpush.msra.mxu0 %v1408
      %1436 = vmatpush.msra.mxu0 %v1407
      %1437 = vmatpush.msra.mxu0 %v1406
      %1438 = vmatmul.f32.gmra.mxu0 %v1389
      %v1439 = vpop.f32.mrf.mxu0
      %v1440 = vadd.f32 0.0, %v1439
      %1441 = vmatmul.f32.gmra.mxu0 %v1390
      %v1442 = vpop.f32.mrf.mxu0
      %v1443 = vadd.f32 0.0, %v1442
      %1444 = vmatmul.f32.gmra.mxu0 %v1391
      %v1445 = vpop.f32.mrf.mxu0
      %v1446 = vadd.f32 0.0, %v1445
      %1447 = vmatmul.f32.gmra.mxu0 %v1392
      %v1448 = vpop.f32.mrf.mxu0
      %v1449 = vadd.f32 0.0, %v1448
      %1450 = vmatmul.f32.gmra.mxu0 %v1393
      %v1451 = vpop.f32.mrf.mxu0
      %v1452 = vadd.f32 0.0, %v1451
      %1453 = vmatmul.f32.gmra.mxu0 %v1394
      %v1454 = vpop.f32.mrf.mxu0
      %v1455 = vadd.f32 0.0, %v1454
      %1456 = vmatmul.f32.gmra.mxu0 %v1395
      %v1457 = vpop.f32.mrf.mxu0
      %v1458 = vadd.f32 0.0, %v1457
      %1459 = vmatmul.f32.gmra.mxu0 %v1396
      %v1460 = vpop.f32.mrf.mxu0
      %v1461 = vadd.f32 0.0, %v1460
      %1462 = vmatmul.f32.gmra.mxu0 %v1397
      %v1463 = vpop.f32.mrf.mxu0
      %v1464 = vadd.f32 0.0, %v1463
      %1465 = vmatmul.f32.gmra.mxu0 %v1398
      %v1466 = vpop.f32.mrf.mxu0
      %v1467 = vadd.f32 0.0, %v1466
      %1468 = vmatmul.f32.gmra.mxu0 %v1399
      %v1469 = vpop.f32.mrf.mxu0
      %v1470 = vadd.f32 0.0, %v1469
      %1471 = vmatmul.f32.gmra.mxu0 %v1400
      %v1472 = vpop.f32.mrf.mxu0
      %v1473 = vadd.f32 0.0, %v1472
      %1474 = vmatmul.f32.gmra.mxu0 %v1401
      %v1475 = vpop.f32.mrf.mxu0
      %v1476 = vadd.f32 0.0, %v1475
      %1477 = vmatmul.f32.gmra.mxu0 %v1402
      %v1478 = vpop.f32.mrf.mxu0
      %v1479 = vadd.f32 0.0, %v1478
      %1480 = vmatmul.f32.gmra.mxu0 %v1403
      %v1481 = vpop.f32.mrf.mxu0
      %v1482 = vadd.f32 0.0, %v1481
      %1483 = vmatmul.f32.gmra.mxu0 %v1404
      %v1484 = vpop.f32.mrf.mxu0
      %v1485 = vadd.f32 0.0, %v1484
      %1486 = vdwg.mxu0
      %v1487 = vadd.f32 %v1373, %v1440
      %v1488 = vadd.f32 %v1374, %v1443
      %v1489 = vadd.f32 %v1375, %v1446
      %v1490 = vadd.f32 %v1376, %v1449
      %v1491 = vadd.f32 %v1377, %v1452
      %v1492 = vadd.f32 %v1378, %v1455
      %v1493 = vadd.f32 %v1379, %v1458
      %v1494 = vadd.f32 %v1380, %v1461
      %v1495 = vadd.f32 %v1381, %v1464
      %v1496 = vadd.f32 %v1382, %v1467
      %v1497 = vadd.f32 %v1383, %v1470
      %v1498 = vadd.f32 %v1384, %v1473
      %v1499 = vadd.f32 %v1385, %v1476
      %v1500 = vadd.f32 %v1386, %v1479
      %v1501 = vadd.f32 %v1387, %v1482
      %v1502 = vadd.f32 %v1388, %v1485
      %s1503 = scalar_lea.vmem [#allocation2], 48
      %v1504 = vld [vmem:[%s1503] sm:$0xff]
      %v1505 = vld [vmem:[%s1503 + $0x8] sm:$0xff]
      %v1506 = vld [vmem:[%s1503 + $0x18] sm:$0xff]
      %v1507 = vld [vmem:[%s1503 + $0x20] sm:$0xff]
      %v1508 = vld [vmem:[%s1503 + $0x30] sm:$0xff]
      %v1509 = vld [vmem:[%s1503 + $0x38] sm:$0xff]
      %v1510 = vld [vmem:[%s1503 + $0x48] sm:$0xff]
      %v1511 = vld [vmem:[%s1503 + $0x50] sm:$0xff]
      %v1512 = vld [vmem:[%s1503 + $0x60] sm:$0xff]
      %v1513 = vld [vmem:[%s1503 + $0x68] sm:$0xff]
      %v1514 = vld [vmem:[%s1503 + $0x78] sm:$0xff]
      %v1515 = vld [vmem:[%s1503 + $0x80] sm:$0xff]
      %v1516 = vld [vmem:[%s1503 + $0x90] sm:$0xff]
      %v1517 = vld [vmem:[%s1503 + $0x98] sm:$0xff]
      %v1518 = vld [vmem:[%s1503 + $0xa8] sm:$0xff]
      %v1519 = vld [vmem:[%s1503 + $0xb0] sm:$0xff]
      %s1520 = scalar_lea.vmem %s2, 768
      %v1521 = vld [vmem:[%s1520] sm:$0xff]
      %v1522 = vld [vmem:[%s1520 + $0x8] sm:$0xff]
      %v1523 = vld [vmem:[%s1520 + $0x10] sm:$0xff]
      %v1524 = vld [vmem:[%s1520 + $0x18] sm:$0xff]
      %v1525 = vld [vmem:[%s1520 + $0x20] sm:$0xff]
      %v1526 = vld [vmem:[%s1520 + $0x28] sm:$0xff]
      %v1527 = vld [vmem:[%s1520 + $0x30] sm:$0xff]
      %v1528 = vld [vmem:[%s1520 + $0x38] sm:$0xff]
      %v1529 = vld [vmem:[%s1520 + $0x40] sm:$0xff]
      %v1530 = vld [vmem:[%s1520 + $0x48] sm:$0xff]
      %v1531 = vld [vmem:[%s1520 + $0x50] sm:$0xff]
      %v1532 = vld [vmem:[%s1520 + $0x58] sm:$0xff]
      %v1533 = vld [vmem:[%s1520 + $0x60] sm:$0xff]
      %v1534 = vld [vmem:[%s1520 + $0x68] sm:$0xff]
      %v1535 = vld [vmem:[%s1520 + $0x70] sm:$0xff]
      %v1536 = vld [vmem:[%s1520 + $0x78] sm:$0xff]
      %1537 = vmatpush.msra.mxu0 %v1536
      %1538 = vmatpush.msra.mxu0 %v1535
      %1539 = vmatpush.msra.mxu0 %v1534
      %1540 = vmatpush.msra.mxu0 %v1533
      %1541 = vmatpush.msra.mxu0 %v1532
      %1542 = vmatpush.msra.mxu0 %v1531
      %1543 = vmatpush.msra.mxu0 %v1530
      %1544 = vmatpush.msra.mxu0 %v1529
      %1545 = vmatpush.msra.mxu0 %v1528
      %1546 = vmatpush.msra.mxu0 %v1527
      %1547 = vmatpush.msra.mxu0 %v1526
      %1548 = vmatpush.msra.mxu0 %v1525
      %1549 = vmatpush.msra.mxu0 %v1524
      %1550 = vmatpush.msra.mxu0 %v1523
      %1551 = vmatpush.msra.mxu0 %v1522
      %1552 = vmatpush.msra.mxu0 %v1521
      %1553 = vmatmul.f32.gmra.mxu0 %v1504
      %v1554 = vpop.f32.mrf.mxu0
      %v1555 = vadd.f32 0.0, %v1554
      %1556 = vmatmul.f32.gmra.mxu0 %v1505
      %v1557 = vpop.f32.mrf.mxu0
      %v1558 = vadd.f32 0.0, %v1557
      %1559 = vmatmul.f32.gmra.mxu0 %v1506
      %v1560 = vpop.f32.mrf.mxu0
      %v1561 = vadd.f32 0.0, %v1560
      %1562 = vmatmul.f32.gmra.mxu0 %v1507
      %v1563 = vpop.f32.mrf.mxu0
      %v1564 = vadd.f32 0.0, %v1563
      %1565 = vmatmul.f32.gmra.mxu0 %v1508
      %v1566 = vpop.f32.mrf.mxu0
      %v1567 = vadd.f32 0.0, %v1566
      %1568 = vmatmul.f32.gmra.mxu0 %v1509
      %v1569 = vpop.f32.mrf.mxu0
      %v1570 = vadd.f32 0.0, %v1569
      %1571 = vmatmul.f32.gmra.mxu0 %v1510
      %v1572 = vpop.f32.mrf.mxu0
      %v1573 = vadd.f32 0.0, %v1572
      %1574 = vmatmul.f32.gmra.mxu0 %v1511
      %v1575 = vpop.f32.mrf.mxu0
      %v1576 = vadd.f32 0.0, %v1575
      %1577 = vmatmul.f32.gmra.mxu0 %v1512
      %v1578 = vpop.f32.mrf.mxu0
      %v1579 = vadd.f32 0.0, %v1578
      %1580 = vmatmul.f32.gmra.mxu0 %v1513
      %v1581 = vpop.f32.mrf.mxu0
      %v1582 = vadd.f32 0.0, %v1581
      %1583 = vmatmul.f32.gmra.mxu0 %v1514
      %v1584 = vpop.f32.mrf.mxu0
      %v1585 = vadd.f32 0.0, %v1584
      %1586 = vmatmul.f32.gmra.mxu0 %v1515
      %v1587 = vpop.f32.mrf.mxu0
      %v1588 = vadd.f32 0.0, %v1587
      %1589 = vmatmul.f32.gmra.mxu0 %v1516
      %v1590 = vpop.f32.mrf.mxu0
      %v1591 = vadd.f32 0.0, %v1590
      %1592 = vmatmul.f32.gmra.mxu0 %v1517
      %v1593 = vpop.f32.mrf.mxu0
      %v1594 = vadd.f32 0.0, %v1593
      %1595 = vmatmul.f32.gmra.mxu0 %v1518
      %v1596 = vpop.f32.mrf.mxu0
      %v1597 = vadd.f32 0.0, %v1596
      %1598 = vmatmul.f32.gmra.mxu0 %v1519
      %v1599 = vpop.f32.mrf.mxu0
      %v1600 = vadd.f32 0.0, %v1599
      %1601 = vdwg.mxu0
      %v1602 = vadd.f32 %v1487, %v1555
      %v1603 = vadd.f32 %v1488, %v1558
      %v1604 = vadd.f32 %v1489, %v1561
      %v1605 = vadd.f32 %v1490, %v1564
      %v1606 = vadd.f32 %v1491, %v1567
      %v1607 = vadd.f32 %v1492, %v1570
      %v1608 = vadd.f32 %v1493, %v1573
      %v1609 = vadd.f32 %v1494, %v1576
      %v1610 = vadd.f32 %v1495, %v1579
      %v1611 = vadd.f32 %v1496, %v1582
      %v1612 = vadd.f32 %v1497, %v1585
      %v1613 = vadd.f32 %v1498, %v1588
      %v1614 = vadd.f32 %v1499, %v1591
      %v1615 = vadd.f32 %v1500, %v1594
      %v1616 = vadd.f32 %v1501, %v1597
      %v1617 = vadd.f32 %v1502, %v1600
      %v1618 = vld [vmem:[%s1503 + $0x1] sm:$0xff]
      %v1619 = vld [vmem:[%s1503 + $0x9] sm:$0xff]
      %v1620 = vld [vmem:[%s1503 + $0x19] sm:$0xff]
      %v1621 = vld [vmem:[%s1503 + $0x21] sm:$0xff]
      %v1622 = vld [vmem:[%s1503 + $0x31] sm:$0xff]
      %v1623 = vld [vmem:[%s1503 + $0x39] sm:$0xff]
      %v1624 = vld [vmem:[%s1503 + $0x49] sm:$0xff]
      %v1625 = vld [vmem:[%s1503 + $0x51] sm:$0xff]
      %v1626 = vld [vmem:[%s1503 + $0x61] sm:$0xff]
      %v1627 = vld [vmem:[%s1503 + $0x69] sm:$0xff]
      %v1628 = vld [vmem:[%s1503 + $0x79] sm:$0xff]
      %v1629 = vld [vmem:[%s1503 + $0x81] sm:$0xff]
      %v1630 = vld [vmem:[%s1503 + $0x91] sm:$0xff]
      %v1631 = vld [vmem:[%s1503 + $0x99] sm:$0xff]
      %v1632 = vld [vmem:[%s1503 + $0xa9] sm:$0xff]
      %v1633 = vld [vmem:[%s1503 + $0xb1] sm:$0xff]
      %s1634 = scalar_lea.vmem %s2, 896
      %v1635 = vld [vmem:[%s1634] sm:$0xff]
      %v1636 = vld [vmem:[%s1634 + $0x8] sm:$0xff]
      %v1637 = vld [vmem:[%s1634 + $0x10] sm:$0xff]
      %v1638 = vld [vmem:[%s1634 + $0x18] sm:$0xff]
      %v1639 = vld [vmem:[%s1634 + $0x20] sm:$0xff]
      %v1640 = vld [vmem:[%s1634 + $0x28] sm:$0xff]
      %v1641 = vld [vmem:[%s1634 + $0x30] sm:$0xff]
      %v1642 = vld [vmem:[%s1634 + $0x38] sm:$0xff]
      %v1643 = vld [vmem:[%s1634 + $0x40] sm:$0xff]
      %v1644 = vld [vmem:[%s1634 + $0x48] sm:$0xff]
      %v1645 = vld [vmem:[%s1634 + $0x50] sm:$0xff]
      %v1646 = vld [vmem:[%s1634 + $0x58] sm:$0xff]
      %v1647 = vld [vmem:[%s1634 + $0x60] sm:$0xff]
      %v1648 = vld [vmem:[%s1634 + $0x68] sm:$0xff]
      %v1649 = vld [vmem:[%s1634 + $0x70] sm:$0xff]
      %v1650 = vld [vmem:[%s1634 + $0x78] sm:$0xff]
      %1651 = vmatpush.msra.mxu0 %v1650
      %1652 = vmatpush.msra.mxu0 %v1649
      %1653 = vmatpush.msra.mxu0 %v1648
      %1654 = vmatpush.msra.mxu0 %v1647
      %1655 = vmatpush.msra.mxu0 %v1646
      %1656 = vmatpush.msra.mxu0 %v1645
      %1657 = vmatpush.msra.mxu0 %v1644
      %1658 = vmatpush.msra.mxu0 %v1643
      %1659 = vmatpush.msra.mxu0 %v1642
      %1660 = vmatpush.msra.mxu0 %v1641
      %1661 = vmatpush.msra.mxu0 %v1640
      %1662 = vmatpush.msra.mxu0 %v1639
      %1663 = vmatpush.msra.mxu0 %v1638
      %1664 = vmatpush.msra.mxu0 %v1637
      %1665 = vmatpush.msra.mxu0 %v1636
      %1666 = vmatpush.msra.mxu0 %v1635
      %1667 = vmatmul.f32.gmra.mxu0 %v1618
      %v1668 = vpop.f32.mrf.mxu0
      %v1669 = vadd.f32 0.0, %v1668
      %1670 = vmatmul.f32.gmra.mxu0 %v1619
      %v1671 = vpop.f32.mrf.mxu0
      %v1672 = vadd.f32 0.0, %v1671
      %1673 = vmatmul.f32.gmra.mxu0 %v1620
      %v1674 = vpop.f32.mrf.mxu0
      %v1675 = vadd.f32 0.0, %v1674
      %1676 = vmatmul.f32.gmra.mxu0 %v1621
      %v1677 = vpop.f32.mrf.mxu0
      %v1678 = vadd.f32 0.0, %v1677
      %1679 = vmatmul.f32.gmra.mxu0 %v1622
      %v1680 = vpop.f32.mrf.mxu0
      %v1681 = vadd.f32 0.0, %v1680
      %1682 = vmatmul.f32.gmra.mxu0 %v1623
      %v1683 = vpop.f32.mrf.mxu0
      %v1684 = vadd.f32 0.0, %v1683
      %1685 = vmatmul.f32.gmra.mxu0 %v1624
      %v1686 = vpop.f32.mrf.mxu0
      %v1687 = vadd.f32 0.0, %v1686
      %1688 = vmatmul.f32.gmra.mxu0 %v1625
      %v1689 = vpop.f32.mrf.mxu0
      %v1690 = vadd.f32 0.0, %v1689
      %1691 = vmatmul.f32.gmra.mxu0 %v1626
      %v1692 = vpop.f32.mrf.mxu0
      %v1693 = vadd.f32 0.0, %v1692
      %1694 = vmatmul.f32.gmra.mxu0 %v1627
      %v1695 = vpop.f32.mrf.mxu0
      %v1696 = vadd.f32 0.0, %v1695
      %1697 = vmatmul.f32.gmra.mxu0 %v1628
      %v1698 = vpop.f32.mrf.mxu0
      %v1699 = vadd.f32 0.0, %v1698
      %1700 = vmatmul.f32.gmra.mxu0 %v1629
      %v1701 = vpop.f32.mrf.mxu0
      %v1702 = vadd.f32 0.0, %v1701
      %1703 = vmatmul.f32.gmra.mxu0 %v1630
      %v1704 = vpop.f32.mrf.mxu0
      %v1705 = vadd.f32 0.0, %v1704
      %1706 = vmatmul.f32.gmra.mxu0 %v1631
      %v1707 = vpop.f32.mrf.mxu0
      %v1708 = vadd.f32 0.0, %v1707
      %1709 = vmatmul.f32.gmra.mxu0 %v1632
      %v1710 = vpop.f32.mrf.mxu0
      %v1711 = vadd.f32 0.0, %v1710
      %1712 = vmatmul.f32.gmra.mxu0 %v1633
      %v1713 = vpop.f32.mrf.mxu0
      %v1714 = vadd.f32 0.0, %v1713
      %1715 = vdwg.mxu0
      %v1716 = vadd.f32 %v1602, %v1669
      %v1717 = vadd.f32 %v1603, %v1672
      %v1718 = vadd.f32 %v1604, %v1675
      %v1719 = vadd.f32 %v1605, %v1678
      %v1720 = vadd.f32 %v1606, %v1681
      %v1721 = vadd.f32 %v1607, %v1684
      %v1722 = vadd.f32 %v1608, %v1687
      %v1723 = vadd.f32 %v1609, %v1690
      %v1724 = vadd.f32 %v1610, %v1693
      %v1725 = vadd.f32 %v1611, %v1696
      %v1726 = vadd.f32 %v1612, %v1699
      %v1727 = vadd.f32 %v1613, %v1702
      %v1728 = vadd.f32 %v1614, %v1705
      %v1729 = vadd.f32 %v1615, %v1708
      %v1730 = vadd.f32 %v1616, %v1711
      %v1731 = vadd.f32 %v1617, %v1714
      %v1732 = vld [vmem:[%s1503 + $0x2] sm:$0xff]
      %v1733 = vld [vmem:[%s1503 + $0xa] sm:$0xff]
      %v1734 = vld [vmem:[%s1503 + $0x1a] sm:$0xff]
      %v1735 = vld [vmem:[%s1503 + $0x22] sm:$0xff]
      %v1736 = vld [vmem:[%s1503 + $0x32] sm:$0xff]
      %v1737 = vld [vmem:[%s1503 + $0x3a] sm:$0xff]
      %v1738 = vld [vmem:[%s1503 + $0x4a] sm:$0xff]
      %v1739 = vld [vmem:[%s1503 + $0x52] sm:$0xff]
      %v1740 = vld [vmem:[%s1503 + $0x62] sm:$0xff]
      %v1741 = vld [vmem:[%s1503 + $0x6a] sm:$0xff]
      %v1742 = vld [vmem:[%s1503 + $0x7a] sm:$0xff]
      %v1743 = vld [vmem:[%s1503 + $0x82] sm:$0xff]
      %v1744 = vld [vmem:[%s1503 + $0x92] sm:$0xff]
      %v1745 = vld [vmem:[%s1503 + $0x9a] sm:$0xff]
      %v1746 = vld [vmem:[%s1503 + $0xaa] sm:$0xff]
      %v1747 = vld [vmem:[%s1503 + $0xb2] sm:$0xff]
      %s1748 = scalar_lea.vmem %s2, 1024
      %v1749 = vld [vmem:[%s1748] sm:$0xff]
      %v1750 = vld [vmem:[%s1748 + $0x8] sm:$0xff]
      %v1751 = vld [vmem:[%s1748 + $0x10] sm:$0xff]
      %v1752 = vld [vmem:[%s1748 + $0x18] sm:$0xff]
      %v1753 = vld [vmem:[%s1748 + $0x20] sm:$0xff]
      %v1754 = vld [vmem:[%s1748 + $0x28] sm:$0xff]
      %v1755 = vld [vmem:[%s1748 + $0x30] sm:$0xff]
      %v1756 = vld [vmem:[%s1748 + $0x38] sm:$0xff]
      %v1757 = vld [vmem:[%s1748 + $0x40] sm:$0xff]
      %v1758 = vld [vmem:[%s1748 + $0x48] sm:$0xff]
      %v1759 = vld [vmem:[%s1748 + $0x50] sm:$0xff]
      %v1760 = vld [vmem:[%s1748 + $0x58] sm:$0xff]
      %v1761 = vld [vmem:[%s1748 + $0x60] sm:$0xff]
      %v1762 = vld [vmem:[%s1748 + $0x68] sm:$0xff]
      %v1763 = vld [vmem:[%s1748 + $0x70] sm:$0xff]
      %v1764 = vld [vmem:[%s1748 + $0x78] sm:$0xff]
      %1765 = vmatpush.msra.mxu0 %v1764
      %1766 = vmatpush.msra.mxu0 %v1763
      %1767 = vmatpush.msra.mxu0 %v1762
      %1768 = vmatpush.msra.mxu0 %v1761
      %1769 = vmatpush.msra.mxu0 %v1760
      %1770 = vmatpush.msra.mxu0 %v1759
      %1771 = vmatpush.msra.mxu0 %v1758
      %1772 = vmatpush.msra.mxu0 %v1757
      %1773 = vmatpush.msra.mxu0 %v1756
      %1774 = vmatpush.msra.mxu0 %v1755
      %1775 = vmatpush.msra.mxu0 %v1754
      %1776 = vmatpush.msra.mxu0 %v1753
      %1777 = vmatpush.msra.mxu0 %v1752
      %1778 = vmatpush.msra.mxu0 %v1751
      %1779 = vmatpush.msra.mxu0 %v1750
      %1780 = vmatpush.msra.mxu0 %v1749
      %1781 = vmatmul.f32.gmra.mxu0 %v1732
      %v1782 = vpop.f32.mrf.mxu0
      %v1783 = vadd.f32 0.0, %v1782
      %1784 = vmatmul.f32.gmra.mxu0 %v1733
      %v1785 = vpop.f32.mrf.mxu0
      %v1786 = vadd.f32 0.0, %v1785
      %1787 = vmatmul.f32.gmra.mxu0 %v1734
      %v1788 = vpop.f32.mrf.mxu0
      %v1789 = vadd.f32 0.0, %v1788
      %1790 = vmatmul.f32.gmra.mxu0 %v1735
      %v1791 = vpop.f32.mrf.mxu0
      %v1792 = vadd.f32 0.0, %v1791
      %1793 = vmatmul.f32.gmra.mxu0 %v1736
      %v1794 = vpop.f32.mrf.mxu0
      %v1795 = vadd.f32 0.0, %v1794
      %1796 = vmatmul.f32.gmra.mxu0 %v1737
      %v1797 = vpop.f32.mrf.mxu0
      %v1798 = vadd.f32 0.0, %v1797
      %1799 = vmatmul.f32.gmra.mxu0 %v1738
      %v1800 = vpop.f32.mrf.mxu0
      %v1801 = vadd.f32 0.0, %v1800
      %1802 = vmatmul.f32.gmra.mxu0 %v1739
      %v1803 = vpop.f32.mrf.mxu0
      %v1804 = vadd.f32 0.0, %v1803
      %1805 = vmatmul.f32.gmra.mxu0 %v1740
      %v1806 = vpop.f32.mrf.mxu0
      %v1807 = vadd.f32 0.0, %v1806
      %1808 = vmatmul.f32.gmra.mxu0 %v1741
      %v1809 = vpop.f32.mrf.mxu0
      %v1810 = vadd.f32 0.0, %v1809
      %1811 = vmatmul.f32.gmra.mxu0 %v1742
      %v1812 = vpop.f32.mrf.mxu0
      %v1813 = vadd.f32 0.0, %v1812
      %1814 = vmatmul.f32.gmra.mxu0 %v1743
      %v1815 = vpop.f32.mrf.mxu0
      %v1816 = vadd.f32 0.0, %v1815
      %1817 = vmatmul.f32.gmra.mxu0 %v1744
      %v1818 = vpop.f32.mrf.mxu0
      %v1819 = vadd.f32 0.0, %v1818
      %1820 = vmatmul.f32.gmra.mxu0 %v1745
      %v1821 = vpop.f32.mrf.mxu0
      %v1822 = vadd.f32 0.0, %v1821
      %1823 = vmatmul.f32.gmra.mxu0 %v1746
      %v1824 = vpop.f32.mrf.mxu0
      %v1825 = vadd.f32 0.0, %v1824
      %1826 = vmatmul.f32.gmra.mxu0 %v1747
      %v1827 = vpop.f32.mrf.mxu0
      %v1828 = vadd.f32 0.0, %v1827
      %1829 = vdwg.mxu0
      %v1830 = vadd.f32 %v1716, %v1783
      %v1831 = vadd.f32 %v1717, %v1786
      %v1832 = vadd.f32 %v1718, %v1789
      %v1833 = vadd.f32 %v1719, %v1792
      %v1834 = vadd.f32 %v1720, %v1795
      %v1835 = vadd.f32 %v1721, %v1798
      %v1836 = vadd.f32 %v1722, %v1801
      %v1837 = vadd.f32 %v1723, %v1804
      %v1838 = vadd.f32 %v1724, %v1807
      %v1839 = vadd.f32 %v1725, %v1810
      %v1840 = vadd.f32 %v1726, %v1813
      %v1841 = vadd.f32 %v1727, %v1816
      %v1842 = vadd.f32 %v1728, %v1819
      %v1843 = vadd.f32 %v1729, %v1822
      %v1844 = vadd.f32 %v1730, %v1825
      %v1845 = vadd.f32 %v1731, %v1828
      %v1846 = vld [vmem:[%s3] sm:$0x1]
      %v1848 = vperm.slane %v1846, 0
      %v1850 = vadd.f32 %v1830, %v1848
      %v1851 = vadd.f32 %v1831, %v1848
      %v1852 = vadd.f32 %v1832, %v1848
      %v1853 = vadd.f32 %v1833, %v1848
      %v1854 = vadd.f32 %v1834, %v1848
      %v1855 = vadd.f32 %v1835, %v1848
      %v1856 = vadd.f32 %v1836, %v1848
      %v1857 = vadd.f32 %v1837, %v1848
      %v1858 = vadd.f32 %v1838, %v1848
      %v1859 = vadd.f32 %v1839, %v1848
      %v1860 = vadd.f32 %v1840, %v1848
      %v1861 = vadd.f32 %v1841, %v1848
      %v1862 = vadd.f32 %v1842, %v1848
      %v1863 = vadd.f32 %v1843, %v1848
      %v1864 = vadd.f32 %v1844, %v1848
      %v1865 = vadd.f32 %v1845, %v1848
      %v1866 = vmul.f32 %v1850, 0.05
      %v1867 = vmul.f32 %v1851, 0.05
      %v1868 = vmul.f32 %v1852, 0.05
      %v1869 = vmul.f32 %v1853, 0.05
      %v1870 = vmul.f32 %v1854, 0.05
      %v1871 = vmul.f32 %v1855, 0.05
      %v1872 = vmul.f32 %v1856, 0.05
      %v1873 = vmul.f32 %v1857, 0.05
      %v1874 = vmul.f32 %v1858, 0.05
      %v1875 = vmul.f32 %v1859, 0.05
      %v1876 = vmul.f32 %v1860, 0.05
      %v1877 = vmul.f32 %v1861, 0.05
      %v1878 = vmul.f32 %v1862, 0.05
      %v1879 = vmul.f32 %v1863, 0.05
      %v1880 = vmul.f32 %v1864, 0.05
      %v1881 = vmul.f32 %v1865, 0.05
      %v1882 = vmax.f32 %v1850, %v1866
      %v1883 = vmax.f32 %v1851, %v1867
      %v1884 = vmax.f32 %v1852, %v1868
      %v1885 = vmax.f32 %v1853, %v1869
      %v1886 = vmax.f32 %v1854, %v1870
      %v1887 = vmax.f32 %v1855, %v1871
      %v1888 = vmax.f32 %v1856, %v1872
      %v1889 = vmax.f32 %v1857, %v1873
      %v1890 = vmax.f32 %v1858, %v1874
      %v1891 = vmax.f32 %v1859, %v1875
      %v1892 = vmax.f32 %v1860, %v1876
      %v1893 = vmax.f32 %v1861, %v1877
      %v1894 = vmax.f32 %v1862, %v1878
      %v1895 = vmax.f32 %v1863, %v1879
      %v1896 = vmax.f32 %v1864, %v1880
      %v1897 = vmax.f32 %v1865, %v1881
      %s1898 = scalar_lea.vmem [#allocation3], 24
      %1899 = vst [vmem:[%s1898 + $0x1] sm:$0xff] %v1882
      %1900 = vst [vmem:[%s1898 + $0x9] sm:$0xff] %v1883
      %1901 = vst [vmem:[%s1898 + $0x19] sm:$0xff] %v1884
      %1902 = vst [vmem:[%s1898 + $0x21] sm:$0xff] %v1885
      %1903 = vst [vmem:[%s1898 + $0x31] sm:$0xff] %v1886
      %1904 = vst [vmem:[%s1898 + $0x39] sm:$0xff] %v1887
      %1905 = vst [vmem:[%s1898 + $0x49] sm:$0xff] %v1888
      %1906 = vst [vmem:[%s1898 + $0x51] sm:$0xff] %v1889
      %1907 = vst [vmem:[%s1898 + $0x61] sm:$0xff] %v1890
      %1908 = vst [vmem:[%s1898 + $0x69] sm:$0xff] %v1891
      %1909 = vst [vmem:[%s1898 + $0x79] sm:$0xff] %v1892
      %1910 = vst [vmem:[%s1898 + $0x81] sm:$0xff] %v1893
      %1911 = vst [vmem:[%s1898 + $0x91] sm:$0xff] %v1894
      %1912 = vst [vmem:[%s1898 + $0x99] sm:$0xff] %v1895
      %1913 = vst [vmem:[%s1898 + $0xa9] sm:$0xff] %v1896
      %1914 = vst [vmem:[%s1898 + $0xb1] sm:$0xff] %v1897
      %s1915 = scalar_lea.vmem [#allocation2], 192
      %v1916 = vld [vmem:[%s1915] sm:$0xff]
      %v1917 = vld [vmem:[%s1915 + $0x8] sm:$0xff]
      %v1918 = vld [vmem:[%s1915 + $0x18] sm:$0xff]
      %v1919 = vld [vmem:[%s1915 + $0x20] sm:$0xff]
      %v1920 = vld [vmem:[%s1915 + $0x30] sm:$0xff]
      %v1921 = vld [vmem:[%s1915 + $0x38] sm:$0xff]
      %v1922 = vld [vmem:[%s1915 + $0x48] sm:$0xff]
      %v1923 = vld [vmem:[%s1915 + $0x50] sm:$0xff]
      %v1924 = vld [vmem:[%s1915 + $0x60] sm:$0xff]
      %v1925 = vld [vmem:[%s1915 + $0x68] sm:$0xff]
      %v1926 = vld [vmem:[%s1915 + $0x78] sm:$0xff]
      %v1927 = vld [vmem:[%s1915 + $0x80] sm:$0xff]
      %v1928 = vld [vmem:[%s1915 + $0x90] sm:$0xff]
      %v1929 = vld [vmem:[%s1915 + $0x98] sm:$0xff]
      %v1930 = vld [vmem:[%s1915 + $0xa8] sm:$0xff]
      %v1931 = vld [vmem:[%s1915 + $0xb0] sm:$0xff]
      %v1932 = vld [vmem:[%s2] sm:$0xff]
      %v1933 = vld [vmem:[%s2 + $0x8] sm:$0xff]
      %v1934 = vld [vmem:[%s2 + $0x10] sm:$0xff]
      %v1935 = vld [vmem:[%s2 + $0x18] sm:$0xff]
      %v1936 = vld [vmem:[%s2 + $0x20] sm:$0xff]
      %v1937 = vld [vmem:[%s2 + $0x28] sm:$0xff]
      %v1938 = vld [vmem:[%s2 + $0x30] sm:$0xff]
      %v1939 = vld [vmem:[%s2 + $0x38] sm:$0xff]
      %v1940 = vld [vmem:[%s2 + $0x40] sm:$0xff]
      %v1941 = vld [vmem:[%s2 + $0x48] sm:$0xff]
      %v1942 = vld [vmem:[%s2 + $0x50] sm:$0xff]
      %v1943 = vld [vmem:[%s2 + $0x58] sm:$0xff]
      %v1944 = vld [vmem:[%s2 + $0x60] sm:$0xff]
      %v1945 = vld [vmem:[%s2 + $0x68] sm:$0xff]
      %v1946 = vld [vmem:[%s2 + $0x70] sm:$0xff]
      %v1947 = vld [vmem:[%s2 + $0x78] sm:$0xff]
      %v1948 = vld [vmem:[%s1915 + $0x1] sm:$0xff]
      %v1949 = vld [vmem:[%s1915 + $0x9] sm:$0xff]
      %v1950 = vld [vmem:[%s1915 + $0x19] sm:$0xff]
      %v1951 = vld [vmem:[%s1915 + $0x21] sm:$0xff]
      %v1952 = vld [vmem:[%s1915 + $0x31] sm:$0xff]
      %v1953 = vld [vmem:[%s1915 + $0x39] sm:$0xff]
      %v1954 = vld [vmem:[%s1915 + $0x49] sm:$0xff]
      %v1955 = vld [vmem:[%s1915 + $0x51] sm:$0xff]
      %v1956 = vld [vmem:[%s1915 + $0x61] sm:$0xff]
      %v1957 = vld [vmem:[%s1915 + $0x69] sm:$0xff]
      %v1958 = vld [vmem:[%s1915 + $0x79] sm:$0xff]
      %v1959 = vld [vmem:[%s1915 + $0x81] sm:$0xff]
      %v1960 = vld [vmem:[%s1915 + $0x91] sm:$0xff]
      %v1961 = vld [vmem:[%s1915 + $0x99] sm:$0xff]
      %v1962 = vld [vmem:[%s1915 + $0xa9] sm:$0xff]
      %v1963 = vld [vmem:[%s1915 + $0xb1] sm:$0xff]
      %v1964 = vld [vmem:[%s900] sm:$0xff]
      %v1965 = vld [vmem:[%s900 + $0x8] sm:$0xff]
      %v1966 = vld [vmem:[%s900 + $0x10] sm:$0xff]
      %v1967 = vld [vmem:[%s900 + $0x18] sm:$0xff]
      %v1968 = vld [vmem:[%s900 + $0x20] sm:$0xff]
      %v1969 = vld [vmem:[%s900 + $0x28] sm:$0xff]
      %v1970 = vld [vmem:[%s900 + $0x30] sm:$0xff]
      %v1971 = vld [vmem:[%s900 + $0x38] sm:$0xff]
      %v1972 = vld [vmem:[%s900 + $0x40] sm:$0xff]
      %v1973 = vld [vmem:[%s900 + $0x48] sm:$0xff]
      %v1974 = vld [vmem:[%s900 + $0x50] sm:$0xff]
      %v1975 = vld [vmem:[%s900 + $0x58] sm:$0xff]
      %v1976 = vld [vmem:[%s900 + $0x60] sm:$0xff]
      %v1977 = vld [vmem:[%s900 + $0x68] sm:$0xff]
      %v1978 = vld [vmem:[%s900 + $0x70] sm:$0xff]
      %v1979 = vld [vmem:[%s900 + $0x78] sm:$0xff]
      %1980 = vmatpush.msra.mxu0 %v1979
      %1981 = vmatpush.msra.mxu0 %v1978
      %1982 = vmatpush.msra.mxu0 %v1977
      %1983 = vmatpush.msra.mxu0 %v1976
      %1984 = vmatpush.msra.mxu0 %v1975
      %1985 = vmatpush.msra.mxu0 %v1974
      %1986 = vmatpush.msra.mxu0 %v1973
      %1987 = vmatpush.msra.mxu0 %v1972
      %1988 = vmatpush.msra.mxu0 %v1971
      %1989 = vmatpush.msra.mxu0 %v1970
      %1990 = vmatpush.msra.mxu0 %v1969
      %1991 = vmatpush.msra.mxu0 %v1968
      %1992 = vmatpush.msra.mxu0 %v1967
      %1993 = vmatpush.msra.mxu0 %v1966
      %1994 = vmatpush.msra.mxu0 %v1965
      %1995 = vmatpush.msra.mxu0 %v1964
      %1996 = vmatmul.f32.gmra.mxu0 %v1948
      %v1997 = vpop.f32.mrf.mxu0
      %v1998 = vadd.f32 0.0, %v1997
      %1999 = vmatmul.f32.gmra.mxu0 %v1949
      %v2000 = vpop.f32.mrf.mxu0
      %v2001 = vadd.f32 0.0, %v2000
      %2002 = vmatmul.f32.gmra.mxu0 %v1950
      %v2003 = vpop.f32.mrf.mxu0
      %v2004 = vadd.f32 0.0, %v2003
      %2005 = vmatmul.f32.gmra.mxu0 %v1951
      %v2006 = vpop.f32.mrf.mxu0
      %v2007 = vadd.f32 0.0, %v2006
      %2008 = vmatmul.f32.gmra.mxu0 %v1952
      %v2009 = vpop.f32.mrf.mxu0
      %v2010 = vadd.f32 0.0, %v2009
      %2011 = vmatmul.f32.gmra.mxu0 %v1953
      %v2012 = vpop.f32.mrf.mxu0
      %v2013 = vadd.f32 0.0, %v2012
      %2014 = vmatmul.f32.gmra.mxu0 %v1954
      %v2015 = vpop.f32.mrf.mxu0
      %v2016 = vadd.f32 0.0, %v2015
      %2017 = vmatmul.f32.gmra.mxu0 %v1955
      %v2018 = vpop.f32.mrf.mxu0
      %v2019 = vadd.f32 0.0, %v2018
      %2020 = vmatmul.f32.gmra.mxu0 %v1956
      %v2021 = vpop.f32.mrf.mxu0
      %v2022 = vadd.f32 0.0, %v2021
      %2023 = vmatmul.f32.gmra.mxu0 %v1957
      %v2024 = vpop.f32.mrf.mxu0
      %v2025 = vadd.f32 0.0, %v2024
      %2026 = vmatmul.f32.gmra.mxu0 %v1958
      %v2027 = vpop.f32.mrf.mxu0
      %v2028 = vadd.f32 0.0, %v2027
      %2029 = vmatmul.f32.gmra.mxu0 %v1959
      %v2030 = vpop.f32.mrf.mxu0
      %v2031 = vadd.f32 0.0, %v2030
      %2032 = vmatmul.f32.gmra.mxu0 %v1960
      %v2033 = vpop.f32.mrf.mxu0
      %v2034 = vadd.f32 0.0, %v2033
      %2035 = vmatmul.f32.gmra.mxu0 %v1961
      %v2036 = vpop.f32.mrf.mxu0
      %v2037 = vadd.f32 0.0, %v2036
      %2038 = vmatmul.f32.gmra.mxu0 %v1962
      %v2039 = vpop.f32.mrf.mxu0
      %v2040 = vadd.f32 0.0, %v2039
      %2041 = vmatmul.f32.gmra.mxu0 %v1963
      %v2042 = vpop.f32.mrf.mxu0
      %v2043 = vadd.f32 0.0, %v2042
      %2044 = vdwg.mxu0
      %2045 = vmatpush.msra.mxu0 %v1947
      %2046 = vmatpush.msra.mxu0 %v1946
      %2047 = vmatpush.msra.mxu0 %v1945
      %2048 = vmatpush.msra.mxu0 %v1944
      %2049 = vmatpush.msra.mxu0 %v1943
      %2050 = vmatpush.msra.mxu0 %v1942
      %2051 = vmatpush.msra.mxu0 %v1941
      %2052 = vmatpush.msra.mxu0 %v1940
      %2053 = vmatpush.msra.mxu0 %v1939
      %2054 = vmatpush.msra.mxu0 %v1938
      %2055 = vmatpush.msra.mxu0 %v1937
      %2056 = vmatpush.msra.mxu0 %v1936
      %2057 = vmatpush.msra.mxu0 %v1935
      %2058 = vmatpush.msra.mxu0 %v1934
      %2059 = vmatpush.msra.mxu0 %v1933
      %2060 = vmatpush.msra.mxu0 %v1932
      %2061 = vmatmul.f32.gmra.mxu0 %v1916
      %v2062 = vpop.f32.mrf.mxu0
      %v2063 = vadd.f32 %v1998, %v2062
      %2064 = vmatmul.f32.gmra.mxu0 %v1917
      %v2065 = vpop.f32.mrf.mxu0
      %v2066 = vadd.f32 %v2001, %v2065
      %2067 = vmatmul.f32.gmra.mxu0 %v1918
      %v2068 = vpop.f32.mrf.mxu0
      %v2069 = vadd.f32 %v2004, %v2068
      %2070 = vmatmul.f32.gmra.mxu0 %v1919
      %v2071 = vpop.f32.mrf.mxu0
      %v2072 = vadd.f32 %v2007, %v2071
      %2073 = vmatmul.f32.gmra.mxu0 %v1920
      %v2074 = vpop.f32.mrf.mxu0
      %v2075 = vadd.f32 %v2010, %v2074
      %2076 = vmatmul.f32.gmra.mxu0 %v1921
      %v2077 = vpop.f32.mrf.mxu0
      %v2078 = vadd.f32 %v2013, %v2077
      %2079 = vmatmul.f32.gmra.mxu0 %v1922
      %v2080 = vpop.f32.mrf.mxu0
      %v2081 = vadd.f32 %v2016, %v2080
      %2082 = vmatmul.f32.gmra.mxu0 %v1923
      %v2083 = vpop.f32.mrf.mxu0
      %v2084 = vadd.f32 %v2019, %v2083
      %2085 = vmatmul.f32.gmra.mxu0 %v1924
      %v2086 = vpop.f32.mrf.mxu0
      %v2087 = vadd.f32 %v2022, %v2086
      %2088 = vmatmul.f32.gmra.mxu0 %v1925
      %v2089 = vpop.f32.mrf.mxu0
      %v2090 = vadd.f32 %v2025, %v2089
      %2091 = vmatmul.f32.gmra.mxu0 %v1926
      %v2092 = vpop.f32.mrf.mxu0
      %v2093 = vadd.f32 %v2028, %v2092
      %2094 = vmatmul.f32.gmra.mxu0 %v1927
      %v2095 = vpop.f32.mrf.mxu0
      %v2096 = vadd.f32 %v2031, %v2095
      %2097 = vmatmul.f32.gmra.mxu0 %v1928
      %v2098 = vpop.f32.mrf.mxu0
      %v2099 = vadd.f32 %v2034, %v2098
      %2100 = vmatmul.f32.gmra.mxu0 %v1929
      %v2101 = vpop.f32.mrf.mxu0
      %v2102 = vadd.f32 %v2037, %v2101
      %2103 = vmatmul.f32.gmra.mxu0 %v1930
      %v2104 = vpop.f32.mrf.mxu0
      %v2105 = vadd.f32 %v2040, %v2104
      %2106 = vmatmul.f32.gmra.mxu0 %v1931
      %v2107 = vpop.f32.mrf.mxu0
      %v2108 = vadd.f32 %v2043, %v2107
      %2109 = vdwg.mxu0
      %v2110 = vld [vmem:[%s1915 + $0x2] sm:$0xff]
      %v2111 = vld [vmem:[%s1915 + $0xa] sm:$0xff]
      %v2112 = vld [vmem:[%s1915 + $0x1a] sm:$0xff]
      %v2113 = vld [vmem:[%s1915 + $0x22] sm:$0xff]
      %v2114 = vld [vmem:[%s1915 + $0x32] sm:$0xff]
      %v2115 = vld [vmem:[%s1915 + $0x3a] sm:$0xff]
      %v2116 = vld [vmem:[%s1915 + $0x4a] sm:$0xff]
      %v2117 = vld [vmem:[%s1915 + $0x52] sm:$0xff]
      %v2118 = vld [vmem:[%s1915 + $0x62] sm:$0xff]
      %v2119 = vld [vmem:[%s1915 + $0x6a] sm:$0xff]
      %v2120 = vld [vmem:[%s1915 + $0x7a] sm:$0xff]
      %v2121 = vld [vmem:[%s1915 + $0x82] sm:$0xff]
      %v2122 = vld [vmem:[%s1915 + $0x92] sm:$0xff]
      %v2123 = vld [vmem:[%s1915 + $0x9a] sm:$0xff]
      %v2124 = vld [vmem:[%s1915 + $0xaa] sm:$0xff]
      %v2125 = vld [vmem:[%s1915 + $0xb2] sm:$0xff]
      %v2126 = vld [vmem:[%s1063] sm:$0xff]
      %v2127 = vld [vmem:[%s1063 + $0x8] sm:$0xff]
      %v2128 = vld [vmem:[%s1063 + $0x10] sm:$0xff]
      %v2129 = vld [vmem:[%s1063 + $0x18] sm:$0xff]
      %v2130 = vld [vmem:[%s1063 + $0x20] sm:$0xff]
      %v2131 = vld [vmem:[%s1063 + $0x28] sm:$0xff]
      %v2132 = vld [vmem:[%s1063 + $0x30] sm:$0xff]
      %v2133 = vld [vmem:[%s1063 + $0x38] sm:$0xff]
      %v2134 = vld [vmem:[%s1063 + $0x40] sm:$0xff]
      %v2135 = vld [vmem:[%s1063 + $0x48] sm:$0xff]
      %v2136 = vld [vmem:[%s1063 + $0x50] sm:$0xff]
      %v2137 = vld [vmem:[%s1063 + $0x58] sm:$0xff]
      %v2138 = vld [vmem:[%s1063 + $0x60] sm:$0xff]
      %v2139 = vld [vmem:[%s1063 + $0x68] sm:$0xff]
      %v2140 = vld [vmem:[%s1063 + $0x70] sm:$0xff]
      %v2141 = vld [vmem:[%s1063 + $0x78] sm:$0xff]
      %2142 = vmatpush.msra.mxu0 %v2141
      %2143 = vmatpush.msra.mxu0 %v2140
      %2144 = vmatpush.msra.mxu0 %v2139
      %2145 = vmatpush.msra.mxu0 %v2138
      %2146 = vmatpush.msra.mxu0 %v2137
      %2147 = vmatpush.msra.mxu0 %v2136
      %2148 = vmatpush.msra.mxu0 %v2135
      %2149 = vmatpush.msra.mxu0 %v2134
      %2150 = vmatpush.msra.mxu0 %v2133
      %2151 = vmatpush.msra.mxu0 %v2132
      %2152 = vmatpush.msra.mxu0 %v2131
      %2153 = vmatpush.msra.mxu0 %v2130
      %2154 = vmatpush.msra.mxu0 %v2129
      %2155 = vmatpush.msra.mxu0 %v2128
      %2156 = vmatpush.msra.mxu0 %v2127
      %2157 = vmatpush.msra.mxu0 %v2126
      %2158 = vmatmul.f32.gmra.mxu0 %v2110
      %v2159 = vpop.f32.mrf.mxu0
      %v2160 = vadd.f32 0.0, %v2159
      %2161 = vmatmul.f32.gmra.mxu0 %v2111
      %v2162 = vpop.f32.mrf.mxu0
      %v2163 = vadd.f32 0.0, %v2162
      %2164 = vmatmul.f32.gmra.mxu0 %v2112
      %v2165 = vpop.f32.mrf.mxu0
      %v2166 = vadd.f32 0.0, %v2165
      %2167 = vmatmul.f32.gmra.mxu0 %v2113
      %v2168 = vpop.f32.mrf.mxu0
      %v2169 = vadd.f32 0.0, %v2168
      %2170 = vmatmul.f32.gmra.mxu0 %v2114
      %v2171 = vpop.f32.mrf.mxu0
      %v2172 = vadd.f32 0.0, %v2171
      %2173 = vmatmul.f32.gmra.mxu0 %v2115
      %v2174 = vpop.f32.mrf.mxu0
      %v2175 = vadd.f32 0.0, %v2174
      %2176 = vmatmul.f32.gmra.mxu0 %v2116
      %v2177 = vpop.f32.mrf.mxu0
      %v2178 = vadd.f32 0.0, %v2177
      %2179 = vmatmul.f32.gmra.mxu0 %v2117
      %v2180 = vpop.f32.mrf.mxu0
      %v2181 = vadd.f32 0.0, %v2180
      %2182 = vmatmul.f32.gmra.mxu0 %v2118
      %v2183 = vpop.f32.mrf.mxu0
      %v2184 = vadd.f32 0.0, %v2183
      %2185 = vmatmul.f32.gmra.mxu0 %v2119
      %v2186 = vpop.f32.mrf.mxu0
      %v2187 = vadd.f32 0.0, %v2186
      %2188 = vmatmul.f32.gmra.mxu0 %v2120
      %v2189 = vpop.f32.mrf.mxu0
      %v2190 = vadd.f32 0.0, %v2189
      %2191 = vmatmul.f32.gmra.mxu0 %v2121
      %v2192 = vpop.f32.mrf.mxu0
      %v2193 = vadd.f32 0.0, %v2192
      %2194 = vmatmul.f32.gmra.mxu0 %v2122
      %v2195 = vpop.f32.mrf.mxu0
      %v2196 = vadd.f32 0.0, %v2195
      %2197 = vmatmul.f32.gmra.mxu0 %v2123
      %v2198 = vpop.f32.mrf.mxu0
      %v2199 = vadd.f32 0.0, %v2198
      %2200 = vmatmul.f32.gmra.mxu0 %v2124
      %v2201 = vpop.f32.mrf.mxu0
      %v2202 = vadd.f32 0.0, %v2201
      %2203 = vmatmul.f32.gmra.mxu0 %v2125
      %v2204 = vpop.f32.mrf.mxu0
      %v2205 = vadd.f32 0.0, %v2204
      %2206 = vdwg.mxu0
      %v2207 = vadd.f32 %v2063, %v2160
      %v2208 = vadd.f32 %v2066, %v2163
      %v2209 = vadd.f32 %v2069, %v2166
      %v2210 = vadd.f32 %v2072, %v2169
      %v2211 = vadd.f32 %v2075, %v2172
      %v2212 = vadd.f32 %v2078, %v2175
      %v2213 = vadd.f32 %v2081, %v2178
      %v2214 = vadd.f32 %v2084, %v2181
      %v2215 = vadd.f32 %v2087, %v2184
      %v2216 = vadd.f32 %v2090, %v2187
      %v2217 = vadd.f32 %v2093, %v2190
      %v2218 = vadd.f32 %v2096, %v2193
      %v2219 = vadd.f32 %v2099, %v2196
      %v2220 = vadd.f32 %v2102, %v2199
      %v2221 = vadd.f32 %v2105, %v2202
      %v2222 = vadd.f32 %v2108, %v2205
      %v2223 = vld [vmem:[%s835] sm:$0xff]
      %v2224 = vld [vmem:[%s835 + $0x8] sm:$0xff]
      %v2225 = vld [vmem:[%s835 + $0x18] sm:$0xff]
      %v2226 = vld [vmem:[%s835 + $0x20] sm:$0xff]
      %v2227 = vld [vmem:[%s835 + $0x30] sm:$0xff]
      %v2228 = vld [vmem:[%s835 + $0x38] sm:$0xff]
      %v2229 = vld [vmem:[%s835 + $0x48] sm:$0xff]
      %v2230 = vld [vmem:[%s835 + $0x50] sm:$0xff]
      %v2231 = vld [vmem:[%s835 + $0x60] sm:$0xff]
      %v2232 = vld [vmem:[%s835 + $0x68] sm:$0xff]
      %v2233 = vld [vmem:[%s835 + $0x78] sm:$0xff]
      %v2234 = vld [vmem:[%s835 + $0x80] sm:$0xff]
      %v2235 = vld [vmem:[%s835 + $0x90] sm:$0xff]
      %v2236 = vld [vmem:[%s835 + $0x98] sm:$0xff]
      %v2237 = vld [vmem:[%s835 + $0xa8] sm:$0xff]
      %v2238 = vld [vmem:[%s835 + $0xb0] sm:$0xff]
      %v2239 = vld [vmem:[%s1177] sm:$0xff]
      %v2240 = vld [vmem:[%s1177 + $0x8] sm:$0xff]
      %v2241 = vld [vmem:[%s1177 + $0x10] sm:$0xff]
      %v2242 = vld [vmem:[%s1177 + $0x18] sm:$0xff]
      %v2243 = vld [vmem:[%s1177 + $0x20] sm:$0xff]
      %v2244 = vld [vmem:[%s1177 + $0x28] sm:$0xff]
      %v2245 = vld [vmem:[%s1177 + $0x30] sm:$0xff]
      %v2246 = vld [vmem:[%s1177 + $0x38] sm:$0xff]
      %v2247 = vld [vmem:[%s1177 + $0x40] sm:$0xff]
      %v2248 = vld [vmem:[%s1177 + $0x48] sm:$0xff]
      %v2249 = vld [vmem:[%s1177 + $0x50] sm:$0xff]
      %v2250 = vld [vmem:[%s1177 + $0x58] sm:$0xff]
      %v2251 = vld [vmem:[%s1177 + $0x60] sm:$0xff]
      %v2252 = vld [vmem:[%s1177 + $0x68] sm:$0xff]
      %v2253 = vld [vmem:[%s1177 + $0x70] sm:$0xff]
      %v2254 = vld [vmem:[%s1177 + $0x78] sm:$0xff]
      %2255 = vmatpush.msra.mxu0 %v2254
      %2256 = vmatpush.msra.mxu0 %v2253
      %2257 = vmatpush.msra.mxu0 %v2252
      %2258 = vmatpush.msra.mxu0 %v2251
      %2259 = vmatpush.msra.mxu0 %v2250
      %2260 = vmatpush.msra.mxu0 %v2249
      %2261 = vmatpush.msra.mxu0 %v2248
      %2262 = vmatpush.msra.mxu0 %v2247
      %2263 = vmatpush.msra.mxu0 %v2246
      %2264 = vmatpush.msra.mxu0 %v2245
      %2265 = vmatpush.msra.mxu0 %v2244
      %2266 = vmatpush.msra.mxu0 %v2243
      %2267 = vmatpush.msra.mxu0 %v2242
      %2268 = vmatpush.msra.mxu0 %v2241
      %2269 = vmatpush.msra.mxu0 %v2240
      %2270 = vmatpush.msra.mxu0 %v2239
      %2271 = vmatmul.f32.gmra.mxu0 %v2223
      %v2272 = vpop.f32.mrf.mxu0
      %v2273 = vadd.f32 0.0, %v2272
      %2274 = vmatmul.f32.gmra.mxu0 %v2224
      %v2275 = vpop.f32.mrf.mxu0
      %v2276 = vadd.f32 0.0, %v2275
      %2277 = vmatmul.f32.gmra.mxu0 %v2225
      %v2278 = vpop.f32.mrf.mxu0
      %v2279 = vadd.f32 0.0, %v2278
      %2280 = vmatmul.f32.gmra.mxu0 %v2226
      %v2281 = vpop.f32.mrf.mxu0
      %v2282 = vadd.f32 0.0, %v2281
      %2283 = vmatmul.f32.gmra.mxu0 %v2227
      %v2284 = vpop.f32.mrf.mxu0
      %v2285 = vadd.f32 0.0, %v2284
      %2286 = vmatmul.f32.gmra.mxu0 %v2228
      %v2287 = vpop.f32.mrf.mxu0
      %v2288 = vadd.f32 0.0, %v2287
      %2289 = vmatmul.f32.gmra.mxu0 %v2229
      %v2290 = vpop.f32.mrf.mxu0
      %v2291 = vadd.f32 0.0, %v2290
      %2292 = vmatmul.f32.gmra.mxu0 %v2230
      %v2293 = vpop.f32.mrf.mxu0
      %v2294 = vadd.f32 0.0, %v2293
      %2295 = vmatmul.f32.gmra.mxu0 %v2231
      %v2296 = vpop.f32.mrf.mxu0
      %v2297 = vadd.f32 0.0, %v2296
      %2298 = vmatmul.f32.gmra.mxu0 %v2232
      %v2299 = vpop.f32.mrf.mxu0
      %v2300 = vadd.f32 0.0, %v2299
      %2301 = vmatmul.f32.gmra.mxu0 %v2233
      %v2302 = vpop.f32.mrf.mxu0
      %v2303 = vadd.f32 0.0, %v2302
      %2304 = vmatmul.f32.gmra.mxu0 %v2234
      %v2305 = vpop.f32.mrf.mxu0
      %v2306 = vadd.f32 0.0, %v2305
      %2307 = vmatmul.f32.gmra.mxu0 %v2235
      %v2308 = vpop.f32.mrf.mxu0
      %v2309 = vadd.f32 0.0, %v2308
      %2310 = vmatmul.f32.gmra.mxu0 %v2236
      %v2311 = vpop.f32.mrf.mxu0
      %v2312 = vadd.f32 0.0, %v2311
      %2313 = vmatmul.f32.gmra.mxu0 %v2237
      %v2314 = vpop.f32.mrf.mxu0
      %v2315 = vadd.f32 0.0, %v2314
      %2316 = vmatmul.f32.gmra.mxu0 %v2238
      %v2317 = vpop.f32.mrf.mxu0
      %v2318 = vadd.f32 0.0, %v2317
      %2319 = vdwg.mxu0
      %v2320 = vadd.f32 %v2207, %v2273
      %v2321 = vadd.f32 %v2208, %v2276
      %v2322 = vadd.f32 %v2209, %v2279
      %v2323 = vadd.f32 %v2210, %v2282
      %v2324 = vadd.f32 %v2211, %v2285
      %v2325 = vadd.f32 %v2212, %v2288
      %v2326 = vadd.f32 %v2213, %v2291
      %v2327 = vadd.f32 %v2214, %v2294
      %v2328 = vadd.f32 %v2215, %v2297
      %v2329 = vadd.f32 %v2216, %v2300
      %v2330 = vadd.f32 %v2217, %v2303
      %v2331 = vadd.f32 %v2218, %v2306
      %v2332 = vadd.f32 %v2219, %v2309
      %v2333 = vadd.f32 %v2220, %v2312
      %v2334 = vadd.f32 %v2221, %v2315
      %v2335 = vadd.f32 %v2222, %v2318
      %v2336 = vld [vmem:[%s835 + $0x1] sm:$0xff]
      %v2337 = vld [vmem:[%s835 + $0x9] sm:$0xff]
      %v2338 = vld [vmem:[%s835 + $0x19] sm:$0xff]
      %v2339 = vld [vmem:[%s835 + $0x21] sm:$0xff]
      %v2340 = vld [vmem:[%s835 + $0x31] sm:$0xff]
      %v2341 = vld [vmem:[%s835 + $0x39] sm:$0xff]
      %v2342 = vld [vmem:[%s835 + $0x49] sm:$0xff]
      %v2343 = vld [vmem:[%s835 + $0x51] sm:$0xff]
      %v2344 = vld [vmem:[%s835 + $0x61] sm:$0xff]
      %v2345 = vld [vmem:[%s835 + $0x69] sm:$0xff]
      %v2346 = vld [vmem:[%s835 + $0x79] sm:$0xff]
      %v2347 = vld [vmem:[%s835 + $0x81] sm:$0xff]
      %v2348 = vld [vmem:[%s835 + $0x91] sm:$0xff]
      %v2349 = vld [vmem:[%s835 + $0x99] sm:$0xff]
      %v2350 = vld [vmem:[%s835 + $0xa9] sm:$0xff]
      %v2351 = vld [vmem:[%s835 + $0xb1] sm:$0xff]
      %v2352 = vld [vmem:[%s1291] sm:$0xff]
      %v2353 = vld [vmem:[%s1291 + $0x8] sm:$0xff]
      %v2354 = vld [vmem:[%s1291 + $0x10] sm:$0xff]
      %v2355 = vld [vmem:[%s1291 + $0x18] sm:$0xff]
      %v2356 = vld [vmem:[%s1291 + $0x20] sm:$0xff]
      %v2357 = vld [vmem:[%s1291 + $0x28] sm:$0xff]
      %v2358 = vld [vmem:[%s1291 + $0x30] sm:$0xff]
      %v2359 = vld [vmem:[%s1291 + $0x38] sm:$0xff]
      %v2360 = vld [vmem:[%s1291 + $0x40] sm:$0xff]
      %v2361 = vld [vmem:[%s1291 + $0x48] sm:$0xff]
      %v2362 = vld [vmem:[%s1291 + $0x50] sm:$0xff]
      %v2363 = vld [vmem:[%s1291 + $0x58] sm:$0xff]
      %v2364 = vld [vmem:[%s1291 + $0x60] sm:$0xff]
      %v2365 = vld [vmem:[%s1291 + $0x68] sm:$0xff]
      %v2366 = vld [vmem:[%s1291 + $0x70] sm:$0xff]
      %v2367 = vld [vmem:[%s1291 + $0x78] sm:$0xff]
      %2368 = vmatpush.msra.mxu0 %v2367
      %2369 = vmatpush.msra.mxu0 %v2366
      %2370 = vmatpush.msra.mxu0 %v2365
      %2371 = vmatpush.msra.mxu0 %v2364
      %2372 = vmatpush.msra.mxu0 %v2363
      %2373 = vmatpush.msra.mxu0 %v2362
      %2374 = vmatpush.msra.mxu0 %v2361
      %2375 = vmatpush.msra.mxu0 %v2360
      %2376 = vmatpush.msra.mxu0 %v2359
      %2377 = vmatpush.msra.mxu0 %v2358
      %2378 = vmatpush.msra.mxu0 %v2357
      %2379 = vmatpush.msra.mxu0 %v2356
      %2380 = vmatpush.msra.mxu0 %v2355
      %2381 = vmatpush.msra.mxu0 %v2354
      %2382 = vmatpush.msra.mxu0 %v2353
      %2383 = vmatpush.msra.mxu0 %v2352
      %2384 = vmatmul.f32.gmra.mxu0 %v2336
      %v2385 = vpop.f32.mrf.mxu0
      %v2386 = vadd.f32 0.0, %v2385
      %2387 = vmatmul.f32.gmra.mxu0 %v2337
      %v2388 = vpop.f32.mrf.mxu0
      %v2389 = vadd.f32 0.0, %v2388
      %2390 = vmatmul.f32.gmra.mxu0 %v2338
      %v2391 = vpop.f32.mrf.mxu0
      %v2392 = vadd.f32 0.0, %v2391
      %2393 = vmatmul.f32.gmra.mxu0 %v2339
      %v2394 = vpop.f32.mrf.mxu0
      %v2395 = vadd.f32 0.0, %v2394
      %2396 = vmatmul.f32.gmra.mxu0 %v2340
      %v2397 = vpop.f32.mrf.mxu0
      %v2398 = vadd.f32 0.0, %v2397
      %2399 = vmatmul.f32.gmra.mxu0 %v2341
      %v2400 = vpop.f32.mrf.mxu0
      %v2401 = vadd.f32 0.0, %v2400
      %2402 = vmatmul.f32.gmra.mxu0 %v2342
      %v2403 = vpop.f32.mrf.mxu0
      %v2404 = vadd.f32 0.0, %v2403
      %2405 = vmatmul.f32.gmra.mxu0 %v2343
      %v2406 = vpop.f32.mrf.mxu0
      %v2407 = vadd.f32 0.0, %v2406
      %2408 = vmatmul.f32.gmra.mxu0 %v2344
      %v2409 = vpop.f32.mrf.mxu0
      %v2410 = vadd.f32 0.0, %v2409
      %2411 = vmatmul.f32.gmra.mxu0 %v2345
      %v2412 = vpop.f32.mrf.mxu0
      %v2413 = vadd.f32 0.0, %v2412
      %2414 = vmatmul.f32.gmra.mxu0 %v2346
      %v2415 = vpop.f32.mrf.mxu0
      %v2416 = vadd.f32 0.0, %v2415
      %2417 = vmatmul.f32.gmra.mxu0 %v2347
      %v2418 = vpop.f32.mrf.mxu0
      %v2419 = vadd.f32 0.0, %v2418
      %2420 = vmatmul.f32.gmra.mxu0 %v2348
      %v2421 = vpop.f32.mrf.mxu0
      %v2422 = vadd.f32 0.0, %v2421
      %2423 = vmatmul.f32.gmra.mxu0 %v2349
      %v2424 = vpop.f32.mrf.mxu0
      %v2425 = vadd.f32 0.0, %v2424
      %2426 = vmatmul.f32.gmra.mxu0 %v2350
      %v2427 = vpop.f32.mrf.mxu0
      %v2428 = vadd.f32 0.0, %v2427
      %2429 = vmatmul.f32.gmra.mxu0 %v2351
      %v2430 = vpop.f32.mrf.mxu0
      %v2431 = vadd.f32 0.0, %v2430
      %2432 = vdwg.mxu0
      %v2433 = vadd.f32 %v2320, %v2386
      %v2434 = vadd.f32 %v2321, %v2389
      %v2435 = vadd.f32 %v2322, %v2392
      %v2436 = vadd.f32 %v2323, %v2395
      %v2437 = vadd.f32 %v2324, %v2398
      %v2438 = vadd.f32 %v2325, %v2401
      %v2439 = vadd.f32 %v2326, %v2404
      %v2440 = vadd.f32 %v2327, %v2407
      %v2441 = vadd.f32 %v2328, %v2410
      %v2442 = vadd.f32 %v2329, %v2413
      %v2443 = vadd.f32 %v2330, %v2416
      %v2444 = vadd.f32 %v2331, %v2419
      %v2445 = vadd.f32 %v2332, %v2422
      %v2446 = vadd.f32 %v2333, %v2425
      %v2447 = vadd.f32 %v2334, %v2428
      %v2448 = vadd.f32 %v2335, %v2431
      %v2449 = vld [vmem:[%s835 + $0x2] sm:$0xff]
      %v2450 = vld [vmem:[%s835 + $0xa] sm:$0xff]
      %v2451 = vld [vmem:[%s835 + $0x1a] sm:$0xff]
      %v2452 = vld [vmem:[%s835 + $0x22] sm:$0xff]
      %v2453 = vld [vmem:[%s835 + $0x32] sm:$0xff]
      %v2454 = vld [vmem:[%s835 + $0x3a] sm:$0xff]
      %v2455 = vld [vmem:[%s835 + $0x4a] sm:$0xff]
      %v2456 = vld [vmem:[%s835 + $0x52] sm:$0xff]
      %v2457 = vld [vmem:[%s835 + $0x62] sm:$0xff]
      %v2458 = vld [vmem:[%s835 + $0x6a] sm:$0xff]
      %v2459 = vld [vmem:[%s835 + $0x7a] sm:$0xff]
      %v2460 = vld [vmem:[%s835 + $0x82] sm:$0xff]
      %v2461 = vld [vmem:[%s835 + $0x92] sm:$0xff]
      %v2462 = vld [vmem:[%s835 + $0x9a] sm:$0xff]
      %v2463 = vld [vmem:[%s835 + $0xaa] sm:$0xff]
      %v2464 = vld [vmem:[%s835 + $0xb2] sm:$0xff]
      %v2465 = vld [vmem:[%s1405] sm:$0xff]
      %v2466 = vld [vmem:[%s1405 + $0x8] sm:$0xff]
      %v2467 = vld [vmem:[%s1405 + $0x10] sm:$0xff]
      %v2468 = vld [vmem:[%s1405 + $0x18] sm:$0xff]
      %v2469 = vld [vmem:[%s1405 + $0x20] sm:$0xff]
      %v2470 = vld [vmem:[%s1405 + $0x28] sm:$0xff]
      %v2471 = vld [vmem:[%s1405 + $0x30] sm:$0xff]
      %v2472 = vld [vmem:[%s1405 + $0x38] sm:$0xff]
      %v2473 = vld [vmem:[%s1405 + $0x40] sm:$0xff]
      %v2474 = vld [vmem:[%s1405 + $0x48] sm:$0xff]
      %v2475 = vld [vmem:[%s1405 + $0x50] sm:$0xff]
      %v2476 = vld [vmem:[%s1405 + $0x58] sm:$0xff]
      %v2477 = vld [vmem:[%s1405 + $0x60] sm:$0xff]
      %v2478 = vld [vmem:[%s1405 + $0x68] sm:$0xff]
      %v2479 = vld [vmem:[%s1405 + $0x70] sm:$0xff]
      %v2480 = vld [vmem:[%s1405 + $0x78] sm:$0xff]
      %2481 = vmatpush.msra.mxu0 %v2480
      %2482 = vmatpush.msra.mxu0 %v2479
      %2483 = vmatpush.msra.mxu0 %v2478
      %2484 = vmatpush.msra.mxu0 %v2477
      %2485 = vmatpush.msra.mxu0 %v2476
      %2486 = vmatpush.msra.mxu0 %v2475
      %2487 = vmatpush.msra.mxu0 %v2474
      %2488 = vmatpush.msra.mxu0 %v2473
      %2489 = vmatpush.msra.mxu0 %v2472
      %2490 = vmatpush.msra.mxu0 %v2471
      %2491 = vmatpush.msra.mxu0 %v2470
      %2492 = vmatpush.msra.mxu0 %v2469
      %2493 = vmatpush.msra.mxu0 %v2468
      %2494 = vmatpush.msra.mxu0 %v2467
      %2495 = vmatpush.msra.mxu0 %v2466
      %2496 = vmatpush.msra.mxu0 %v2465
      %2497 = vmatmul.f32.gmra.mxu0 %v2449
      %v2498 = vpop.f32.mrf.mxu0
      %v2499 = vadd.f32 0.0, %v2498
      %2500 = vmatmul.f32.gmra.mxu0 %v2450
      %v2501 = vpop.f32.mrf.mxu0
      %v2502 = vadd.f32 0.0, %v2501
      %2503 = vmatmul.f32.gmra.mxu0 %v2451
      %v2504 = vpop.f32.mrf.mxu0
      %v2505 = vadd.f32 0.0, %v2504
      %2506 = vmatmul.f32.gmra.mxu0 %v2452
      %v2507 = vpop.f32.mrf.mxu0
      %v2508 = vadd.f32 0.0, %v2507
      %2509 = vmatmul.f32.gmra.mxu0 %v2453
      %v2510 = vpop.f32.mrf.mxu0
      %v2511 = vadd.f32 0.0, %v2510
      %2512 = vmatmul.f32.gmra.mxu0 %v2454
      %v2513 = vpop.f32.mrf.mxu0
      %v2514 = vadd.f32 0.0, %v2513
      %2515 = vmatmul.f32.gmra.mxu0 %v2455
      %v2516 = vpop.f32.mrf.mxu0
      %v2517 = vadd.f32 0.0, %v2516
      %2518 = vmatmul.f32.gmra.mxu0 %v2456
      %v2519 = vpop.f32.mrf.mxu0
      %v2520 = vadd.f32 0.0, %v2519
      %2521 = vmatmul.f32.gmra.mxu0 %v2457
      %v2522 = vpop.f32.mrf.mxu0
      %v2523 = vadd.f32 0.0, %v2522
      %2524 = vmatmul.f32.gmra.mxu0 %v2458
      %v2525 = vpop.f32.mrf.mxu0
      %v2526 = vadd.f32 0.0, %v2525
      %2527 = vmatmul.f32.gmra.mxu0 %v2459
      %v2528 = vpop.f32.mrf.mxu0
      %v2529 = vadd.f32 0.0, %v2528
      %2530 = vmatmul.f32.gmra.mxu0 %v2460
      %v2531 = vpop.f32.mrf.mxu0
      %v2532 = vadd.f32 0.0, %v2531
      %2533 = vmatmul.f32.gmra.mxu0 %v2461
      %v2534 = vpop.f32.mrf.mxu0
      %v2535 = vadd.f32 0.0, %v2534
      %2536 = vmatmul.f32.gmra.mxu0 %v2462
      %v2537 = vpop.f32.mrf.mxu0
      %v2538 = vadd.f32 0.0, %v2537
      %2539 = vmatmul.f32.gmra.mxu0 %v2463
      %v2540 = vpop.f32.mrf.mxu0
      %v2541 = vadd.f32 0.0, %v2540
      %2542 = vmatmul.f32.gmra.mxu0 %v2464
      %v2543 = vpop.f32.mrf.mxu0
      %v2544 = vadd.f32 0.0, %v2543
      %2545 = vdwg.mxu0
      %v2546 = vadd.f32 %v2433, %v2499
      %v2547 = vadd.f32 %v2434, %v2502
      %v2548 = vadd.f32 %v2435, %v2505
      %v2549 = vadd.f32 %v2436, %v2508
      %v2550 = vadd.f32 %v2437, %v2511
      %v2551 = vadd.f32 %v2438, %v2514
      %v2552 = vadd.f32 %v2439, %v2517
      %v2553 = vadd.f32 %v2440, %v2520
      %v2554 = vadd.f32 %v2441, %v2523
      %v2555 = vadd.f32 %v2442, %v2526
      %v2556 = vadd.f32 %v2443, %v2529
      %v2557 = vadd.f32 %v2444, %v2532
      %v2558 = vadd.f32 %v2445, %v2535
      %v2559 = vadd.f32 %v2446, %v2538
      %v2560 = vadd.f32 %v2447, %v2541
      %v2561 = vadd.f32 %v2448, %v2544
      %s2562 = scalar_lea.vmem [#allocation2], 240
      %v2563 = vld [vmem:[%s2562] sm:$0xff]
      %v2564 = vld [vmem:[%s2562 + $0x8] sm:$0xff]
      %v2565 = vld [vmem:[%s2562 + $0x18] sm:$0xff]
      %v2566 = vld [vmem:[%s2562 + $0x20] sm:$0xff]
      %v2567 = vld [vmem:[%s2562 + $0x30] sm:$0xff]
      %v2568 = vld [vmem:[%s2562 + $0x38] sm:$0xff]
      %v2569 = vld [vmem:[%s2562 + $0x48] sm:$0xff]
      %v2570 = vld [vmem:[%s2562 + $0x50] sm:$0xff]
      %v2571 = vld [vmem:[%s2562 + $0x60] sm:$0xff]
      %v2572 = vld [vmem:[%s2562 + $0x68] sm:$0xff]
      %v2573 = vld [vmem:[%s2562 + $0x78] sm:$0xff]
      %v2574 = vld [vmem:[%s2562 + $0x80] sm:$0xff]
      %v2575 = vld [vmem:[%s2562 + $0x90] sm:$0xff]
      %v2576 = vld [vmem:[%s2562 + $0x98] sm:$0xff]
      %v2577 = vld [vmem:[%s2562 + $0xa8] sm:$0xff]
      %v2578 = vld [vmem:[%s2562 + $0xb0] sm:$0xff]
      %v2579 = vld [vmem:[%s1520] sm:$0xff]
      %v2580 = vld [vmem:[%s1520 + $0x8] sm:$0xff]
      %v2581 = vld [vmem:[%s1520 + $0x10] sm:$0xff]
      %v2582 = vld [vmem:[%s1520 + $0x18] sm:$0xff]
      %v2583 = vld [vmem:[%s1520 + $0x20] sm:$0xff]
      %v2584 = vld [vmem:[%s1520 + $0x28] sm:$0xff]
      %v2585 = vld [vmem:[%s1520 + $0x30] sm:$0xff]
      %v2586 = vld [vmem:[%s1520 + $0x38] sm:$0xff]
      %v2587 = vld [vmem:[%s1520 + $0x40] sm:$0xff]
      %v2588 = vld [vmem:[%s1520 + $0x48] sm:$0xff]
      %v2589 = vld [vmem:[%s1520 + $0x50] sm:$0xff]
      %v2590 = vld [vmem:[%s1520 + $0x58] sm:$0xff]
      %v2591 = vld [vmem:[%s1520 + $0x60] sm:$0xff]
      %v2592 = vld [vmem:[%s1520 + $0x68] sm:$0xff]
      %v2593 = vld [vmem:[%s1520 + $0x70] sm:$0xff]
      %v2594 = vld [vmem:[%s1520 + $0x78] sm:$0xff]
      %2595 = vmatpush.msra.mxu0 %v2594
      %2596 = vmatpush.msra.mxu0 %v2593
      %2597 = vmatpush.msra.mxu0 %v2592
      %2598 = vmatpush.msra.mxu0 %v2591
      %2599 = vmatpush.msra.mxu0 %v2590
      %2600 = vmatpush.msra.mxu0 %v2589
      %2601 = vmatpush.msra.mxu0 %v2588
      %2602 = vmatpush.msra.mxu0 %v2587
      %2603 = vmatpush.msra.mxu0 %v2586
      %2604 = vmatpush.msra.mxu0 %v2585
      %2605 = vmatpush.msra.mxu0 %v2584
      %2606 = vmatpush.msra.mxu0 %v2583
      %2607 = vmatpush.msra.mxu0 %v2582
      %2608 = vmatpush.msra.mxu0 %v2581
      %2609 = vmatpush.msra.mxu0 %v2580
      %2610 = vmatpush.msra.mxu0 %v2579
      %2611 = vmatmul.f32.gmra.mxu0 %v2563
      %v2612 = vpop.f32.mrf.mxu0
      %v2613 = vadd.f32 0.0, %v2612
      %2614 = vmatmul.f32.gmra.mxu0 %v2564
      %v2615 = vpop.f32.mrf.mxu0
      %v2616 = vadd.f32 0.0, %v2615
      %2617 = vmatmul.f32.gmra.mxu0 %v2565
      %v2618 = vpop.f32.mrf.mxu0
      %v2619 = vadd.f32 0.0, %v2618
      %2620 = vmatmul.f32.gmra.mxu0 %v2566
      %v2621 = vpop.f32.mrf.mxu0
      %v2622 = vadd.f32 0.0, %v2621
      %2623 = vmatmul.f32.gmra.mxu0 %v2567
      %v2624 = vpop.f32.mrf.mxu0
      %v2625 = vadd.f32 0.0, %v2624
      %2626 = vmatmul.f32.gmra.mxu0 %v2568
      %v2627 = vpop.f32.mrf.mxu0
      %v2628 = vadd.f32 0.0, %v2627
      %2629 = vmatmul.f32.gmra.mxu0 %v2569
      %v2630 = vpop.f32.mrf.mxu0
      %v2631 = vadd.f32 0.0, %v2630
      %2632 = vmatmul.f32.gmra.mxu0 %v2570
      %v2633 = vpop.f32.mrf.mxu0
      %v2634 = vadd.f32 0.0, %v2633
      %2635 = vmatmul.f32.gmra.mxu0 %v2571
      %v2636 = vpop.f32.mrf.mxu0
      %v2637 = vadd.f32 0.0, %v2636
      %2638 = vmatmul.f32.gmra.mxu0 %v2572
      %v2639 = vpop.f32.mrf.mxu0
      %v2640 = vadd.f32 0.0, %v2639
      %2641 = vmatmul.f32.gmra.mxu0 %v2573
      %v2642 = vpop.f32.mrf.mxu0
      %v2643 = vadd.f32 0.0, %v2642
      %2644 = vmatmul.f32.gmra.mxu0 %v2574
      %v2645 = vpop.f32.mrf.mxu0
      %v2646 = vadd.f32 0.0, %v2645
      %2647 = vmatmul.f32.gmra.mxu0 %v2575
      %v2648 = vpop.f32.mrf.mxu0
      %v2649 = vadd.f32 0.0, %v2648
      %2650 = vmatmul.f32.gmra.mxu0 %v2576
      %v2651 = vpop.f32.mrf.mxu0
      %v2652 = vadd.f32 0.0, %v2651
      %2653 = vmatmul.f32.gmra.mxu0 %v2577
      %v2654 = vpop.f32.mrf.mxu0
      %v2655 = vadd.f32 0.0, %v2654
      %2656 = vmatmul.f32.gmra.mxu0 %v2578
      %v2657 = vpop.f32.mrf.mxu0
      %v2658 = vadd.f32 0.0, %v2657
      %2659 = vdwg.mxu0
      %v2660 = vadd.f32 %v2546, %v2613
      %v2661 = vadd.f32 %v2547, %v2616
      %v2662 = vadd.f32 %v2548, %v2619
      %v2663 = vadd.f32 %v2549, %v2622
      %v2664 = vadd.f32 %v2550, %v2625
      %v2665 = vadd.f32 %v2551, %v2628
      %v2666 = vadd.f32 %v2552, %v2631
      %v2667 = vadd.f32 %v2553, %v2634
      %v2668 = vadd.f32 %v2554, %v2637
      %v2669 = vadd.f32 %v2555, %v2640
      %v2670 = vadd.f32 %v2556, %v2643
      %v2671 = vadd.f32 %v2557, %v2646
      %v2672 = vadd.f32 %v2558, %v2649
      %v2673 = vadd.f32 %v2559, %v2652
      %v2674 = vadd.f32 %v2560, %v2655
      %v2675 = vadd.f32 %v2561, %v2658
      %v2676 = vld [vmem:[%s2562 + $0x1] sm:$0xff]
      %v2677 = vld [vmem:[%s2562 + $0x9] sm:$0xff]
      %v2678 = vld [vmem:[%s2562 + $0x19] sm:$0xff]
      %v2679 = vld [vmem:[%s2562 + $0x21] sm:$0xff]
      %v2680 = vld [vmem:[%s2562 + $0x31] sm:$0xff]
      %v2681 = vld [vmem:[%s2562 + $0x39] sm:$0xff]
      %v2682 = vld [vmem:[%s2562 + $0x49] sm:$0xff]
      %v2683 = vld [vmem:[%s2562 + $0x51] sm:$0xff]
      %v2684 = vld [vmem:[%s2562 + $0x61] sm:$0xff]
      %v2685 = vld [vmem:[%s2562 + $0x69] sm:$0xff]
      %v2686 = vld [vmem:[%s2562 + $0x79] sm:$0xff]
      %v2687 = vld [vmem:[%s2562 + $0x81] sm:$0xff]
      %v2688 = vld [vmem:[%s2562 + $0x91] sm:$0xff]
      %v2689 = vld [vmem:[%s2562 + $0x99] sm:$0xff]
      %v2690 = vld [vmem:[%s2562 + $0xa9] sm:$0xff]
      %v2691 = vld [vmem:[%s2562 + $0xb1] sm:$0xff]
      %v2692 = vld [vmem:[%s1634] sm:$0xff]
      %v2693 = vld [vmem:[%s1634 + $0x8] sm:$0xff]
      %v2694 = vld [vmem:[%s1634 + $0x10] sm:$0xff]
      %v2695 = vld [vmem:[%s1634 + $0x18] sm:$0xff]
      %v2696 = vld [vmem:[%s1634 + $0x20] sm:$0xff]
      %v2697 = vld [vmem:[%s1634 + $0x28] sm:$0xff]
      %v2698 = vld [vmem:[%s1634 + $0x30] sm:$0xff]
      %v2699 = vld [vmem:[%s1634 + $0x38] sm:$0xff]
      %v2700 = vld [vmem:[%s1634 + $0x40] sm:$0xff]
      %v2701 = vld [vmem:[%s1634 + $0x48] sm:$0xff]
      %v2702 = vld [vmem:[%s1634 + $0x50] sm:$0xff]
      %v2703 = vld [vmem:[%s1634 + $0x58] sm:$0xff]
      %v2704 = vld [vmem:[%s1634 + $0x60] sm:$0xff]
      %v2705 = vld [vmem:[%s1634 + $0x68] sm:$0xff]
      %v2706 = vld [vmem:[%s1634 + $0x70] sm:$0xff]
      %v2707 = vld [vmem:[%s1634 + $0x78] sm:$0xff]
      %2708 = vmatpush.msra.mxu0 %v2707
      %2709 = vmatpush.msra.mxu0 %v2706
      %2710 = vmatpush.msra.mxu0 %v2705
      %2711 = vmatpush.msra.mxu0 %v2704
      %2712 = vmatpush.msra.mxu0 %v2703
      %2713 = vmatpush.msra.mxu0 %v2702
      %2714 = vmatpush.msra.mxu0 %v2701
      %2715 = vmatpush.msra.mxu0 %v2700
      %2716 = vmatpush.msra.mxu0 %v2699
      %2717 = vmatpush.msra.mxu0 %v2698
      %2718 = vmatpush.msra.mxu0 %v2697
      %2719 = vmatpush.msra.mxu0 %v2696
      %2720 = vmatpush.msra.mxu0 %v2695
      %2721 = vmatpush.msra.mxu0 %v2694
      %2722 = vmatpush.msra.mxu0 %v2693
      %2723 = vmatpush.msra.mxu0 %v2692
      %2724 = vmatmul.f32.gmra.mxu0 %v2676
      %v2725 = vpop.f32.mrf.mxu0
      %v2726 = vadd.f32 0.0, %v2725
      %2727 = vmatmul.f32.gmra.mxu0 %v2677
      %v2728 = vpop.f32.mrf.mxu0
      %v2729 = vadd.f32 0.0, %v2728
      %2730 = vmatmul.f32.gmra.mxu0 %v2678
      %v2731 = vpop.f32.mrf.mxu0
      %v2732 = vadd.f32 0.0, %v2731
      %2733 = vmatmul.f32.gmra.mxu0 %v2679
      %v2734 = vpop.f32.mrf.mxu0
      %v2735 = vadd.f32 0.0, %v2734
      %2736 = vmatmul.f32.gmra.mxu0 %v2680
      %v2737 = vpop.f32.mrf.mxu0
      %v2738 = vadd.f32 0.0, %v2737
      %2739 = vmatmul.f32.gmra.mxu0 %v2681
      %v2740 = vpop.f32.mrf.mxu0
      %v2741 = vadd.f32 0.0, %v2740
      %2742 = vmatmul.f32.gmra.mxu0 %v2682
      %v2743 = vpop.f32.mrf.mxu0
      %v2744 = vadd.f32 0.0, %v2743
      %2745 = vmatmul.f32.gmra.mxu0 %v2683
      %v2746 = vpop.f32.mrf.mxu0
      %v2747 = vadd.f32 0.0, %v2746
      %2748 = vmatmul.f32.gmra.mxu0 %v2684
      %v2749 = vpop.f32.mrf.mxu0
      %v2750 = vadd.f32 0.0, %v2749
      %2751 = vmatmul.f32.gmra.mxu0 %v2685
      %v2752 = vpop.f32.mrf.mxu0
      %v2753 = vadd.f32 0.0, %v2752
      %2754 = vmatmul.f32.gmra.mxu0 %v2686
      %v2755 = vpop.f32.mrf.mxu0
      %v2756 = vadd.f32 0.0, %v2755
      %2757 = vmatmul.f32.gmra.mxu0 %v2687
      %v2758 = vpop.f32.mrf.mxu0
      %v2759 = vadd.f32 0.0, %v2758
      %2760 = vmatmul.f32.gmra.mxu0 %v2688
      %v2761 = vpop.f32.mrf.mxu0
      %v2762 = vadd.f32 0.0, %v2761
      %2763 = vmatmul.f32.gmra.mxu0 %v2689
      %v2764 = vpop.f32.mrf.mxu0
      %v2765 = vadd.f32 0.0, %v2764
      %2766 = vmatmul.f32.gmra.mxu0 %v2690
      %v2767 = vpop.f32.mrf.mxu0
      %v2768 = vadd.f32 0.0, %v2767
      %2769 = vmatmul.f32.gmra.mxu0 %v2691
      %v2770 = vpop.f32.mrf.mxu0
      %v2771 = vadd.f32 0.0, %v2770
      %2772 = vdwg.mxu0
      %v2773 = vadd.f32 %v2660, %v2726
      %v2774 = vadd.f32 %v2661, %v2729
      %v2775 = vadd.f32 %v2662, %v2732
      %v2776 = vadd.f32 %v2663, %v2735
      %v2777 = vadd.f32 %v2664, %v2738
      %v2778 = vadd.f32 %v2665, %v2741
      %v2779 = vadd.f32 %v2666, %v2744
      %v2780 = vadd.f32 %v2667, %v2747
      %v2781 = vadd.f32 %v2668, %v2750
      %v2782 = vadd.f32 %v2669, %v2753
      %v2783 = vadd.f32 %v2670, %v2756
      %v2784 = vadd.f32 %v2671, %v2759
      %v2785 = vadd.f32 %v2672, %v2762
      %v2786 = vadd.f32 %v2673, %v2765
      %v2787 = vadd.f32 %v2674, %v2768
      %v2788 = vadd.f32 %v2675, %v2771
      %v2789 = vld [vmem:[%s2562 + $0x2] sm:$0xff]
      %v2790 = vld [vmem:[%s2562 + $0xa] sm:$0xff]
      %v2791 = vld [vmem:[%s2562 + $0x1a] sm:$0xff]
      %v2792 = vld [vmem:[%s2562 + $0x22] sm:$0xff]
      %v2793 = vld [vmem:[%s2562 + $0x32] sm:$0xff]
      %v2794 = vld [vmem:[%s2562 + $0x3a] sm:$0xff]
      %v2795 = vld [vmem:[%s2562 + $0x4a] sm:$0xff]
      %v2796 = vld [vmem:[%s2562 + $0x52] sm:$0xff]
      %v2797 = vld [vmem:[%s2562 + $0x62] sm:$0xff]
      %v2798 = vld [vmem:[%s2562 + $0x6a] sm:$0xff]
      %v2799 = vld [vmem:[%s2562 + $0x7a] sm:$0xff]
      %v2800 = vld [vmem:[%s2562 + $0x82] sm:$0xff]
      %v2801 = vld [vmem:[%s2562 + $0x92] sm:$0xff]
      %v2802 = vld [vmem:[%s2562 + $0x9a] sm:$0xff]
      %v2803 = vld [vmem:[%s2562 + $0xaa] sm:$0xff]
      %v2804 = vld [vmem:[%s2562 + $0xb2] sm:$0xff]
      %v2805 = vld [vmem:[%s1748] sm:$0xff]
      %v2806 = vld [vmem:[%s1748 + $0x8] sm:$0xff]
      %v2807 = vld [vmem:[%s1748 + $0x10] sm:$0xff]
      %v2808 = vld [vmem:[%s1748 + $0x18] sm:$0xff]
      %v2809 = vld [vmem:[%s1748 + $0x20] sm:$0xff]
      %v2810 = vld [vmem:[%s1748 + $0x28] sm:$0xff]
      %v2811 = vld [vmem:[%s1748 + $0x30] sm:$0xff]
      %v2812 = vld [vmem:[%s1748 + $0x38] sm:$0xff]
      %v2813 = vld [vmem:[%s1748 + $0x40] sm:$0xff]
      %v2814 = vld [vmem:[%s1748 + $0x48] sm:$0xff]
      %v2815 = vld [vmem:[%s1748 + $0x50] sm:$0xff]
      %v2816 = vld [vmem:[%s1748 + $0x58] sm:$0xff]
      %v2817 = vld [vmem:[%s1748 + $0x60] sm:$0xff]
      %v2818 = vld [vmem:[%s1748 + $0x68] sm:$0xff]
      %v2819 = vld [vmem:[%s1748 + $0x70] sm:$0xff]
      %v2820 = vld [vmem:[%s1748 + $0x78] sm:$0xff]
      %2821 = vmatpush.msra.mxu0 %v2820
      %2822 = vmatpush.msra.mxu0 %v2819
      %2823 = vmatpush.msra.mxu0 %v2818
      %2824 = vmatpush.msra.mxu0 %v2817
      %2825 = vmatpush.msra.mxu0 %v2816
      %2826 = vmatpush.msra.mxu0 %v2815
      %2827 = vmatpush.msra.mxu0 %v2814
      %2828 = vmatpush.msra.mxu0 %v2813
      %2829 = vmatpush.msra.mxu0 %v2812
      %2830 = vmatpush.msra.mxu0 %v2811
      %2831 = vmatpush.msra.mxu0 %v2810
      %2832 = vmatpush.msra.mxu0 %v2809
      %2833 = vmatpush.msra.mxu0 %v2808
      %2834 = vmatpush.msra.mxu0 %v2807
      %2835 = vmatpush.msra.mxu0 %v2806
      %2836 = vmatpush.msra.mxu0 %v2805
      %2837 = vmatmul.f32.gmra.mxu0 %v2789
      %v2838 = vpop.f32.mrf.mxu0
      %v2839 = vadd.f32 0.0, %v2838
      %2840 = vmatmul.f32.gmra.mxu0 %v2790
      %v2841 = vpop.f32.mrf.mxu0
      %v2842 = vadd.f32 0.0, %v2841
      %2843 = vmatmul.f32.gmra.mxu0 %v2791
      %v2844 = vpop.f32.mrf.mxu0
      %v2845 = vadd.f32 0.0, %v2844
      %2846 = vmatmul.f32.gmra.mxu0 %v2792
      %v2847 = vpop.f32.mrf.mxu0
      %v2848 = vadd.f32 0.0, %v2847
      %2849 = vmatmul.f32.gmra.mxu0 %v2793
      %v2850 = vpop.f32.mrf.mxu0
      %v2851 = vadd.f32 0.0, %v2850
      %2852 = vmatmul.f32.gmra.mxu0 %v2794
      %v2853 = vpop.f32.mrf.mxu0
      %v2854 = vadd.f32 0.0, %v2853
      %2855 = vmatmul.f32.gmra.mxu0 %v2795
      %v2856 = vpop.f32.mrf.mxu0
      %v2857 = vadd.f32 0.0, %v2856
      %2858 = vmatmul.f32.gmra.mxu0 %v2796
      %v2859 = vpop.f32.mrf.mxu0
      %v2860 = vadd.f32 0.0, %v2859
      %2861 = vmatmul.f32.gmra.mxu0 %v2797
      %v2862 = vpop.f32.mrf.mxu0
      %v2863 = vadd.f32 0.0, %v2862
      %2864 = vmatmul.f32.gmra.mxu0 %v2798
      %v2865 = vpop.f32.mrf.mxu0
      %v2866 = vadd.f32 0.0, %v2865
      %2867 = vmatmul.f32.gmra.mxu0 %v2799
      %v2868 = vpop.f32.mrf.mxu0
      %v2869 = vadd.f32 0.0, %v2868
      %2870 = vmatmul.f32.gmra.mxu0 %v2800
      %v2871 = vpop.f32.mrf.mxu0
      %v2872 = vadd.f32 0.0, %v2871
      %2873 = vmatmul.f32.gmra.mxu0 %v2801
      %v2874 = vpop.f32.mrf.mxu0
      %v2875 = vadd.f32 0.0, %v2874
      %2876 = vmatmul.f32.gmra.mxu0 %v2802
      %v2877 = vpop.f32.mrf.mxu0
      %v2878 = vadd.f32 0.0, %v2877
      %2879 = vmatmul.f32.gmra.mxu0 %v2803
      %v2880 = vpop.f32.mrf.mxu0
      %v2881 = vadd.f32 0.0, %v2880
      %2882 = vmatmul.f32.gmra.mxu0 %v2804
      %v2883 = vpop.f32.mrf.mxu0
      %v2884 = vadd.f32 0.0, %v2883
      %2885 = vdwg.mxu0
      %v2886 = vadd.f32 %v2773, %v2839
      %v2887 = vadd.f32 %v2774, %v2842
      %v2888 = vadd.f32 %v2775, %v2845
      %v2889 = vadd.f32 %v2776, %v2848
      %v2890 = vadd.f32 %v2777, %v2851
      %v2891 = vadd.f32 %v2778, %v2854
      %v2892 = vadd.f32 %v2779, %v2857
      %v2893 = vadd.f32 %v2780, %v2860
      %v2894 = vadd.f32 %v2781, %v2863
      %v2895 = vadd.f32 %v2782, %v2866
      %v2896 = vadd.f32 %v2783, %v2869
      %v2897 = vadd.f32 %v2784, %v2872
      %v2898 = vadd.f32 %v2785, %v2875
      %v2899 = vadd.f32 %v2786, %v2878
      %v2900 = vadd.f32 %v2787, %v2881
      %v2901 = vadd.f32 %v2788, %v2884
      %v2902 = vld [vmem:[%s3] sm:$0x1]
      %v2904 = vperm.slane %v2902, 0
      %v2906 = vadd.f32 %v2886, %v2904
      %v2907 = vadd.f32 %v2887, %v2904
      %v2908 = vadd.f32 %v2888, %v2904
      %v2909 = vadd.f32 %v2889, %v2904
      %v2910 = vadd.f32 %v2890, %v2904
      %v2911 = vadd.f32 %v2891, %v2904
      %v2912 = vadd.f32 %v2892, %v2904
      %v2913 = vadd.f32 %v2893, %v2904
      %v2914 = vadd.f32 %v2894, %v2904
      %v2915 = vadd.f32 %v2895, %v2904
      %v2916 = vadd.f32 %v2896, %v2904
      %v2917 = vadd.f32 %v2897, %v2904
      %v2918 = vadd.f32 %v2898, %v2904
      %v2919 = vadd.f32 %v2899, %v2904
      %v2920 = vadd.f32 %v2900, %v2904
      %v2921 = vadd.f32 %v2901, %v2904
      %v2922 = vmul.f32 %v2906, 0.05
      %v2923 = vmul.f32 %v2907, 0.05
      %v2924 = vmul.f32 %v2908, 0.05
      %v2925 = vmul.f32 %v2909, 0.05
      %v2926 = vmul.f32 %v2910, 0.05
      %v2927 = vmul.f32 %v2911, 0.05
      %v2928 = vmul.f32 %v2912, 0.05
      %v2929 = vmul.f32 %v2913, 0.05
      %v2930 = vmul.f32 %v2914, 0.05
      %v2931 = vmul.f32 %v2915, 0.05
      %v2932 = vmul.f32 %v2916, 0.05
      %v2933 = vmul.f32 %v2917, 0.05
      %v2934 = vmul.f32 %v2918, 0.05
      %v2935 = vmul.f32 %v2919, 0.05
      %v2936 = vmul.f32 %v2920, 0.05
      %v2937 = vmul.f32 %v2921, 0.05
      %v2938 = vmax.f32 %v2906, %v2922
      %v2939 = vmax.f32 %v2907, %v2923
      %v2940 = vmax.f32 %v2908, %v2924
      %v2941 = vmax.f32 %v2909, %v2925
      %v2942 = vmax.f32 %v2910, %v2926
      %v2943 = vmax.f32 %v2911, %v2927
      %v2944 = vmax.f32 %v2912, %v2928
      %v2945 = vmax.f32 %v2913, %v2929
      %v2946 = vmax.f32 %v2914, %v2930
      %v2947 = vmax.f32 %v2915, %v2931
      %v2948 = vmax.f32 %v2916, %v2932
      %v2949 = vmax.f32 %v2917, %v2933
      %v2950 = vmax.f32 %v2918, %v2934
      %v2951 = vmax.f32 %v2919, %v2935
      %v2952 = vmax.f32 %v2920, %v2936
      %v2953 = vmax.f32 %v2921, %v2937
      %s2954 = scalar_lea.vmem [#allocation3], 216
      %2955 = vst [vmem:[%s2954 + $0x1] sm:$0xff] %v2938
      %2956 = vst [vmem:[%s2954 + $0x9] sm:$0xff] %v2939
      %2957 = vst [vmem:[%s2954 + $0x19] sm:$0xff] %v2940
      %2958 = vst [vmem:[%s2954 + $0x21] sm:$0xff] %v2941
      %2959 = vst [vmem:[%s2954 + $0x31] sm:$0xff] %v2942
      %2960 = vst [vmem:[%s2954 + $0x39] sm:$0xff] %v2943
      %2961 = vst [vmem:[%s2954 + $0x49] sm:$0xff] %v2944
      %2962 = vst [vmem:[%s2954 + $0x51] sm:$0xff] %v2945
      %2963 = vst [vmem:[%s2954 + $0x61] sm:$0xff] %v2946
      %2964 = vst [vmem:[%s2954 + $0x69] sm:$0xff] %v2947
      %2965 = vst [vmem:[%s2954 + $0x79] sm:$0xff] %v2948
      %2966 = vst [vmem:[%s2954 + $0x81] sm:$0xff] %v2949
      %2967 = vst [vmem:[%s2954 + $0x91] sm:$0xff] %v2950
      %2968 = vst [vmem:[%s2954 + $0x99] sm:$0xff] %v2951
      %2969 = vst [vmem:[%s2954 + $0xa9] sm:$0xff] %v2952
      %2970 = vst [vmem:[%s2954 + $0xb1] sm:$0xff] %v2953
      %v2971 = vld [vmem:[#allocation3] sm:$0xff]
      %v2972 = vld [vmem:[#allocation3 + $0x8] sm:$0xff]
      %v2973 = vld [vmem:[#allocation3 + $0x18] sm:$0xff]
      %v2974 = vld [vmem:[#allocation3 + $0x20] sm:$0xff]
      %v2975 = vld [vmem:[#allocation3 + $0x30] sm:$0xff]
      %v2976 = vld [vmem:[#allocation3 + $0x38] sm:$0xff]
      %v2977 = vld [vmem:[#allocation3 + $0x48] sm:$0xff]
      %v2978 = vld [vmem:[#allocation3 + $0x50] sm:$0xff]
      %v2979 = vld [vmem:[#allocation3 + $0x60] sm:$0xff]
      %v2980 = vld [vmem:[#allocation3 + $0x68] sm:$0xff]
      %v2981 = vld [vmem:[#allocation3 + $0x78] sm:$0xff]
      %v2982 = vld [vmem:[#allocation3 + $0x80] sm:$0xff]
      %v2983 = vld [vmem:[#allocation3 + $0x90] sm:$0xff]
      %v2984 = vld [vmem:[#allocation3 + $0x98] sm:$0xff]
      %v2985 = vld [vmem:[#allocation3 + $0xa8] sm:$0xff]
      %v2986 = vld [vmem:[#allocation3 + $0xb0] sm:$0xff]
      %s2987 = scalar_lea.vmem %s2, 1152
      %v2988 = vld [vmem:[%s2987] sm:$0xff]
      %v2989 = vld [vmem:[%s2987 + $0x8] sm:$0xff]
      %v2990 = vld [vmem:[%s2987 + $0x10] sm:$0xff]
      %v2991 = vld [vmem:[%s2987 + $0x18] sm:$0xff]
      %v2992 = vld [vmem:[%s2987 + $0x20] sm:$0xff]
      %v2993 = vld [vmem:[%s2987 + $0x28] sm:$0xff]
      %v2994 = vld [vmem:[%s2987 + $0x30] sm:$0xff]
      %v2995 = vld [vmem:[%s2987 + $0x38] sm:$0xff]
      %v2996 = vld [vmem:[%s2987 + $0x40] sm:$0xff]
      %v2997 = vld [vmem:[%s2987 + $0x48] sm:$0xff]
      %v2998 = vld [vmem:[%s2987 + $0x50] sm:$0xff]
      %v2999 = vld [vmem:[%s2987 + $0x58] sm:$0xff]
      %v3000 = vld [vmem:[%s2987 + $0x60] sm:$0xff]
      %v3001 = vld [vmem:[%s2987 + $0x68] sm:$0xff]
      %v3002 = vld [vmem:[%s2987 + $0x70] sm:$0xff]
      %v3003 = vld [vmem:[%s2987 + $0x78] sm:$0xff]
      %v3004 = vld [vmem:[#allocation3 + $0x1] sm:$0xff]
      %v3005 = vld [vmem:[#allocation3 + $0x9] sm:$0xff]
      %v3006 = vld [vmem:[#allocation3 + $0x19] sm:$0xff]
      %v3007 = vld [vmem:[#allocation3 + $0x21] sm:$0xff]
      %v3008 = vld [vmem:[#allocation3 + $0x31] sm:$0xff]
      %v3009 = vld [vmem:[#allocation3 + $0x39] sm:$0xff]
      %v3010 = vld [vmem:[#allocation3 + $0x49] sm:$0xff]
      %v3011 = vld [vmem:[#allocation3 + $0x51] sm:$0xff]
      %v3012 = vld [vmem:[#allocation3 + $0x61] sm:$0xff]
      %v3013 = vld [vmem:[#allocation3 + $0x69] sm:$0xff]
      %v3014 = vld [vmem:[#allocation3 + $0x79] sm:$0xff]
      %v3015 = vld [vmem:[#allocation3 + $0x81] sm:$0xff]
      %v3016 = vld [vmem:[#allocation3 + $0x91] sm:$0xff]
      %v3017 = vld [vmem:[#allocation3 + $0x99] sm:$0xff]
      %v3018 = vld [vmem:[#allocation3 + $0xa9] sm:$0xff]
      %v3019 = vld [vmem:[#allocation3 + $0xb1] sm:$0xff]
      %s3020 = scalar_lea.vmem %s2, 1280
      %v3021 = vld [vmem:[%s3020] sm:$0xff]
      %v3022 = vld [vmem:[%s3020 + $0x8] sm:$0xff]
      %v3023 = vld [vmem:[%s3020 + $0x10] sm:$0xff]
      %v3024 = vld [vmem:[%s3020 + $0x18] sm:$0xff]
      %v3025 = vld [vmem:[%s3020 + $0x20] sm:$0xff]
      %v3026 = vld [vmem:[%s3020 + $0x28] sm:$0xff]
      %v3027 = vld [vmem:[%s3020 + $0x30] sm:$0xff]
      %v3028 = vld [vmem:[%s3020 + $0x38] sm:$0xff]
      %v3029 = vld [vmem:[%s3020 + $0x40] sm:$0xff]
      %v3030 = vld [vmem:[%s3020 + $0x48] sm:$0xff]
      %v3031 = vld [vmem:[%s3020 + $0x50] sm:$0xff]
      %v3032 = vld [vmem:[%s3020 + $0x58] sm:$0xff]
      %v3033 = vld [vmem:[%s3020 + $0x60] sm:$0xff]
      %v3034 = vld [vmem:[%s3020 + $0x68] sm:$0xff]
      %v3035 = vld [vmem:[%s3020 + $0x70] sm:$0xff]
      %v3036 = vld [vmem:[%s3020 + $0x78] sm:$0xff]
      %3037 = vmatpush.msra.mxu0 %v3036
      %3038 = vmatpush.msra.mxu0 %v3035
      %3039 = vmatpush.msra.mxu0 %v3034
      %3040 = vmatpush.msra.mxu0 %v3033
      %3041 = vmatpush.msra.mxu0 %v3032
      %3042 = vmatpush.msra.mxu0 %v3031
      %3043 = vmatpush.msra.mxu0 %v3030
      %3044 = vmatpush.msra.mxu0 %v3029
      %3045 = vmatpush.msra.mxu0 %v3028
      %3046 = vmatpush.msra.mxu0 %v3027
      %3047 = vmatpush.msra.mxu0 %v3026
      %3048 = vmatpush.msra.mxu0 %v3025
      %3049 = vmatpush.msra.mxu0 %v3024
      %3050 = vmatpush.msra.mxu0 %v3023
      %3051 = vmatpush.msra.mxu0 %v3022
      %3052 = vmatpush.msra.mxu0 %v3021
      %3053 = vmatmul.f32.gmra.mxu0 %v3004
      %v3054 = vpop.f32.mrf.mxu0
      %v3055 = vadd.f32 0.0, %v3054
      %3056 = vmatmul.f32.gmra.mxu0 %v3005
      %v3057 = vpop.f32.mrf.mxu0
      %v3058 = vadd.f32 0.0, %v3057
      %3059 = vmatmul.f32.gmra.mxu0 %v3006
      %v3060 = vpop.f32.mrf.mxu0
      %v3061 = vadd.f32 0.0, %v3060
      %3062 = vmatmul.f32.gmra.mxu0 %v3007
      %v3063 = vpop.f32.mrf.mxu0
      %v3064 = vadd.f32 0.0, %v3063
      %3065 = vmatmul.f32.gmra.mxu0 %v3008
      %v3066 = vpop.f32.mrf.mxu0
      %v3067 = vadd.f32 0.0, %v3066
      %3068 = vmatmul.f32.gmra.mxu0 %v3009
      %v3069 = vpop.f32.mrf.mxu0
      %v3070 = vadd.f32 0.0, %v3069
      %3071 = vmatmul.f32.gmra.mxu0 %v3010
      %v3072 = vpop.f32.mrf.mxu0
      %v3073 = vadd.f32 0.0, %v3072
      %3074 = vmatmul.f32.gmra.mxu0 %v3011
      %v3075 = vpop.f32.mrf.mxu0
      %v3076 = vadd.f32 0.0, %v3075
      %3077 = vmatmul.f32.gmra.mxu0 %v3012
      %v3078 = vpop.f32.mrf.mxu0
      %v3079 = vadd.f32 0.0, %v3078
      %3080 = vmatmul.f32.gmra.mxu0 %v3013
      %v3081 = vpop.f32.mrf.mxu0
      %v3082 = vadd.f32 0.0, %v3081
      %3083 = vmatmul.f32.gmra.mxu0 %v3014
      %v3084 = vpop.f32.mrf.mxu0
      %v3085 = vadd.f32 0.0, %v3084
      %3086 = vmatmul.f32.gmra.mxu0 %v3015
      %v3087 = vpop.f32.mrf.mxu0
      %v3088 = vadd.f32 0.0, %v3087
      %3089 = vmatmul.f32.gmra.mxu0 %v3016
      %v3090 = vpop.f32.mrf.mxu0
      %v3091 = vadd.f32 0.0, %v3090
      %3092 = vmatmul.f32.gmra.mxu0 %v3017
      %v3093 = vpop.f32.mrf.mxu0
      %v3094 = vadd.f32 0.0, %v3093
      %3095 = vmatmul.f32.gmra.mxu0 %v3018
      %v3096 = vpop.f32.mrf.mxu0
      %v3097 = vadd.f32 0.0, %v3096
      %3098 = vmatmul.f32.gmra.mxu0 %v3019
      %v3099 = vpop.f32.mrf.mxu0
      %v3100 = vadd.f32 0.0, %v3099
      %3101 = vdwg.mxu0
      %3102 = vmatpush.msra.mxu0 %v3003
      %3103 = vmatpush.msra.mxu0 %v3002
      %3104 = vmatpush.msra.mxu0 %v3001
      %3105 = vmatpush.msra.mxu0 %v3000
      %3106 = vmatpush.msra.mxu0 %v2999
      %3107 = vmatpush.msra.mxu0 %v2998
      %3108 = vmatpush.msra.mxu0 %v2997
      %3109 = vmatpush.msra.mxu0 %v2996
      %3110 = vmatpush.msra.mxu0 %v2995
      %3111 = vmatpush.msra.mxu0 %v2994
      %3112 = vmatpush.msra.mxu0 %v2993
      %3113 = vmatpush.msra.mxu0 %v2992
      %3114 = vmatpush.msra.mxu0 %v2991
      %3115 = vmatpush.msra.mxu0 %v2990
      %3116 = vmatpush.msra.mxu0 %v2989
      %3117 = vmatpush.msra.mxu0 %v2988
      %3118 = vmatmul.f32.gmra.mxu0 %v2971
      %v3119 = vpop.f32.mrf.mxu0
      %v3120 = vadd.f32 %v3055, %v3119
      %3121 = vmatmul.f32.gmra.mxu0 %v2972
      %v3122 = vpop.f32.mrf.mxu0
      %v3123 = vadd.f32 %v3058, %v3122
      %3124 = vmatmul.f32.gmra.mxu0 %v2973
      %v3125 = vpop.f32.mrf.mxu0
      %v3126 = vadd.f32 %v3061, %v3125
      %3127 = vmatmul.f32.gmra.mxu0 %v2974
      %v3128 = vpop.f32.mrf.mxu0
      %v3129 = vadd.f32 %v3064, %v3128
      %3130 = vmatmul.f32.gmra.mxu0 %v2975
      %v3131 = vpop.f32.mrf.mxu0
      %v3132 = vadd.f32 %v3067, %v3131
      %3133 = vmatmul.f32.gmra.mxu0 %v2976
      %v3134 = vpop.f32.mrf.mxu0
      %v3135 = vadd.f32 %v3070, %v3134
      %3136 = vmatmul.f32.gmra.mxu0 %v2977
      %v3137 = vpop.f32.mrf.mxu0
      %v3138 = vadd.f32 %v3073, %v3137
      %3139 = vmatmul.f32.gmra.mxu0 %v2978
      %v3140 = vpop.f32.mrf.mxu0
      %v3141 = vadd.f32 %v3076, %v3140
      %3142 = vmatmul.f32.gmra.mxu0 %v2979
      %v3143 = vpop.f32.mrf.mxu0
      %v3144 = vadd.f32 %v3079, %v3143
      %3145 = vmatmul.f32.gmra.mxu0 %v2980
      %v3146 = vpop.f32.mrf.mxu0
      %v3147 = vadd.f32 %v3082, %v3146
      %3148 = vmatmul.f32.gmra.mxu0 %v2981
      %v3149 = vpop.f32.mrf.mxu0
      %v3150 = vadd.f32 %v3085, %v3149
      %3151 = vmatmul.f32.gmra.mxu0 %v2982
      %v3152 = vpop.f32.mrf.mxu0
      %v3153 = vadd.f32 %v3088, %v3152
      %3154 = vmatmul.f32.gmra.mxu0 %v2983
      %v3155 = vpop.f32.mrf.mxu0
      %v3156 = vadd.f32 %v3091, %v3155
      %3157 = vmatmul.f32.gmra.mxu0 %v2984
      %v3158 = vpop.f32.mrf.mxu0
      %v3159 = vadd.f32 %v3094, %v3158
      %3160 = vmatmul.f32.gmra.mxu0 %v2985
      %v3161 = vpop.f32.mrf.mxu0
      %v3162 = vadd.f32 %v3097, %v3161
      %3163 = vmatmul.f32.gmra.mxu0 %v2986
      %v3164 = vpop.f32.mrf.mxu0
      %v3165 = vadd.f32 %v3100, %v3164
      %3166 = vdwg.mxu0
      %v3167 = vld [vmem:[#allocation3 + $0x2] sm:$0xff]
      %v3168 = vld [vmem:[#allocation3 + $0xa] sm:$0xff]
      %v3169 = vld [vmem:[#allocation3 + $0x1a] sm:$0xff]
      %v3170 = vld [vmem:[#allocation3 + $0x22] sm:$0xff]
      %v3171 = vld [vmem:[#allocation3 + $0x32] sm:$0xff]
      %v3172 = vld [vmem:[#allocation3 + $0x3a] sm:$0xff]
      %v3173 = vld [vmem:[#allocation3 + $0x4a] sm:$0xff]
      %v3174 = vld [vmem:[#allocation3 + $0x52] sm:$0xff]
      %v3175 = vld [vmem:[#allocation3 + $0x62] sm:$0xff]
      %v3176 = vld [vmem:[#allocation3 + $0x6a] sm:$0xff]
      %v3177 = vld [vmem:[#allocation3 + $0x7a] sm:$0xff]
      %v3178 = vld [vmem:[#allocation3 + $0x82] sm:$0xff]
      %v3179 = vld [vmem:[#allocation3 + $0x92] sm:$0xff]
      %v3180 = vld [vmem:[#allocation3 + $0x9a] sm:$0xff]
      %v3181 = vld [vmem:[#allocation3 + $0xaa] sm:$0xff]
      %v3182 = vld [vmem:[#allocation3 + $0xb2] sm:$0xff]
      %s3183 = scalar_lea.vmem %s2, 1408
      %v3184 = vld [vmem:[%s3183] sm:$0xff]
      %v3185 = vld [vmem:[%s3183 + $0x8] sm:$0xff]
      %v3186 = vld [vmem:[%s3183 + $0x10] sm:$0xff]
      %v3187 = vld [vmem:[%s3183 + $0x18] sm:$0xff]
      %v3188 = vld [vmem:[%s3183 + $0x20] sm:$0xff]
      %v3189 = vld [vmem:[%s3183 + $0x28] sm:$0xff]
      %v3190 = vld [vmem:[%s3183 + $0x30] sm:$0xff]
      %v3191 = vld [vmem:[%s3183 + $0x38] sm:$0xff]
      %v3192 = vld [vmem:[%s3183 + $0x40] sm:$0xff]
      %v3193 = vld [vmem:[%s3183 + $0x48] sm:$0xff]
      %v3194 = vld [vmem:[%s3183 + $0x50] sm:$0xff]
      %v3195 = vld [vmem:[%s3183 + $0x58] sm:$0xff]
      %v3196 = vld [vmem:[%s3183 + $0x60] sm:$0xff]
      %v3197 = vld [vmem:[%s3183 + $0x68] sm:$0xff]
      %v3198 = vld [vmem:[%s3183 + $0x70] sm:$0xff]
      %v3199 = vld [vmem:[%s3183 + $0x78] sm:$0xff]
      %3200 = vmatpush.msra.mxu0 %v3199
      %3201 = vmatpush.msra.mxu0 %v3198
      %3202 = vmatpush.msra.mxu0 %v3197
      %3203 = vmatpush.msra.mxu0 %v3196
      %3204 = vmatpush.msra.mxu0 %v3195
      %3205 = vmatpush.msra.mxu0 %v3194
      %3206 = vmatpush.msra.mxu0 %v3193
      %3207 = vmatpush.msra.mxu0 %v3192
      %3208 = vmatpush.msra.mxu0 %v3191
      %3209 = vmatpush.msra.mxu0 %v3190
      %3210 = vmatpush.msra.mxu0 %v3189
      %3211 = vmatpush.msra.mxu0 %v3188
      %3212 = vmatpush.msra.mxu0 %v3187
      %3213 = vmatpush.msra.mxu0 %v3186
      %3214 = vmatpush.msra.mxu0 %v3185
      %3215 = vmatpush.msra.mxu0 %v3184
      %3216 = vmatmul.f32.gmra.mxu0 %v3167
      %v3217 = vpop.f32.mrf.mxu0
      %v3218 = vadd.f32 0.0, %v3217
      %3219 = vmatmul.f32.gmra.mxu0 %v3168
      %v3220 = vpop.f32.mrf.mxu0
      %v3221 = vadd.f32 0.0, %v3220
      %3222 = vmatmul.f32.gmra.mxu0 %v3169
      %v3223 = vpop.f32.mrf.mxu0
      %v3224 = vadd.f32 0.0, %v3223
      %3225 = vmatmul.f32.gmra.mxu0 %v3170
      %v3226 = vpop.f32.mrf.mxu0
      %v3227 = vadd.f32 0.0, %v3226
      %3228 = vmatmul.f32.gmra.mxu0 %v3171
      %v3229 = vpop.f32.mrf.mxu0
      %v3230 = vadd.f32 0.0, %v3229
      %3231 = vmatmul.f32.gmra.mxu0 %v3172
      %v3232 = vpop.f32.mrf.mxu0
      %v3233 = vadd.f32 0.0, %v3232
      %3234 = vmatmul.f32.gmra.mxu0 %v3173
      %v3235 = vpop.f32.mrf.mxu0
      %v3236 = vadd.f32 0.0, %v3235
      %3237 = vmatmul.f32.gmra.mxu0 %v3174
      %v3238 = vpop.f32.mrf.mxu0
      %v3239 = vadd.f32 0.0, %v3238
      %3240 = vmatmul.f32.gmra.mxu0 %v3175
      %v3241 = vpop.f32.mrf.mxu0
      %v3242 = vadd.f32 0.0, %v3241
      %3243 = vmatmul.f32.gmra.mxu0 %v3176
      %v3244 = vpop.f32.mrf.mxu0
      %v3245 = vadd.f32 0.0, %v3244
      %3246 = vmatmul.f32.gmra.mxu0 %v3177
      %v3247 = vpop.f32.mrf.mxu0
      %v3248 = vadd.f32 0.0, %v3247
      %3249 = vmatmul.f32.gmra.mxu0 %v3178
      %v3250 = vpop.f32.mrf.mxu0
      %v3251 = vadd.f32 0.0, %v3250
      %3252 = vmatmul.f32.gmra.mxu0 %v3179
      %v3253 = vpop.f32.mrf.mxu0
      %v3254 = vadd.f32 0.0, %v3253
      %3255 = vmatmul.f32.gmra.mxu0 %v3180
      %v3256 = vpop.f32.mrf.mxu0
      %v3257 = vadd.f32 0.0, %v3256
      %3258 = vmatmul.f32.gmra.mxu0 %v3181
      %v3259 = vpop.f32.mrf.mxu0
      %v3260 = vadd.f32 0.0, %v3259
      %3261 = vmatmul.f32.gmra.mxu0 %v3182
      %v3262 = vpop.f32.mrf.mxu0
      %v3263 = vadd.f32 0.0, %v3262
      %3264 = vdwg.mxu0
      %v3265 = vadd.f32 %v3120, %v3218
      %v3266 = vadd.f32 %v3123, %v3221
      %v3267 = vadd.f32 %v3126, %v3224
      %v3268 = vadd.f32 %v3129, %v3227
      %v3269 = vadd.f32 %v3132, %v3230
      %v3270 = vadd.f32 %v3135, %v3233
      %v3271 = vadd.f32 %v3138, %v3236
      %v3272 = vadd.f32 %v3141, %v3239
      %v3273 = vadd.f32 %v3144, %v3242
      %v3274 = vadd.f32 %v3147, %v3245
      %v3275 = vadd.f32 %v3150, %v3248
      %v3276 = vadd.f32 %v3153, %v3251
      %v3277 = vadd.f32 %v3156, %v3254
      %v3278 = vadd.f32 %v3159, %v3257
      %v3279 = vadd.f32 %v3162, %v3260
      %v3280 = vadd.f32 %v3165, %v3263
      %v3281 = vld [vmem:[%s1898] sm:$0xff]
      %v3282 = vld [vmem:[%s1898 + $0x8] sm:$0xff]
      %v3283 = vld [vmem:[%s1898 + $0x18] sm:$0xff]
      %v3284 = vld [vmem:[%s1898 + $0x20] sm:$0xff]
      %v3285 = vld [vmem:[%s1898 + $0x30] sm:$0xff]
      %v3286 = vld [vmem:[%s1898 + $0x38] sm:$0xff]
      %v3287 = vld [vmem:[%s1898 + $0x48] sm:$0xff]
      %v3288 = vld [vmem:[%s1898 + $0x50] sm:$0xff]
      %v3289 = vld [vmem:[%s1898 + $0x60] sm:$0xff]
      %v3290 = vld [vmem:[%s1898 + $0x68] sm:$0xff]
      %v3291 = vld [vmem:[%s1898 + $0x78] sm:$0xff]
      %v3292 = vld [vmem:[%s1898 + $0x80] sm:$0xff]
      %v3293 = vld [vmem:[%s1898 + $0x90] sm:$0xff]
      %v3294 = vld [vmem:[%s1898 + $0x98] sm:$0xff]
      %v3295 = vld [vmem:[%s1898 + $0xa8] sm:$0xff]
      %v3296 = vld [vmem:[%s1898 + $0xb0] sm:$0xff]
      %s3297 = scalar_lea.vmem %s2, 1536
      %v3298 = vld [vmem:[%s3297] sm:$0xff]
      %v3299 = vld [vmem:[%s3297 + $0x8] sm:$0xff]
      %v3300 = vld [vmem:[%s3297 + $0x10] sm:$0xff]
      %v3301 = vld [vmem:[%s3297 + $0x18] sm:$0xff]
      %v3302 = vld [vmem:[%s3297 + $0x20] sm:$0xff]
      %v3303 = vld [vmem:[%s3297 + $0x28] sm:$0xff]
      %v3304 = vld [vmem:[%s3297 + $0x30] sm:$0xff]
      %v3305 = vld [vmem:[%s3297 + $0x38] sm:$0xff]
      %v3306 = vld [vmem:[%s3297 + $0x40] sm:$0xff]
      %v3307 = vld [vmem:[%s3297 + $0x48] sm:$0xff]
      %v3308 = vld [vmem:[%s3297 + $0x50] sm:$0xff]
      %v3309 = vld [vmem:[%s3297 + $0x58] sm:$0xff]
      %v3310 = vld [vmem:[%s3297 + $0x60] sm:$0xff]
      %v3311 = vld [vmem:[%s3297 + $0x68] sm:$0xff]
      %v3312 = vld [vmem:[%s3297 + $0x70] sm:$0xff]
      %v3313 = vld [vmem:[%s3297 + $0x78] sm:$0xff]
      %3314 = vmatpush.msra.mxu0 %v3313
      %3315 = vmatpush.msra.mxu0 %v3312
      %3316 = vmatpush.msra.mxu0 %v3311
      %3317 = vmatpush.msra.mxu0 %v3310
      %3318 = vmatpush.msra.mxu0 %v3309
      %3319 = vmatpush.msra.mxu0 %v3308
      %3320 = vmatpush.msra.mxu0 %v3307
      %3321 = vmatpush.msra.mxu0 %v3306
      %3322 = vmatpush.msra.mxu0 %v3305
      %3323 = vmatpush.msra.mxu0 %v3304
      %3324 = vmatpush.msra.mxu0 %v3303
      %3325 = vmatpush.msra.mxu0 %v3302
      %3326 = vmatpush.msra.mxu0 %v3301
      %3327 = vmatpush.msra.mxu0 %v3300
      %3328 = vmatpush.msra.mxu0 %v3299
      %3329 = vmatpush.msra.mxu0 %v3298
      %3330 = vmatmul.f32.gmra.mxu0 %v3281
      %v3331 = vpop.f32.mrf.mxu0
      %v3332 = vadd.f32 0.0, %v3331
      %3333 = vmatmul.f32.gmra.mxu0 %v3282
      %v3334 = vpop.f32.mrf.mxu0
      %v3335 = vadd.f32 0.0, %v3334
      %3336 = vmatmul.f32.gmra.mxu0 %v3283
      %v3337 = vpop.f32.mrf.mxu0
      %v3338 = vadd.f32 0.0, %v3337
      %3339 = vmatmul.f32.gmra.mxu0 %v3284
      %v3340 = vpop.f32.mrf.mxu0
      %v3341 = vadd.f32 0.0, %v3340
      %3342 = vmatmul.f32.gmra.mxu0 %v3285
      %v3343 = vpop.f32.mrf.mxu0
      %v3344 = vadd.f32 0.0, %v3343
      %3345 = vmatmul.f32.gmra.mxu0 %v3286
      %v3346 = vpop.f32.mrf.mxu0
      %v3347 = vadd.f32 0.0, %v3346
      %3348 = vmatmul.f32.gmra.mxu0 %v3287
      %v3349 = vpop.f32.mrf.mxu0
      %v3350 = vadd.f32 0.0, %v3349
      %3351 = vmatmul.f32.gmra.mxu0 %v3288
      %v3352 = vpop.f32.mrf.mxu0
      %v3353 = vadd.f32 0.0, %v3352
      %3354 = vmatmul.f32.gmra.mxu0 %v3289
      %v3355 = vpop.f32.mrf.mxu0
      %v3356 = vadd.f32 0.0, %v3355
      %3357 = vmatmul.f32.gmra.mxu0 %v3290
      %v3358 = vpop.f32.mrf.mxu0
      %v3359 = vadd.f32 0.0, %v3358
      %3360 = vmatmul.f32.gmra.mxu0 %v3291
      %v3361 = vpop.f32.mrf.mxu0
      %v3362 = vadd.f32 0.0, %v3361
      %3363 = vmatmul.f32.gmra.mxu0 %v3292
      %v3364 = vpop.f32.mrf.mxu0
      %v3365 = vadd.f32 0.0, %v3364
      %3366 = vmatmul.f32.gmra.mxu0 %v3293
      %v3367 = vpop.f32.mrf.mxu0
      %v3368 = vadd.f32 0.0, %v3367
      %3369 = vmatmul.f32.gmra.mxu0 %v3294
      %v3370 = vpop.f32.mrf.mxu0
      %v3371 = vadd.f32 0.0, %v3370
      %3372 = vmatmul.f32.gmra.mxu0 %v3295
      %v3373 = vpop.f32.mrf.mxu0
      %v3374 = vadd.f32 0.0, %v3373
      %3375 = vmatmul.f32.gmra.mxu0 %v3296
      %v3376 = vpop.f32.mrf.mxu0
      %v3377 = vadd.f32 0.0, %v3376
      %3378 = vdwg.mxu0
      %v3379 = vadd.f32 %v3265, %v3332
      %v3380 = vadd.f32 %v3266, %v3335
      %v3381 = vadd.f32 %v3267, %v3338
      %v3382 = vadd.f32 %v3268, %v3341
      %v3383 = vadd.f32 %v3269, %v3344
      %v3384 = vadd.f32 %v3270, %v3347
      %v3385 = vadd.f32 %v3271, %v3350
      %v3386 = vadd.f32 %v3272, %v3353
      %v3387 = vadd.f32 %v3273, %v3356
      %v3388 = vadd.f32 %v3274, %v3359
      %v3389 = vadd.f32 %v3275, %v3362
      %v3390 = vadd.f32 %v3276, %v3365
      %v3391 = vadd.f32 %v3277, %v3368
      %v3392 = vadd.f32 %v3278, %v3371
      %v3393 = vadd.f32 %v3279, %v3374
      %v3394 = vadd.f32 %v3280, %v3377
      %v3395 = vld [vmem:[%s1898 + $0x1] sm:$0xff]
      %v3396 = vld [vmem:[%s1898 + $0x9] sm:$0xff]
      %v3397 = vld [vmem:[%s1898 + $0x19] sm:$0xff]
      %v3398 = vld [vmem:[%s1898 + $0x21] sm:$0xff]
      %v3399 = vld [vmem:[%s1898 + $0x31] sm:$0xff]
      %v3400 = vld [vmem:[%s1898 + $0x39] sm:$0xff]
      %v3401 = vld [vmem:[%s1898 + $0x49] sm:$0xff]
      %v3402 = vld [vmem:[%s1898 + $0x51] sm:$0xff]
      %v3403 = vld [vmem:[%s1898 + $0x61] sm:$0xff]
      %v3404 = vld [vmem:[%s1898 + $0x69] sm:$0xff]
      %v3405 = vld [vmem:[%s1898 + $0x79] sm:$0xff]
      %v3406 = vld [vmem:[%s1898 + $0x81] sm:$0xff]
      %v3407 = vld [vmem:[%s1898 + $0x91] sm:$0xff]
      %v3408 = vld [vmem:[%s1898 + $0x99] sm:$0xff]
      %v3409 = vld [vmem:[%s1898 + $0xa9] sm:$0xff]
      %v3410 = vld [vmem:[%s1898 + $0xb1] sm:$0xff]
      %s3411 = scalar_lea.vmem %s2, 1664
      %v3412 = vld [vmem:[%s3411] sm:$0xff]
      %v3413 = vld [vmem:[%s3411 + $0x8] sm:$0xff]
      %v3414 = vld [vmem:[%s3411 + $0x10] sm:$0xff]
      %v3415 = vld [vmem:[%s3411 + $0x18] sm:$0xff]
      %v3416 = vld [vmem:[%s3411 + $0x20] sm:$0xff]
      %v3417 = vld [vmem:[%s3411 + $0x28] sm:$0xff]
      %v3418 = vld [vmem:[%s3411 + $0x30] sm:$0xff]
      %v3419 = vld [vmem:[%s3411 + $0x38] sm:$0xff]
      %v3420 = vld [vmem:[%s3411 + $0x40] sm:$0xff]
      %v3421 = vld [vmem:[%s3411 + $0x48] sm:$0xff]
      %v3422 = vld [vmem:[%s3411 + $0x50] sm:$0xff]
      %v3423 = vld [vmem:[%s3411 + $0x58] sm:$0xff]
      %v3424 = vld [vmem:[%s3411 + $0x60] sm:$0xff]
      %v3425 = vld [vmem:[%s3411 + $0x68] sm:$0xff]
      %v3426 = vld [vmem:[%s3411 + $0x70] sm:$0xff]
      %v3427 = vld [vmem:[%s3411 + $0x78] sm:$0xff]
      %3428 = vmatpush.msra.mxu0 %v3427
      %3429 = vmatpush.msra.mxu0 %v3426
      %3430 = vmatpush.msra.mxu0 %v3425
      %3431 = vmatpush.msra.mxu0 %v3424
      %3432 = vmatpush.msra.mxu0 %v3423
      %3433 = vmatpush.msra.mxu0 %v3422
      %3434 = vmatpush.msra.mxu0 %v3421
      %3435 = vmatpush.msra.mxu0 %v3420
      %3436 = vmatpush.msra.mxu0 %v3419
      %3437 = vmatpush.msra.mxu0 %v3418
      %3438 = vmatpush.msra.mxu0 %v3417
      %3439 = vmatpush.msra.mxu0 %v3416
      %3440 = vmatpush.msra.mxu0 %v3415
      %3441 = vmatpush.msra.mxu0 %v3414
      %3442 = vmatpush.msra.mxu0 %v3413
      %3443 = vmatpush.msra.mxu0 %v3412
      %3444 = vmatmul.f32.gmra.mxu0 %v3395
      %v3445 = vpop.f32.mrf.mxu0
      %v3446 = vadd.f32 0.0, %v3445
      %3447 = vmatmul.f32.gmra.mxu0 %v3396
      %v3448 = vpop.f32.mrf.mxu0
      %v3449 = vadd.f32 0.0, %v3448
      %3450 = vmatmul.f32.gmra.mxu0 %v3397
      %v3451 = vpop.f32.mrf.mxu0
      %v3452 = vadd.f32 0.0, %v3451
      %3453 = vmatmul.f32.gmra.mxu0 %v3398
      %v3454 = vpop.f32.mrf.mxu0
      %v3455 = vadd.f32 0.0, %v3454
      %3456 = vmatmul.f32.gmra.mxu0 %v3399
      %v3457 = vpop.f32.mrf.mxu0
      %v3458 = vadd.f32 0.0, %v3457
      %3459 = vmatmul.f32.gmra.mxu0 %v3400
      %v3460 = vpop.f32.mrf.mxu0
      %v3461 = vadd.f32 0.0, %v3460
      %3462 = vmatmul.f32.gmra.mxu0 %v3401
      %v3463 = vpop.f32.mrf.mxu0
      %v3464 = vadd.f32 0.0, %v3463
      %3465 = vmatmul.f32.gmra.mxu0 %v3402
      %v3466 = vpop.f32.mrf.mxu0
      %v3467 = vadd.f32 0.0, %v3466
      %3468 = vmatmul.f32.gmra.mxu0 %v3403
      %v3469 = vpop.f32.mrf.mxu0
      %v3470 = vadd.f32 0.0, %v3469
      %3471 = vmatmul.f32.gmra.mxu0 %v3404
      %v3472 = vpop.f32.mrf.mxu0
      %v3473 = vadd.f32 0.0, %v3472
      %3474 = vmatmul.f32.gmra.mxu0 %v3405
      %v3475 = vpop.f32.mrf.mxu0
      %v3476 = vadd.f32 0.0, %v3475
      %3477 = vmatmul.f32.gmra.mxu0 %v3406
      %v3478 = vpop.f32.mrf.mxu0
      %v3479 = vadd.f32 0.0, %v3478
      %3480 = vmatmul.f32.gmra.mxu0 %v3407
      %v3481 = vpop.f32.mrf.mxu0
      %v3482 = vadd.f32 0.0, %v3481
      %3483 = vmatmul.f32.gmra.mxu0 %v3408
      %v3484 = vpop.f32.mrf.mxu0
      %v3485 = vadd.f32 0.0, %v3484
      %3486 = vmatmul.f32.gmra.mxu0 %v3409
      %v3487 = vpop.f32.mrf.mxu0
      %v3488 = vadd.f32 0.0, %v3487
      %3489 = vmatmul.f32.gmra.mxu0 %v3410
      %v3490 = vpop.f32.mrf.mxu0
      %v3491 = vadd.f32 0.0, %v3490
      %3492 = vdwg.mxu0
      %v3493 = vadd.f32 %v3379, %v3446
      %v3494 = vadd.f32 %v3380, %v3449
      %v3495 = vadd.f32 %v3381, %v3452
      %v3496 = vadd.f32 %v3382, %v3455
      %v3497 = vadd.f32 %v3383, %v3458
      %v3498 = vadd.f32 %v3384, %v3461
      %v3499 = vadd.f32 %v3385, %v3464
      %v3500 = vadd.f32 %v3386, %v3467
      %v3501 = vadd.f32 %v3387, %v3470
      %v3502 = vadd.f32 %v3388, %v3473
      %v3503 = vadd.f32 %v3389, %v3476
      %v3504 = vadd.f32 %v3390, %v3479
      %v3505 = vadd.f32 %v3391, %v3482
      %v3506 = vadd.f32 %v3392, %v3485
      %v3507 = vadd.f32 %v3393, %v3488
      %v3508 = vadd.f32 %v3394, %v3491
      %v3509 = vld [vmem:[%s1898 + $0x2] sm:$0xff]
      %v3510 = vld [vmem:[%s1898 + $0xa] sm:$0xff]
      %v3511 = vld [vmem:[%s1898 + $0x1a] sm:$0xff]
      %v3512 = vld [vmem:[%s1898 + $0x22] sm:$0xff]
      %v3513 = vld [vmem:[%s1898 + $0x32] sm:$0xff]
      %v3514 = vld [vmem:[%s1898 + $0x3a] sm:$0xff]
      %v3515 = vld [vmem:[%s1898 + $0x4a] sm:$0xff]
      %v3516 = vld [vmem:[%s1898 + $0x52] sm:$0xff]
      %v3517 = vld [vmem:[%s1898 + $0x62] sm:$0xff]
      %v3518 = vld [vmem:[%s1898 + $0x6a] sm:$0xff]
      %v3519 = vld [vmem:[%s1898 + $0x7a] sm:$0xff]
      %v3520 = vld [vmem:[%s1898 + $0x82] sm:$0xff]
      %v3521 = vld [vmem:[%s1898 + $0x92] sm:$0xff]
      %v3522 = vld [vmem:[%s1898 + $0x9a] sm:$0xff]
      %v3523 = vld [vmem:[%s1898 + $0xaa] sm:$0xff]
      %v3524 = vld [vmem:[%s1898 + $0xb2] sm:$0xff]
      %s3525 = scalar_lea.vmem %s2, 1792
      %v3526 = vld [vmem:[%s3525] sm:$0xff]
      %v3527 = vld [vmem:[%s3525 + $0x8] sm:$0xff]
      %v3528 = vld [vmem:[%s3525 + $0x10] sm:$0xff]
      %v3529 = vld [vmem:[%s3525 + $0x18] sm:$0xff]
      %v3530 = vld [vmem:[%s3525 + $0x20] sm:$0xff]
      %v3531 = vld [vmem:[%s3525 + $0x28] sm:$0xff]
      %v3532 = vld [vmem:[%s3525 + $0x30] sm:$0xff]
      %v3533 = vld [vmem:[%s3525 + $0x38] sm:$0xff]
      %v3534 = vld [vmem:[%s3525 + $0x40] sm:$0xff]
      %v3535 = vld [vmem:[%s3525 + $0x48] sm:$0xff]
      %v3536 = vld [vmem:[%s3525 + $0x50] sm:$0xff]
      %v3537 = vld [vmem:[%s3525 + $0x58] sm:$0xff]
      %v3538 = vld [vmem:[%s3525 + $0x60] sm:$0xff]
      %v3539 = vld [vmem:[%s3525 + $0x68] sm:$0xff]
      %v3540 = vld [vmem:[%s3525 + $0x70] sm:$0xff]
      %v3541 = vld [vmem:[%s3525 + $0x78] sm:$0xff]
      %3542 = vmatpush.msra.mxu0 %v3541
      %3543 = vmatpush.msra.mxu0 %v3540
      %3544 = vmatpush.msra.mxu0 %v3539
      %3545 = vmatpush.msra.mxu0 %v3538
      %3546 = vmatpush.msra.mxu0 %v3537
      %3547 = vmatpush.msra.mxu0 %v3536
      %3548 = vmatpush.msra.mxu0 %v3535
      %3549 = vmatpush.msra.mxu0 %v3534
      %3550 = vmatpush.msra.mxu0 %v3533
      %3551 = vmatpush.msra.mxu0 %v3532
      %3552 = vmatpush.msra.mxu0 %v3531
      %3553 = vmatpush.msra.mxu0 %v3530
      %3554 = vmatpush.msra.mxu0 %v3529
      %3555 = vmatpush.msra.mxu0 %v3528
      %3556 = vmatpush.msra.mxu0 %v3527
      %3557 = vmatpush.msra.mxu0 %v3526
      %3558 = vmatmul.f32.gmra.mxu0 %v3509
      %v3559 = vpop.f32.mrf.mxu0
      %v3560 = vadd.f32 0.0, %v3559
      %3561 = vmatmul.f32.gmra.mxu0 %v3510
      %v3562 = vpop.f32.mrf.mxu0
      %v3563 = vadd.f32 0.0, %v3562
      %3564 = vmatmul.f32.gmra.mxu0 %v3511
      %v3565 = vpop.f32.mrf.mxu0
      %v3566 = vadd.f32 0.0, %v3565
      %3567 = vmatmul.f32.gmra.mxu0 %v3512
      %v3568 = vpop.f32.mrf.mxu0
      %v3569 = vadd.f32 0.0, %v3568
      %3570 = vmatmul.f32.gmra.mxu0 %v3513
      %v3571 = vpop.f32.mrf.mxu0
      %v3572 = vadd.f32 0.0, %v3571
      %3573 = vmatmul.f32.gmra.mxu0 %v3514
      %v3574 = vpop.f32.mrf.mxu0
      %v3575 = vadd.f32 0.0, %v3574
      %3576 = vmatmul.f32.gmra.mxu0 %v3515
      %v3577 = vpop.f32.mrf.mxu0
      %v3578 = vadd.f32 0.0, %v3577
      %3579 = vmatmul.f32.gmra.mxu0 %v3516
      %v3580 = vpop.f32.mrf.mxu0
      %v3581 = vadd.f32 0.0, %v3580
      %3582 = vmatmul.f32.gmra.mxu0 %v3517
      %v3583 = vpop.f32.mrf.mxu0
      %v3584 = vadd.f32 0.0, %v3583
      %3585 = vmatmul.f32.gmra.mxu0 %v3518
      %v3586 = vpop.f32.mrf.mxu0
      %v3587 = vadd.f32 0.0, %v3586
      %3588 = vmatmul.f32.gmra.mxu0 %v3519
      %v3589 = vpop.f32.mrf.mxu0
      %v3590 = vadd.f32 0.0, %v3589
      %3591 = vmatmul.f32.gmra.mxu0 %v3520
      %v3592 = vpop.f32.mrf.mxu0
      %v3593 = vadd.f32 0.0, %v3592
      %3594 = vmatmul.f32.gmra.mxu0 %v3521
      %v3595 = vpop.f32.mrf.mxu0
      %v3596 = vadd.f32 0.0, %v3595
      %3597 = vmatmul.f32.gmra.mxu0 %v3522
      %v3598 = vpop.f32.mrf.mxu0
      %v3599 = vadd.f32 0.0, %v3598
      %3600 = vmatmul.f32.gmra.mxu0 %v3523
      %v3601 = vpop.f32.mrf.mxu0
      %v3602 = vadd.f32 0.0, %v3601
      %3603 = vmatmul.f32.gmra.mxu0 %v3524
      %v3604 = vpop.f32.mrf.mxu0
      %v3605 = vadd.f32 0.0, %v3604
      %3606 = vdwg.mxu0
      %v3607 = vadd.f32 %v3493, %v3560
      %v3608 = vadd.f32 %v3494, %v3563
      %v3609 = vadd.f32 %v3495, %v3566
      %v3610 = vadd.f32 %v3496, %v3569
      %v3611 = vadd.f32 %v3497, %v3572
      %v3612 = vadd.f32 %v3498, %v3575
      %v3613 = vadd.f32 %v3499, %v3578
      %v3614 = vadd.f32 %v3500, %v3581
      %v3615 = vadd.f32 %v3501, %v3584
      %v3616 = vadd.f32 %v3502, %v3587
      %v3617 = vadd.f32 %v3503, %v3590
      %v3618 = vadd.f32 %v3504, %v3593
      %v3619 = vadd.f32 %v3505, %v3596
      %v3620 = vadd.f32 %v3506, %v3599
      %v3621 = vadd.f32 %v3507, %v3602
      %v3622 = vadd.f32 %v3508, %v3605
      %s3623 = scalar_lea.vmem [#allocation3], 48
      %v3624 = vld [vmem:[%s3623] sm:$0xff]
      %v3625 = vld [vmem:[%s3623 + $0x8] sm:$0xff]
      %v3626 = vld [vmem:[%s3623 + $0x18] sm:$0xff]
      %v3627 = vld [vmem:[%s3623 + $0x20] sm:$0xff]
      %v3628 = vld [vmem:[%s3623 + $0x30] sm:$0xff]
      %v3629 = vld [vmem:[%s3623 + $0x38] sm:$0xff]
      %v3630 = vld [vmem:[%s3623 + $0x48] sm:$0xff]
      %v3631 = vld [vmem:[%s3623 + $0x50] sm:$0xff]
      %v3632 = vld [vmem:[%s3623 + $0x60] sm:$0xff]
      %v3633 = vld [vmem:[%s3623 + $0x68] sm:$0xff]
      %v3634 = vld [vmem:[%s3623 + $0x78] sm:$0xff]
      %v3635 = vld [vmem:[%s3623 + $0x80] sm:$0xff]
      %v3636 = vld [vmem:[%s3623 + $0x90] sm:$0xff]
      %v3637 = vld [vmem:[%s3623 + $0x98] sm:$0xff]
      %v3638 = vld [vmem:[%s3623 + $0xa8] sm:$0xff]
      %v3639 = vld [vmem:[%s3623 + $0xb0] sm:$0xff]
      %s3640 = scalar_lea.vmem %s2, 1920
      %v3641 = vld [vmem:[%s3640] sm:$0xff]
      %v3642 = vld [vmem:[%s3640 + $0x8] sm:$0xff]
      %v3643 = vld [vmem:[%s3640 + $0x10] sm:$0xff]
      %v3644 = vld [vmem:[%s3640 + $0x18] sm:$0xff]
      %v3645 = vld [vmem:[%s3640 + $0x20] sm:$0xff]
      %v3646 = vld [vmem:[%s3640 + $0x28] sm:$0xff]
      %v3647 = vld [vmem:[%s3640 + $0x30] sm:$0xff]
      %v3648 = vld [vmem:[%s3640 + $0x38] sm:$0xff]
      %v3649 = vld [vmem:[%s3640 + $0x40] sm:$0xff]
      %v3650 = vld [vmem:[%s3640 + $0x48] sm:$0xff]
      %v3651 = vld [vmem:[%s3640 + $0x50] sm:$0xff]
      %v3652 = vld [vmem:[%s3640 + $0x58] sm:$0xff]
      %v3653 = vld [vmem:[%s3640 + $0x60] sm:$0xff]
      %v3654 = vld [vmem:[%s3640 + $0x68] sm:$0xff]
      %v3655 = vld [vmem:[%s3640 + $0x70] sm:$0xff]
      %v3656 = vld [vmem:[%s3640 + $0x78] sm:$0xff]
      %3657 = vmatpush.msra.mxu0 %v3656
      %3658 = vmatpush.msra.mxu0 %v3655
      %3659 = vmatpush.msra.mxu0 %v3654
      %3660 = vmatpush.msra.mxu0 %v3653
      %3661 = vmatpush.msra.mxu0 %v3652
      %3662 = vmatpush.msra.mxu0 %v3651
      %3663 = vmatpush.msra.mxu0 %v3650
      %3664 = vmatpush.msra.mxu0 %v3649
      %3665 = vmatpush.msra.mxu0 %v3648
      %3666 = vmatpush.msra.mxu0 %v3647
      %3667 = vmatpush.msra.mxu0 %v3646
      %3668 = vmatpush.msra.mxu0 %v3645
      %3669 = vmatpush.msra.mxu0 %v3644
      %3670 = vmatpush.msra.mxu0 %v3643
      %3671 = vmatpush.msra.mxu0 %v3642
      %3672 = vmatpush.msra.mxu0 %v3641
      %3673 = vmatmul.f32.gmra.mxu0 %v3624
      %v3674 = vpop.f32.mrf.mxu0
      %v3675 = vadd.f32 0.0, %v3674
      %3676 = vmatmul.f32.gmra.mxu0 %v3625
      %v3677 = vpop.f32.mrf.mxu0
      %v3678 = vadd.f32 0.0, %v3677
      %3679 = vmatmul.f32.gmra.mxu0 %v3626
      %v3680 = vpop.f32.mrf.mxu0
      %v3681 = vadd.f32 0.0, %v3680
      %3682 = vmatmul.f32.gmra.mxu0 %v3627
      %v3683 = vpop.f32.mrf.mxu0
      %v3684 = vadd.f32 0.0, %v3683
      %3685 = vmatmul.f32.gmra.mxu0 %v3628
      %v3686 = vpop.f32.mrf.mxu0
      %v3687 = vadd.f32 0.0, %v3686
      %3688 = vmatmul.f32.gmra.mxu0 %v3629
      %v3689 = vpop.f32.mrf.mxu0
      %v3690 = vadd.f32 0.0, %v3689
      %3691 = vmatmul.f32.gmra.mxu0 %v3630
      %v3692 = vpop.f32.mrf.mxu0
      %v3693 = vadd.f32 0.0, %v3692
      %3694 = vmatmul.f32.gmra.mxu0 %v3631
      %v3695 = vpop.f32.mrf.mxu0
      %v3696 = vadd.f32 0.0, %v3695
      %3697 = vmatmul.f32.gmra.mxu0 %v3632
      %v3698 = vpop.f32.mrf.mxu0
      %v3699 = vadd.f32 0.0, %v3698
      %3700 = vmatmul.f32.gmra.mxu0 %v3633
      %v3701 = vpop.f32.mrf.mxu0
      %v3702 = vadd.f32 0.0, %v3701
      %3703 = vmatmul.f32.gmra.mxu0 %v3634
      %v3704 = vpop.f32.mrf.mxu0
      %v3705 = vadd.f32 0.0, %v3704
      %3706 = vmatmul.f32.gmra.mxu0 %v3635
      %v3707 = vpop.f32.mrf.mxu0
      %v3708 = vadd.f32 0.0, %v3707
      %3709 = vmatmul.f32.gmra.mxu0 %v3636
      %v3710 = vpop.f32.mrf.mxu0
      %v3711 = vadd.f32 0.0, %v3710
      %3712 = vmatmul.f32.gmra.mxu0 %v3637
      %v3713 = vpop.f32.mrf.mxu0
      %v3714 = vadd.f32 0.0, %v3713
      %3715 = vmatmul.f32.gmra.mxu0 %v3638
      %v3716 = vpop.f32.mrf.mxu0
      %v3717 = vadd.f32 0.0, %v3716
      %3718 = vmatmul.f32.gmra.mxu0 %v3639
      %v3719 = vpop.f32.mrf.mxu0
      %v3720 = vadd.f32 0.0, %v3719
      %3721 = vdwg.mxu0
      %v3722 = vadd.f32 %v3607, %v3675
      %v3723 = vadd.f32 %v3608, %v3678
      %v3724 = vadd.f32 %v3609, %v3681
      %v3725 = vadd.f32 %v3610, %v3684
      %v3726 = vadd.f32 %v3611, %v3687
      %v3727 = vadd.f32 %v3612, %v3690
      %v3728 = vadd.f32 %v3613, %v3693
      %v3729 = vadd.f32 %v3614, %v3696
      %v3730 = vadd.f32 %v3615, %v3699
      %v3731 = vadd.f32 %v3616, %v3702
      %v3732 = vadd.f32 %v3617, %v3705
      %v3733 = vadd.f32 %v3618, %v3708
      %v3734 = vadd.f32 %v3619, %v3711
      %v3735 = vadd.f32 %v3620, %v3714
      %v3736 = vadd.f32 %v3621, %v3717
      %v3737 = vadd.f32 %v3622, %v3720
      %v3738 = vld [vmem:[%s3623 + $0x1] sm:$0xff]
      %v3739 = vld [vmem:[%s3623 + $0x9] sm:$0xff]
      %v3740 = vld [vmem:[%s3623 + $0x19] sm:$0xff]
      %v3741 = vld [vmem:[%s3623 + $0x21] sm:$0xff]
      %v3742 = vld [vmem:[%s3623 + $0x31] sm:$0xff]
      %v3743 = vld [vmem:[%s3623 + $0x39] sm:$0xff]
      %v3744 = vld [vmem:[%s3623 + $0x49] sm:$0xff]
      %v3745 = vld [vmem:[%s3623 + $0x51] sm:$0xff]
      %v3746 = vld [vmem:[%s3623 + $0x61] sm:$0xff]
      %v3747 = vld [vmem:[%s3623 + $0x69] sm:$0xff]
      %v3748 = vld [vmem:[%s3623 + $0x79] sm:$0xff]
      %v3749 = vld [vmem:[%s3623 + $0x81] sm:$0xff]
      %v3750 = vld [vmem:[%s3623 + $0x91] sm:$0xff]
      %v3751 = vld [vmem:[%s3623 + $0x99] sm:$0xff]
      %v3752 = vld [vmem:[%s3623 + $0xa9] sm:$0xff]
      %v3753 = vld [vmem:[%s3623 + $0xb1] sm:$0xff]
      %s3754 = scalar_lea.vmem %s2, 2048
      %v3755 = vld [vmem:[%s3754] sm:$0xff]
      %v3756 = vld [vmem:[%s3754 + $0x8] sm:$0xff]
      %v3757 = vld [vmem:[%s3754 + $0x10] sm:$0xff]
      %v3758 = vld [vmem:[%s3754 + $0x18] sm:$0xff]
      %v3759 = vld [vmem:[%s3754 + $0x20] sm:$0xff]
      %v3760 = vld [vmem:[%s3754 + $0x28] sm:$0xff]
      %v3761 = vld [vmem:[%s3754 + $0x30] sm:$0xff]
      %v3762 = vld [vmem:[%s3754 + $0x38] sm:$0xff]
      %v3763 = vld [vmem:[%s3754 + $0x40] sm:$0xff]
      %v3764 = vld [vmem:[%s3754 + $0x48] sm:$0xff]
      %v3765 = vld [vmem:[%s3754 + $0x50] sm:$0xff]
      %v3766 = vld [vmem:[%s3754 + $0x58] sm:$0xff]
      %v3767 = vld [vmem:[%s3754 + $0x60] sm:$0xff]
      %v3768 = vld [vmem:[%s3754 + $0x68] sm:$0xff]
      %v3769 = vld [vmem:[%s3754 + $0x70] sm:$0xff]
      %v3770 = vld [vmem:[%s3754 + $0x78] sm:$0xff]
      %3771 = vmatpush.msra.mxu0 %v3770
      %3772 = vmatpush.msra.mxu0 %v3769
      %3773 = vmatpush.msra.mxu0 %v3768
      %3774 = vmatpush.msra.mxu0 %v3767
      %3775 = vmatpush.msra.mxu0 %v3766
      %3776 = vmatpush.msra.mxu0 %v3765
      %3777 = vmatpush.msra.mxu0 %v3764
      %3778 = vmatpush.msra.mxu0 %v3763
      %3779 = vmatpush.msra.mxu0 %v3762
      %3780 = vmatpush.msra.mxu0 %v3761
      %3781 = vmatpush.msra.mxu0 %v3760
      %3782 = vmatpush.msra.mxu0 %v3759
      %3783 = vmatpush.msra.mxu0 %v3758
      %3784 = vmatpush.msra.mxu0 %v3757
      %3785 = vmatpush.msra.mxu0 %v3756
      %3786 = vmatpush.msra.mxu0 %v3755
      %3787 = vmatmul.f32.gmra.mxu0 %v3738
      %v3788 = vpop.f32.mrf.mxu0
      %v3789 = vadd.f32 0.0, %v3788
      %3790 = vmatmul.f32.gmra.mxu0 %v3739
      %v3791 = vpop.f32.mrf.mxu0
      %v3792 = vadd.f32 0.0, %v3791
      %3793 = vmatmul.f32.gmra.mxu0 %v3740
      %v3794 = vpop.f32.mrf.mxu0
      %v3795 = vadd.f32 0.0, %v3794
      %3796 = vmatmul.f32.gmra.mxu0 %v3741
      %v3797 = vpop.f32.mrf.mxu0
      %v3798 = vadd.f32 0.0, %v3797
      %3799 = vmatmul.f32.gmra.mxu0 %v3742
      %v3800 = vpop.f32.mrf.mxu0
      %v3801 = vadd.f32 0.0, %v3800
      %3802 = vmatmul.f32.gmra.mxu0 %v3743
      %v3803 = vpop.f32.mrf.mxu0
      %v3804 = vadd.f32 0.0, %v3803
      %3805 = vmatmul.f32.gmra.mxu0 %v3744
      %v3806 = vpop.f32.mrf.mxu0
      %v3807 = vadd.f32 0.0, %v3806
      %3808 = vmatmul.f32.gmra.mxu0 %v3745
      %v3809 = vpop.f32.mrf.mxu0
      %v3810 = vadd.f32 0.0, %v3809
      %3811 = vmatmul.f32.gmra.mxu0 %v3746
      %v3812 = vpop.f32.mrf.mxu0
      %v3813 = vadd.f32 0.0, %v3812
      %3814 = vmatmul.f32.gmra.mxu0 %v3747
      %v3815 = vpop.f32.mrf.mxu0
      %v3816 = vadd.f32 0.0, %v3815
      %3817 = vmatmul.f32.gmra.mxu0 %v3748
      %v3818 = vpop.f32.mrf.mxu0
      %v3819 = vadd.f32 0.0, %v3818
      %3820 = vmatmul.f32.gmra.mxu0 %v3749
      %v3821 = vpop.f32.mrf.mxu0
      %v3822 = vadd.f32 0.0, %v3821
      %3823 = vmatmul.f32.gmra.mxu0 %v3750
      %v3824 = vpop.f32.mrf.mxu0
      %v3825 = vadd.f32 0.0, %v3824
      %3826 = vmatmul.f32.gmra.mxu0 %v3751
      %v3827 = vpop.f32.mrf.mxu0
      %v3828 = vadd.f32 0.0, %v3827
      %3829 = vmatmul.f32.gmra.mxu0 %v3752
      %v3830 = vpop.f32.mrf.mxu0
      %v3831 = vadd.f32 0.0, %v3830
      %3832 = vmatmul.f32.gmra.mxu0 %v3753
      %v3833 = vpop.f32.mrf.mxu0
      %v3834 = vadd.f32 0.0, %v3833
      %3835 = vdwg.mxu0
      %v3836 = vadd.f32 %v3722, %v3789
      %v3837 = vadd.f32 %v3723, %v3792
      %v3838 = vadd.f32 %v3724, %v3795
      %v3839 = vadd.f32 %v3725, %v3798
      %v3840 = vadd.f32 %v3726, %v3801
      %v3841 = vadd.f32 %v3727, %v3804
      %v3842 = vadd.f32 %v3728, %v3807
      %v3843 = vadd.f32 %v3729, %v3810
      %v3844 = vadd.f32 %v3730, %v3813
      %v3845 = vadd.f32 %v3731, %v3816
      %v3846 = vadd.f32 %v3732, %v3819
      %v3847 = vadd.f32 %v3733, %v3822
      %v3848 = vadd.f32 %v3734, %v3825
      %v3849 = vadd.f32 %v3735, %v3828
      %v3850 = vadd.f32 %v3736, %v3831
      %v3851 = vadd.f32 %v3737, %v3834
      %v3852 = vld [vmem:[%s3623 + $0x2] sm:$0xff]
      %v3853 = vld [vmem:[%s3623 + $0xa] sm:$0xff]
      %v3854 = vld [vmem:[%s3623 + $0x1a] sm:$0xff]
      %v3855 = vld [vmem:[%s3623 + $0x22] sm:$0xff]
      %v3856 = vld [vmem:[%s3623 + $0x32] sm:$0xff]
      %v3857 = vld [vmem:[%s3623 + $0x3a] sm:$0xff]
      %v3858 = vld [vmem:[%s3623 + $0x4a] sm:$0xff]
      %v3859 = vld [vmem:[%s3623 + $0x52] sm:$0xff]
      %v3860 = vld [vmem:[%s3623 + $0x62] sm:$0xff]
      %v3861 = vld [vmem:[%s3623 + $0x6a] sm:$0xff]
      %v3862 = vld [vmem:[%s3623 + $0x7a] sm:$0xff]
      %v3863 = vld [vmem:[%s3623 + $0x82] sm:$0xff]
      %v3864 = vld [vmem:[%s3623 + $0x92] sm:$0xff]
      %v3865 = vld [vmem:[%s3623 + $0x9a] sm:$0xff]
      %v3866 = vld [vmem:[%s3623 + $0xaa] sm:$0xff]
      %v3867 = vld [vmem:[%s3623 + $0xb2] sm:$0xff]
      %s3868 = scalar_lea.vmem %s2, 2176
      %v3869 = vld [vmem:[%s3868] sm:$0xff]
      %v3870 = vld [vmem:[%s3868 + $0x8] sm:$0xff]
      %v3871 = vld [vmem:[%s3868 + $0x10] sm:$0xff]
      %v3872 = vld [vmem:[%s3868 + $0x18] sm:$0xff]
      %v3873 = vld [vmem:[%s3868 + $0x20] sm:$0xff]
      %v3874 = vld [vmem:[%s3868 + $0x28] sm:$0xff]
      %v3875 = vld [vmem:[%s3868 + $0x30] sm:$0xff]
      %v3876 = vld [vmem:[%s3868 + $0x38] sm:$0xff]
      %v3877 = vld [vmem:[%s3868 + $0x40] sm:$0xff]
      %v3878 = vld [vmem:[%s3868 + $0x48] sm:$0xff]
      %v3879 = vld [vmem:[%s3868 + $0x50] sm:$0xff]
      %v3880 = vld [vmem:[%s3868 + $0x58] sm:$0xff]
      %v3881 = vld [vmem:[%s3868 + $0x60] sm:$0xff]
      %v3882 = vld [vmem:[%s3868 + $0x68] sm:$0xff]
      %v3883 = vld [vmem:[%s3868 + $0x70] sm:$0xff]
      %v3884 = vld [vmem:[%s3868 + $0x78] sm:$0xff]
      %3885 = vmatpush.msra.mxu0 %v3884
      %3886 = vmatpush.msra.mxu0 %v3883
      %3887 = vmatpush.msra.mxu0 %v3882
      %3888 = vmatpush.msra.mxu0 %v3881
      %3889 = vmatpush.msra.mxu0 %v3880
      %3890 = vmatpush.msra.mxu0 %v3879
      %3891 = vmatpush.msra.mxu0 %v3878
      %3892 = vmatpush.msra.mxu0 %v3877
      %3893 = vmatpush.msra.mxu0 %v3876
      %3894 = vmatpush.msra.mxu0 %v3875
      %3895 = vmatpush.msra.mxu0 %v3874
      %3896 = vmatpush.msra.mxu0 %v3873
      %3897 = vmatpush.msra.mxu0 %v3872
      %3898 = vmatpush.msra.mxu0 %v3871
      %3899 = vmatpush.msra.mxu0 %v3870
      %3900 = vmatpush.msra.mxu0 %v3869
      %3901 = vmatmul.f32.gmra.mxu0 %v3852
      %v3902 = vpop.f32.mrf.mxu0
      %v3903 = vadd.f32 0.0, %v3902
      %3904 = vmatmul.f32.gmra.mxu0 %v3853
      %v3905 = vpop.f32.mrf.mxu0
      %v3906 = vadd.f32 0.0, %v3905
      %3907 = vmatmul.f32.gmra.mxu0 %v3854
      %v3908 = vpop.f32.mrf.mxu0
      %v3909 = vadd.f32 0.0, %v3908
      %3910 = vmatmul.f32.gmra.mxu0 %v3855
      %v3911 = vpop.f32.mrf.mxu0
      %v3912 = vadd.f32 0.0, %v3911
      %3913 = vmatmul.f32.gmra.mxu0 %v3856
      %v3914 = vpop.f32.mrf.mxu0
      %v3915 = vadd.f32 0.0, %v3914
      %3916 = vmatmul.f32.gmra.mxu0 %v3857
      %v3917 = vpop.f32.mrf.mxu0
      %v3918 = vadd.f32 0.0, %v3917
      %3919 = vmatmul.f32.gmra.mxu0 %v3858
      %v3920 = vpop.f32.mrf.mxu0
      %v3921 = vadd.f32 0.0, %v3920
      %3922 = vmatmul.f32.gmra.mxu0 %v3859
      %v3923 = vpop.f32.mrf.mxu0
      %v3924 = vadd.f32 0.0, %v3923
      %3925 = vmatmul.f32.gmra.mxu0 %v3860
      %v3926 = vpop.f32.mrf.mxu0
      %v3927 = vadd.f32 0.0, %v3926
      %3928 = vmatmul.f32.gmra.mxu0 %v3861
      %v3929 = vpop.f32.mrf.mxu0
      %v3930 = vadd.f32 0.0, %v3929
      %3931 = vmatmul.f32.gmra.mxu0 %v3862
      %v3932 = vpop.f32.mrf.mxu0
      %v3933 = vadd.f32 0.0, %v3932
      %3934 = vmatmul.f32.gmra.mxu0 %v3863
      %v3935 = vpop.f32.mrf.mxu0
      %v3936 = vadd.f32 0.0, %v3935
      %3937 = vmatmul.f32.gmra.mxu0 %v3864
      %v3938 = vpop.f32.mrf.mxu0
      %v3939 = vadd.f32 0.0, %v3938
      %3940 = vmatmul.f32.gmra.mxu0 %v3865
      %v3941 = vpop.f32.mrf.mxu0
      %v3942 = vadd.f32 0.0, %v3941
      %3943 = vmatmul.f32.gmra.mxu0 %v3866
      %v3944 = vpop.f32.mrf.mxu0
      %v3945 = vadd.f32 0.0, %v3944
      %3946 = vmatmul.f32.gmra.mxu0 %v3867
      %v3947 = vpop.f32.mrf.mxu0
      %v3948 = vadd.f32 0.0, %v3947
      %3949 = vdwg.mxu0
      %v3950 = vadd.f32 %v3836, %v3903
      %v3951 = vadd.f32 %v3837, %v3906
      %v3952 = vadd.f32 %v3838, %v3909
      %v3953 = vadd.f32 %v3839, %v3912
      %v3954 = vadd.f32 %v3840, %v3915
      %v3955 = vadd.f32 %v3841, %v3918
      %v3956 = vadd.f32 %v3842, %v3921
      %v3957 = vadd.f32 %v3843, %v3924
      %v3958 = vadd.f32 %v3844, %v3927
      %v3959 = vadd.f32 %v3845, %v3930
      %v3960 = vadd.f32 %v3846, %v3933
      %v3961 = vadd.f32 %v3847, %v3936
      %v3962 = vadd.f32 %v3848, %v3939
      %v3963 = vadd.f32 %v3849, %v3942
      %v3964 = vadd.f32 %v3850, %v3945
      %v3965 = vadd.f32 %v3851, %v3948
      %s3966 = scalar_lea.vmem %s3, 1
      %v3967 = vld [vmem:[%s3966] sm:$0x1]
      %v3969 = vperm.slane %v3967, 0
      %v3971 = vadd.f32 %v3950, %v3969
      %v3972 = vadd.f32 %v3951, %v3969
      %v3973 = vadd.f32 %v3952, %v3969
      %v3974 = vadd.f32 %v3953, %v3969
      %v3975 = vadd.f32 %v3954, %v3969
      %v3976 = vadd.f32 %v3955, %v3969
      %v3977 = vadd.f32 %v3956, %v3969
      %v3978 = vadd.f32 %v3957, %v3969
      %v3979 = vadd.f32 %v3958, %v3969
      %v3980 = vadd.f32 %v3959, %v3969
      %v3981 = vadd.f32 %v3960, %v3969
      %v3982 = vadd.f32 %v3961, %v3969
      %v3983 = vadd.f32 %v3962, %v3969
      %v3984 = vadd.f32 %v3963, %v3969
      %v3985 = vadd.f32 %v3964, %v3969
      %v3986 = vadd.f32 %v3965, %v3969
      %v3987 = vmul.f32 %v3971, 0.05
      %v3988 = vmul.f32 %v3972, 0.05
      %v3989 = vmul.f32 %v3973, 0.05
      %v3990 = vmul.f32 %v3974, 0.05
      %v3991 = vmul.f32 %v3975, 0.05
      %v3992 = vmul.f32 %v3976, 0.05
      %v3993 = vmul.f32 %v3977, 0.05
      %v3994 = vmul.f32 %v3978, 0.05
      %v3995 = vmul.f32 %v3979, 0.05
      %v3996 = vmul.f32 %v3980, 0.05
      %v3997 = vmul.f32 %v3981, 0.05
      %v3998 = vmul.f32 %v3982, 0.05
      %v3999 = vmul.f32 %v3983, 0.05
      %v4000 = vmul.f32 %v3984, 0.05
      %v4001 = vmul.f32 %v3985, 0.05
      %v4002 = vmul.f32 %v3986, 0.05
      %v4003 = vmax.f32 %v3971, %v3987
      %v4004 = vmax.f32 %v3972, %v3988
      %v4005 = vmax.f32 %v3973, %v3989
      %v4006 = vmax.f32 %v3974, %v3990
      %v4007 = vmax.f32 %v3975, %v3991
      %v4008 = vmax.f32 %v3976, %v3992
      %v4009 = vmax.f32 %v3977, %v3993
      %v4010 = vmax.f32 %v3978, %v3994
      %v4011 = vmax.f32 %v3979, %v3995
      %v4012 = vmax.f32 %v3980, %v3996
      %v4013 = vmax.f32 %v3981, %v3997
      %v4014 = vmax.f32 %v3982, %v3998
      %v4015 = vmax.f32 %v3983, %v3999
      %v4016 = vmax.f32 %v3984, %v4000
      %v4017 = vmax.f32 %v3985, %v4001
      %v4018 = vmax.f32 %v3986, %v4002
      %4019 = vst [vmem:[%s801 + $0x1] sm:$0xff] %v4003
      %4020 = vst [vmem:[%s801 + $0x9] sm:$0xff] %v4004
      %4021 = vst [vmem:[%s801 + $0x19] sm:$0xff] %v4005
      %4022 = vst [vmem:[%s801 + $0x21] sm:$0xff] %v4006
      %4023 = vst [vmem:[%s801 + $0x31] sm:$0xff] %v4007
      %4024 = vst [vmem:[%s801 + $0x39] sm:$0xff] %v4008
      %4025 = vst [vmem:[%s801 + $0x49] sm:$0xff] %v4009
      %4026 = vst [vmem:[%s801 + $0x51] sm:$0xff] %v4010
      %4027 = vst [vmem:[%s801 + $0x61] sm:$0xff] %v4011
      %4028 = vst [vmem:[%s801 + $0x69] sm:$0xff] %v4012
      %4029 = vst [vmem:[%s801 + $0x79] sm:$0xff] %v4013
      %4030 = vst [vmem:[%s801 + $0x81] sm:$0xff] %v4014
      %4031 = vst [vmem:[%s801 + $0x91] sm:$0xff] %v4015
      %4032 = vst [vmem:[%s801 + $0x99] sm:$0xff] %v4016
      %4033 = vst [vmem:[%s801 + $0xa9] sm:$0xff] %v4017
      %4034 = vst [vmem:[%s801 + $0xb1] sm:$0xff] %v4018
      %s4035 = scalar_lea.vmem [#allocation3], 192
      %v4036 = vld [vmem:[%s4035] sm:$0xff]
      %v4037 = vld [vmem:[%s4035 + $0x8] sm:$0xff]
      %v4038 = vld [vmem:[%s4035 + $0x18] sm:$0xff]
      %v4039 = vld [vmem:[%s4035 + $0x20] sm:$0xff]
      %v4040 = vld [vmem:[%s4035 + $0x30] sm:$0xff]
      %v4041 = vld [vmem:[%s4035 + $0x38] sm:$0xff]
      %v4042 = vld [vmem:[%s4035 + $0x48] sm:$0xff]
      %v4043 = vld [vmem:[%s4035 + $0x50] sm:$0xff]
      %v4044 = vld [vmem:[%s4035 + $0x60] sm:$0xff]
      %v4045 = vld [vmem:[%s4035 + $0x68] sm:$0xff]
      %v4046 = vld [vmem:[%s4035 + $0x78] sm:$0xff]
      %v4047 = vld [vmem:[%s4035 + $0x80] sm:$0xff]
      %v4048 = vld [vmem:[%s4035 + $0x90] sm:$0xff]
      %v4049 = vld [vmem:[%s4035 + $0x98] sm:$0xff]
      %v4050 = vld [vmem:[%s4035 + $0xa8] sm:$0xff]
      %v4051 = vld [vmem:[%s4035 + $0xb0] sm:$0xff]
      %v4052 = vld [vmem:[%s2987] sm:$0xff]
      %v4053 = vld [vmem:[%s2987 + $0x8] sm:$0xff]
      %v4054 = vld [vmem:[%s2987 + $0x10] sm:$0xff]
      %v4055 = vld [vmem:[%s2987 + $0x18] sm:$0xff]
      %v4056 = vld [vmem:[%s2987 + $0x20] sm:$0xff]
      %v4057 = vld [vmem:[%s2987 + $0x28] sm:$0xff]
      %v4058 = vld [vmem:[%s2987 + $0x30] sm:$0xff]
      %v4059 = vld [vmem:[%s2987 + $0x38] sm:$0xff]
      %v4060 = vld [vmem:[%s2987 + $0x40] sm:$0xff]
      %v4061 = vld [vmem:[%s2987 + $0x48] sm:$0xff]
      %v4062 = vld [vmem:[%s2987 + $0x50] sm:$0xff]
      %v4063 = vld [vmem:[%s2987 + $0x58] sm:$0xff]
      %v4064 = vld [vmem:[%s2987 + $0x60] sm:$0xff]
      %v4065 = vld [vmem:[%s2987 + $0x68] sm:$0xff]
      %v4066 = vld [vmem:[%s2987 + $0x70] sm:$0xff]
      %v4067 = vld [vmem:[%s2987 + $0x78] sm:$0xff]
      %v4068 = vld [vmem:[%s4035 + $0x1] sm:$0xff]
      %v4069 = vld [vmem:[%s4035 + $0x9] sm:$0xff]
      %v4070 = vld [vmem:[%s4035 + $0x19] sm:$0xff]
      %v4071 = vld [vmem:[%s4035 + $0x21] sm:$0xff]
      %v4072 = vld [vmem:[%s4035 + $0x31] sm:$0xff]
      %v4073 = vld [vmem:[%s4035 + $0x39] sm:$0xff]
      %v4074 = vld [vmem:[%s4035 + $0x49] sm:$0xff]
      %v4075 = vld [vmem:[%s4035 + $0x51] sm:$0xff]
      %v4076 = vld [vmem:[%s4035 + $0x61] sm:$0xff]
      %v4077 = vld [vmem:[%s4035 + $0x69] sm:$0xff]
      %v4078 = vld [vmem:[%s4035 + $0x79] sm:$0xff]
      %v4079 = vld [vmem:[%s4035 + $0x81] sm:$0xff]
      %v4080 = vld [vmem:[%s4035 + $0x91] sm:$0xff]
      %v4081 = vld [vmem:[%s4035 + $0x99] sm:$0xff]
      %v4082 = vld [vmem:[%s4035 + $0xa9] sm:$0xff]
      %v4083 = vld [vmem:[%s4035 + $0xb1] sm:$0xff]
      %v4084 = vld [vmem:[%s3020] sm:$0xff]
      %v4085 = vld [vmem:[%s3020 + $0x8] sm:$0xff]
      %v4086 = vld [vmem:[%s3020 + $0x10] sm:$0xff]
      %v4087 = vld [vmem:[%s3020 + $0x18] sm:$0xff]
      %v4088 = vld [vmem:[%s3020 + $0x20] sm:$0xff]
      %v4089 = vld [vmem:[%s3020 + $0x28] sm:$0xff]
      %v4090 = vld [vmem:[%s3020 + $0x30] sm:$0xff]
      %v4091 = vld [vmem:[%s3020 + $0x38] sm:$0xff]
      %v4092 = vld [vmem:[%s3020 + $0x40] sm:$0xff]
      %v4093 = vld [vmem:[%s3020 + $0x48] sm:$0xff]
      %v4094 = vld [vmem:[%s3020 + $0x50] sm:$0xff]
      %v4095 = vld [vmem:[%s3020 + $0x58] sm:$0xff]
      %v4096 = vld [vmem:[%s3020 + $0x60] sm:$0xff]
      %v4097 = vld [vmem:[%s3020 + $0x68] sm:$0xff]
      %v4098 = vld [vmem:[%s3020 + $0x70] sm:$0xff]
      %v4099 = vld [vmem:[%s3020 + $0x78] sm:$0xff]
      %4100 = vmatpush.msra.mxu0 %v4099
      %4101 = vmatpush.msra.mxu0 %v4098
      %4102 = vmatpush.msra.mxu0 %v4097
      %4103 = vmatpush.msra.mxu0 %v4096
      %4104 = vmatpush.msra.mxu0 %v4095
      %4105 = vmatpush.msra.mxu0 %v4094
      %4106 = vmatpush.msra.mxu0 %v4093
      %4107 = vmatpush.msra.mxu0 %v4092
      %4108 = vmatpush.msra.mxu0 %v4091
      %4109 = vmatpush.msra.mxu0 %v4090
      %4110 = vmatpush.msra.mxu0 %v4089
      %4111 = vmatpush.msra.mxu0 %v4088
      %4112 = vmatpush.msra.mxu0 %v4087
      %4113 = vmatpush.msra.mxu0 %v4086
      %4114 = vmatpush.msra.mxu0 %v4085
      %4115 = vmatpush.msra.mxu0 %v4084
      %4116 = vmatmul.f32.gmra.mxu0 %v4068
      %v4117 = vpop.f32.mrf.mxu0
      %v4118 = vadd.f32 0.0, %v4117
      %4119 = vmatmul.f32.gmra.mxu0 %v4069
      %v4120 = vpop.f32.mrf.mxu0
      %v4121 = vadd.f32 0.0, %v4120
      %4122 = vmatmul.f32.gmra.mxu0 %v4070
      %v4123 = vpop.f32.mrf.mxu0
      %v4124 = vadd.f32 0.0, %v4123
      %4125 = vmatmul.f32.gmra.mxu0 %v4071
      %v4126 = vpop.f32.mrf.mxu0
      %v4127 = vadd.f32 0.0, %v4126
      %4128 = vmatmul.f32.gmra.mxu0 %v4072
      %v4129 = vpop.f32.mrf.mxu0
      %v4130 = vadd.f32 0.0, %v4129
      %4131 = vmatmul.f32.gmra.mxu0 %v4073
      %v4132 = vpop.f32.mrf.mxu0
      %v4133 = vadd.f32 0.0, %v4132
      %4134 = vmatmul.f32.gmra.mxu0 %v4074
      %v4135 = vpop.f32.mrf.mxu0
      %v4136 = vadd.f32 0.0, %v4135
      %4137 = vmatmul.f32.gmra.mxu0 %v4075
      %v4138 = vpop.f32.mrf.mxu0
      %v4139 = vadd.f32 0.0, %v4138
      %4140 = vmatmul.f32.gmra.mxu0 %v4076
      %v4141 = vpop.f32.mrf.mxu0
      %v4142 = vadd.f32 0.0, %v4141
      %4143 = vmatmul.f32.gmra.mxu0 %v4077
      %v4144 = vpop.f32.mrf.mxu0
      %v4145 = vadd.f32 0.0, %v4144
      %4146 = vmatmul.f32.gmra.mxu0 %v4078
      %v4147 = vpop.f32.mrf.mxu0
      %v4148 = vadd.f32 0.0, %v4147
      %4149 = vmatmul.f32.gmra.mxu0 %v4079
      %v4150 = vpop.f32.mrf.mxu0
      %v4151 = vadd.f32 0.0, %v4150
      %4152 = vmatmul.f32.gmra.mxu0 %v4080
      %v4153 = vpop.f32.mrf.mxu0
      %v4154 = vadd.f32 0.0, %v4153
      %4155 = vmatmul.f32.gmra.mxu0 %v4081
      %v4156 = vpop.f32.mrf.mxu0
      %v4157 = vadd.f32 0.0, %v4156
      %4158 = vmatmul.f32.gmra.mxu0 %v4082
      %v4159 = vpop.f32.mrf.mxu0
      %v4160 = vadd.f32 0.0, %v4159
      %4161 = vmatmul.f32.gmra.mxu0 %v4083
      %v4162 = vpop.f32.mrf.mxu0
      %v4163 = vadd.f32 0.0, %v4162
      %4164 = vdwg.mxu0
      %4165 = vmatpush.msra.mxu0 %v4067
      %4166 = vmatpush.msra.mxu0 %v4066
      %4167 = vmatpush.msra.mxu0 %v4065
      %4168 = vmatpush.msra.mxu0 %v4064
      %4169 = vmatpush.msra.mxu0 %v4063
      %4170 = vmatpush.msra.mxu0 %v4062
      %4171 = vmatpush.msra.mxu0 %v4061
      %4172 = vmatpush.msra.mxu0 %v4060
      %4173 = vmatpush.msra.mxu0 %v4059
      %4174 = vmatpush.msra.mxu0 %v4058
      %4175 = vmatpush.msra.mxu0 %v4057
      %4176 = vmatpush.msra.mxu0 %v4056
      %4177 = vmatpush.msra.mxu0 %v4055
      %4178 = vmatpush.msra.mxu0 %v4054
      %4179 = vmatpush.msra.mxu0 %v4053
      %4180 = vmatpush.msra.mxu0 %v4052
      %4181 = vmatmul.f32.gmra.mxu0 %v4036
      %v4182 = vpop.f32.mrf.mxu0
      %v4183 = vadd.f32 %v4118, %v4182
      %4184 = vmatmul.f32.gmra.mxu0 %v4037
      %v4185 = vpop.f32.mrf.mxu0
      %v4186 = vadd.f32 %v4121, %v4185
      %4187 = vmatmul.f32.gmra.mxu0 %v4038
      %v4188 = vpop.f32.mrf.mxu0
      %v4189 = vadd.f32 %v4124, %v4188
      %4190 = vmatmul.f32.gmra.mxu0 %v4039
      %v4191 = vpop.f32.mrf.mxu0
      %v4192 = vadd.f32 %v4127, %v4191
      %4193 = vmatmul.f32.gmra.mxu0 %v4040
      %v4194 = vpop.f32.mrf.mxu0
      %v4195 = vadd.f32 %v4130, %v4194
      %4196 = vmatmul.f32.gmra.mxu0 %v4041
      %v4197 = vpop.f32.mrf.mxu0
      %v4198 = vadd.f32 %v4133, %v4197
      %4199 = vmatmul.f32.gmra.mxu0 %v4042
      %v4200 = vpop.f32.mrf.mxu0
      %v4201 = vadd.f32 %v4136, %v4200
      %4202 = vmatmul.f32.gmra.mxu0 %v4043
      %v4203 = vpop.f32.mrf.mxu0
      %v4204 = vadd.f32 %v4139, %v4203
      %4205 = vmatmul.f32.gmra.mxu0 %v4044
      %v4206 = vpop.f32.mrf.mxu0
      %v4207 = vadd.f32 %v4142, %v4206
      %4208 = vmatmul.f32.gmra.mxu0 %v4045
      %v4209 = vpop.f32.mrf.mxu0
      %v4210 = vadd.f32 %v4145, %v4209
      %4211 = vmatmul.f32.gmra.mxu0 %v4046
      %v4212 = vpop.f32.mrf.mxu0
      %v4213 = vadd.f32 %v4148, %v4212
      %4214 = vmatmul.f32.gmra.mxu0 %v4047
      %v4215 = vpop.f32.mrf.mxu0
      %v4216 = vadd.f32 %v4151, %v4215
      %4217 = vmatmul.f32.gmra.mxu0 %v4048
      %v4218 = vpop.f32.mrf.mxu0
      %v4219 = vadd.f32 %v4154, %v4218
      %4220 = vmatmul.f32.gmra.mxu0 %v4049
      %v4221 = vpop.f32.mrf.mxu0
      %v4222 = vadd.f32 %v4157, %v4221
      %4223 = vmatmul.f32.gmra.mxu0 %v4050
      %v4224 = vpop.f32.mrf.mxu0
      %v4225 = vadd.f32 %v4160, %v4224
      %4226 = vmatmul.f32.gmra.mxu0 %v4051
      %v4227 = vpop.f32.mrf.mxu0
      %v4228 = vadd.f32 %v4163, %v4227
      %4229 = vdwg.mxu0
      %v4230 = vld [vmem:[%s4035 + $0x2] sm:$0xff]
      %v4231 = vld [vmem:[%s4035 + $0xa] sm:$0xff]
      %v4232 = vld [vmem:[%s4035 + $0x1a] sm:$0xff]
      %v4233 = vld [vmem:[%s4035 + $0x22] sm:$0xff]
      %v4234 = vld [vmem:[%s4035 + $0x32] sm:$0xff]
      %v4235 = vld [vmem:[%s4035 + $0x3a] sm:$0xff]
      %v4236 = vld [vmem:[%s4035 + $0x4a] sm:$0xff]
      %v4237 = vld [vmem:[%s4035 + $0x52] sm:$0xff]
      %v4238 = vld [vmem:[%s4035 + $0x62] sm:$0xff]
      %v4239 = vld [vmem:[%s4035 + $0x6a] sm:$0xff]
      %v4240 = vld [vmem:[%s4035 + $0x7a] sm:$0xff]
      %v4241 = vld [vmem:[%s4035 + $0x82] sm:$0xff]
      %v4242 = vld [vmem:[%s4035 + $0x92] sm:$0xff]
      %v4243 = vld [vmem:[%s4035 + $0x9a] sm:$0xff]
      %v4244 = vld [vmem:[%s4035 + $0xaa] sm:$0xff]
      %v4245 = vld [vmem:[%s4035 + $0xb2] sm:$0xff]
      %v4246 = vld [vmem:[%s3183] sm:$0xff]
      %v4247 = vld [vmem:[%s3183 + $0x8] sm:$0xff]
      %v4248 = vld [vmem:[%s3183 + $0x10] sm:$0xff]
      %v4249 = vld [vmem:[%s3183 + $0x18] sm:$0xff]
      %v4250 = vld [vmem:[%s3183 + $0x20] sm:$0xff]
      %v4251 = vld [vmem:[%s3183 + $0x28] sm:$0xff]
      %v4252 = vld [vmem:[%s3183 + $0x30] sm:$0xff]
      %v4253 = vld [vmem:[%s3183 + $0x38] sm:$0xff]
      %v4254 = vld [vmem:[%s3183 + $0x40] sm:$0xff]
      %v4255 = vld [vmem:[%s3183 + $0x48] sm:$0xff]
      %v4256 = vld [vmem:[%s3183 + $0x50] sm:$0xff]
      %v4257 = vld [vmem:[%s3183 + $0x58] sm:$0xff]
      %v4258 = vld [vmem:[%s3183 + $0x60] sm:$0xff]
      %v4259 = vld [vmem:[%s3183 + $0x68] sm:$0xff]
      %v4260 = vld [vmem:[%s3183 + $0x70] sm:$0xff]
      %v4261 = vld [vmem:[%s3183 + $0x78] sm:$0xff]
      %4262 = vmatpush.msra.mxu0 %v4261
      %4263 = vmatpush.msra.mxu0 %v4260
      %4264 = vmatpush.msra.mxu0 %v4259
      %4265 = vmatpush.msra.mxu0 %v4258
      %4266 = vmatpush.msra.mxu0 %v4257
      %4267 = vmatpush.msra.mxu0 %v4256
      %4268 = vmatpush.msra.mxu0 %v4255
      %4269 = vmatpush.msra.mxu0 %v4254
      %4270 = vmatpush.msra.mxu0 %v4253
      %4271 = vmatpush.msra.mxu0 %v4252
      %4272 = vmatpush.msra.mxu0 %v4251
      %4273 = vmatpush.msra.mxu0 %v4250
      %4274 = vmatpush.msra.mxu0 %v4249
      %4275 = vmatpush.msra.mxu0 %v4248
      %4276 = vmatpush.msra.mxu0 %v4247
      %4277 = vmatpush.msra.mxu0 %v4246
      %4278 = vmatmul.f32.gmra.mxu0 %v4230
      %v4279 = vpop.f32.mrf.mxu0
      %v4280 = vadd.f32 0.0, %v4279
      %4281 = vmatmul.f32.gmra.mxu0 %v4231
      %v4282 = vpop.f32.mrf.mxu0
      %v4283 = vadd.f32 0.0, %v4282
      %4284 = vmatmul.f32.gmra.mxu0 %v4232
      %v4285 = vpop.f32.mrf.mxu0
      %v4286 = vadd.f32 0.0, %v4285
      %4287 = vmatmul.f32.gmra.mxu0 %v4233
      %v4288 = vpop.f32.mrf.mxu0
      %v4289 = vadd.f32 0.0, %v4288
      %4290 = vmatmul.f32.gmra.mxu0 %v4234
      %v4291 = vpop.f32.mrf.mxu0
      %v4292 = vadd.f32 0.0, %v4291
      %4293 = vmatmul.f32.gmra.mxu0 %v4235
      %v4294 = vpop.f32.mrf.mxu0
      %v4295 = vadd.f32 0.0, %v4294
      %4296 = vmatmul.f32.gmra.mxu0 %v4236
      %v4297 = vpop.f32.mrf.mxu0
      %v4298 = vadd.f32 0.0, %v4297
      %4299 = vmatmul.f32.gmra.mxu0 %v4237
      %v4300 = vpop.f32.mrf.mxu0
      %v4301 = vadd.f32 0.0, %v4300
      %4302 = vmatmul.f32.gmra.mxu0 %v4238
      %v4303 = vpop.f32.mrf.mxu0
      %v4304 = vadd.f32 0.0, %v4303
      %4305 = vmatmul.f32.gmra.mxu0 %v4239
      %v4306 = vpop.f32.mrf.mxu0
      %v4307 = vadd.f32 0.0, %v4306
      %4308 = vmatmul.f32.gmra.mxu0 %v4240
      %v4309 = vpop.f32.mrf.mxu0
      %v4310 = vadd.f32 0.0, %v4309
      %4311 = vmatmul.f32.gmra.mxu0 %v4241
      %v4312 = vpop.f32.mrf.mxu0
      %v4313 = vadd.f32 0.0, %v4312
      %4314 = vmatmul.f32.gmra.mxu0 %v4242
      %v4315 = vpop.f32.mrf.mxu0
      %v4316 = vadd.f32 0.0, %v4315
      %4317 = vmatmul.f32.gmra.mxu0 %v4243
      %v4318 = vpop.f32.mrf.mxu0
      %v4319 = vadd.f32 0.0, %v4318
      %4320 = vmatmul.f32.gmra.mxu0 %v4244
      %v4321 = vpop.f32.mrf.mxu0
      %v4322 = vadd.f32 0.0, %v4321
      %4323 = vmatmul.f32.gmra.mxu0 %v4245
      %v4324 = vpop.f32.mrf.mxu0
      %v4325 = vadd.f32 0.0, %v4324
      %4326 = vdwg.mxu0
      %v4327 = vadd.f32 %v4183, %v4280
      %v4328 = vadd.f32 %v4186, %v4283
      %v4329 = vadd.f32 %v4189, %v4286
      %v4330 = vadd.f32 %v4192, %v4289
      %v4331 = vadd.f32 %v4195, %v4292
      %v4332 = vadd.f32 %v4198, %v4295
      %v4333 = vadd.f32 %v4201, %v4298
      %v4334 = vadd.f32 %v4204, %v4301
      %v4335 = vadd.f32 %v4207, %v4304
      %v4336 = vadd.f32 %v4210, %v4307
      %v4337 = vadd.f32 %v4213, %v4310
      %v4338 = vadd.f32 %v4216, %v4313
      %v4339 = vadd.f32 %v4219, %v4316
      %v4340 = vadd.f32 %v4222, %v4319
      %v4341 = vadd.f32 %v4225, %v4322
      %v4342 = vadd.f32 %v4228, %v4325
      %v4343 = vld [vmem:[%s2954] sm:$0xff]
      %v4344 = vld [vmem:[%s2954 + $0x8] sm:$0xff]
      %v4345 = vld [vmem:[%s2954 + $0x18] sm:$0xff]
      %v4346 = vld [vmem:[%s2954 + $0x20] sm:$0xff]
      %v4347 = vld [vmem:[%s2954 + $0x30] sm:$0xff]
      %v4348 = vld [vmem:[%s2954 + $0x38] sm:$0xff]
      %v4349 = vld [vmem:[%s2954 + $0x48] sm:$0xff]
      %v4350 = vld [vmem:[%s2954 + $0x50] sm:$0xff]
      %v4351 = vld [vmem:[%s2954 + $0x60] sm:$0xff]
      %v4352 = vld [vmem:[%s2954 + $0x68] sm:$0xff]
      %v4353 = vld [vmem:[%s2954 + $0x78] sm:$0xff]
      %v4354 = vld [vmem:[%s2954 + $0x80] sm:$0xff]
      %v4355 = vld [vmem:[%s2954 + $0x90] sm:$0xff]
      %v4356 = vld [vmem:[%s2954 + $0x98] sm:$0xff]
      %v4357 = vld [vmem:[%s2954 + $0xa8] sm:$0xff]
      %v4358 = vld [vmem:[%s2954 + $0xb0] sm:$0xff]
      %v4359 = vld [vmem:[%s3297] sm:$0xff]
      %v4360 = vld [vmem:[%s3297 + $0x8] sm:$0xff]
      %v4361 = vld [vmem:[%s3297 + $0x10] sm:$0xff]
      %v4362 = vld [vmem:[%s3297 + $0x18] sm:$0xff]
      %v4363 = vld [vmem:[%s3297 + $0x20] sm:$0xff]
      %v4364 = vld [vmem:[%s3297 + $0x28] sm:$0xff]
      %v4365 = vld [vmem:[%s3297 + $0x30] sm:$0xff]
      %v4366 = vld [vmem:[%s3297 + $0x38] sm:$0xff]
      %v4367 = vld [vmem:[%s3297 + $0x40] sm:$0xff]
      %v4368 = vld [vmem:[%s3297 + $0x48] sm:$0xff]
      %v4369 = vld [vmem:[%s3297 + $0x50] sm:$0xff]
      %v4370 = vld [vmem:[%s3297 + $0x58] sm:$0xff]
      %v4371 = vld [vmem:[%s3297 + $0x60] sm:$0xff]
      %v4372 = vld [vmem:[%s3297 + $0x68] sm:$0xff]
      %v4373 = vld [vmem:[%s3297 + $0x70] sm:$0xff]
      %v4374 = vld [vmem:[%s3297 + $0x78] sm:$0xff]
      %4375 = vmatpush.msra.mxu0 %v4374
      %4376 = vmatpush.msra.mxu0 %v4373
      %4377 = vmatpush.msra.mxu0 %v4372
      %4378 = vmatpush.msra.mxu0 %v4371
      %4379 = vmatpush.msra.mxu0 %v4370
      %4380 = vmatpush.msra.mxu0 %v4369
      %4381 = vmatpush.msra.mxu0 %v4368
      %4382 = vmatpush.msra.mxu0 %v4367
      %4383 = vmatpush.msra.mxu0 %v4366
      %4384 = vmatpush.msra.mxu0 %v4365
      %4385 = vmatpush.msra.mxu0 %v4364
      %4386 = vmatpush.msra.mxu0 %v4363
      %4387 = vmatpush.msra.mxu0 %v4362
      %4388 = vmatpush.msra.mxu0 %v4361
      %4389 = vmatpush.msra.mxu0 %v4360
      %4390 = vmatpush.msra.mxu0 %v4359
      %4391 = vmatmul.f32.gmra.mxu0 %v4343
      %v4392 = vpop.f32.mrf.mxu0
      %v4393 = vadd.f32 0.0, %v4392
      %4394 = vmatmul.f32.gmra.mxu0 %v4344
      %v4395 = vpop.f32.mrf.mxu0
      %v4396 = vadd.f32 0.0, %v4395
      %4397 = vmatmul.f32.gmra.mxu0 %v4345
      %v4398 = vpop.f32.mrf.mxu0
      %v4399 = vadd.f32 0.0, %v4398
      %4400 = vmatmul.f32.gmra.mxu0 %v4346
      %v4401 = vpop.f32.mrf.mxu0
      %v4402 = vadd.f32 0.0, %v4401
      %4403 = vmatmul.f32.gmra.mxu0 %v4347
      %v4404 = vpop.f32.mrf.mxu0
      %v4405 = vadd.f32 0.0, %v4404
      %4406 = vmatmul.f32.gmra.mxu0 %v4348
      %v4407 = vpop.f32.mrf.mxu0
      %v4408 = vadd.f32 0.0, %v4407
      %4409 = vmatmul.f32.gmra.mxu0 %v4349
      %v4410 = vpop.f32.mrf.mxu0
      %v4411 = vadd.f32 0.0, %v4410
      %4412 = vmatmul.f32.gmra.mxu0 %v4350
      %v4413 = vpop.f32.mrf.mxu0
      %v4414 = vadd.f32 0.0, %v4413
      %4415 = vmatmul.f32.gmra.mxu0 %v4351
      %v4416 = vpop.f32.mrf.mxu0
      %v4417 = vadd.f32 0.0, %v4416
      %4418 = vmatmul.f32.gmra.mxu0 %v4352
      %v4419 = vpop.f32.mrf.mxu0
      %v4420 = vadd.f32 0.0, %v4419
      %4421 = vmatmul.f32.gmra.mxu0 %v4353
      %v4422 = vpop.f32.mrf.mxu0
      %v4423 = vadd.f32 0.0, %v4422
      %4424 = vmatmul.f32.gmra.mxu0 %v4354
      %v4425 = vpop.f32.mrf.mxu0
      %v4426 = vadd.f32 0.0, %v4425
      %4427 = vmatmul.f32.gmra.mxu0 %v4355
      %v4428 = vpop.f32.mrf.mxu0
      %v4429 = vadd.f32 0.0, %v4428
      %4430 = vmatmul.f32.gmra.mxu0 %v4356
      %v4431 = vpop.f32.mrf.mxu0
      %v4432 = vadd.f32 0.0, %v4431
      %4433 = vmatmul.f32.gmra.mxu0 %v4357
      %v4434 = vpop.f32.mrf.mxu0
      %v4435 = vadd.f32 0.0, %v4434
      %4436 = vmatmul.f32.gmra.mxu0 %v4358
      %v4437 = vpop.f32.mrf.mxu0
      %v4438 = vadd.f32 0.0, %v4437
      %4439 = vdwg.mxu0
      %v4440 = vadd.f32 %v4327, %v4393
      %v4441 = vadd.f32 %v4328, %v4396
      %v4442 = vadd.f32 %v4329, %v4399
      %v4443 = vadd.f32 %v4330, %v4402
      %v4444 = vadd.f32 %v4331, %v4405
      %v4445 = vadd.f32 %v4332, %v4408
      %v4446 = vadd.f32 %v4333, %v4411
      %v4447 = vadd.f32 %v4334, %v4414
      %v4448 = vadd.f32 %v4335, %v4417
      %v4449 = vadd.f32 %v4336, %v4420
      %v4450 = vadd.f32 %v4337, %v4423
      %v4451 = vadd.f32 %v4338, %v4426
      %v4452 = vadd.f32 %v4339, %v4429
      %v4453 = vadd.f32 %v4340, %v4432
      %v4454 = vadd.f32 %v4341, %v4435
      %v4455 = vadd.f32 %v4342, %v4438
      %v4456 = vld [vmem:[%s2954 + $0x1] sm:$0xff]
      %v4457 = vld [vmem:[%s2954 + $0x9] sm:$0xff]
      %v4458 = vld [vmem:[%s2954 + $0x19] sm:$0xff]
      %v4459 = vld [vmem:[%s2954 + $0x21] sm:$0xff]
      %v4460 = vld [vmem:[%s2954 + $0x31] sm:$0xff]
      %v4461 = vld [vmem:[%s2954 + $0x39] sm:$0xff]
      %v4462 = vld [vmem:[%s2954 + $0x49] sm:$0xff]
      %v4463 = vld [vmem:[%s2954 + $0x51] sm:$0xff]
      %v4464 = vld [vmem:[%s2954 + $0x61] sm:$0xff]
      %v4465 = vld [vmem:[%s2954 + $0x69] sm:$0xff]
      %v4466 = vld [vmem:[%s2954 + $0x79] sm:$0xff]
      %v4467 = vld [vmem:[%s2954 + $0x81] sm:$0xff]
      %v4468 = vld [vmem:[%s2954 + $0x91] sm:$0xff]
      %v4469 = vld [vmem:[%s2954 + $0x99] sm:$0xff]
      %v4470 = vld [vmem:[%s2954 + $0xa9] sm:$0xff]
      %v4471 = vld [vmem:[%s2954 + $0xb1] sm:$0xff]
      %v4472 = vld [vmem:[%s3411] sm:$0xff]
      %v4473 = vld [vmem:[%s3411 + $0x8] sm:$0xff]
      %v4474 = vld [vmem:[%s3411 + $0x10] sm:$0xff]
      %v4475 = vld [vmem:[%s3411 + $0x18] sm:$0xff]
      %v4476 = vld [vmem:[%s3411 + $0x20] sm:$0xff]
      %v4477 = vld [vmem:[%s3411 + $0x28] sm:$0xff]
      %v4478 = vld [vmem:[%s3411 + $0x30] sm:$0xff]
      %v4479 = vld [vmem:[%s3411 + $0x38] sm:$0xff]
      %v4480 = vld [vmem:[%s3411 + $0x40] sm:$0xff]
      %v4481 = vld [vmem:[%s3411 + $0x48] sm:$0xff]
      %v4482 = vld [vmem:[%s3411 + $0x50] sm:$0xff]
      %v4483 = vld [vmem:[%s3411 + $0x58] sm:$0xff]
      %v4484 = vld [vmem:[%s3411 + $0x60] sm:$0xff]
      %v4485 = vld [vmem:[%s3411 + $0x68] sm:$0xff]
      %v4486 = vld [vmem:[%s3411 + $0x70] sm:$0xff]
      %v4487 = vld [vmem:[%s3411 + $0x78] sm:$0xff]
      %4488 = vmatpush.msra.mxu0 %v4487
      %4489 = vmatpush.msra.mxu0 %v4486
      %4490 = vmatpush.msra.mxu0 %v4485
      %4491 = vmatpush.msra.mxu0 %v4484
      %4492 = vmatpush.msra.mxu0 %v4483
      %4493 = vmatpush.msra.mxu0 %v4482
      %4494 = vmatpush.msra.mxu0 %v4481
      %4495 = vmatpush.msra.mxu0 %v4480
      %4496 = vmatpush.msra.mxu0 %v4479
      %4497 = vmatpush.msra.mxu0 %v4478
      %4498 = vmatpush.msra.mxu0 %v4477
      %4499 = vmatpush.msra.mxu0 %v4476
      %4500 = vmatpush.msra.mxu0 %v4475
      %4501 = vmatpush.msra.mxu0 %v4474
      %4502 = vmatpush.msra.mxu0 %v4473
      %4503 = vmatpush.msra.mxu0 %v4472
      %4504 = vmatmul.f32.gmra.mxu0 %v4456
      %v4505 = vpop.f32.mrf.mxu0
      %v4506 = vadd.f32 0.0, %v4505
      %4507 = vmatmul.f32.gmra.mxu0 %v4457
      %v4508 = vpop.f32.mrf.mxu0
      %v4509 = vadd.f32 0.0, %v4508
      %4510 = vmatmul.f32.gmra.mxu0 %v4458
      %v4511 = vpop.f32.mrf.mxu0
      %v4512 = vadd.f32 0.0, %v4511
      %4513 = vmatmul.f32.gmra.mxu0 %v4459
      %v4514 = vpop.f32.mrf.mxu0
      %v4515 = vadd.f32 0.0, %v4514
      %4516 = vmatmul.f32.gmra.mxu0 %v4460
      %v4517 = vpop.f32.mrf.mxu0
      %v4518 = vadd.f32 0.0, %v4517
      %4519 = vmatmul.f32.gmra.mxu0 %v4461
      %v4520 = vpop.f32.mrf.mxu0
      %v4521 = vadd.f32 0.0, %v4520
      %4522 = vmatmul.f32.gmra.mxu0 %v4462
      %v4523 = vpop.f32.mrf.mxu0
      %v4524 = vadd.f32 0.0, %v4523
      %4525 = vmatmul.f32.gmra.mxu0 %v4463
      %v4526 = vpop.f32.mrf.mxu0
      %v4527 = vadd.f32 0.0, %v4526
      %4528 = vmatmul.f32.gmra.mxu0 %v4464
      %v4529 = vpop.f32.mrf.mxu0
      %v4530 = vadd.f32 0.0, %v4529
      %4531 = vmatmul.f32.gmra.mxu0 %v4465
      %v4532 = vpop.f32.mrf.mxu0
      %v4533 = vadd.f32 0.0, %v4532
      %4534 = vmatmul.f32.gmra.mxu0 %v4466
      %v4535 = vpop.f32.mrf.mxu0
      %v4536 = vadd.f32 0.0, %v4535
      %4537 = vmatmul.f32.gmra.mxu0 %v4467
      %v4538 = vpop.f32.mrf.mxu0
      %v4539 = vadd.f32 0.0, %v4538
      %4540 = vmatmul.f32.gmra.mxu0 %v4468
      %v4541 = vpop.f32.mrf.mxu0
      %v4542 = vadd.f32 0.0, %v4541
      %4543 = vmatmul.f32.gmra.mxu0 %v4469
      %v4544 = vpop.f32.mrf.mxu0
      %v4545 = vadd.f32 0.0, %v4544
      %4546 = vmatmul.f32.gmra.mxu0 %v4470
      %v4547 = vpop.f32.mrf.mxu0
      %v4548 = vadd.f32 0.0, %v4547
      %4549 = vmatmul.f32.gmra.mxu0 %v4471
      %v4550 = vpop.f32.mrf.mxu0
      %v4551 = vadd.f32 0.0, %v4550
      %4552 = vdwg.mxu0
      %v4553 = vadd.f32 %v4440, %v4506
      %v4554 = vadd.f32 %v4441, %v4509
      %v4555 = vadd.f32 %v4442, %v4512
      %v4556 = vadd.f32 %v4443, %v4515
      %v4557 = vadd.f32 %v4444, %v4518
      %v4558 = vadd.f32 %v4445, %v4521
      %v4559 = vadd.f32 %v4446, %v4524
      %v4560 = vadd.f32 %v4447, %v4527
      %v4561 = vadd.f32 %v4448, %v4530
      %v4562 = vadd.f32 %v4449, %v4533
      %v4563 = vadd.f32 %v4450, %v4536
      %v4564 = vadd.f32 %v4451, %v4539
      %v4565 = vadd.f32 %v4452, %v4542
      %v4566 = vadd.f32 %v4453, %v4545
      %v4567 = vadd.f32 %v4454, %v4548
      %v4568 = vadd.f32 %v4455, %v4551
      %v4569 = vld [vmem:[%s2954 + $0x2] sm:$0xff]
      %v4570 = vld [vmem:[%s2954 + $0xa] sm:$0xff]
      %v4571 = vld [vmem:[%s2954 + $0x1a] sm:$0xff]
      %v4572 = vld [vmem:[%s2954 + $0x22] sm:$0xff]
      %v4573 = vld [vmem:[%s2954 + $0x32] sm:$0xff]
      %v4574 = vld [vmem:[%s2954 + $0x3a] sm:$0xff]
      %v4575 = vld [vmem:[%s2954 + $0x4a] sm:$0xff]
      %v4576 = vld [vmem:[%s2954 + $0x52] sm:$0xff]
      %v4577 = vld [vmem:[%s2954 + $0x62] sm:$0xff]
      %v4578 = vld [vmem:[%s2954 + $0x6a] sm:$0xff]
      %v4579 = vld [vmem:[%s2954 + $0x7a] sm:$0xff]
      %v4580 = vld [vmem:[%s2954 + $0x82] sm:$0xff]
      %v4581 = vld [vmem:[%s2954 + $0x92] sm:$0xff]
      %v4582 = vld [vmem:[%s2954 + $0x9a] sm:$0xff]
      %v4583 = vld [vmem:[%s2954 + $0xaa] sm:$0xff]
      %v4584 = vld [vmem:[%s2954 + $0xb2] sm:$0xff]
      %v4585 = vld [vmem:[%s3525] sm:$0xff]
      %v4586 = vld [vmem:[%s3525 + $0x8] sm:$0xff]
      %v4587 = vld [vmem:[%s3525 + $0x10] sm:$0xff]
      %v4588 = vld [vmem:[%s3525 + $0x18] sm:$0xff]
      %v4589 = vld [vmem:[%s3525 + $0x20] sm:$0xff]
      %v4590 = vld [vmem:[%s3525 + $0x28] sm:$0xff]
      %v4591 = vld [vmem:[%s3525 + $0x30] sm:$0xff]
      %v4592 = vld [vmem:[%s3525 + $0x38] sm:$0xff]
      %v4593 = vld [vmem:[%s3525 + $0x40] sm:$0xff]
      %v4594 = vld [vmem:[%s3525 + $0x48] sm:$0xff]
      %v4595 = vld [vmem:[%s3525 + $0x50] sm:$0xff]
      %v4596 = vld [vmem:[%s3525 + $0x58] sm:$0xff]
      %v4597 = vld [vmem:[%s3525 + $0x60] sm:$0xff]
      %v4598 = vld [vmem:[%s3525 + $0x68] sm:$0xff]
      %v4599 = vld [vmem:[%s3525 + $0x70] sm:$0xff]
      %v4600 = vld [vmem:[%s3525 + $0x78] sm:$0xff]
      %4601 = vmatpush.msra.mxu0 %v4600
      %4602 = vmatpush.msra.mxu0 %v4599
      %4603 = vmatpush.msra.mxu0 %v4598
      %4604 = vmatpush.msra.mxu0 %v4597
      %4605 = vmatpush.msra.mxu0 %v4596
      %4606 = vmatpush.msra.mxu0 %v4595
      %4607 = vmatpush.msra.mxu0 %v4594
      %4608 = vmatpush.msra.mxu0 %v4593
      %4609 = vmatpush.msra.mxu0 %v4592
      %4610 = vmatpush.msra.mxu0 %v4591
      %4611 = vmatpush.msra.mxu0 %v4590
      %4612 = vmatpush.msra.mxu0 %v4589
      %4613 = vmatpush.msra.mxu0 %v4588
      %4614 = vmatpush.msra.mxu0 %v4587
      %4615 = vmatpush.msra.mxu0 %v4586
      %4616 = vmatpush.msra.mxu0 %v4585
      %4617 = vmatmul.f32.gmra.mxu0 %v4569
      %v4618 = vpop.f32.mrf.mxu0
      %v4619 = vadd.f32 0.0, %v4618
      %4620 = vmatmul.f32.gmra.mxu0 %v4570
      %v4621 = vpop.f32.mrf.mxu0
      %v4622 = vadd.f32 0.0, %v4621
      %4623 = vmatmul.f32.gmra.mxu0 %v4571
      %v4624 = vpop.f32.mrf.mxu0
      %v4625 = vadd.f32 0.0, %v4624
      %4626 = vmatmul.f32.gmra.mxu0 %v4572
      %v4627 = vpop.f32.mrf.mxu0
      %v4628 = vadd.f32 0.0, %v4627
      %4629 = vmatmul.f32.gmra.mxu0 %v4573
      %v4630 = vpop.f32.mrf.mxu0
      %v4631 = vadd.f32 0.0, %v4630
      %4632 = vmatmul.f32.gmra.mxu0 %v4574
      %v4633 = vpop.f32.mrf.mxu0
      %v4634 = vadd.f32 0.0, %v4633
      %4635 = vmatmul.f32.gmra.mxu0 %v4575
      %v4636 = vpop.f32.mrf.mxu0
      %v4637 = vadd.f32 0.0, %v4636
      %4638 = vmatmul.f32.gmra.mxu0 %v4576
      %v4639 = vpop.f32.mrf.mxu0
      %v4640 = vadd.f32 0.0, %v4639
      %4641 = vmatmul.f32.gmra.mxu0 %v4577
      %v4642 = vpop.f32.mrf.mxu0
      %v4643 = vadd.f32 0.0, %v4642
      %4644 = vmatmul.f32.gmra.mxu0 %v4578
      %v4645 = vpop.f32.mrf.mxu0
      %v4646 = vadd.f32 0.0, %v4645
      %4647 = vmatmul.f32.gmra.mxu0 %v4579
      %v4648 = vpop.f32.mrf.mxu0
      %v4649 = vadd.f32 0.0, %v4648
      %4650 = vmatmul.f32.gmra.mxu0 %v4580
      %v4651 = vpop.f32.mrf.mxu0
      %v4652 = vadd.f32 0.0, %v4651
      %4653 = vmatmul.f32.gmra.mxu0 %v4581
      %v4654 = vpop.f32.mrf.mxu0
      %v4655 = vadd.f32 0.0, %v4654
      %4656 = vmatmul.f32.gmra.mxu0 %v4582
      %v4657 = vpop.f32.mrf.mxu0
      %v4658 = vadd.f32 0.0, %v4657
      %4659 = vmatmul.f32.gmra.mxu0 %v4583
      %v4660 = vpop.f32.mrf.mxu0
      %v4661 = vadd.f32 0.0, %v4660
      %4662 = vmatmul.f32.gmra.mxu0 %v4584
      %v4663 = vpop.f32.mrf.mxu0
      %v4664 = vadd.f32 0.0, %v4663
      %4665 = vdwg.mxu0
      %v4666 = vadd.f32 %v4553, %v4619
      %v4667 = vadd.f32 %v4554, %v4622
      %v4668 = vadd.f32 %v4555, %v4625
      %v4669 = vadd.f32 %v4556, %v4628
      %v4670 = vadd.f32 %v4557, %v4631
      %v4671 = vadd.f32 %v4558, %v4634
      %v4672 = vadd.f32 %v4559, %v4637
      %v4673 = vadd.f32 %v4560, %v4640
      %v4674 = vadd.f32 %v4561, %v4643
      %v4675 = vadd.f32 %v4562, %v4646
      %v4676 = vadd.f32 %v4563, %v4649
      %v4677 = vadd.f32 %v4564, %v4652
      %v4678 = vadd.f32 %v4565, %v4655
      %v4679 = vadd.f32 %v4566, %v4658
      %v4680 = vadd.f32 %v4567, %v4661
      %v4681 = vadd.f32 %v4568, %v4664
      %s4682 = scalar_lea.vmem [#allocation3], 240
      %v4683 = vld [vmem:[%s4682] sm:$0xff]
      %v4684 = vld [vmem:[%s4682 + $0x8] sm:$0xff]
      %v4685 = vld [vmem:[%s4682 + $0x18] sm:$0xff]
      %v4686 = vld [vmem:[%s4682 + $0x20] sm:$0xff]
      %v4687 = vld [vmem:[%s4682 + $0x30] sm:$0xff]
      %v4688 = vld [vmem:[%s4682 + $0x38] sm:$0xff]
      %v4689 = vld [vmem:[%s4682 + $0x48] sm:$0xff]
      %v4690 = vld [vmem:[%s4682 + $0x50] sm:$0xff]
      %v4691 = vld [vmem:[%s4682 + $0x60] sm:$0xff]
      %v4692 = vld [vmem:[%s4682 + $0x68] sm:$0xff]
      %v4693 = vld [vmem:[%s4682 + $0x78] sm:$0xff]
      %v4694 = vld [vmem:[%s4682 + $0x80] sm:$0xff]
      %v4695 = vld [vmem:[%s4682 + $0x90] sm:$0xff]
      %v4696 = vld [vmem:[%s4682 + $0x98] sm:$0xff]
      %v4697 = vld [vmem:[%s4682 + $0xa8] sm:$0xff]
      %v4698 = vld [vmem:[%s4682 + $0xb0] sm:$0xff]
      %v4699 = vld [vmem:[%s3640] sm:$0xff]
      %v4700 = vld [vmem:[%s3640 + $0x8] sm:$0xff]
      %v4701 = vld [vmem:[%s3640 + $0x10] sm:$0xff]
      %v4702 = vld [vmem:[%s3640 + $0x18] sm:$0xff]
      %v4703 = vld [vmem:[%s3640 + $0x20] sm:$0xff]
      %v4704 = vld [vmem:[%s3640 + $0x28] sm:$0xff]
      %v4705 = vld [vmem:[%s3640 + $0x30] sm:$0xff]
      %v4706 = vld [vmem:[%s3640 + $0x38] sm:$0xff]
      %v4707 = vld [vmem:[%s3640 + $0x40] sm:$0xff]
      %v4708 = vld [vmem:[%s3640 + $0x48] sm:$0xff]
      %v4709 = vld [vmem:[%s3640 + $0x50] sm:$0xff]
      %v4710 = vld [vmem:[%s3640 + $0x58] sm:$0xff]
      %v4711 = vld [vmem:[%s3640 + $0x60] sm:$0xff]
      %v4712 = vld [vmem:[%s3640 + $0x68] sm:$0xff]
      %v4713 = vld [vmem:[%s3640 + $0x70] sm:$0xff]
      %v4714 = vld [vmem:[%s3640 + $0x78] sm:$0xff]
      %4715 = vmatpush.msra.mxu0 %v4714
      %4716 = vmatpush.msra.mxu0 %v4713
      %4717 = vmatpush.msra.mxu0 %v4712
      %4718 = vmatpush.msra.mxu0 %v4711
      %4719 = vmatpush.msra.mxu0 %v4710
      %4720 = vmatpush.msra.mxu0 %v4709
      %4721 = vmatpush.msra.mxu0 %v4708
      %4722 = vmatpush.msra.mxu0 %v4707
      %4723 = vmatpush.msra.mxu0 %v4706
      %4724 = vmatpush.msra.mxu0 %v4705
      %4725 = vmatpush.msra.mxu0 %v4704
      %4726 = vmatpush.msra.mxu0 %v4703
      %4727 = vmatpush.msra.mxu0 %v4702
      %4728 = vmatpush.msra.mxu0 %v4701
      %4729 = vmatpush.msra.mxu0 %v4700
      %4730 = vmatpush.msra.mxu0 %v4699
      %4731 = vmatmul.f32.gmra.mxu0 %v4683
      %v4732 = vpop.f32.mrf.mxu0
      %v4733 = vadd.f32 0.0, %v4732
      %4734 = vmatmul.f32.gmra.mxu0 %v4684
      %v4735 = vpop.f32.mrf.mxu0
      %v4736 = vadd.f32 0.0, %v4735
      %4737 = vmatmul.f32.gmra.mxu0 %v4685
      %v4738 = vpop.f32.mrf.mxu0
      %v4739 = vadd.f32 0.0, %v4738
      %4740 = vmatmul.f32.gmra.mxu0 %v4686
      %v4741 = vpop.f32.mrf.mxu0
      %v4742 = vadd.f32 0.0, %v4741
      %4743 = vmatmul.f32.gmra.mxu0 %v4687
      %v4744 = vpop.f32.mrf.mxu0
      %v4745 = vadd.f32 0.0, %v4744
      %4746 = vmatmul.f32.gmra.mxu0 %v4688
      %v4747 = vpop.f32.mrf.mxu0
      %v4748 = vadd.f32 0.0, %v4747
      %4749 = vmatmul.f32.gmra.mxu0 %v4689
      %v4750 = vpop.f32.mrf.mxu0
      %v4751 = vadd.f32 0.0, %v4750
      %4752 = vmatmul.f32.gmra.mxu0 %v4690
      %v4753 = vpop.f32.mrf.mxu0
      %v4754 = vadd.f32 0.0, %v4753
      %4755 = vmatmul.f32.gmra.mxu0 %v4691
      %v4756 = vpop.f32.mrf.mxu0
      %v4757 = vadd.f32 0.0, %v4756
      %4758 = vmatmul.f32.gmra.mxu0 %v4692
      %v4759 = vpop.f32.mrf.mxu0
      %v4760 = vadd.f32 0.0, %v4759
      %4761 = vmatmul.f32.gmra.mxu0 %v4693
      %v4762 = vpop.f32.mrf.mxu0
      %v4763 = vadd.f32 0.0, %v4762
      %4764 = vmatmul.f32.gmra.mxu0 %v4694
      %v4765 = vpop.f32.mrf.mxu0
      %v4766 = vadd.f32 0.0, %v4765
      %4767 = vmatmul.f32.gmra.mxu0 %v4695
      %v4768 = vpop.f32.mrf.mxu0
      %v4769 = vadd.f32 0.0, %v4768
      %4770 = vmatmul.f32.gmra.mxu0 %v4696
      %v4771 = vpop.f32.mrf.mxu0
      %v4772 = vadd.f32 0.0, %v4771
      %4773 = vmatmul.f32.gmra.mxu0 %v4697
      %v4774 = vpop.f32.mrf.mxu0
      %v4775 = vadd.f32 0.0, %v4774
      %4776 = vmatmul.f32.gmra.mxu0 %v4698
      %v4777 = vpop.f32.mrf.mxu0
      %v4778 = vadd.f32 0.0, %v4777
      %4779 = vdwg.mxu0
      %v4780 = vadd.f32 %v4666, %v4733
      %v4781 = vadd.f32 %v4667, %v4736
      %v4782 = vadd.f32 %v4668, %v4739
      %v4783 = vadd.f32 %v4669, %v4742
      %v4784 = vadd.f32 %v4670, %v4745
      %v4785 = vadd.f32 %v4671, %v4748
      %v4786 = vadd.f32 %v4672, %v4751
      %v4787 = vadd.f32 %v4673, %v4754
      %v4788 = vadd.f32 %v4674, %v4757
      %v4789 = vadd.f32 %v4675, %v4760
      %v4790 = vadd.f32 %v4676, %v4763
      %v4791 = vadd.f32 %v4677, %v4766
      %v4792 = vadd.f32 %v4678, %v4769
      %v4793 = vadd.f32 %v4679, %v4772
      %v4794 = vadd.f32 %v4680, %v4775
      %v4795 = vadd.f32 %v4681, %v4778
      %v4796 = vld [vmem:[%s4682 + $0x1] sm:$0xff]
      %v4797 = vld [vmem:[%s4682 + $0x9] sm:$0xff]
      %v4798 = vld [vmem:[%s4682 + $0x19] sm:$0xff]
      %v4799 = vld [vmem:[%s4682 + $0x21] sm:$0xff]
      %v4800 = vld [vmem:[%s4682 + $0x31] sm:$0xff]
      %v4801 = vld [vmem:[%s4682 + $0x39] sm:$0xff]
      %v4802 = vld [vmem:[%s4682 + $0x49] sm:$0xff]
      %v4803 = vld [vmem:[%s4682 + $0x51] sm:$0xff]
      %v4804 = vld [vmem:[%s4682 + $0x61] sm:$0xff]
      %v4805 = vld [vmem:[%s4682 + $0x69] sm:$0xff]
      %v4806 = vld [vmem:[%s4682 + $0x79] sm:$0xff]
      %v4807 = vld [vmem:[%s4682 + $0x81] sm:$0xff]
      %v4808 = vld [vmem:[%s4682 + $0x91] sm:$0xff]
      %v4809 = vld [vmem:[%s4682 + $0x99] sm:$0xff]
      %v4810 = vld [vmem:[%s4682 + $0xa9] sm:$0xff]
      %v4811 = vld [vmem:[%s4682 + $0xb1] sm:$0xff]
      %v4812 = vld [vmem:[%s3754] sm:$0xff]
      %v4813 = vld [vmem:[%s3754 + $0x8] sm:$0xff]
      %v4814 = vld [vmem:[%s3754 + $0x10] sm:$0xff]
      %v4815 = vld [vmem:[%s3754 + $0x18] sm:$0xff]
      %v4816 = vld [vmem:[%s3754 + $0x20] sm:$0xff]
      %v4817 = vld [vmem:[%s3754 + $0x28] sm:$0xff]
      %v4818 = vld [vmem:[%s3754 + $0x30] sm:$0xff]
      %v4819 = vld [vmem:[%s3754 + $0x38] sm:$0xff]
      %v4820 = vld [vmem:[%s3754 + $0x40] sm:$0xff]
      %v4821 = vld [vmem:[%s3754 + $0x48] sm:$0xff]
      %v4822 = vld [vmem:[%s3754 + $0x50] sm:$0xff]
      %v4823 = vld [vmem:[%s3754 + $0x58] sm:$0xff]
      %v4824 = vld [vmem:[%s3754 + $0x60] sm:$0xff]
      %v4825 = vld [vmem:[%s3754 + $0x68] sm:$0xff]
      %v4826 = vld [vmem:[%s3754 + $0x70] sm:$0xff]
      %v4827 = vld [vmem:[%s3754 + $0x78] sm:$0xff]
      %4828 = vmatpush.msra.mxu0 %v4827
      %4829 = vmatpush.msra.mxu0 %v4826
      %4830 = vmatpush.msra.mxu0 %v4825
      %4831 = vmatpush.msra.mxu0 %v4824
      %4832 = vmatpush.msra.mxu0 %v4823
      %4833 = vmatpush.msra.mxu0 %v4822
      %4834 = vmatpush.msra.mxu0 %v4821
      %4835 = vmatpush.msra.mxu0 %v4820
      %4836 = vmatpush.msra.mxu0 %v4819
      %4837 = vmatpush.msra.mxu0 %v4818
      %4838 = vmatpush.msra.mxu0 %v4817
      %4839 = vmatpush.msra.mxu0 %v4816
      %4840 = vmatpush.msra.mxu0 %v4815
      %4841 = vmatpush.msra.mxu0 %v4814
      %4842 = vmatpush.msra.mxu0 %v4813
      %4843 = vmatpush.msra.mxu0 %v4812
      %4844 = vmatmul.f32.gmra.mxu0 %v4796
      %v4845 = vpop.f32.mrf.mxu0
      %v4846 = vadd.f32 0.0, %v4845
      %4847 = vmatmul.f32.gmra.mxu0 %v4797
      %v4848 = vpop.f32.mrf.mxu0
      %v4849 = vadd.f32 0.0, %v4848
      %4850 = vmatmul.f32.gmra.mxu0 %v4798
      %v4851 = vpop.f32.mrf.mxu0
      %v4852 = vadd.f32 0.0, %v4851
      %4853 = vmatmul.f32.gmra.mxu0 %v4799
      %v4854 = vpop.f32.mrf.mxu0
      %v4855 = vadd.f32 0.0, %v4854
      %4856 = vmatmul.f32.gmra.mxu0 %v4800
      %v4857 = vpop.f32.mrf.mxu0
      %v4858 = vadd.f32 0.0, %v4857
      %4859 = vmatmul.f32.gmra.mxu0 %v4801
      %v4860 = vpop.f32.mrf.mxu0
      %v4861 = vadd.f32 0.0, %v4860
      %4862 = vmatmul.f32.gmra.mxu0 %v4802
      %v4863 = vpop.f32.mrf.mxu0
      %v4864 = vadd.f32 0.0, %v4863
      %4865 = vmatmul.f32.gmra.mxu0 %v4803
      %v4866 = vpop.f32.mrf.mxu0
      %v4867 = vadd.f32 0.0, %v4866
      %4868 = vmatmul.f32.gmra.mxu0 %v4804
      %v4869 = vpop.f32.mrf.mxu0
      %v4870 = vadd.f32 0.0, %v4869
      %4871 = vmatmul.f32.gmra.mxu0 %v4805
      %v4872 = vpop.f32.mrf.mxu0
      %v4873 = vadd.f32 0.0, %v4872
      %4874 = vmatmul.f32.gmra.mxu0 %v4806
      %v4875 = vpop.f32.mrf.mxu0
      %v4876 = vadd.f32 0.0, %v4875
      %4877 = vmatmul.f32.gmra.mxu0 %v4807
      %v4878 = vpop.f32.mrf.mxu0
      %v4879 = vadd.f32 0.0, %v4878
      %4880 = vmatmul.f32.gmra.mxu0 %v4808
      %v4881 = vpop.f32.mrf.mxu0
      %v4882 = vadd.f32 0.0, %v4881
      %4883 = vmatmul.f32.gmra.mxu0 %v4809
      %v4884 = vpop.f32.mrf.mxu0
      %v4885 = vadd.f32 0.0, %v4884
      %4886 = vmatmul.f32.gmra.mxu0 %v4810
      %v4887 = vpop.f32.mrf.mxu0
      %v4888 = vadd.f32 0.0, %v4887
      %4889 = vmatmul.f32.gmra.mxu0 %v4811
      %v4890 = vpop.f32.mrf.mxu0
      %v4891 = vadd.f32 0.0, %v4890
      %4892 = vdwg.mxu0
      %v4893 = vadd.f32 %v4780, %v4846
      %v4894 = vadd.f32 %v4781, %v4849
      %v4895 = vadd.f32 %v4782, %v4852
      %v4896 = vadd.f32 %v4783, %v4855
      %v4897 = vadd.f32 %v4784, %v4858
      %v4898 = vadd.f32 %v4785, %v4861
      %v4899 = vadd.f32 %v4786, %v4864
      %v4900 = vadd.f32 %v4787, %v4867
      %v4901 = vadd.f32 %v4788, %v4870
      %v4902 = vadd.f32 %v4789, %v4873
      %v4903 = vadd.f32 %v4790, %v4876
      %v4904 = vadd.f32 %v4791, %v4879
      %v4905 = vadd.f32 %v4792, %v4882
      %v4906 = vadd.f32 %v4793, %v4885
      %v4907 = vadd.f32 %v4794, %v4888
      %v4908 = vadd.f32 %v4795, %v4891
      %v4909 = vld [vmem:[%s4682 + $0x2] sm:$0xff]
      %v4910 = vld [vmem:[%s4682 + $0xa] sm:$0xff]
      %v4911 = vld [vmem:[%s4682 + $0x1a] sm:$0xff]
      %v4912 = vld [vmem:[%s4682 + $0x22] sm:$0xff]
      %v4913 = vld [vmem:[%s4682 + $0x32] sm:$0xff]
      %v4914 = vld [vmem:[%s4682 + $0x3a] sm:$0xff]
      %v4915 = vld [vmem:[%s4682 + $0x4a] sm:$0xff]
      %v4916 = vld [vmem:[%s4682 + $0x52] sm:$0xff]
      %v4917 = vld [vmem:[%s4682 + $0x62] sm:$0xff]
      %v4918 = vld [vmem:[%s4682 + $0x6a] sm:$0xff]
      %v4919 = vld [vmem:[%s4682 + $0x7a] sm:$0xff]
      %v4920 = vld [vmem:[%s4682 + $0x82] sm:$0xff]
      %v4921 = vld [vmem:[%s4682 + $0x92] sm:$0xff]
      %v4922 = vld [vmem:[%s4682 + $0x9a] sm:$0xff]
      %v4923 = vld [vmem:[%s4682 + $0xaa] sm:$0xff]
      %v4924 = vld [vmem:[%s4682 + $0xb2] sm:$0xff]
      %v4925 = vld [vmem:[%s3868] sm:$0xff]
      %v4926 = vld [vmem:[%s3868 + $0x8] sm:$0xff]
      %v4927 = vld [vmem:[%s3868 + $0x10] sm:$0xff]
      %v4928 = vld [vmem:[%s3868 + $0x18] sm:$0xff]
      %v4929 = vld [vmem:[%s3868 + $0x20] sm:$0xff]
      %v4930 = vld [vmem:[%s3868 + $0x28] sm:$0xff]
      %v4931 = vld [vmem:[%s3868 + $0x30] sm:$0xff]
      %v4932 = vld [vmem:[%s3868 + $0x38] sm:$0xff]
      %v4933 = vld [vmem:[%s3868 + $0x40] sm:$0xff]
      %v4934 = vld [vmem:[%s3868 + $0x48] sm:$0xff]
      %v4935 = vld [vmem:[%s3868 + $0x50] sm:$0xff]
      %v4936 = vld [vmem:[%s3868 + $0x58] sm:$0xff]
      %v4937 = vld [vmem:[%s3868 + $0x60] sm:$0xff]
      %v4938 = vld [vmem:[%s3868 + $0x68] sm:$0xff]
      %v4939 = vld [vmem:[%s3868 + $0x70] sm:$0xff]
      %v4940 = vld [vmem:[%s3868 + $0x78] sm:$0xff]
      %4941 = vmatpush.msra.mxu0 %v4940
      %4942 = vmatpush.msra.mxu0 %v4939
      %4943 = vmatpush.msra.mxu0 %v4938
      %4944 = vmatpush.msra.mxu0 %v4937
      %4945 = vmatpush.msra.mxu0 %v4936
      %4946 = vmatpush.msra.mxu0 %v4935
      %4947 = vmatpush.msra.mxu0 %v4934
      %4948 = vmatpush.msra.mxu0 %v4933
      %4949 = vmatpush.msra.mxu0 %v4932
      %4950 = vmatpush.msra.mxu0 %v4931
      %4951 = vmatpush.msra.mxu0 %v4930
      %4952 = vmatpush.msra.mxu0 %v4929
      %4953 = vmatpush.msra.mxu0 %v4928
      %4954 = vmatpush.msra.mxu0 %v4927
      %4955 = vmatpush.msra.mxu0 %v4926
      %4956 = vmatpush.msra.mxu0 %v4925
      %4957 = vmatmul.f32.gmra.mxu0 %v4909
      %v4958 = vpop.f32.mrf.mxu0
      %v4959 = vadd.f32 0.0, %v4958
      %4960 = vmatmul.f32.gmra.mxu0 %v4910
      %v4961 = vpop.f32.mrf.mxu0
      %v4962 = vadd.f32 0.0, %v4961
      %4963 = vmatmul.f32.gmra.mxu0 %v4911
      %v4964 = vpop.f32.mrf.mxu0
      %v4965 = vadd.f32 0.0, %v4964
      %4966 = vmatmul.f32.gmra.mxu0 %v4912
      %v4967 = vpop.f32.mrf.mxu0
      %v4968 = vadd.f32 0.0, %v4967
      %4969 = vmatmul.f32.gmra.mxu0 %v4913
      %v4970 = vpop.f32.mrf.mxu0
      %v4971 = vadd.f32 0.0, %v4970
      %4972 = vmatmul.f32.gmra.mxu0 %v4914
      %v4973 = vpop.f32.mrf.mxu0
      %v4974 = vadd.f32 0.0, %v4973
      %4975 = vmatmul.f32.gmra.mxu0 %v4915
      %v4976 = vpop.f32.mrf.mxu0
      %v4977 = vadd.f32 0.0, %v4976
      %4978 = vmatmul.f32.gmra.mxu0 %v4916
      %v4979 = vpop.f32.mrf.mxu0
      %v4980 = vadd.f32 0.0, %v4979
      %4981 = vmatmul.f32.gmra.mxu0 %v4917
      %v4982 = vpop.f32.mrf.mxu0
      %v4983 = vadd.f32 0.0, %v4982
      %4984 = vmatmul.f32.gmra.mxu0 %v4918
      %v4985 = vpop.f32.mrf.mxu0
      %v4986 = vadd.f32 0.0, %v4985
      %4987 = vmatmul.f32.gmra.mxu0 %v4919
      %v4988 = vpop.f32.mrf.mxu0
      %v4989 = vadd.f32 0.0, %v4988
      %4990 = vmatmul.f32.gmra.mxu0 %v4920
      %v4991 = vpop.f32.mrf.mxu0
      %v4992 = vadd.f32 0.0, %v4991
      %4993 = vmatmul.f32.gmra.mxu0 %v4921
      %v4994 = vpop.f32.mrf.mxu0
      %v4995 = vadd.f32 0.0, %v4994
      %4996 = vmatmul.f32.gmra.mxu0 %v4922
      %v4997 = vpop.f32.mrf.mxu0
      %v4998 = vadd.f32 0.0, %v4997
      %4999 = vmatmul.f32.gmra.mxu0 %v4923
      %v5000 = vpop.f32.mrf.mxu0
      %v5001 = vadd.f32 0.0, %v5000
      %5002 = vmatmul.f32.gmra.mxu0 %v4924
      %v5003 = vpop.f32.mrf.mxu0
      %v5004 = vadd.f32 0.0, %v5003
      %5005 = vdwg.mxu0
      %v5006 = vadd.f32 %v4893, %v4959
      %v5007 = vadd.f32 %v4894, %v4962
      %v5008 = vadd.f32 %v4895, %v4965
      %v5009 = vadd.f32 %v4896, %v4968
      %v5010 = vadd.f32 %v4897, %v4971
      %v5011 = vadd.f32 %v4898, %v4974
      %v5012 = vadd.f32 %v4899, %v4977
      %v5013 = vadd.f32 %v4900, %v4980
      %v5014 = vadd.f32 %v4901, %v4983
      %v5015 = vadd.f32 %v4902, %v4986
      %v5016 = vadd.f32 %v4903, %v4989
      %v5017 = vadd.f32 %v4904, %v4992
      %v5018 = vadd.f32 %v4905, %v4995
      %v5019 = vadd.f32 %v4906, %v4998
      %v5020 = vadd.f32 %v4907, %v5001
      %v5021 = vadd.f32 %v4908, %v5004
      %v5022 = vld [vmem:[%s3966] sm:$0x1]
      %v5024 = vperm.slane %v5022, 0
      %v5026 = vadd.f32 %v5006, %v5024
      %v5027 = vadd.f32 %v5007, %v5024
      %v5028 = vadd.f32 %v5008, %v5024
      %v5029 = vadd.f32 %v5009, %v5024
      %v5030 = vadd.f32 %v5010, %v5024
      %v5031 = vadd.f32 %v5011, %v5024
      %v5032 = vadd.f32 %v5012, %v5024
      %v5033 = vadd.f32 %v5013, %v5024
      %v5034 = vadd.f32 %v5014, %v5024
      %v5035 = vadd.f32 %v5015, %v5024
      %v5036 = vadd.f32 %v5016, %v5024
      %v5037 = vadd.f32 %v5017, %v5024
      %v5038 = vadd.f32 %v5018, %v5024
      %v5039 = vadd.f32 %v5019, %v5024
      %v5040 = vadd.f32 %v5020, %v5024
      %v5041 = vadd.f32 %v5021, %v5024
      %v5042 = vmul.f32 %v5026, 0.05
      %v5043 = vmul.f32 %v5027, 0.05
      %v5044 = vmul.f32 %v5028, 0.05
      %v5045 = vmul.f32 %v5029, 0.05
      %v5046 = vmul.f32 %v5030, 0.05
      %v5047 = vmul.f32 %v5031, 0.05
      %v5048 = vmul.f32 %v5032, 0.05
      %v5049 = vmul.f32 %v5033, 0.05
      %v5050 = vmul.f32 %v5034, 0.05
      %v5051 = vmul.f32 %v5035, 0.05
      %v5052 = vmul.f32 %v5036, 0.05
      %v5053 = vmul.f32 %v5037, 0.05
      %v5054 = vmul.f32 %v5038, 0.05
      %v5055 = vmul.f32 %v5039, 0.05
      %v5056 = vmul.f32 %v5040, 0.05
      %v5057 = vmul.f32 %v5041, 0.05
      %v5058 = vmax.f32 %v5026, %v5042
      %v5059 = vmax.f32 %v5027, %v5043
      %v5060 = vmax.f32 %v5028, %v5044
      %v5061 = vmax.f32 %v5029, %v5045
      %v5062 = vmax.f32 %v5030, %v5046
      %v5063 = vmax.f32 %v5031, %v5047
      %v5064 = vmax.f32 %v5032, %v5048
      %v5065 = vmax.f32 %v5033, %v5049
      %v5066 = vmax.f32 %v5034, %v5050
      %v5067 = vmax.f32 %v5035, %v5051
      %v5068 = vmax.f32 %v5036, %v5052
      %v5069 = vmax.f32 %v5037, %v5053
      %v5070 = vmax.f32 %v5038, %v5054
      %v5071 = vmax.f32 %v5039, %v5055
      %v5072 = vmax.f32 %v5040, %v5056
      %v5073 = vmax.f32 %v5041, %v5057
      %5074 = vst [vmem:[%s835 + $0x1] sm:$0xff] %v5058
      %5075 = vst [vmem:[%s835 + $0x9] sm:$0xff] %v5059
      %5076 = vst [vmem:[%s835 + $0x19] sm:$0xff] %v5060
      %5077 = vst [vmem:[%s835 + $0x21] sm:$0xff] %v5061
      %5078 = vst [vmem:[%s835 + $0x31] sm:$0xff] %v5062
      %5079 = vst [vmem:[%s835 + $0x39] sm:$0xff] %v5063
      %5080 = vst [vmem:[%s835 + $0x49] sm:$0xff] %v5064
      %5081 = vst [vmem:[%s835 + $0x51] sm:$0xff] %v5065
      %5082 = vst [vmem:[%s835 + $0x61] sm:$0xff] %v5066
      %5083 = vst [vmem:[%s835 + $0x69] sm:$0xff] %v5067
      %5084 = vst [vmem:[%s835 + $0x79] sm:$0xff] %v5068
      %5085 = vst [vmem:[%s835 + $0x81] sm:$0xff] %v5069
      %5086 = vst [vmem:[%s835 + $0x91] sm:$0xff] %v5070
      %5087 = vst [vmem:[%s835 + $0x99] sm:$0xff] %v5071
      %5088 = vst [vmem:[%s835 + $0xa9] sm:$0xff] %v5072
      %5089 = vst [vmem:[%s835 + $0xb1] sm:$0xff] %v5073
      %v5090 = vld [vmem:[#allocation2] sm:$0xff]
      %v5091 = vld [vmem:[#allocation2 + $0x8] sm:$0xff]
      %v5092 = vld [vmem:[#allocation2 + $0x18] sm:$0xff]
      %v5093 = vld [vmem:[#allocation2 + $0x20] sm:$0xff]
      %v5094 = vld [vmem:[#allocation2 + $0x30] sm:$0xff]
      %v5095 = vld [vmem:[#allocation2 + $0x38] sm:$0xff]
      %v5096 = vld [vmem:[#allocation2 + $0x48] sm:$0xff]
      %v5097 = vld [vmem:[#allocation2 + $0x50] sm:$0xff]
      %v5098 = vld [vmem:[#allocation2 + $0x60] sm:$0xff]
      %v5099 = vld [vmem:[#allocation2 + $0x68] sm:$0xff]
      %v5100 = vld [vmem:[#allocation2 + $0x78] sm:$0xff]
      %v5101 = vld [vmem:[#allocation2 + $0x80] sm:$0xff]
      %v5102 = vld [vmem:[#allocation2 + $0x90] sm:$0xff]
      %v5103 = vld [vmem:[#allocation2 + $0x98] sm:$0xff]
      %v5104 = vld [vmem:[#allocation2 + $0xa8] sm:$0xff]
      %v5105 = vld [vmem:[#allocation2 + $0xb0] sm:$0xff]
      %s5106 = scalar_lea.vmem %s2, 2304
      %v5107 = vld [vmem:[%s5106] sm:$0xff]
      %v5108 = vld [vmem:[%s5106 + $0x8] sm:$0xff]
      %v5109 = vld [vmem:[%s5106 + $0x10] sm:$0xff]
      %v5110 = vld [vmem:[%s5106 + $0x18] sm:$0xff]
      %v5111 = vld [vmem:[%s5106 + $0x20] sm:$0xff]
      %v5112 = vld [vmem:[%s5106 + $0x28] sm:$0xff]
      %v5113 = vld [vmem:[%s5106 + $0x30] sm:$0xff]
      %v5114 = vld [vmem:[%s5106 + $0x38] sm:$0xff]
      %v5115 = vld [vmem:[%s5106 + $0x40] sm:$0xff]
      %v5116 = vld [vmem:[%s5106 + $0x48] sm:$0xff]
      %v5117 = vld [vmem:[%s5106 + $0x50] sm:$0xff]
      %v5118 = vld [vmem:[%s5106 + $0x58] sm:$0xff]
      %v5119 = vld [vmem:[%s5106 + $0x60] sm:$0xff]
      %v5120 = vld [vmem:[%s5106 + $0x68] sm:$0xff]
      %v5121 = vld [vmem:[%s5106 + $0x70] sm:$0xff]
      %v5122 = vld [vmem:[%s5106 + $0x78] sm:$0xff]
      %v5123 = vld [vmem:[#allocation2 + $0x1] sm:$0xff]
      %v5124 = vld [vmem:[#allocation2 + $0x9] sm:$0xff]
      %v5125 = vld [vmem:[#allocation2 + $0x19] sm:$0xff]
      %v5126 = vld [vmem:[#allocation2 + $0x21] sm:$0xff]
      %v5127 = vld [vmem:[#allocation2 + $0x31] sm:$0xff]
      %v5128 = vld [vmem:[#allocation2 + $0x39] sm:$0xff]
      %v5129 = vld [vmem:[#allocation2 + $0x49] sm:$0xff]
      %v5130 = vld [vmem:[#allocation2 + $0x51] sm:$0xff]
      %v5131 = vld [vmem:[#allocation2 + $0x61] sm:$0xff]
      %v5132 = vld [vmem:[#allocation2 + $0x69] sm:$0xff]
      %v5133 = vld [vmem:[#allocation2 + $0x79] sm:$0xff]
      %v5134 = vld [vmem:[#allocation2 + $0x81] sm:$0xff]
      %v5135 = vld [vmem:[#allocation2 + $0x91] sm:$0xff]
      %v5136 = vld [vmem:[#allocation2 + $0x99] sm:$0xff]
      %v5137 = vld [vmem:[#allocation2 + $0xa9] sm:$0xff]
      %v5138 = vld [vmem:[#allocation2 + $0xb1] sm:$0xff]
      %s5139 = scalar_lea.vmem %s2, 2432
      %v5140 = vld [vmem:[%s5139] sm:$0xff]
      %v5141 = vld [vmem:[%s5139 + $0x8] sm:$0xff]
      %v5142 = vld [vmem:[%s5139 + $0x10] sm:$0xff]
      %v5143 = vld [vmem:[%s5139 + $0x18] sm:$0xff]
      %v5144 = vld [vmem:[%s5139 + $0x20] sm:$0xff]
      %v5145 = vld [vmem:[%s5139 + $0x28] sm:$0xff]
      %v5146 = vld [vmem:[%s5139 + $0x30] sm:$0xff]
      %v5147 = vld [vmem:[%s5139 + $0x38] sm:$0xff]
      %v5148 = vld [vmem:[%s5139 + $0x40] sm:$0xff]
      %v5149 = vld [vmem:[%s5139 + $0x48] sm:$0xff]
      %v5150 = vld [vmem:[%s5139 + $0x50] sm:$0xff]
      %v5151 = vld [vmem:[%s5139 + $0x58] sm:$0xff]
      %v5152 = vld [vmem:[%s5139 + $0x60] sm:$0xff]
      %v5153 = vld [vmem:[%s5139 + $0x68] sm:$0xff]
      %v5154 = vld [vmem:[%s5139 + $0x70] sm:$0xff]
      %v5155 = vld [vmem:[%s5139 + $0x78] sm:$0xff]
      %5156 = vmatpush.msra.mxu0 %v5155
      %5157 = vmatpush.msra.mxu0 %v5154
      %5158 = vmatpush.msra.mxu0 %v5153
      %5159 = vmatpush.msra.mxu0 %v5152
      %5160 = vmatpush.msra.mxu0 %v5151
      %5161 = vmatpush.msra.mxu0 %v5150
      %5162 = vmatpush.msra.mxu0 %v5149
      %5163 = vmatpush.msra.mxu0 %v5148
      %5164 = vmatpush.msra.mxu0 %v5147
      %5165 = vmatpush.msra.mxu0 %v5146
      %5166 = vmatpush.msra.mxu0 %v5145
      %5167 = vmatpush.msra.mxu0 %v5144
      %5168 = vmatpush.msra.mxu0 %v5143
      %5169 = vmatpush.msra.mxu0 %v5142
      %5170 = vmatpush.msra.mxu0 %v5141
      %5171 = vmatpush.msra.mxu0 %v5140
      %5172 = vmatmul.f32.gmra.mxu0 %v5123
      %v5173 = vpop.f32.mrf.mxu0
      %v5174 = vadd.f32 0.0, %v5173
      %5175 = vmatmul.f32.gmra.mxu0 %v5124
      %v5176 = vpop.f32.mrf.mxu0
      %v5177 = vadd.f32 0.0, %v5176
      %5178 = vmatmul.f32.gmra.mxu0 %v5125
      %v5179 = vpop.f32.mrf.mxu0
      %v5180 = vadd.f32 0.0, %v5179
      %5181 = vmatmul.f32.gmra.mxu0 %v5126
      %v5182 = vpop.f32.mrf.mxu0
      %v5183 = vadd.f32 0.0, %v5182
      %5184 = vmatmul.f32.gmra.mxu0 %v5127
      %v5185 = vpop.f32.mrf.mxu0
      %v5186 = vadd.f32 0.0, %v5185
      %5187 = vmatmul.f32.gmra.mxu0 %v5128
      %v5188 = vpop.f32.mrf.mxu0
      %v5189 = vadd.f32 0.0, %v5188
      %5190 = vmatmul.f32.gmra.mxu0 %v5129
      %v5191 = vpop.f32.mrf.mxu0
      %v5192 = vadd.f32 0.0, %v5191
      %5193 = vmatmul.f32.gmra.mxu0 %v5130
      %v5194 = vpop.f32.mrf.mxu0
      %v5195 = vadd.f32 0.0, %v5194
      %5196 = vmatmul.f32.gmra.mxu0 %v5131
      %v5197 = vpop.f32.mrf.mxu0
      %v5198 = vadd.f32 0.0, %v5197
      %5199 = vmatmul.f32.gmra.mxu0 %v5132
      %v5200 = vpop.f32.mrf.mxu0
      %v5201 = vadd.f32 0.0, %v5200
      %5202 = vmatmul.f32.gmra.mxu0 %v5133
      %v5203 = vpop.f32.mrf.mxu0
      %v5204 = vadd.f32 0.0, %v5203
      %5205 = vmatmul.f32.gmra.mxu0 %v5134
      %v5206 = vpop.f32.mrf.mxu0
      %v5207 = vadd.f32 0.0, %v5206
      %5208 = vmatmul.f32.gmra.mxu0 %v5135
      %v5209 = vpop.f32.mrf.mxu0
      %v5210 = vadd.f32 0.0, %v5209
      %5211 = vmatmul.f32.gmra.mxu0 %v5136
      %v5212 = vpop.f32.mrf.mxu0
      %v5213 = vadd.f32 0.0, %v5212
      %5214 = vmatmul.f32.gmra.mxu0 %v5137
      %v5215 = vpop.f32.mrf.mxu0
      %v5216 = vadd.f32 0.0, %v5215
      %5217 = vmatmul.f32.gmra.mxu0 %v5138
      %v5218 = vpop.f32.mrf.mxu0
      %v5219 = vadd.f32 0.0, %v5218
      %5220 = vdwg.mxu0
      %5221 = vmatpush.msra.mxu0 %v5122
      %5222 = vmatpush.msra.mxu0 %v5121
      %5223 = vmatpush.msra.mxu0 %v5120
      %5224 = vmatpush.msra.mxu0 %v5119
      %5225 = vmatpush.msra.mxu0 %v5118
      %5226 = vmatpush.msra.mxu0 %v5117
      %5227 = vmatpush.msra.mxu0 %v5116
      %5228 = vmatpush.msra.mxu0 %v5115
      %5229 = vmatpush.msra.mxu0 %v5114
      %5230 = vmatpush.msra.mxu0 %v5113
      %5231 = vmatpush.msra.mxu0 %v5112
      %5232 = vmatpush.msra.mxu0 %v5111
      %5233 = vmatpush.msra.mxu0 %v5110
      %5234 = vmatpush.msra.mxu0 %v5109
      %5235 = vmatpush.msra.mxu0 %v5108
      %5236 = vmatpush.msra.mxu0 %v5107
      %5237 = vmatmul.f32.gmra.mxu0 %v5090
      %v5238 = vpop.f32.mrf.mxu0
      %v5239 = vadd.f32 %v5174, %v5238
      %5240 = vmatmul.f32.gmra.mxu0 %v5091
      %v5241 = vpop.f32.mrf.mxu0
      %v5242 = vadd.f32 %v5177, %v5241
      %5243 = vmatmul.f32.gmra.mxu0 %v5092
      %v5244 = vpop.f32.mrf.mxu0
      %v5245 = vadd.f32 %v5180, %v5244
      %5246 = vmatmul.f32.gmra.mxu0 %v5093
      %v5247 = vpop.f32.mrf.mxu0
      %v5248 = vadd.f32 %v5183, %v5247
      %5249 = vmatmul.f32.gmra.mxu0 %v5094
      %v5250 = vpop.f32.mrf.mxu0
      %v5251 = vadd.f32 %v5186, %v5250
      %5252 = vmatmul.f32.gmra.mxu0 %v5095
      %v5253 = vpop.f32.mrf.mxu0
      %v5254 = vadd.f32 %v5189, %v5253
      %5255 = vmatmul.f32.gmra.mxu0 %v5096
      %v5256 = vpop.f32.mrf.mxu0
      %v5257 = vadd.f32 %v5192, %v5256
      %5258 = vmatmul.f32.gmra.mxu0 %v5097
      %v5259 = vpop.f32.mrf.mxu0
      %v5260 = vadd.f32 %v5195, %v5259
      %5261 = vmatmul.f32.gmra.mxu0 %v5098
      %v5262 = vpop.f32.mrf.mxu0
      %v5263 = vadd.f32 %v5198, %v5262
      %5264 = vmatmul.f32.gmra.mxu0 %v5099
      %v5265 = vpop.f32.mrf.mxu0
      %v5266 = vadd.f32 %v5201, %v5265
      %5267 = vmatmul.f32.gmra.mxu0 %v5100
      %v5268 = vpop.f32.mrf.mxu0
      %v5269 = vadd.f32 %v5204, %v5268
      %5270 = vmatmul.f32.gmra.mxu0 %v5101
      %v5271 = vpop.f32.mrf.mxu0
      %v5272 = vadd.f32 %v5207, %v5271
      %5273 = vmatmul.f32.gmra.mxu0 %v5102
      %v5274 = vpop.f32.mrf.mxu0
      %v5275 = vadd.f32 %v5210, %v5274
      %5276 = vmatmul.f32.gmra.mxu0 %v5103
      %v5277 = vpop.f32.mrf.mxu0
      %v5278 = vadd.f32 %v5213, %v5277
      %5279 = vmatmul.f32.gmra.mxu0 %v5104
      %v5280 = vpop.f32.mrf.mxu0
      %v5281 = vadd.f32 %v5216, %v5280
      %5282 = vmatmul.f32.gmra.mxu0 %v5105
      %v5283 = vpop.f32.mrf.mxu0
      %v5284 = vadd.f32 %v5219, %v5283
      %5285 = vdwg.mxu0
      %v5286 = vld [vmem:[#allocation2 + $0x2] sm:$0xff]
      %v5287 = vld [vmem:[#allocation2 + $0xa] sm:$0xff]
      %v5288 = vld [vmem:[#allocation2 + $0x1a] sm:$0xff]
      %v5289 = vld [vmem:[#allocation2 + $0x22] sm:$0xff]
      %v5290 = vld [vmem:[#allocation2 + $0x32] sm:$0xff]
      %v5291 = vld [vmem:[#allocation2 + $0x3a] sm:$0xff]
      %v5292 = vld [vmem:[#allocation2 + $0x4a] sm:$0xff]
      %v5293 = vld [vmem:[#allocation2 + $0x52] sm:$0xff]
      %v5294 = vld [vmem:[#allocation2 + $0x62] sm:$0xff]
      %v5295 = vld [vmem:[#allocation2 + $0x6a] sm:$0xff]
      %v5296 = vld [vmem:[#allocation2 + $0x7a] sm:$0xff]
      %v5297 = vld [vmem:[#allocation2 + $0x82] sm:$0xff]
      %v5298 = vld [vmem:[#allocation2 + $0x92] sm:$0xff]
      %v5299 = vld [vmem:[#allocation2 + $0x9a] sm:$0xff]
      %v5300 = vld [vmem:[#allocation2 + $0xaa] sm:$0xff]
      %v5301 = vld [vmem:[#allocation2 + $0xb2] sm:$0xff]
      %s5302 = scalar_lea.vmem %s2, 2560
      %v5303 = vld [vmem:[%s5302] sm:$0xff]
      %v5304 = vld [vmem:[%s5302 + $0x8] sm:$0xff]
      %v5305 = vld [vmem:[%s5302 + $0x10] sm:$0xff]
      %v5306 = vld [vmem:[%s5302 + $0x18] sm:$0xff]
      %v5307 = vld [vmem:[%s5302 + $0x20] sm:$0xff]
      %v5308 = vld [vmem:[%s5302 + $0x28] sm:$0xff]
      %v5309 = vld [vmem:[%s5302 + $0x30] sm:$0xff]
      %v5310 = vld [vmem:[%s5302 + $0x38] sm:$0xff]
      %v5311 = vld [vmem:[%s5302 + $0x40] sm:$0xff]
      %v5312 = vld [vmem:[%s5302 + $0x48] sm:$0xff]
      %v5313 = vld [vmem:[%s5302 + $0x50] sm:$0xff]
      %v5314 = vld [vmem:[%s5302 + $0x58] sm:$0xff]
      %v5315 = vld [vmem:[%s5302 + $0x60] sm:$0xff]
      %v5316 = vld [vmem:[%s5302 + $0x68] sm:$0xff]
      %v5317 = vld [vmem:[%s5302 + $0x70] sm:$0xff]
      %v5318 = vld [vmem:[%s5302 + $0x78] sm:$0xff]
      %5319 = vmatpush.msra.mxu0 %v5318
      %5320 = vmatpush.msra.mxu0 %v5317
      %5321 = vmatpush.msra.mxu0 %v5316
      %5322 = vmatpush.msra.mxu0 %v5315
      %5323 = vmatpush.msra.mxu0 %v5314
      %5324 = vmatpush.msra.mxu0 %v5313
      %5325 = vmatpush.msra.mxu0 %v5312
      %5326 = vmatpush.msra.mxu0 %v5311
      %5327 = vmatpush.msra.mxu0 %v5310
      %5328 = vmatpush.msra.mxu0 %v5309
      %5329 = vmatpush.msra.mxu0 %v5308
      %5330 = vmatpush.msra.mxu0 %v5307
      %5331 = vmatpush.msra.mxu0 %v5306
      %5332 = vmatpush.msra.mxu0 %v5305
      %5333 = vmatpush.msra.mxu0 %v5304
      %5334 = vmatpush.msra.mxu0 %v5303
      %5335 = vmatmul.f32.gmra.mxu0 %v5286
      %v5336 = vpop.f32.mrf.mxu0
      %v5337 = vadd.f32 0.0, %v5336
      %5338 = vmatmul.f32.gmra.mxu0 %v5287
      %v5339 = vpop.f32.mrf.mxu0
      %v5340 = vadd.f32 0.0, %v5339
      %5341 = vmatmul.f32.gmra.mxu0 %v5288
      %v5342 = vpop.f32.mrf.mxu0
      %v5343 = vadd.f32 0.0, %v5342
      %5344 = vmatmul.f32.gmra.mxu0 %v5289
      %v5345 = vpop.f32.mrf.mxu0
      %v5346 = vadd.f32 0.0, %v5345
      %5347 = vmatmul.f32.gmra.mxu0 %v5290
      %v5348 = vpop.f32.mrf.mxu0
      %v5349 = vadd.f32 0.0, %v5348
      %5350 = vmatmul.f32.gmra.mxu0 %v5291
      %v5351 = vpop.f32.mrf.mxu0
      %v5352 = vadd.f32 0.0, %v5351
      %5353 = vmatmul.f32.gmra.mxu0 %v5292
      %v5354 = vpop.f32.mrf.mxu0
      %v5355 = vadd.f32 0.0, %v5354
      %5356 = vmatmul.f32.gmra.mxu0 %v5293
      %v5357 = vpop.f32.mrf.mxu0
      %v5358 = vadd.f32 0.0, %v5357
      %5359 = vmatmul.f32.gmra.mxu0 %v5294
      %v5360 = vpop.f32.mrf.mxu0
      %v5361 = vadd.f32 0.0, %v5360
      %5362 = vmatmul.f32.gmra.mxu0 %v5295
      %v5363 = vpop.f32.mrf.mxu0
      %v5364 = vadd.f32 0.0, %v5363
      %5365 = vmatmul.f32.gmra.mxu0 %v5296
      %v5366 = vpop.f32.mrf.mxu0
      %v5367 = vadd.f32 0.0, %v5366
      %5368 = vmatmul.f32.gmra.mxu0 %v5297
      %v5369 = vpop.f32.mrf.mxu0
      %v5370 = vadd.f32 0.0, %v5369
      %5371 = vmatmul.f32.gmra.mxu0 %v5298
      %v5372 = vpop.f32.mrf.mxu0
      %v5373 = vadd.f32 0.0, %v5372
      %5374 = vmatmul.f32.gmra.mxu0 %v5299
      %v5375 = vpop.f32.mrf.mxu0
      %v5376 = vadd.f32 0.0, %v5375
      %5377 = vmatmul.f32.gmra.mxu0 %v5300
      %v5378 = vpop.f32.mrf.mxu0
      %v5379 = vadd.f32 0.0, %v5378
      %5380 = vmatmul.f32.gmra.mxu0 %v5301
      %v5381 = vpop.f32.mrf.mxu0
      %v5382 = vadd.f32 0.0, %v5381
      %5383 = vdwg.mxu0
      %v5384 = vadd.f32 %v5239, %v5337
      %v5385 = vadd.f32 %v5242, %v5340
      %v5386 = vadd.f32 %v5245, %v5343
      %v5387 = vadd.f32 %v5248, %v5346
      %v5388 = vadd.f32 %v5251, %v5349
      %v5389 = vadd.f32 %v5254, %v5352
      %v5390 = vadd.f32 %v5257, %v5355
      %v5391 = vadd.f32 %v5260, %v5358
      %v5392 = vadd.f32 %v5263, %v5361
      %v5393 = vadd.f32 %v5266, %v5364
      %v5394 = vadd.f32 %v5269, %v5367
      %v5395 = vadd.f32 %v5272, %v5370
      %v5396 = vadd.f32 %v5275, %v5373
      %v5397 = vadd.f32 %v5278, %v5376
      %v5398 = vadd.f32 %v5281, %v5379
      %v5399 = vadd.f32 %v5284, %v5382
      %v5400 = vld [vmem:[%s801] sm:$0xff]
      %v5401 = vld [vmem:[%s801 + $0x8] sm:$0xff]
      %v5402 = vld [vmem:[%s801 + $0x18] sm:$0xff]
      %v5403 = vld [vmem:[%s801 + $0x20] sm:$0xff]
      %v5404 = vld [vmem:[%s801 + $0x30] sm:$0xff]
      %v5405 = vld [vmem:[%s801 + $0x38] sm:$0xff]
      %v5406 = vld [vmem:[%s801 + $0x48] sm:$0xff]
      %v5407 = vld [vmem:[%s801 + $0x50] sm:$0xff]
      %v5408 = vld [vmem:[%s801 + $0x60] sm:$0xff]
      %v5409 = vld [vmem:[%s801 + $0x68] sm:$0xff]
      %v5410 = vld [vmem:[%s801 + $0x78] sm:$0xff]
      %v5411 = vld [vmem:[%s801 + $0x80] sm:$0xff]
      %v5412 = vld [vmem:[%s801 + $0x90] sm:$0xff]
      %v5413 = vld [vmem:[%s801 + $0x98] sm:$0xff]
      %v5414 = vld [vmem:[%s801 + $0xa8] sm:$0xff]
      %v5415 = vld [vmem:[%s801 + $0xb0] sm:$0xff]
      %s5416 = scalar_lea.vmem %s2, 2688
      %v5417 = vld [vmem:[%s5416] sm:$0xff]
      %v5418 = vld [vmem:[%s5416 + $0x8] sm:$0xff]
      %v5419 = vld [vmem:[%s5416 + $0x10] sm:$0xff]
      %v5420 = vld [vmem:[%s5416 + $0x18] sm:$0xff]
      %v5421 = vld [vmem:[%s5416 + $0x20] sm:$0xff]
      %v5422 = vld [vmem:[%s5416 + $0x28] sm:$0xff]
      %v5423 = vld [vmem:[%s5416 + $0x30] sm:$0xff]
      %v5424 = vld [vmem:[%s5416 + $0x38] sm:$0xff]
      %v5425 = vld [vmem:[%s5416 + $0x40] sm:$0xff]
      %v5426 = vld [vmem:[%s5416 + $0x48] sm:$0xff]
      %v5427 = vld [vmem:[%s5416 + $0x50] sm:$0xff]
      %v5428 = vld [vmem:[%s5416 + $0x58] sm:$0xff]
      %v5429 = vld [vmem:[%s5416 + $0x60] sm:$0xff]
      %v5430 = vld [vmem:[%s5416 + $0x68] sm:$0xff]
      %v5431 = vld [vmem:[%s5416 + $0x70] sm:$0xff]
      %v5432 = vld [vmem:[%s5416 + $0x78] sm:$0xff]
      %5433 = vmatpush.msra.mxu0 %v5432
      %5434 = vmatpush.msra.mxu0 %v5431
      %5435 = vmatpush.msra.mxu0 %v5430
      %5436 = vmatpush.msra.mxu0 %v5429
      %5437 = vmatpush.msra.mxu0 %v5428
      %5438 = vmatpush.msra.mxu0 %v5427
      %5439 = vmatpush.msra.mxu0 %v5426
      %5440 = vmatpush.msra.mxu0 %v5425
      %5441 = vmatpush.msra.mxu0 %v5424
      %5442 = vmatpush.msra.mxu0 %v5423
      %5443 = vmatpush.msra.mxu0 %v5422
      %5444 = vmatpush.msra.mxu0 %v5421
      %5445 = vmatpush.msra.mxu0 %v5420
      %5446 = vmatpush.msra.mxu0 %v5419
      %5447 = vmatpush.msra.mxu0 %v5418
      %5448 = vmatpush.msra.mxu0 %v5417
      %5449 = vmatmul.f32.gmra.mxu0 %v5400
      %v5450 = vpop.f32.mrf.mxu0
      %v5451 = vadd.f32 0.0, %v5450
      %5452 = vmatmul.f32.gmra.mxu0 %v5401
      %v5453 = vpop.f32.mrf.mxu0
      %v5454 = vadd.f32 0.0, %v5453
      %5455 = vmatmul.f32.gmra.mxu0 %v5402
      %v5456 = vpop.f32.mrf.mxu0
      %v5457 = vadd.f32 0.0, %v5456
      %5458 = vmatmul.f32.gmra.mxu0 %v5403
      %v5459 = vpop.f32.mrf.mxu0
      %v5460 = vadd.f32 0.0, %v5459
      %5461 = vmatmul.f32.gmra.mxu0 %v5404
      %v5462 = vpop.f32.mrf.mxu0
      %v5463 = vadd.f32 0.0, %v5462
      %5464 = vmatmul.f32.gmra.mxu0 %v5405
      %v5465 = vpop.f32.mrf.mxu0
      %v5466 = vadd.f32 0.0, %v5465
      %5467 = vmatmul.f32.gmra.mxu0 %v5406
      %v5468 = vpop.f32.mrf.mxu0
      %v5469 = vadd.f32 0.0, %v5468
      %5470 = vmatmul.f32.gmra.mxu0 %v5407
      %v5471 = vpop.f32.mrf.mxu0
      %v5472 = vadd.f32 0.0, %v5471
      %5473 = vmatmul.f32.gmra.mxu0 %v5408
      %v5474 = vpop.f32.mrf.mxu0
      %v5475 = vadd.f32 0.0, %v5474
      %5476 = vmatmul.f32.gmra.mxu0 %v5409
      %v5477 = vpop.f32.mrf.mxu0
      %v5478 = vadd.f32 0.0, %v5477
      %5479 = vmatmul.f32.gmra.mxu0 %v5410
      %v5480 = vpop.f32.mrf.mxu0
      %v5481 = vadd.f32 0.0, %v5480
      %5482 = vmatmul.f32.gmra.mxu0 %v5411
      %v5483 = vpop.f32.mrf.mxu0
      %v5484 = vadd.f32 0.0, %v5483
      %5485 = vmatmul.f32.gmra.mxu0 %v5412
      %v5486 = vpop.f32.mrf.mxu0
      %v5487 = vadd.f32 0.0, %v5486
      %5488 = vmatmul.f32.gmra.mxu0 %v5413
      %v5489 = vpop.f32.mrf.mxu0
      %v5490 = vadd.f32 0.0, %v5489
      %5491 = vmatmul.f32.gmra.mxu0 %v5414
      %v5492 = vpop.f32.mrf.mxu0
      %v5493 = vadd.f32 0.0, %v5492
      %5494 = vmatmul.f32.gmra.mxu0 %v5415
      %v5495 = vpop.f32.mrf.mxu0
      %v5496 = vadd.f32 0.0, %v5495
      %5497 = vdwg.mxu0
      %v5498 = vadd.f32 %v5384, %v5451
      %v5499 = vadd.f32 %v5385, %v5454
      %v5500 = vadd.f32 %v5386, %v5457
      %v5501 = vadd.f32 %v5387, %v5460
      %v5502 = vadd.f32 %v5388, %v5463
      %v5503 = vadd.f32 %v5389, %v5466
      %v5504 = vadd.f32 %v5390, %v5469
      %v5505 = vadd.f32 %v5391, %v5472
      %v5506 = vadd.f32 %v5392, %v5475
      %v5507 = vadd.f32 %v5393, %v5478
      %v5508 = vadd.f32 %v5394, %v5481
      %v5509 = vadd.f32 %v5395, %v5484
      %v5510 = vadd.f32 %v5396, %v5487
      %v5511 = vadd.f32 %v5397, %v5490
      %v5512 = vadd.f32 %v5398, %v5493
      %v5513 = vadd.f32 %v5399, %v5496
      %v5514 = vld [vmem:[%s801 + $0x1] sm:$0xff]
      %v5515 = vld [vmem:[%s801 + $0x9] sm:$0xff]
      %v5516 = vld [vmem:[%s801 + $0x19] sm:$0xff]
      %v5517 = vld [vmem:[%s801 + $0x21] sm:$0xff]
      %v5518 = vld [vmem:[%s801 + $0x31] sm:$0xff]
      %v5519 = vld [vmem:[%s801 + $0x39] sm:$0xff]
      %v5520 = vld [vmem:[%s801 + $0x49] sm:$0xff]
      %v5521 = vld [vmem:[%s801 + $0x51] sm:$0xff]
      %v5522 = vld [vmem:[%s801 + $0x61] sm:$0xff]
      %v5523 = vld [vmem:[%s801 + $0x69] sm:$0xff]
      %v5524 = vld [vmem:[%s801 + $0x79] sm:$0xff]
      %v5525 = vld [vmem:[%s801 + $0x81] sm:$0xff]
      %v5526 = vld [vmem:[%s801 + $0x91] sm:$0xff]
      %v5527 = vld [vmem:[%s801 + $0x99] sm:$0xff]
      %v5528 = vld [vmem:[%s801 + $0xa9] sm:$0xff]
      %v5529 = vld [vmem:[%s801 + $0xb1] sm:$0xff]
      %s5530 = scalar_lea.vmem %s2, 2816
      %v5531 = vld [vmem:[%s5530] sm:$0xff]
      %v5532 = vld [vmem:[%s5530 + $0x8] sm:$0xff]
      %v5533 = vld [vmem:[%s5530 + $0x10] sm:$0xff]
      %v5534 = vld [vmem:[%s5530 + $0x18] sm:$0xff]
      %v5535 = vld [vmem:[%s5530 + $0x20] sm:$0xff]
      %v5536 = vld [vmem:[%s5530 + $0x28] sm:$0xff]
      %v5537 = vld [vmem:[%s5530 + $0x30] sm:$0xff]
      %v5538 = vld [vmem:[%s5530 + $0x38] sm:$0xff]
      %v5539 = vld [vmem:[%s5530 + $0x40] sm:$0xff]
      %v5540 = vld [vmem:[%s5530 + $0x48] sm:$0xff]
      %v5541 = vld [vmem:[%s5530 + $0x50] sm:$0xff]
      %v5542 = vld [vmem:[%s5530 + $0x58] sm:$0xff]
      %v5543 = vld [vmem:[%s5530 + $0x60] sm:$0xff]
      %v5544 = vld [vmem:[%s5530 + $0x68] sm:$0xff]
      %v5545 = vld [vmem:[%s5530 + $0x70] sm:$0xff]
      %v5546 = vld [vmem:[%s5530 + $0x78] sm:$0xff]
      %5547 = vmatpush.msra.mxu0 %v5546
      %5548 = vmatpush.msra.mxu0 %v5545
      %5549 = vmatpush.msra.mxu0 %v5544
      %5550 = vmatpush.msra.mxu0 %v5543
      %5551 = vmatpush.msra.mxu0 %v5542
      %5552 = vmatpush.msra.mxu0 %v5541
      %5553 = vmatpush.msra.mxu0 %v5540
      %5554 = vmatpush.msra.mxu0 %v5539
      %5555 = vmatpush.msra.mxu0 %v5538
      %5556 = vmatpush.msra.mxu0 %v5537
      %5557 = vmatpush.msra.mxu0 %v5536
      %5558 = vmatpush.msra.mxu0 %v5535
      %5559 = vmatpush.msra.mxu0 %v5534
      %5560 = vmatpush.msra.mxu0 %v5533
      %5561 = vmatpush.msra.mxu0 %v5532
      %5562 = vmatpush.msra.mxu0 %v5531
      %5563 = vmatmul.f32.gmra.mxu0 %v5514
      %v5564 = vpop.f32.mrf.mxu0
      %v5565 = vadd.f32 0.0, %v5564
      %5566 = vmatmul.f32.gmra.mxu0 %v5515
      %v5567 = vpop.f32.mrf.mxu0
      %v5568 = vadd.f32 0.0, %v5567
      %5569 = vmatmul.f32.gmra.mxu0 %v5516
      %v5570 = vpop.f32.mrf.mxu0
      %v5571 = vadd.f32 0.0, %v5570
      %5572 = vmatmul.f32.gmra.mxu0 %v5517
      %v5573 = vpop.f32.mrf.mxu0
      %v5574 = vadd.f32 0.0, %v5573
      %5575 = vmatmul.f32.gmra.mxu0 %v5518
      %v5576 = vpop.f32.mrf.mxu0
      %v5577 = vadd.f32 0.0, %v5576
      %5578 = vmatmul.f32.gmra.mxu0 %v5519
      %v5579 = vpop.f32.mrf.mxu0
      %v5580 = vadd.f32 0.0, %v5579
      %5581 = vmatmul.f32.gmra.mxu0 %v5520
      %v5582 = vpop.f32.mrf.mxu0
      %v5583 = vadd.f32 0.0, %v5582
      %5584 = vmatmul.f32.gmra.mxu0 %v5521
      %v5585 = vpop.f32.mrf.mxu0
      %v5586 = vadd.f32 0.0, %v5585
      %5587 = vmatmul.f32.gmra.mxu0 %v5522
      %v5588 = vpop.f32.mrf.mxu0
      %v5589 = vadd.f32 0.0, %v5588
      %5590 = vmatmul.f32.gmra.mxu0 %v5523
      %v5591 = vpop.f32.mrf.mxu0
      %v5592 = vadd.f32 0.0, %v5591
      %5593 = vmatmul.f32.gmra.mxu0 %v5524
      %v5594 = vpop.f32.mrf.mxu0
      %v5595 = vadd.f32 0.0, %v5594
      %5596 = vmatmul.f32.gmra.mxu0 %v5525
      %v5597 = vpop.f32.mrf.mxu0
      %v5598 = vadd.f32 0.0, %v5597
      %5599 = vmatmul.f32.gmra.mxu0 %v5526
      %v5600 = vpop.f32.mrf.mxu0
      %v5601 = vadd.f32 0.0, %v5600
      %5602 = vmatmul.f32.gmra.mxu0 %v5527
      %v5603 = vpop.f32.mrf.mxu0
      %v5604 = vadd.f32 0.0, %v5603
      %5605 = vmatmul.f32.gmra.mxu0 %v5528
      %v5606 = vpop.f32.mrf.mxu0
      %v5607 = vadd.f32 0.0, %v5606
      %5608 = vmatmul.f32.gmra.mxu0 %v5529
      %v5609 = vpop.f32.mrf.mxu0
      %v5610 = vadd.f32 0.0, %v5609
      %5611 = vdwg.mxu0
      %v5612 = vadd.f32 %v5498, %v5565
      %v5613 = vadd.f32 %v5499, %v5568
      %v5614 = vadd.f32 %v5500, %v5571
      %v5615 = vadd.f32 %v5501, %v5574
      %v5616 = vadd.f32 %v5502, %v5577
      %v5617 = vadd.f32 %v5503, %v5580
      %v5618 = vadd.f32 %v5504, %v5583
      %v5619 = vadd.f32 %v5505, %v5586
      %v5620 = vadd.f32 %v5506, %v5589
      %v5621 = vadd.f32 %v5507, %v5592
      %v5622 = vadd.f32 %v5508, %v5595
      %v5623 = vadd.f32 %v5509, %v5598
      %v5624 = vadd.f32 %v5510, %v5601
      %v5625 = vadd.f32 %v5511, %v5604
      %v5626 = vadd.f32 %v5512, %v5607
      %v5627 = vadd.f32 %v5513, %v5610
      %v5628 = vld [vmem:[%s801 + $0x2] sm:$0xff]
      %v5629 = vld [vmem:[%s801 + $0xa] sm:$0xff]
      %v5630 = vld [vmem:[%s801 + $0x1a] sm:$0xff]
      %v5631 = vld [vmem:[%s801 + $0x22] sm:$0xff]
      %v5632 = vld [vmem:[%s801 + $0x32] sm:$0xff]
      %v5633 = vld [vmem:[%s801 + $0x3a] sm:$0xff]
      %v5634 = vld [vmem:[%s801 + $0x4a] sm:$0xff]
      %v5635 = vld [vmem:[%s801 + $0x52] sm:$0xff]
      %v5636 = vld [vmem:[%s801 + $0x62] sm:$0xff]
      %v5637 = vld [vmem:[%s801 + $0x6a] sm:$0xff]
      %v5638 = vld [vmem:[%s801 + $0x7a] sm:$0xff]
      %v5639 = vld [vmem:[%s801 + $0x82] sm:$0xff]
      %v5640 = vld [vmem:[%s801 + $0x92] sm:$0xff]
      %v5641 = vld [vmem:[%s801 + $0x9a] sm:$0xff]
      %v5642 = vld [vmem:[%s801 + $0xaa] sm:$0xff]
      %v5643 = vld [vmem:[%s801 + $0xb2] sm:$0xff]
      %s5644 = scalar_lea.vmem %s2, 2944
      %v5645 = vld [vmem:[%s5644] sm:$0xff]
      %v5646 = vld [vmem:[%s5644 + $0x8] sm:$0xff]
      %v5647 = vld [vmem:[%s5644 + $0x10] sm:$0xff]
      %v5648 = vld [vmem:[%s5644 + $0x18] sm:$0xff]
      %v5649 = vld [vmem:[%s5644 + $0x20] sm:$0xff]
      %v5650 = vld [vmem:[%s5644 + $0x28] sm:$0xff]
      %v5651 = vld [vmem:[%s5644 + $0x30] sm:$0xff]
      %v5652 = vld [vmem:[%s5644 + $0x38] sm:$0xff]
      %v5653 = vld [vmem:[%s5644 + $0x40] sm:$0xff]
      %v5654 = vld [vmem:[%s5644 + $0x48] sm:$0xff]
      %v5655 = vld [vmem:[%s5644 + $0x50] sm:$0xff]
      %v5656 = vld [vmem:[%s5644 + $0x58] sm:$0xff]
      %v5657 = vld [vmem:[%s5644 + $0x60] sm:$0xff]
      %v5658 = vld [vmem:[%s5644 + $0x68] sm:$0xff]
      %v5659 = vld [vmem:[%s5644 + $0x70] sm:$0xff]
      %v5660 = vld [vmem:[%s5644 + $0x78] sm:$0xff]
      %5661 = vmatpush.msra.mxu0 %v5660
      %5662 = vmatpush.msra.mxu0 %v5659
      %5663 = vmatpush.msra.mxu0 %v5658
      %5664 = vmatpush.msra.mxu0 %v5657
      %5665 = vmatpush.msra.mxu0 %v5656
      %5666 = vmatpush.msra.mxu0 %v5655
      %5667 = vmatpush.msra.mxu0 %v5654
      %5668 = vmatpush.msra.mxu0 %v5653
      %5669 = vmatpush.msra.mxu0 %v5652
      %5670 = vmatpush.msra.mxu0 %v5651
      %5671 = vmatpush.msra.mxu0 %v5650
      %5672 = vmatpush.msra.mxu0 %v5649
      %5673 = vmatpush.msra.mxu0 %v5648
      %5674 = vmatpush.msra.mxu0 %v5647
      %5675 = vmatpush.msra.mxu0 %v5646
      %5676 = vmatpush.msra.mxu0 %v5645
      %5677 = vmatmul.f32.gmra.mxu0 %v5628
      %v5678 = vpop.f32.mrf.mxu0
      %v5679 = vadd.f32 0.0, %v5678
      %5680 = vmatmul.f32.gmra.mxu0 %v5629
      %v5681 = vpop.f32.mrf.mxu0
      %v5682 = vadd.f32 0.0, %v5681
      %5683 = vmatmul.f32.gmra.mxu0 %v5630
      %v5684 = vpop.f32.mrf.mxu0
      %v5685 = vadd.f32 0.0, %v5684
      %5686 = vmatmul.f32.gmra.mxu0 %v5631
      %v5687 = vpop.f32.mrf.mxu0
      %v5688 = vadd.f32 0.0, %v5687
      %5689 = vmatmul.f32.gmra.mxu0 %v5632
      %v5690 = vpop.f32.mrf.mxu0
      %v5691 = vadd.f32 0.0, %v5690
      %5692 = vmatmul.f32.gmra.mxu0 %v5633
      %v5693 = vpop.f32.mrf.mxu0
      %v5694 = vadd.f32 0.0, %v5693
      %5695 = vmatmul.f32.gmra.mxu0 %v5634
      %v5696 = vpop.f32.mrf.mxu0
      %v5697 = vadd.f32 0.0, %v5696
      %5698 = vmatmul.f32.gmra.mxu0 %v5635
      %v5699 = vpop.f32.mrf.mxu0
      %v5700 = vadd.f32 0.0, %v5699
      %5701 = vmatmul.f32.gmra.mxu0 %v5636
      %v5702 = vpop.f32.mrf.mxu0
      %v5703 = vadd.f32 0.0, %v5702
      %5704 = vmatmul.f32.gmra.mxu0 %v5637
      %v5705 = vpop.f32.mrf.mxu0
      %v5706 = vadd.f32 0.0, %v5705
      %5707 = vmatmul.f32.gmra.mxu0 %v5638
      %v5708 = vpop.f32.mrf.mxu0
      %v5709 = vadd.f32 0.0, %v5708
      %5710 = vmatmul.f32.gmra.mxu0 %v5639
      %v5711 = vpop.f32.mrf.mxu0
      %v5712 = vadd.f32 0.0, %v5711
      %5713 = vmatmul.f32.gmra.mxu0 %v5640
      %v5714 = vpop.f32.mrf.mxu0
      %v5715 = vadd.f32 0.0, %v5714
      %5716 = vmatmul.f32.gmra.mxu0 %v5641
      %v5717 = vpop.f32.mrf.mxu0
      %v5718 = vadd.f32 0.0, %v5717
      %5719 = vmatmul.f32.gmra.mxu0 %v5642
      %v5720 = vpop.f32.mrf.mxu0
      %v5721 = vadd.f32 0.0, %v5720
      %5722 = vmatmul.f32.gmra.mxu0 %v5643
      %v5723 = vpop.f32.mrf.mxu0
      %v5724 = vadd.f32 0.0, %v5723
      %5725 = vdwg.mxu0
      %v5726 = vadd.f32 %v5612, %v5679
      %v5727 = vadd.f32 %v5613, %v5682
      %v5728 = vadd.f32 %v5614, %v5685
      %v5729 = vadd.f32 %v5615, %v5688
      %v5730 = vadd.f32 %v5616, %v5691
      %v5731 = vadd.f32 %v5617, %v5694
      %v5732 = vadd.f32 %v5618, %v5697
      %v5733 = vadd.f32 %v5619, %v5700
      %v5734 = vadd.f32 %v5620, %v5703
      %v5735 = vadd.f32 %v5621, %v5706
      %v5736 = vadd.f32 %v5622, %v5709
      %v5737 = vadd.f32 %v5623, %v5712
      %v5738 = vadd.f32 %v5624, %v5715
      %v5739 = vadd.f32 %v5625, %v5718
      %v5740 = vadd.f32 %v5626, %v5721
      %v5741 = vadd.f32 %v5627, %v5724
      %v5742 = vld [vmem:[%s1503] sm:$0xff]
      %v5743 = vld [vmem:[%s1503 + $0x8] sm:$0xff]
      %v5744 = vld [vmem:[%s1503 + $0x18] sm:$0xff]
      %v5745 = vld [vmem:[%s1503 + $0x20] sm:$0xff]
      %v5746 = vld [vmem:[%s1503 + $0x30] sm:$0xff]
      %v5747 = vld [vmem:[%s1503 + $0x38] sm:$0xff]
      %v5748 = vld [vmem:[%s1503 + $0x48] sm:$0xff]
      %v5749 = vld [vmem:[%s1503 + $0x50] sm:$0xff]
      %v5750 = vld [vmem:[%s1503 + $0x60] sm:$0xff]
      %v5751 = vld [vmem:[%s1503 + $0x68] sm:$0xff]
      %v5752 = vld [vmem:[%s1503 + $0x78] sm:$0xff]
      %v5753 = vld [vmem:[%s1503 + $0x80] sm:$0xff]
      %v5754 = vld [vmem:[%s1503 + $0x90] sm:$0xff]
      %v5755 = vld [vmem:[%s1503 + $0x98] sm:$0xff]
      %v5756 = vld [vmem:[%s1503 + $0xa8] sm:$0xff]
      %v5757 = vld [vmem:[%s1503 + $0xb0] sm:$0xff]
      %s5758 = scalar_lea.vmem %s2, 3072
      %v5759 = vld [vmem:[%s5758] sm:$0xff]
      %v5760 = vld [vmem:[%s5758 + $0x8] sm:$0xff]
      %v5761 = vld [vmem:[%s5758 + $0x10] sm:$0xff]
      %v5762 = vld [vmem:[%s5758 + $0x18] sm:$0xff]
      %v5763 = vld [vmem:[%s5758 + $0x20] sm:$0xff]
      %v5764 = vld [vmem:[%s5758 + $0x28] sm:$0xff]
      %v5765 = vld [vmem:[%s5758 + $0x30] sm:$0xff]
      %v5766 = vld [vmem:[%s5758 + $0x38] sm:$0xff]
      %v5767 = vld [vmem:[%s5758 + $0x40] sm:$0xff]
      %v5768 = vld [vmem:[%s5758 + $0x48] sm:$0xff]
      %v5769 = vld [vmem:[%s5758 + $0x50] sm:$0xff]
      %v5770 = vld [vmem:[%s5758 + $0x58] sm:$0xff]
      %v5771 = vld [vmem:[%s5758 + $0x60] sm:$0xff]
      %v5772 = vld [vmem:[%s5758 + $0x68] sm:$0xff]
      %v5773 = vld [vmem:[%s5758 + $0x70] sm:$0xff]
      %v5774 = vld [vmem:[%s5758 + $0x78] sm:$0xff]
      %5775 = vmatpush.msra.mxu0 %v5774
      %5776 = vmatpush.msra.mxu0 %v5773
      %5777 = vmatpush.msra.mxu0 %v5772
      %5778 = vmatpush.msra.mxu0 %v5771
      %5779 = vmatpush.msra.mxu0 %v5770
      %5780 = vmatpush.msra.mxu0 %v5769
      %5781 = vmatpush.msra.mxu0 %v5768
      %5782 = vmatpush.msra.mxu0 %v5767
      %5783 = vmatpush.msra.mxu0 %v5766
      %5784 = vmatpush.msra.mxu0 %v5765
      %5785 = vmatpush.msra.mxu0 %v5764
      %5786 = vmatpush.msra.mxu0 %v5763
      %5787 = vmatpush.msra.mxu0 %v5762
      %5788 = vmatpush.msra.mxu0 %v5761
      %5789 = vmatpush.msra.mxu0 %v5760
      %5790 = vmatpush.msra.mxu0 %v5759
      %5791 = vmatmul.f32.gmra.mxu0 %v5742
      %v5792 = vpop.f32.mrf.mxu0
      %v5793 = vadd.f32 0.0, %v5792
      %5794 = vmatmul.f32.gmra.mxu0 %v5743
      %v5795 = vpop.f32.mrf.mxu0
      %v5796 = vadd.f32 0.0, %v5795
      %5797 = vmatmul.f32.gmra.mxu0 %v5744
      %v5798 = vpop.f32.mrf.mxu0
      %v5799 = vadd.f32 0.0, %v5798
      %5800 = vmatmul.f32.gmra.mxu0 %v5745
      %v5801 = vpop.f32.mrf.mxu0
      %v5802 = vadd.f32 0.0, %v5801
      %5803 = vmatmul.f32.gmra.mxu0 %v5746
      %v5804 = vpop.f32.mrf.mxu0
      %v5805 = vadd.f32 0.0, %v5804
      %5806 = vmatmul.f32.gmra.mxu0 %v5747
      %v5807 = vpop.f32.mrf.mxu0
      %v5808 = vadd.f32 0.0, %v5807
      %5809 = vmatmul.f32.gmra.mxu0 %v5748
      %v5810 = vpop.f32.mrf.mxu0
      %v5811 = vadd.f32 0.0, %v5810
      %5812 = vmatmul.f32.gmra.mxu0 %v5749
      %v5813 = vpop.f32.mrf.mxu0
      %v5814 = vadd.f32 0.0, %v5813
      %5815 = vmatmul.f32.gmra.mxu0 %v5750
      %v5816 = vpop.f32.mrf.mxu0
      %v5817 = vadd.f32 0.0, %v5816
      %5818 = vmatmul.f32.gmra.mxu0 %v5751
      %v5819 = vpop.f32.mrf.mxu0
      %v5820 = vadd.f32 0.0, %v5819
      %5821 = vmatmul.f32.gmra.mxu0 %v5752
      %v5822 = vpop.f32.mrf.mxu0
      %v5823 = vadd.f32 0.0, %v5822
      %5824 = vmatmul.f32.gmra.mxu0 %v5753
      %v5825 = vpop.f32.mrf.mxu0
      %v5826 = vadd.f32 0.0, %v5825
      %5827 = vmatmul.f32.gmra.mxu0 %v5754
      %v5828 = vpop.f32.mrf.mxu0
      %v5829 = vadd.f32 0.0, %v5828
      %5830 = vmatmul.f32.gmra.mxu0 %v5755
      %v5831 = vpop.f32.mrf.mxu0
      %v5832 = vadd.f32 0.0, %v5831
      %5833 = vmatmul.f32.gmra.mxu0 %v5756
      %v5834 = vpop.f32.mrf.mxu0
      %v5835 = vadd.f32 0.0, %v5834
      %5836 = vmatmul.f32.gmra.mxu0 %v5757
      %v5837 = vpop.f32.mrf.mxu0
      %v5838 = vadd.f32 0.0, %v5837
      %5839 = vdwg.mxu0
      %v5840 = vadd.f32 %v5726, %v5793
      %v5841 = vadd.f32 %v5727, %v5796
      %v5842 = vadd.f32 %v5728, %v5799
      %v5843 = vadd.f32 %v5729, %v5802
      %v5844 = vadd.f32 %v5730, %v5805
      %v5845 = vadd.f32 %v5731, %v5808
      %v5846 = vadd.f32 %v5732, %v5811
      %v5847 = vadd.f32 %v5733, %v5814
      %v5848 = vadd.f32 %v5734, %v5817
      %v5849 = vadd.f32 %v5735, %v5820
      %v5850 = vadd.f32 %v5736, %v5823
      %v5851 = vadd.f32 %v5737, %v5826
      %v5852 = vadd.f32 %v5738, %v5829
      %v5853 = vadd.f32 %v5739, %v5832
      %v5854 = vadd.f32 %v5740, %v5835
      %v5855 = vadd.f32 %v5741, %v5838
      %v5856 = vld [vmem:[%s1503 + $0x1] sm:$0xff]
      %v5857 = vld [vmem:[%s1503 + $0x9] sm:$0xff]
      %v5858 = vld [vmem:[%s1503 + $0x19] sm:$0xff]
      %v5859 = vld [vmem:[%s1503 + $0x21] sm:$0xff]
      %v5860 = vld [vmem:[%s1503 + $0x31] sm:$0xff]
      %v5861 = vld [vmem:[%s1503 + $0x39] sm:$0xff]
      %v5862 = vld [vmem:[%s1503 + $0x49] sm:$0xff]
      %v5863 = vld [vmem:[%s1503 + $0x51] sm:$0xff]
      %v5864 = vld [vmem:[%s1503 + $0x61] sm:$0xff]
      %v5865 = vld [vmem:[%s1503 + $0x69] sm:$0xff]
      %v5866 = vld [vmem:[%s1503 + $0x79] sm:$0xff]
      %v5867 = vld [vmem:[%s1503 + $0x81] sm:$0xff]
      %v5868 = vld [vmem:[%s1503 + $0x91] sm:$0xff]
      %v5869 = vld [vmem:[%s1503 + $0x99] sm:$0xff]
      %v5870 = vld [vmem:[%s1503 + $0xa9] sm:$0xff]
      %v5871 = vld [vmem:[%s1503 + $0xb1] sm:$0xff]
      %s5872 = scalar_lea.vmem %s2, 3200
      %v5873 = vld [vmem:[%s5872] sm:$0xff]
      %v5874 = vld [vmem:[%s5872 + $0x8] sm:$0xff]
      %v5875 = vld [vmem:[%s5872 + $0x10] sm:$0xff]
      %v5876 = vld [vmem:[%s5872 + $0x18] sm:$0xff]
      %v5877 = vld [vmem:[%s5872 + $0x20] sm:$0xff]
      %v5878 = vld [vmem:[%s5872 + $0x28] sm:$0xff]
      %v5879 = vld [vmem:[%s5872 + $0x30] sm:$0xff]
      %v5880 = vld [vmem:[%s5872 + $0x38] sm:$0xff]
      %v5881 = vld [vmem:[%s5872 + $0x40] sm:$0xff]
      %v5882 = vld [vmem:[%s5872 + $0x48] sm:$0xff]
      %v5883 = vld [vmem:[%s5872 + $0x50] sm:$0xff]
      %v5884 = vld [vmem:[%s5872 + $0x58] sm:$0xff]
      %v5885 = vld [vmem:[%s5872 + $0x60] sm:$0xff]
      %v5886 = vld [vmem:[%s5872 + $0x68] sm:$0xff]
      %v5887 = vld [vmem:[%s5872 + $0x70] sm:$0xff]
      %v5888 = vld [vmem:[%s5872 + $0x78] sm:$0xff]
      %5889 = vmatpush.msra.mxu0 %v5888
      %5890 = vmatpush.msra.mxu0 %v5887
      %5891 = vmatpush.msra.mxu0 %v5886
      %5892 = vmatpush.msra.mxu0 %v5885
      %5893 = vmatpush.msra.mxu0 %v5884
      %5894 = vmatpush.msra.mxu0 %v5883
      %5895 = vmatpush.msra.mxu0 %v5882
      %5896 = vmatpush.msra.mxu0 %v5881
      %5897 = vmatpush.msra.mxu0 %v5880
      %5898 = vmatpush.msra.mxu0 %v5879
      %5899 = vmatpush.msra.mxu0 %v5878
      %5900 = vmatpush.msra.mxu0 %v5877
      %5901 = vmatpush.msra.mxu0 %v5876
      %5902 = vmatpush.msra.mxu0 %v5875
      %5903 = vmatpush.msra.mxu0 %v5874
      %5904 = vmatpush.msra.mxu0 %v5873
      %5905 = vmatmul.f32.gmra.mxu0 %v5856
      %v5906 = vpop.f32.mrf.mxu0
      %v5907 = vadd.f32 0.0, %v5906
      %5908 = vmatmul.f32.gmra.mxu0 %v5857
      %v5909 = vpop.f32.mrf.mxu0
      %v5910 = vadd.f32 0.0, %v5909
      %5911 = vmatmul.f32.gmra.mxu0 %v5858
      %v5912 = vpop.f32.mrf.mxu0
      %v5913 = vadd.f32 0.0, %v5912
      %5914 = vmatmul.f32.gmra.mxu0 %v5859
      %v5915 = vpop.f32.mrf.mxu0
      %v5916 = vadd.f32 0.0, %v5915
      %5917 = vmatmul.f32.gmra.mxu0 %v5860
      %v5918 = vpop.f32.mrf.mxu0
      %v5919 = vadd.f32 0.0, %v5918
      %5920 = vmatmul.f32.gmra.mxu0 %v5861
      %v5921 = vpop.f32.mrf.mxu0
      %v5922 = vadd.f32 0.0, %v5921
      %5923 = vmatmul.f32.gmra.mxu0 %v5862
      %v5924 = vpop.f32.mrf.mxu0
      %v5925 = vadd.f32 0.0, %v5924
      %5926 = vmatmul.f32.gmra.mxu0 %v5863
      %v5927 = vpop.f32.mrf.mxu0
      %v5928 = vadd.f32 0.0, %v5927
      %5929 = vmatmul.f32.gmra.mxu0 %v5864
      %v5930 = vpop.f32.mrf.mxu0
      %v5931 = vadd.f32 0.0, %v5930
      %5932 = vmatmul.f32.gmra.mxu0 %v5865
      %v5933 = vpop.f32.mrf.mxu0
      %v5934 = vadd.f32 0.0, %v5933
      %5935 = vmatmul.f32.gmra.mxu0 %v5866
      %v5936 = vpop.f32.mrf.mxu0
      %v5937 = vadd.f32 0.0, %v5936
      %5938 = vmatmul.f32.gmra.mxu0 %v5867
      %v5939 = vpop.f32.mrf.mxu0
      %v5940 = vadd.f32 0.0, %v5939
      %5941 = vmatmul.f32.gmra.mxu0 %v5868
      %v5942 = vpop.f32.mrf.mxu0
      %v5943 = vadd.f32 0.0, %v5942
      %5944 = vmatmul.f32.gmra.mxu0 %v5869
      %v5945 = vpop.f32.mrf.mxu0
      %v5946 = vadd.f32 0.0, %v5945
      %5947 = vmatmul.f32.gmra.mxu0 %v5870
      %v5948 = vpop.f32.mrf.mxu0
      %v5949 = vadd.f32 0.0, %v5948
      %5950 = vmatmul.f32.gmra.mxu0 %v5871
      %v5951 = vpop.f32.mrf.mxu0
      %v5952 = vadd.f32 0.0, %v5951
      %5953 = vdwg.mxu0
      %v5954 = vadd.f32 %v5840, %v5907
      %v5955 = vadd.f32 %v5841, %v5910
      %v5956 = vadd.f32 %v5842, %v5913
      %v5957 = vadd.f32 %v5843, %v5916
      %v5958 = vadd.f32 %v5844, %v5919
      %v5959 = vadd.f32 %v5845, %v5922
      %v5960 = vadd.f32 %v5846, %v5925
      %v5961 = vadd.f32 %v5847, %v5928
      %v5962 = vadd.f32 %v5848, %v5931
      %v5963 = vadd.f32 %v5849, %v5934
      %v5964 = vadd.f32 %v5850, %v5937
      %v5965 = vadd.f32 %v5851, %v5940
      %v5966 = vadd.f32 %v5852, %v5943
      %v5967 = vadd.f32 %v5853, %v5946
      %v5968 = vadd.f32 %v5854, %v5949
      %v5969 = vadd.f32 %v5855, %v5952
      %v5970 = vld [vmem:[%s1503 + $0x2] sm:$0xff]
      %v5971 = vld [vmem:[%s1503 + $0xa] sm:$0xff]
      %v5972 = vld [vmem:[%s1503 + $0x1a] sm:$0xff]
      %v5973 = vld [vmem:[%s1503 + $0x22] sm:$0xff]
      %v5974 = vld [vmem:[%s1503 + $0x32] sm:$0xff]
      %v5975 = vld [vmem:[%s1503 + $0x3a] sm:$0xff]
      %v5976 = vld [vmem:[%s1503 + $0x4a] sm:$0xff]
      %v5977 = vld [vmem:[%s1503 + $0x52] sm:$0xff]
      %v5978 = vld [vmem:[%s1503 + $0x62] sm:$0xff]
      %v5979 = vld [vmem:[%s1503 + $0x6a] sm:$0xff]
      %v5980 = vld [vmem:[%s1503 + $0x7a] sm:$0xff]
      %v5981 = vld [vmem:[%s1503 + $0x82] sm:$0xff]
      %v5982 = vld [vmem:[%s1503 + $0x92] sm:$0xff]
      %v5983 = vld [vmem:[%s1503 + $0x9a] sm:$0xff]
      %v5984 = vld [vmem:[%s1503 + $0xaa] sm:$0xff]
      %v5985 = vld [vmem:[%s1503 + $0xb2] sm:$0xff]
      %s5986 = scalar_lea.vmem %s2, 3328
      %v5987 = vld [vmem:[%s5986] sm:$0xff]
      %v5988 = vld [vmem:[%s5986 + $0x8] sm:$0xff]
      %v5989 = vld [vmem:[%s5986 + $0x10] sm:$0xff]
      %v5990 = vld [vmem:[%s5986 + $0x18] sm:$0xff]
      %v5991 = vld [vmem:[%s5986 + $0x20] sm:$0xff]
      %v5992 = vld [vmem:[%s5986 + $0x28] sm:$0xff]
      %v5993 = vld [vmem:[%s5986 + $0x30] sm:$0xff]
      %v5994 = vld [vmem:[%s5986 + $0x38] sm:$0xff]
      %v5995 = vld [vmem:[%s5986 + $0x40] sm:$0xff]
      %v5996 = vld [vmem:[%s5986 + $0x48] sm:$0xff]
      %v5997 = vld [vmem:[%s5986 + $0x50] sm:$0xff]
      %v5998 = vld [vmem:[%s5986 + $0x58] sm:$0xff]
      %v5999 = vld [vmem:[%s5986 + $0x60] sm:$0xff]
      %v6000 = vld [vmem:[%s5986 + $0x68] sm:$0xff]
      %v6001 = vld [vmem:[%s5986 + $0x70] sm:$0xff]
      %v6002 = vld [vmem:[%s5986 + $0x78] sm:$0xff]
      %6003 = vmatpush.msra.mxu0 %v6002
      %6004 = vmatpush.msra.mxu0 %v6001
      %6005 = vmatpush.msra.mxu0 %v6000
      %6006 = vmatpush.msra.mxu0 %v5999
      %6007 = vmatpush.msra.mxu0 %v5998
      %6008 = vmatpush.msra.mxu0 %v5997
      %6009 = vmatpush.msra.mxu0 %v5996
      %6010 = vmatpush.msra.mxu0 %v5995
      %6011 = vmatpush.msra.mxu0 %v5994
      %6012 = vmatpush.msra.mxu0 %v5993
      %6013 = vmatpush.msra.mxu0 %v5992
      %6014 = vmatpush.msra.mxu0 %v5991
      %6015 = vmatpush.msra.mxu0 %v5990
      %6016 = vmatpush.msra.mxu0 %v5989
      %6017 = vmatpush.msra.mxu0 %v5988
      %6018 = vmatpush.msra.mxu0 %v5987
      %6019 = vmatmul.f32.gmra.mxu0 %v5970
      %v6020 = vpop.f32.mrf.mxu0
      %v6021 = vadd.f32 0.0, %v6020
      %6022 = vmatmul.f32.gmra.mxu0 %v5971
      %v6023 = vpop.f32.mrf.mxu0
      %v6024 = vadd.f32 0.0, %v6023
      %6025 = vmatmul.f32.gmra.mxu0 %v5972
      %v6026 = vpop.f32.mrf.mxu0
      %v6027 = vadd.f32 0.0, %v6026
      %6028 = vmatmul.f32.gmra.mxu0 %v5973
      %v6029 = vpop.f32.mrf.mxu0
      %v6030 = vadd.f32 0.0, %v6029
      %6031 = vmatmul.f32.gmra.mxu0 %v5974
      %v6032 = vpop.f32.mrf.mxu0
      %v6033 = vadd.f32 0.0, %v6032
      %6034 = vmatmul.f32.gmra.mxu0 %v5975
      %v6035 = vpop.f32.mrf.mxu0
      %v6036 = vadd.f32 0.0, %v6035
      %6037 = vmatmul.f32.gmra.mxu0 %v5976
      %v6038 = vpop.f32.mrf.mxu0
      %v6039 = vadd.f32 0.0, %v6038
      %6040 = vmatmul.f32.gmra.mxu0 %v5977
      %v6041 = vpop.f32.mrf.mxu0
      %v6042 = vadd.f32 0.0, %v6041
      %6043 = vmatmul.f32.gmra.mxu0 %v5978
      %v6044 = vpop.f32.mrf.mxu0
      %v6045 = vadd.f32 0.0, %v6044
      %6046 = vmatmul.f32.gmra.mxu0 %v5979
      %v6047 = vpop.f32.mrf.mxu0
      %v6048 = vadd.f32 0.0, %v6047
      %6049 = vmatmul.f32.gmra.mxu0 %v5980
      %v6050 = vpop.f32.mrf.mxu0
      %v6051 = vadd.f32 0.0, %v6050
      %6052 = vmatmul.f32.gmra.mxu0 %v5981
      %v6053 = vpop.f32.mrf.mxu0
      %v6054 = vadd.f32 0.0, %v6053
      %6055 = vmatmul.f32.gmra.mxu0 %v5982
      %v6056 = vpop.f32.mrf.mxu0
      %v6057 = vadd.f32 0.0, %v6056
      %6058 = vmatmul.f32.gmra.mxu0 %v5983
      %v6059 = vpop.f32.mrf.mxu0
      %v6060 = vadd.f32 0.0, %v6059
      %6061 = vmatmul.f32.gmra.mxu0 %v5984
      %v6062 = vpop.f32.mrf.mxu0
      %v6063 = vadd.f32 0.0, %v6062
      %6064 = vmatmul.f32.gmra.mxu0 %v5985
      %v6065 = vpop.f32.mrf.mxu0
      %v6066 = vadd.f32 0.0, %v6065
      %6067 = vdwg.mxu0
      %v6068 = vadd.f32 %v5954, %v6021
      %v6069 = vadd.f32 %v5955, %v6024
      %v6070 = vadd.f32 %v5956, %v6027
      %v6071 = vadd.f32 %v5957, %v6030
      %v6072 = vadd.f32 %v5958, %v6033
      %v6073 = vadd.f32 %v5959, %v6036
      %v6074 = vadd.f32 %v5960, %v6039
      %v6075 = vadd.f32 %v5961, %v6042
      %v6076 = vadd.f32 %v5962, %v6045
      %v6077 = vadd.f32 %v5963, %v6048
      %v6078 = vadd.f32 %v5964, %v6051
      %v6079 = vadd.f32 %v5965, %v6054
      %v6080 = vadd.f32 %v5966, %v6057
      %v6081 = vadd.f32 %v5967, %v6060
      %v6082 = vadd.f32 %v5968, %v6063
      %v6083 = vadd.f32 %v5969, %v6066
      %s6084 = scalar_lea.vmem %s3, 2
      %v6085 = vld [vmem:[%s6084] sm:$0x1]
      %v6087 = vperm.slane %v6085, 0
      %v6089 = vadd.f32 %v6068, %v6087
      %v6090 = vadd.f32 %v6069, %v6087
      %v6091 = vadd.f32 %v6070, %v6087
      %v6092 = vadd.f32 %v6071, %v6087
      %v6093 = vadd.f32 %v6072, %v6087
      %v6094 = vadd.f32 %v6073, %v6087
      %v6095 = vadd.f32 %v6074, %v6087
      %v6096 = vadd.f32 %v6075, %v6087
      %v6097 = vadd.f32 %v6076, %v6087
      %v6098 = vadd.f32 %v6077, %v6087
      %v6099 = vadd.f32 %v6078, %v6087
      %v6100 = vadd.f32 %v6079, %v6087
      %v6101 = vadd.f32 %v6080, %v6087
      %v6102 = vadd.f32 %v6081, %v6087
      %v6103 = vadd.f32 %v6082, %v6087
      %v6104 = vadd.f32 %v6083, %v6087
      %6105 = vst [vmem:[#allocation4] sm:$0xff] %v6089
      %6106 = vst [vmem:[#allocation4 + $0x8] sm:$0xff] %v6090
      %6107 = vst [vmem:[#allocation4 + $0x10] sm:$0xff] %v6091
      %6108 = vst [vmem:[#allocation4 + $0x18] sm:$0xff] %v6092
      %6109 = vst [vmem:[#allocation4 + $0x20] sm:$0xff] %v6093
      %6110 = vst [vmem:[#allocation4 + $0x28] sm:$0xff] %v6094
      %6111 = vst [vmem:[#allocation4 + $0x30] sm:$0xff] %v6095
      %6112 = vst [vmem:[#allocation4 + $0x38] sm:$0xff] %v6096
      %6113 = vst [vmem:[#allocation4 + $0x40] sm:$0xff] %v6097
      %6114 = vst [vmem:[#allocation4 + $0x48] sm:$0xff] %v6098
      %6115 = vst [vmem:[#allocation4 + $0x50] sm:$0xff] %v6099
      %6116 = vst [vmem:[#allocation4 + $0x58] sm:$0xff] %v6100
      %6117 = vst [vmem:[#allocation4 + $0x60] sm:$0xff] %v6101
      %6118 = vst [vmem:[#allocation4 + $0x68] sm:$0xff] %v6102
      %6119 = vst [vmem:[#allocation4 + $0x70] sm:$0xff] %v6103
      %6120 = vst [vmem:[#allocation4 + $0x78] sm:$0xff] %v6104
      %v6121 = vld [vmem:[%s1915] sm:$0xff]
      %v6122 = vld [vmem:[%s1915 + $0x8] sm:$0xff]
      %v6123 = vld [vmem:[%s1915 + $0x18] sm:$0xff]
      %v6124 = vld [vmem:[%s1915 + $0x20] sm:$0xff]
      %v6125 = vld [vmem:[%s1915 + $0x30] sm:$0xff]
      %v6126 = vld [vmem:[%s1915 + $0x38] sm:$0xff]
      %v6127 = vld [vmem:[%s1915 + $0x48] sm:$0xff]
      %v6128 = vld [vmem:[%s1915 + $0x50] sm:$0xff]
      %v6129 = vld [vmem:[%s1915 + $0x60] sm:$0xff]
      %v6130 = vld [vmem:[%s1915 + $0x68] sm:$0xff]
      %v6131 = vld [vmem:[%s1915 + $0x78] sm:$0xff]
      %v6132 = vld [vmem:[%s1915 + $0x80] sm:$0xff]
      %v6133 = vld [vmem:[%s1915 + $0x90] sm:$0xff]
      %v6134 = vld [vmem:[%s1915 + $0x98] sm:$0xff]
      %v6135 = vld [vmem:[%s1915 + $0xa8] sm:$0xff]
      %v6136 = vld [vmem:[%s1915 + $0xb0] sm:$0xff]
      %v6137 = vld [vmem:[%s5106] sm:$0xff]
      %v6138 = vld [vmem:[%s5106 + $0x8] sm:$0xff]
      %v6139 = vld [vmem:[%s5106 + $0x10] sm:$0xff]
      %v6140 = vld [vmem:[%s5106 + $0x18] sm:$0xff]
      %v6141 = vld [vmem:[%s5106 + $0x20] sm:$0xff]
      %v6142 = vld [vmem:[%s5106 + $0x28] sm:$0xff]
      %v6143 = vld [vmem:[%s5106 + $0x30] sm:$0xff]
      %v6144 = vld [vmem:[%s5106 + $0x38] sm:$0xff]
      %v6145 = vld [vmem:[%s5106 + $0x40] sm:$0xff]
      %v6146 = vld [vmem:[%s5106 + $0x48] sm:$0xff]
      %v6147 = vld [vmem:[%s5106 + $0x50] sm:$0xff]
      %v6148 = vld [vmem:[%s5106 + $0x58] sm:$0xff]
      %v6149 = vld [vmem:[%s5106 + $0x60] sm:$0xff]
      %v6150 = vld [vmem:[%s5106 + $0x68] sm:$0xff]
      %v6151 = vld [vmem:[%s5106 + $0x70] sm:$0xff]
      %v6152 = vld [vmem:[%s5106 + $0x78] sm:$0xff]
      %v6153 = vld [vmem:[%s1915 + $0x1] sm:$0xff]
      %v6154 = vld [vmem:[%s1915 + $0x9] sm:$0xff]
      %v6155 = vld [vmem:[%s1915 + $0x19] sm:$0xff]
      %v6156 = vld [vmem:[%s1915 + $0x21] sm:$0xff]
      %v6157 = vld [vmem:[%s1915 + $0x31] sm:$0xff]
      %v6158 = vld [vmem:[%s1915 + $0x39] sm:$0xff]
      %v6159 = vld [vmem:[%s1915 + $0x49] sm:$0xff]
      %v6160 = vld [vmem:[%s1915 + $0x51] sm:$0xff]
      %v6161 = vld [vmem:[%s1915 + $0x61] sm:$0xff]
      %v6162 = vld [vmem:[%s1915 + $0x69] sm:$0xff]
      %v6163 = vld [vmem:[%s1915 + $0x79] sm:$0xff]
      %v6164 = vld [vmem:[%s1915 + $0x81] sm:$0xff]
      %v6165 = vld [vmem:[%s1915 + $0x91] sm:$0xff]
      %v6166 = vld [vmem:[%s1915 + $0x99] sm:$0xff]
      %v6167 = vld [vmem:[%s1915 + $0xa9] sm:$0xff]
      %v6168 = vld [vmem:[%s1915 + $0xb1] sm:$0xff]
      %v6169 = vld [vmem:[%s5139] sm:$0xff]
      %v6170 = vld [vmem:[%s5139 + $0x8] sm:$0xff]
      %v6171 = vld [vmem:[%s5139 + $0x10] sm:$0xff]
      %v6172 = vld [vmem:[%s5139 + $0x18] sm:$0xff]
      %v6173 = vld [vmem:[%s5139 + $0x20] sm:$0xff]
      %v6174 = vld [vmem:[%s5139 + $0x28] sm:$0xff]
      %v6175 = vld [vmem:[%s5139 + $0x30] sm:$0xff]
      %v6176 = vld [vmem:[%s5139 + $0x38] sm:$0xff]
      %v6177 = vld [vmem:[%s5139 + $0x40] sm:$0xff]
      %v6178 = vld [vmem:[%s5139 + $0x48] sm:$0xff]
      %v6179 = vld [vmem:[%s5139 + $0x50] sm:$0xff]
      %v6180 = vld [vmem:[%s5139 + $0x58] sm:$0xff]
      %v6181 = vld [vmem:[%s5139 + $0x60] sm:$0xff]
      %v6182 = vld [vmem:[%s5139 + $0x68] sm:$0xff]
      %v6183 = vld [vmem:[%s5139 + $0x70] sm:$0xff]
      %v6184 = vld [vmem:[%s5139 + $0x78] sm:$0xff]
      %6185 = vmatpush.msra.mxu0 %v6184
      %6186 = vmatpush.msra.mxu0 %v6183
      %6187 = vmatpush.msra.mxu0 %v6182
      %6188 = vmatpush.msra.mxu0 %v6181
      %6189 = vmatpush.msra.mxu0 %v6180
      %6190 = vmatpush.msra.mxu0 %v6179
      %6191 = vmatpush.msra.mxu0 %v6178
      %6192 = vmatpush.msra.mxu0 %v6177
      %6193 = vmatpush.msra.mxu0 %v6176
      %6194 = vmatpush.msra.mxu0 %v6175
      %6195 = vmatpush.msra.mxu0 %v6174
      %6196 = vmatpush.msra.mxu0 %v6173
      %6197 = vmatpush.msra.mxu0 %v6172
      %6198 = vmatpush.msra.mxu0 %v6171
      %6199 = vmatpush.msra.mxu0 %v6170
      %6200 = vmatpush.msra.mxu0 %v6169
      %6201 = vmatmul.f32.gmra.mxu0 %v6153
      %v6202 = vpop.f32.mrf.mxu0
      %v6203 = vadd.f32 0.0, %v6202
      %6204 = vmatmul.f32.gmra.mxu0 %v6154
      %v6205 = vpop.f32.mrf.mxu0
      %v6206 = vadd.f32 0.0, %v6205
      %6207 = vmatmul.f32.gmra.mxu0 %v6155
      %v6208 = vpop.f32.mrf.mxu0
      %v6209 = vadd.f32 0.0, %v6208
      %6210 = vmatmul.f32.gmra.mxu0 %v6156
      %v6211 = vpop.f32.mrf.mxu0
      %v6212 = vadd.f32 0.0, %v6211
      %6213 = vmatmul.f32.gmra.mxu0 %v6157
      %v6214 = vpop.f32.mrf.mxu0
      %v6215 = vadd.f32 0.0, %v6214
      %6216 = vmatmul.f32.gmra.mxu0 %v6158
      %v6217 = vpop.f32.mrf.mxu0
      %v6218 = vadd.f32 0.0, %v6217
      %6219 = vmatmul.f32.gmra.mxu0 %v6159
      %v6220 = vpop.f32.mrf.mxu0
      %v6221 = vadd.f32 0.0, %v6220
      %6222 = vmatmul.f32.gmra.mxu0 %v6160
      %v6223 = vpop.f32.mrf.mxu0
      %v6224 = vadd.f32 0.0, %v6223
      %6225 = vmatmul.f32.gmra.mxu0 %v6161
      %v6226 = vpop.f32.mrf.mxu0
      %v6227 = vadd.f32 0.0, %v6226
      %6228 = vmatmul.f32.gmra.mxu0 %v6162
      %v6229 = vpop.f32.mrf.mxu0
      %v6230 = vadd.f32 0.0, %v6229
      %6231 = vmatmul.f32.gmra.mxu0 %v6163
      %v6232 = vpop.f32.mrf.mxu0
      %v6233 = vadd.f32 0.0, %v6232
      %6234 = vmatmul.f32.gmra.mxu0 %v6164
      %v6235 = vpop.f32.mrf.mxu0
      %v6236 = vadd.f32 0.0, %v6235
      %6237 = vmatmul.f32.gmra.mxu0 %v6165
      %v6238 = vpop.f32.mrf.mxu0
      %v6239 = vadd.f32 0.0, %v6238
      %6240 = vmatmul.f32.gmra.mxu0 %v6166
      %v6241 = vpop.f32.mrf.mxu0
      %v6242 = vadd.f32 0.0, %v6241
      %6243 = vmatmul.f32.gmra.mxu0 %v6167
      %v6244 = vpop.f32.mrf.mxu0
      %v6245 = vadd.f32 0.0, %v6244
      %6246 = vmatmul.f32.gmra.mxu0 %v6168
      %v6247 = vpop.f32.mrf.mxu0
      %v6248 = vadd.f32 0.0, %v6247
      %6249 = vdwg.mxu0
      %6250 = vmatpush.msra.mxu0 %v6152
      %6251 = vmatpush.msra.mxu0 %v6151
      %6252 = vmatpush.msra.mxu0 %v6150
      %6253 = vmatpush.msra.mxu0 %v6149
      %6254 = vmatpush.msra.mxu0 %v6148
      %6255 = vmatpush.msra.mxu0 %v6147
      %6256 = vmatpush.msra.mxu0 %v6146
      %6257 = vmatpush.msra.mxu0 %v6145
      %6258 = vmatpush.msra.mxu0 %v6144
      %6259 = vmatpush.msra.mxu0 %v6143
      %6260 = vmatpush.msra.mxu0 %v6142
      %6261 = vmatpush.msra.mxu0 %v6141
      %6262 = vmatpush.msra.mxu0 %v6140
      %6263 = vmatpush.msra.mxu0 %v6139
      %6264 = vmatpush.msra.mxu0 %v6138
      %6265 = vmatpush.msra.mxu0 %v6137
      %6266 = vmatmul.f32.gmra.mxu0 %v6121
      %v6267 = vpop.f32.mrf.mxu0
      %v6268 = vadd.f32 %v6203, %v6267
      %6269 = vmatmul.f32.gmra.mxu0 %v6122
      %v6270 = vpop.f32.mrf.mxu0
      %v6271 = vadd.f32 %v6206, %v6270
      %6272 = vmatmul.f32.gmra.mxu0 %v6123
      %v6273 = vpop.f32.mrf.mxu0
      %v6274 = vadd.f32 %v6209, %v6273
      %6275 = vmatmul.f32.gmra.mxu0 %v6124
      %v6276 = vpop.f32.mrf.mxu0
      %v6277 = vadd.f32 %v6212, %v6276
      %6278 = vmatmul.f32.gmra.mxu0 %v6125
      %v6279 = vpop.f32.mrf.mxu0
      %v6280 = vadd.f32 %v6215, %v6279
      %6281 = vmatmul.f32.gmra.mxu0 %v6126
      %v6282 = vpop.f32.mrf.mxu0
      %v6283 = vadd.f32 %v6218, %v6282
      %6284 = vmatmul.f32.gmra.mxu0 %v6127
      %v6285 = vpop.f32.mrf.mxu0
      %v6286 = vadd.f32 %v6221, %v6285
      %6287 = vmatmul.f32.gmra.mxu0 %v6128
      %v6288 = vpop.f32.mrf.mxu0
      %v6289 = vadd.f32 %v6224, %v6288
      %6290 = vmatmul.f32.gmra.mxu0 %v6129
      %v6291 = vpop.f32.mrf.mxu0
      %v6292 = vadd.f32 %v6227, %v6291
      %6293 = vmatmul.f32.gmra.mxu0 %v6130
      %v6294 = vpop.f32.mrf.mxu0
      %v6295 = vadd.f32 %v6230, %v6294
      %6296 = vmatmul.f32.gmra.mxu0 %v6131
      %v6297 = vpop.f32.mrf.mxu0
      %v6298 = vadd.f32 %v6233, %v6297
      %6299 = vmatmul.f32.gmra.mxu0 %v6132
      %v6300 = vpop.f32.mrf.mxu0
      %v6301 = vadd.f32 %v6236, %v6300
      %6302 = vmatmul.f32.gmra.mxu0 %v6133
      %v6303 = vpop.f32.mrf.mxu0
      %v6304 = vadd.f32 %v6239, %v6303
      %6305 = vmatmul.f32.gmra.mxu0 %v6134
      %v6306 = vpop.f32.mrf.mxu0
      %v6307 = vadd.f32 %v6242, %v6306
      %6308 = vmatmul.f32.gmra.mxu0 %v6135
      %v6309 = vpop.f32.mrf.mxu0
      %v6310 = vadd.f32 %v6245, %v6309
      %6311 = vmatmul.f32.gmra.mxu0 %v6136
      %v6312 = vpop.f32.mrf.mxu0
      %v6313 = vadd.f32 %v6248, %v6312
      %6314 = vdwg.mxu0
      %v6315 = vld [vmem:[%s1915 + $0x2] sm:$0xff]
      %v6316 = vld [vmem:[%s1915 + $0xa] sm:$0xff]
      %v6317 = vld [vmem:[%s1915 + $0x1a] sm:$0xff]
      %v6318 = vld [vmem:[%s1915 + $0x22] sm:$0xff]
      %v6319 = vld [vmem:[%s1915 + $0x32] sm:$0xff]
      %v6320 = vld [vmem:[%s1915 + $0x3a] sm:$0xff]
      %v6321 = vld [vmem:[%s1915 + $0x4a] sm:$0xff]
      %v6322 = vld [vmem:[%s1915 + $0x52] sm:$0xff]
      %v6323 = vld [vmem:[%s1915 + $0x62] sm:$0xff]
      %v6324 = vld [vmem:[%s1915 + $0x6a] sm:$0xff]
      %v6325 = vld [vmem:[%s1915 + $0x7a] sm:$0xff]
      %v6326 = vld [vmem:[%s1915 + $0x82] sm:$0xff]
      %v6327 = vld [vmem:[%s1915 + $0x92] sm:$0xff]
      %v6328 = vld [vmem:[%s1915 + $0x9a] sm:$0xff]
      %v6329 = vld [vmem:[%s1915 + $0xaa] sm:$0xff]
      %v6330 = vld [vmem:[%s1915 + $0xb2] sm:$0xff]
      %v6331 = vld [vmem:[%s5302] sm:$0xff]
      %v6332 = vld [vmem:[%s5302 + $0x8] sm:$0xff]
      %v6333 = vld [vmem:[%s5302 + $0x10] sm:$0xff]
      %v6334 = vld [vmem:[%s5302 + $0x18] sm:$0xff]
      %v6335 = vld [vmem:[%s5302 + $0x20] sm:$0xff]
      %v6336 = vld [vmem:[%s5302 + $0x28] sm:$0xff]
      %v6337 = vld [vmem:[%s5302 + $0x30] sm:$0xff]
      %v6338 = vld [vmem:[%s5302 + $0x38] sm:$0xff]
      %v6339 = vld [vmem:[%s5302 + $0x40] sm:$0xff]
      %v6340 = vld [vmem:[%s5302 + $0x48] sm:$0xff]
      %v6341 = vld [vmem:[%s5302 + $0x50] sm:$0xff]
      %v6342 = vld [vmem:[%s5302 + $0x58] sm:$0xff]
      %v6343 = vld [vmem:[%s5302 + $0x60] sm:$0xff]
      %v6344 = vld [vmem:[%s5302 + $0x68] sm:$0xff]
      %v6345 = vld [vmem:[%s5302 + $0x70] sm:$0xff]
      %v6346 = vld [vmem:[%s5302 + $0x78] sm:$0xff]
      %6347 = vmatpush.msra.mxu0 %v6346
      %6348 = vmatpush.msra.mxu0 %v6345
      %6349 = vmatpush.msra.mxu0 %v6344
      %6350 = vmatpush.msra.mxu0 %v6343
      %6351 = vmatpush.msra.mxu0 %v6342
      %6352 = vmatpush.msra.mxu0 %v6341
      %6353 = vmatpush.msra.mxu0 %v6340
      %6354 = vmatpush.msra.mxu0 %v6339
      %6355 = vmatpush.msra.mxu0 %v6338
      %6356 = vmatpush.msra.mxu0 %v6337
      %6357 = vmatpush.msra.mxu0 %v6336
      %6358 = vmatpush.msra.mxu0 %v6335
      %6359 = vmatpush.msra.mxu0 %v6334
      %6360 = vmatpush.msra.mxu0 %v6333
      %6361 = vmatpush.msra.mxu0 %v6332
      %6362 = vmatpush.msra.mxu0 %v6331
      %6363 = vmatmul.f32.gmra.mxu0 %v6315
      %v6364 = vpop.f32.mrf.mxu0
      %v6365 = vadd.f32 0.0, %v6364
      %6366 = vmatmul.f32.gmra.mxu0 %v6316
      %v6367 = vpop.f32.mrf.mxu0
      %v6368 = vadd.f32 0.0, %v6367
      %6369 = vmatmul.f32.gmra.mxu0 %v6317
      %v6370 = vpop.f32.mrf.mxu0
      %v6371 = vadd.f32 0.0, %v6370
      %6372 = vmatmul.f32.gmra.mxu0 %v6318
      %v6373 = vpop.f32.mrf.mxu0
      %v6374 = vadd.f32 0.0, %v6373
      %6375 = vmatmul.f32.gmra.mxu0 %v6319
      %v6376 = vpop.f32.mrf.mxu0
      %v6377 = vadd.f32 0.0, %v6376
      %6378 = vmatmul.f32.gmra.mxu0 %v6320
      %v6379 = vpop.f32.mrf.mxu0
      %v6380 = vadd.f32 0.0, %v6379
      %6381 = vmatmul.f32.gmra.mxu0 %v6321
      %v6382 = vpop.f32.mrf.mxu0
      %v6383 = vadd.f32 0.0, %v6382
      %6384 = vmatmul.f32.gmra.mxu0 %v6322
      %v6385 = vpop.f32.mrf.mxu0
      %v6386 = vadd.f32 0.0, %v6385
      %6387 = vmatmul.f32.gmra.mxu0 %v6323
      %v6388 = vpop.f32.mrf.mxu0
      %v6389 = vadd.f32 0.0, %v6388
      %6390 = vmatmul.f32.gmra.mxu0 %v6324
      %v6391 = vpop.f32.mrf.mxu0
      %v6392 = vadd.f32 0.0, %v6391
      %6393 = vmatmul.f32.gmra.mxu0 %v6325
      %v6394 = vpop.f32.mrf.mxu0
      %v6395 = vadd.f32 0.0, %v6394
      %6396 = vmatmul.f32.gmra.mxu0 %v6326
      %v6397 = vpop.f32.mrf.mxu0
      %v6398 = vadd.f32 0.0, %v6397
      %6399 = vmatmul.f32.gmra.mxu0 %v6327
      %v6400 = vpop.f32.mrf.mxu0
      %v6401 = vadd.f32 0.0, %v6400
      %6402 = vmatmul.f32.gmra.mxu0 %v6328
      %v6403 = vpop.f32.mrf.mxu0
      %v6404 = vadd.f32 0.0, %v6403
      %6405 = vmatmul.f32.gmra.mxu0 %v6329
      %v6406 = vpop.f32.mrf.mxu0
      %v6407 = vadd.f32 0.0, %v6406
      %6408 = vmatmul.f32.gmra.mxu0 %v6330
      %v6409 = vpop.f32.mrf.mxu0
      %v6410 = vadd.f32 0.0, %v6409
      %6411 = vdwg.mxu0
      %v6412 = vadd.f32 %v6268, %v6365
      %v6413 = vadd.f32 %v6271, %v6368
      %v6414 = vadd.f32 %v6274, %v6371
      %v6415 = vadd.f32 %v6277, %v6374
      %v6416 = vadd.f32 %v6280, %v6377
      %v6417 = vadd.f32 %v6283, %v6380
      %v6418 = vadd.f32 %v6286, %v6383
      %v6419 = vadd.f32 %v6289, %v6386
      %v6420 = vadd.f32 %v6292, %v6389
      %v6421 = vadd.f32 %v6295, %v6392
      %v6422 = vadd.f32 %v6298, %v6395
      %v6423 = vadd.f32 %v6301, %v6398
      %v6424 = vadd.f32 %v6304, %v6401
      %v6425 = vadd.f32 %v6307, %v6404
      %v6426 = vadd.f32 %v6310, %v6407
      %v6427 = vadd.f32 %v6313, %v6410
      %v6428 = vld [vmem:[%s835] sm:$0xff]
      %v6429 = vld [vmem:[%s835 + $0x8] sm:$0xff]
      %v6430 = vld [vmem:[%s835 + $0x18] sm:$0xff]
      %v6431 = vld [vmem:[%s835 + $0x20] sm:$0xff]
      %v6432 = vld [vmem:[%s835 + $0x30] sm:$0xff]
      %v6433 = vld [vmem:[%s835 + $0x38] sm:$0xff]
      %v6434 = vld [vmem:[%s835 + $0x48] sm:$0xff]
      %v6435 = vld [vmem:[%s835 + $0x50] sm:$0xff]
      %v6436 = vld [vmem:[%s835 + $0x60] sm:$0xff]
      %v6437 = vld [vmem:[%s835 + $0x68] sm:$0xff]
      %v6438 = vld [vmem:[%s835 + $0x78] sm:$0xff]
      %v6439 = vld [vmem:[%s835 + $0x80] sm:$0xff]
      %v6440 = vld [vmem:[%s835 + $0x90] sm:$0xff]
      %v6441 = vld [vmem:[%s835 + $0x98] sm:$0xff]
      %v6442 = vld [vmem:[%s835 + $0xa8] sm:$0xff]
      %v6443 = vld [vmem:[%s835 + $0xb0] sm:$0xff]
      %v6444 = vld [vmem:[%s5416] sm:$0xff]
      %v6445 = vld [vmem:[%s5416 + $0x8] sm:$0xff]
      %v6446 = vld [vmem:[%s5416 + $0x10] sm:$0xff]
      %v6447 = vld [vmem:[%s5416 + $0x18] sm:$0xff]
      %v6448 = vld [vmem:[%s5416 + $0x20] sm:$0xff]
      %v6449 = vld [vmem:[%s5416 + $0x28] sm:$0xff]
      %v6450 = vld [vmem:[%s5416 + $0x30] sm:$0xff]
      %v6451 = vld [vmem:[%s5416 + $0x38] sm:$0xff]
      %v6452 = vld [vmem:[%s5416 + $0x40] sm:$0xff]
      %v6453 = vld [vmem:[%s5416 + $0x48] sm:$0xff]
      %v6454 = vld [vmem:[%s5416 + $0x50] sm:$0xff]
      %v6455 = vld [vmem:[%s5416 + $0x58] sm:$0xff]
      %v6456 = vld [vmem:[%s5416 + $0x60] sm:$0xff]
      %v6457 = vld [vmem:[%s5416 + $0x68] sm:$0xff]
      %v6458 = vld [vmem:[%s5416 + $0x70] sm:$0xff]
      %v6459 = vld [vmem:[%s5416 + $0x78] sm:$0xff]
      %6460 = vmatpush.msra.mxu0 %v6459
      %6461 = vmatpush.msra.mxu0 %v6458
      %6462 = vmatpush.msra.mxu0 %v6457
      %6463 = vmatpush.msra.mxu0 %v6456
      %6464 = vmatpush.msra.mxu0 %v6455
      %6465 = vmatpush.msra.mxu0 %v6454
      %6466 = vmatpush.msra.mxu0 %v6453
      %6467 = vmatpush.msra.mxu0 %v6452
      %6468 = vmatpush.msra.mxu0 %v6451
      %6469 = vmatpush.msra.mxu0 %v6450
      %6470 = vmatpush.msra.mxu0 %v6449
      %6471 = vmatpush.msra.mxu0 %v6448
      %6472 = vmatpush.msra.mxu0 %v6447
      %6473 = vmatpush.msra.mxu0 %v6446
      %6474 = vmatpush.msra.mxu0 %v6445
      %6475 = vmatpush.msra.mxu0 %v6444
      %6476 = vmatmul.f32.gmra.mxu0 %v6428
      %v6477 = vpop.f32.mrf.mxu0
      %v6478 = vadd.f32 0.0, %v6477
      %6479 = vmatmul.f32.gmra.mxu0 %v6429
      %v6480 = vpop.f32.mrf.mxu0
      %v6481 = vadd.f32 0.0, %v6480
      %6482 = vmatmul.f32.gmra.mxu0 %v6430
      %v6483 = vpop.f32.mrf.mxu0
      %v6484 = vadd.f32 0.0, %v6483
      %6485 = vmatmul.f32.gmra.mxu0 %v6431
      %v6486 = vpop.f32.mrf.mxu0
      %v6487 = vadd.f32 0.0, %v6486
      %6488 = vmatmul.f32.gmra.mxu0 %v6432
      %v6489 = vpop.f32.mrf.mxu0
      %v6490 = vadd.f32 0.0, %v6489
      %6491 = vmatmul.f32.gmra.mxu0 %v6433
      %v6492 = vpop.f32.mrf.mxu0
      %v6493 = vadd.f32 0.0, %v6492
      %6494 = vmatmul.f32.gmra.mxu0 %v6434
      %v6495 = vpop.f32.mrf.mxu0
      %v6496 = vadd.f32 0.0, %v6495
      %6497 = vmatmul.f32.gmra.mxu0 %v6435
      %v6498 = vpop.f32.mrf.mxu0
      %v6499 = vadd.f32 0.0, %v6498
      %6500 = vmatmul.f32.gmra.mxu0 %v6436
      %v6501 = vpop.f32.mrf.mxu0
      %v6502 = vadd.f32 0.0, %v6501
      %6503 = vmatmul.f32.gmra.mxu0 %v6437
      %v6504 = vpop.f32.mrf.mxu0
      %v6505 = vadd.f32 0.0, %v6504
      %6506 = vmatmul.f32.gmra.mxu0 %v6438
      %v6507 = vpop.f32.mrf.mxu0
      %v6508 = vadd.f32 0.0, %v6507
      %6509 = vmatmul.f32.gmra.mxu0 %v6439
      %v6510 = vpop.f32.mrf.mxu0
      %v6511 = vadd.f32 0.0, %v6510
      %6512 = vmatmul.f32.gmra.mxu0 %v6440
      %v6513 = vpop.f32.mrf.mxu0
      %v6514 = vadd.f32 0.0, %v6513
      %6515 = vmatmul.f32.gmra.mxu0 %v6441
      %v6516 = vpop.f32.mrf.mxu0
      %v6517 = vadd.f32 0.0, %v6516
      %6518 = vmatmul.f32.gmra.mxu0 %v6442
      %v6519 = vpop.f32.mrf.mxu0
      %v6520 = vadd.f32 0.0, %v6519
      %6521 = vmatmul.f32.gmra.mxu0 %v6443
      %v6522 = vpop.f32.mrf.mxu0
      %v6523 = vadd.f32 0.0, %v6522
      %6524 = vdwg.mxu0
      %v6525 = vadd.f32 %v6412, %v6478
      %v6526 = vadd.f32 %v6413, %v6481
      %v6527 = vadd.f32 %v6414, %v6484
      %v6528 = vadd.f32 %v6415, %v6487
      %v6529 = vadd.f32 %v6416, %v6490
      %v6530 = vadd.f32 %v6417, %v6493
      %v6531 = vadd.f32 %v6418, %v6496
      %v6532 = vadd.f32 %v6419, %v6499
      %v6533 = vadd.f32 %v6420, %v6502
      %v6534 = vadd.f32 %v6421, %v6505
      %v6535 = vadd.f32 %v6422, %v6508
      %v6536 = vadd.f32 %v6423, %v6511
      %v6537 = vadd.f32 %v6424, %v6514
      %v6538 = vadd.f32 %v6425, %v6517
      %v6539 = vadd.f32 %v6426, %v6520
      %v6540 = vadd.f32 %v6427, %v6523
      %v6541 = vld [vmem:[%s835 + $0x1] sm:$0xff]
      %v6542 = vld [vmem:[%s835 + $0x9] sm:$0xff]
      %v6543 = vld [vmem:[%s835 + $0x19] sm:$0xff]
      %v6544 = vld [vmem:[%s835 + $0x21] sm:$0xff]
      %v6545 = vld [vmem:[%s835 + $0x31] sm:$0xff]
      %v6546 = vld [vmem:[%s835 + $0x39] sm:$0xff]
      %v6547 = vld [vmem:[%s835 + $0x49] sm:$0xff]
      %v6548 = vld [vmem:[%s835 + $0x51] sm:$0xff]
      %v6549 = vld [vmem:[%s835 + $0x61] sm:$0xff]
      %v6550 = vld [vmem:[%s835 + $0x69] sm:$0xff]
      %v6551 = vld [vmem:[%s835 + $0x79] sm:$0xff]
      %v6552 = vld [vmem:[%s835 + $0x81] sm:$0xff]
      %v6553 = vld [vmem:[%s835 + $0x91] sm:$0xff]
      %v6554 = vld [vmem:[%s835 + $0x99] sm:$0xff]
      %v6555 = vld [vmem:[%s835 + $0xa9] sm:$0xff]
      %v6556 = vld [vmem:[%s835 + $0xb1] sm:$0xff]
      %v6557 = vld [vmem:[%s5530] sm:$0xff]
      %v6558 = vld [vmem:[%s5530 + $0x8] sm:$0xff]
      %v6559 = vld [vmem:[%s5530 + $0x10] sm:$0xff]
      %v6560 = vld [vmem:[%s5530 + $0x18] sm:$0xff]
      %v6561 = vld [vmem:[%s5530 + $0x20] sm:$0xff]
      %v6562 = vld [vmem:[%s5530 + $0x28] sm:$0xff]
      %v6563 = vld [vmem:[%s5530 + $0x30] sm:$0xff]
      %v6564 = vld [vmem:[%s5530 + $0x38] sm:$0xff]
      %v6565 = vld [vmem:[%s5530 + $0x40] sm:$0xff]
      %v6566 = vld [vmem:[%s5530 + $0x48] sm:$0xff]
      %v6567 = vld [vmem:[%s5530 + $0x50] sm:$0xff]
      %v6568 = vld [vmem:[%s5530 + $0x58] sm:$0xff]
      %v6569 = vld [vmem:[%s5530 + $0x60] sm:$0xff]
      %v6570 = vld [vmem:[%s5530 + $0x68] sm:$0xff]
      %v6571 = vld [vmem:[%s5530 + $0x70] sm:$0xff]
      %v6572 = vld [vmem:[%s5530 + $0x78] sm:$0xff]
      %6573 = vmatpush.msra.mxu0 %v6572
      %6574 = vmatpush.msra.mxu0 %v6571
      %6575 = vmatpush.msra.mxu0 %v6570
      %6576 = vmatpush.msra.mxu0 %v6569
      %6577 = vmatpush.msra.mxu0 %v6568
      %6578 = vmatpush.msra.mxu0 %v6567
      %6579 = vmatpush.msra.mxu0 %v6566
      %6580 = vmatpush.msra.mxu0 %v6565
      %6581 = vmatpush.msra.mxu0 %v6564
      %6582 = vmatpush.msra.mxu0 %v6563
      %6583 = vmatpush.msra.mxu0 %v6562
      %6584 = vmatpush.msra.mxu0 %v6561
      %6585 = vmatpush.msra.mxu0 %v6560
      %6586 = vmatpush.msra.mxu0 %v6559
      %6587 = vmatpush.msra.mxu0 %v6558
      %6588 = vmatpush.msra.mxu0 %v6557
      %6589 = vmatmul.f32.gmra.mxu0 %v6541
      %v6590 = vpop.f32.mrf.mxu0
      %v6591 = vadd.f32 0.0, %v6590
      %6592 = vmatmul.f32.gmra.mxu0 %v6542
      %v6593 = vpop.f32.mrf.mxu0
      %v6594 = vadd.f32 0.0, %v6593
      %6595 = vmatmul.f32.gmra.mxu0 %v6543
      %v6596 = vpop.f32.mrf.mxu0
      %v6597 = vadd.f32 0.0, %v6596
      %6598 = vmatmul.f32.gmra.mxu0 %v6544
      %v6599 = vpop.f32.mrf.mxu0
      %v6600 = vadd.f32 0.0, %v6599
      %6601 = vmatmul.f32.gmra.mxu0 %v6545
      %v6602 = vpop.f32.mrf.mxu0
      %v6603 = vadd.f32 0.0, %v6602
      %6604 = vmatmul.f32.gmra.mxu0 %v6546
      %v6605 = vpop.f32.mrf.mxu0
      %v6606 = vadd.f32 0.0, %v6605
      %6607 = vmatmul.f32.gmra.mxu0 %v6547
      %v6608 = vpop.f32.mrf.mxu0
      %v6609 = vadd.f32 0.0, %v6608
      %6610 = vmatmul.f32.gmra.mxu0 %v6548
      %v6611 = vpop.f32.mrf.mxu0
      %v6612 = vadd.f32 0.0, %v6611
      %6613 = vmatmul.f32.gmra.mxu0 %v6549
      %v6614 = vpop.f32.mrf.mxu0
      %v6615 = vadd.f32 0.0, %v6614
      %6616 = vmatmul.f32.gmra.mxu0 %v6550
      %v6617 = vpop.f32.mrf.mxu0
      %v6618 = vadd.f32 0.0, %v6617
      %6619 = vmatmul.f32.gmra.mxu0 %v6551
      %v6620 = vpop.f32.mrf.mxu0
      %v6621 = vadd.f32 0.0, %v6620
      %6622 = vmatmul.f32.gmra.mxu0 %v6552
      %v6623 = vpop.f32.mrf.mxu0
      %v6624 = vadd.f32 0.0, %v6623
      %6625 = vmatmul.f32.gmra.mxu0 %v6553
      %v6626 = vpop.f32.mrf.mxu0
      %v6627 = vadd.f32 0.0, %v6626
      %6628 = vmatmul.f32.gmra.mxu0 %v6554
      %v6629 = vpop.f32.mrf.mxu0
      %v6630 = vadd.f32 0.0, %v6629
      %6631 = vmatmul.f32.gmra.mxu0 %v6555
      %v6632 = vpop.f32.mrf.mxu0
      %v6633 = vadd.f32 0.0, %v6632
      %6634 = vmatmul.f32.gmra.mxu0 %v6556
      %v6635 = vpop.f32.mrf.mxu0
      %v6636 = vadd.f32 0.0, %v6635
      %6637 = vdwg.mxu0
      %v6638 = vadd.f32 %v6525, %v6591
      %v6639 = vadd.f32 %v6526, %v6594
      %v6640 = vadd.f32 %v6527, %v6597
      %v6641 = vadd.f32 %v6528, %v6600
      %v6642 = vadd.f32 %v6529, %v6603
      %v6643 = vadd.f32 %v6530, %v6606
      %v6644 = vadd.f32 %v6531, %v6609
      %v6645 = vadd.f32 %v6532, %v6612
      %v6646 = vadd.f32 %v6533, %v6615
      %v6647 = vadd.f32 %v6534, %v6618
      %v6648 = vadd.f32 %v6535, %v6621
      %v6649 = vadd.f32 %v6536, %v6624
      %v6650 = vadd.f32 %v6537, %v6627
      %v6651 = vadd.f32 %v6538, %v6630
      %v6652 = vadd.f32 %v6539, %v6633
      %v6653 = vadd.f32 %v6540, %v6636
      %v6654 = vld [vmem:[%s835 + $0x2] sm:$0xff]
      %v6655 = vld [vmem:[%s835 + $0xa] sm:$0xff]
      %v6656 = vld [vmem:[%s835 + $0x1a] sm:$0xff]
      %v6657 = vld [vmem:[%s835 + $0x22] sm:$0xff]
      %v6658 = vld [vmem:[%s835 + $0x32] sm:$0xff]
      %v6659 = vld [vmem:[%s835 + $0x3a] sm:$0xff]
      %v6660 = vld [vmem:[%s835 + $0x4a] sm:$0xff]
      %v6661 = vld [vmem:[%s835 + $0x52] sm:$0xff]
      %v6662 = vld [vmem:[%s835 + $0x62] sm:$0xff]
      %v6663 = vld [vmem:[%s835 + $0x6a] sm:$0xff]
      %v6664 = vld [vmem:[%s835 + $0x7a] sm:$0xff]
      %v6665 = vld [vmem:[%s835 + $0x82] sm:$0xff]
      %v6666 = vld [vmem:[%s835 + $0x92] sm:$0xff]
      %v6667 = vld [vmem:[%s835 + $0x9a] sm:$0xff]
      %v6668 = vld [vmem:[%s835 + $0xaa] sm:$0xff]
      %v6669 = vld [vmem:[%s835 + $0xb2] sm:$0xff]
      %v6670 = vld [vmem:[%s5644] sm:$0xff]
      %v6671 = vld [vmem:[%s5644 + $0x8] sm:$0xff]
      %v6672 = vld [vmem:[%s5644 + $0x10] sm:$0xff]
      %v6673 = vld [vmem:[%s5644 + $0x18] sm:$0xff]
      %v6674 = vld [vmem:[%s5644 + $0x20] sm:$0xff]
      %v6675 = vld [vmem:[%s5644 + $0x28] sm:$0xff]
      %v6676 = vld [vmem:[%s5644 + $0x30] sm:$0xff]
      %v6677 = vld [vmem:[%s5644 + $0x38] sm:$0xff]
      %v6678 = vld [vmem:[%s5644 + $0x40] sm:$0xff]
      %v6679 = vld [vmem:[%s5644 + $0x48] sm:$0xff]
      %v6680 = vld [vmem:[%s5644 + $0x50] sm:$0xff]
      %v6681 = vld [vmem:[%s5644 + $0x58] sm:$0xff]
      %v6682 = vld [vmem:[%s5644 + $0x60] sm:$0xff]
      %v6683 = vld [vmem:[%s5644 + $0x68] sm:$0xff]
      %v6684 = vld [vmem:[%s5644 + $0x70] sm:$0xff]
      %v6685 = vld [vmem:[%s5644 + $0x78] sm:$0xff]
      %6686 = vmatpush.msra.mxu0 %v6685
      %6687 = vmatpush.msra.mxu0 %v6684
      %6688 = vmatpush.msra.mxu0 %v6683
      %6689 = vmatpush.msra.mxu0 %v6682
      %6690 = vmatpush.msra.mxu0 %v6681
      %6691 = vmatpush.msra.mxu0 %v6680
      %6692 = vmatpush.msra.mxu0 %v6679
      %6693 = vmatpush.msra.mxu0 %v6678
      %6694 = vmatpush.msra.mxu0 %v6677
      %6695 = vmatpush.msra.mxu0 %v6676
      %6696 = vmatpush.msra.mxu0 %v6675
      %6697 = vmatpush.msra.mxu0 %v6674
      %6698 = vmatpush.msra.mxu0 %v6673
      %6699 = vmatpush.msra.mxu0 %v6672
      %6700 = vmatpush.msra.mxu0 %v6671
      %6701 = vmatpush.msra.mxu0 %v6670
      %6702 = vmatmul.f32.gmra.mxu0 %v6654
      %v6703 = vpop.f32.mrf.mxu0
      %v6704 = vadd.f32 0.0, %v6703
      %6705 = vmatmul.f32.gmra.mxu0 %v6655
      %v6706 = vpop.f32.mrf.mxu0
      %v6707 = vadd.f32 0.0, %v6706
      %6708 = vmatmul.f32.gmra.mxu0 %v6656
      %v6709 = vpop.f32.mrf.mxu0
      %v6710 = vadd.f32 0.0, %v6709
      %6711 = vmatmul.f32.gmra.mxu0 %v6657
      %v6712 = vpop.f32.mrf.mxu0
      %v6713 = vadd.f32 0.0, %v6712
      %6714 = vmatmul.f32.gmra.mxu0 %v6658
      %v6715 = vpop.f32.mrf.mxu0
      %v6716 = vadd.f32 0.0, %v6715
      %6717 = vmatmul.f32.gmra.mxu0 %v6659
      %v6718 = vpop.f32.mrf.mxu0
      %v6719 = vadd.f32 0.0, %v6718
      %6720 = vmatmul.f32.gmra.mxu0 %v6660
      %v6721 = vpop.f32.mrf.mxu0
      %v6722 = vadd.f32 0.0, %v6721
      %6723 = vmatmul.f32.gmra.mxu0 %v6661
      %v6724 = vpop.f32.mrf.mxu0
      %v6725 = vadd.f32 0.0, %v6724
      %6726 = vmatmul.f32.gmra.mxu0 %v6662
      %v6727 = vpop.f32.mrf.mxu0
      %v6728 = vadd.f32 0.0, %v6727
      %6729 = vmatmul.f32.gmra.mxu0 %v6663
      %v6730 = vpop.f32.mrf.mxu0
      %v6731 = vadd.f32 0.0, %v6730
      %6732 = vmatmul.f32.gmra.mxu0 %v6664
      %v6733 = vpop.f32.mrf.mxu0
      %v6734 = vadd.f32 0.0, %v6733
      %6735 = vmatmul.f32.gmra.mxu0 %v6665
      %v6736 = vpop.f32.mrf.mxu0
      %v6737 = vadd.f32 0.0, %v6736
      %6738 = vmatmul.f32.gmra.mxu0 %v6666
      %v6739 = vpop.f32.mrf.mxu0
      %v6740 = vadd.f32 0.0, %v6739
      %6741 = vmatmul.f32.gmra.mxu0 %v6667
      %v6742 = vpop.f32.mrf.mxu0
      %v6743 = vadd.f32 0.0, %v6742
      %6744 = vmatmul.f32.gmra.mxu0 %v6668
      %v6745 = vpop.f32.mrf.mxu0
      %v6746 = vadd.f32 0.0, %v6745
      %6747 = vmatmul.f32.gmra.mxu0 %v6669
      %v6748 = vpop.f32.mrf.mxu0
      %v6749 = vadd.f32 0.0, %v6748
      %6750 = vdwg.mxu0
      %v6751 = vadd.f32 %v6638, %v6704
      %v6752 = vadd.f32 %v6639, %v6707
      %v6753 = vadd.f32 %v6640, %v6710
      %v6754 = vadd.f32 %v6641, %v6713
      %v6755 = vadd.f32 %v6642, %v6716
      %v6756 = vadd.f32 %v6643, %v6719
      %v6757 = vadd.f32 %v6644, %v6722
      %v6758 = vadd.f32 %v6645, %v6725
      %v6759 = vadd.f32 %v6646, %v6728
      %v6760 = vadd.f32 %v6647, %v6731
      %v6761 = vadd.f32 %v6648, %v6734
      %v6762 = vadd.f32 %v6649, %v6737
      %v6763 = vadd.f32 %v6650, %v6740
      %v6764 = vadd.f32 %v6651, %v6743
      %v6765 = vadd.f32 %v6652, %v6746
      %v6766 = vadd.f32 %v6653, %v6749
      %v6767 = vld [vmem:[%s2562] sm:$0xff]
      %v6768 = vld [vmem:[%s2562 + $0x8] sm:$0xff]
      %v6769 = vld [vmem:[%s2562 + $0x18] sm:$0xff]
      %v6770 = vld [vmem:[%s2562 + $0x20] sm:$0xff]
      %v6771 = vld [vmem:[%s2562 + $0x30] sm:$0xff]
      %v6772 = vld [vmem:[%s2562 + $0x38] sm:$0xff]
      %v6773 = vld [vmem:[%s2562 + $0x48] sm:$0xff]
      %v6774 = vld [vmem:[%s2562 + $0x50] sm:$0xff]
      %v6775 = vld [vmem:[%s2562 + $0x60] sm:$0xff]
      %v6776 = vld [vmem:[%s2562 + $0x68] sm:$0xff]
      %v6777 = vld [vmem:[%s2562 + $0x78] sm:$0xff]
      %v6778 = vld [vmem:[%s2562 + $0x80] sm:$0xff]
      %v6779 = vld [vmem:[%s2562 + $0x90] sm:$0xff]
      %v6780 = vld [vmem:[%s2562 + $0x98] sm:$0xff]
      %v6781 = vld [vmem:[%s2562 + $0xa8] sm:$0xff]
      %v6782 = vld [vmem:[%s2562 + $0xb0] sm:$0xff]
      %v6783 = vld [vmem:[%s5758] sm:$0xff]
      %v6784 = vld [vmem:[%s5758 + $0x8] sm:$0xff]
      %v6785 = vld [vmem:[%s5758 + $0x10] sm:$0xff]
      %v6786 = vld [vmem:[%s5758 + $0x18] sm:$0xff]
      %v6787 = vld [vmem:[%s5758 + $0x20] sm:$0xff]
      %v6788 = vld [vmem:[%s5758 + $0x28] sm:$0xff]
      %v6789 = vld [vmem:[%s5758 + $0x30] sm:$0xff]
      %v6790 = vld [vmem:[%s5758 + $0x38] sm:$0xff]
      %v6791 = vld [vmem:[%s5758 + $0x40] sm:$0xff]
      %v6792 = vld [vmem:[%s5758 + $0x48] sm:$0xff]
      %v6793 = vld [vmem:[%s5758 + $0x50] sm:$0xff]
      %v6794 = vld [vmem:[%s5758 + $0x58] sm:$0xff]
      %v6795 = vld [vmem:[%s5758 + $0x60] sm:$0xff]
      %v6796 = vld [vmem:[%s5758 + $0x68] sm:$0xff]
      %v6797 = vld [vmem:[%s5758 + $0x70] sm:$0xff]
      %v6798 = vld [vmem:[%s5758 + $0x78] sm:$0xff]
      %6799 = vmatpush.msra.mxu0 %v6798
      %6800 = vmatpush.msra.mxu0 %v6797
      %6801 = vmatpush.msra.mxu0 %v6796
      %6802 = vmatpush.msra.mxu0 %v6795
      %6803 = vmatpush.msra.mxu0 %v6794
      %6804 = vmatpush.msra.mxu0 %v6793
      %6805 = vmatpush.msra.mxu0 %v6792
      %6806 = vmatpush.msra.mxu0 %v6791
      %6807 = vmatpush.msra.mxu0 %v6790
      %6808 = vmatpush.msra.mxu0 %v6789
      %6809 = vmatpush.msra.mxu0 %v6788
      %6810 = vmatpush.msra.mxu0 %v6787
      %6811 = vmatpush.msra.mxu0 %v6786
      %6812 = vmatpush.msra.mxu0 %v6785
      %6813 = vmatpush.msra.mxu0 %v6784
      %6814 = vmatpush.msra.mxu0 %v6783
      %6815 = vmatmul.f32.gmra.mxu0 %v6767
      %v6816 = vpop.f32.mrf.mxu0
      %v6817 = vadd.f32 0.0, %v6816
      %6818 = vmatmul.f32.gmra.mxu0 %v6768
      %v6819 = vpop.f32.mrf.mxu0
      %v6820 = vadd.f32 0.0, %v6819
      %6821 = vmatmul.f32.gmra.mxu0 %v6769
      %v6822 = vpop.f32.mrf.mxu0
      %v6823 = vadd.f32 0.0, %v6822
      %6824 = vmatmul.f32.gmra.mxu0 %v6770
      %v6825 = vpop.f32.mrf.mxu0
      %v6826 = vadd.f32 0.0, %v6825
      %6827 = vmatmul.f32.gmra.mxu0 %v6771
      %v6828 = vpop.f32.mrf.mxu0
      %v6829 = vadd.f32 0.0, %v6828
      %6830 = vmatmul.f32.gmra.mxu0 %v6772
      %v6831 = vpop.f32.mrf.mxu0
      %v6832 = vadd.f32 0.0, %v6831
      %6833 = vmatmul.f32.gmra.mxu0 %v6773
      %v6834 = vpop.f32.mrf.mxu0
      %v6835 = vadd.f32 0.0, %v6834
      %6836 = vmatmul.f32.gmra.mxu0 %v6774
      %v6837 = vpop.f32.mrf.mxu0
      %v6838 = vadd.f32 0.0, %v6837
      %6839 = vmatmul.f32.gmra.mxu0 %v6775
      %v6840 = vpop.f32.mrf.mxu0
      %v6841 = vadd.f32 0.0, %v6840
      %6842 = vmatmul.f32.gmra.mxu0 %v6776
      %v6843 = vpop.f32.mrf.mxu0
      %v6844 = vadd.f32 0.0, %v6843
      %6845 = vmatmul.f32.gmra.mxu0 %v6777
      %v6846 = vpop.f32.mrf.mxu0
      %v6847 = vadd.f32 0.0, %v6846
      %6848 = vmatmul.f32.gmra.mxu0 %v6778
      %v6849 = vpop.f32.mrf.mxu0
      %v6850 = vadd.f32 0.0, %v6849
      %6851 = vmatmul.f32.gmra.mxu0 %v6779
      %v6852 = vpop.f32.mrf.mxu0
      %v6853 = vadd.f32 0.0, %v6852
      %6854 = vmatmul.f32.gmra.mxu0 %v6780
      %v6855 = vpop.f32.mrf.mxu0
      %v6856 = vadd.f32 0.0, %v6855
      %6857 = vmatmul.f32.gmra.mxu0 %v6781
      %v6858 = vpop.f32.mrf.mxu0
      %v6859 = vadd.f32 0.0, %v6858
      %6860 = vmatmul.f32.gmra.mxu0 %v6782
      %v6861 = vpop.f32.mrf.mxu0
      %v6862 = vadd.f32 0.0, %v6861
      %6863 = vdwg.mxu0
      %v6864 = vadd.f32 %v6751, %v6817
      %v6865 = vadd.f32 %v6752, %v6820
      %v6866 = vadd.f32 %v6753, %v6823
      %v6867 = vadd.f32 %v6754, %v6826
      %v6868 = vadd.f32 %v6755, %v6829
      %v6869 = vadd.f32 %v6756, %v6832
      %v6870 = vadd.f32 %v6757, %v6835
      %v6871 = vadd.f32 %v6758, %v6838
      %v6872 = vadd.f32 %v6759, %v6841
      %v6873 = vadd.f32 %v6760, %v6844
      %v6874 = vadd.f32 %v6761, %v6847
      %v6875 = vadd.f32 %v6762, %v6850
      %v6876 = vadd.f32 %v6763, %v6853
      %v6877 = vadd.f32 %v6764, %v6856
      %v6878 = vadd.f32 %v6765, %v6859
      %v6879 = vadd.f32 %v6766, %v6862
      %v6880 = vld [vmem:[%s2562 + $0x1] sm:$0xff]
      %v6881 = vld [vmem:[%s2562 + $0x9] sm:$0xff]
      %v6882 = vld [vmem:[%s2562 + $0x19] sm:$0xff]
      %v6883 = vld [vmem:[%s2562 + $0x21] sm:$0xff]
      %v6884 = vld [vmem:[%s2562 + $0x31] sm:$0xff]
      %v6885 = vld [vmem:[%s2562 + $0x39] sm:$0xff]
      %v6886 = vld [vmem:[%s2562 + $0x49] sm:$0xff]
      %v6887 = vld [vmem:[%s2562 + $0x51] sm:$0xff]
      %v6888 = vld [vmem:[%s2562 + $0x61] sm:$0xff]
      %v6889 = vld [vmem:[%s2562 + $0x69] sm:$0xff]
      %v6890 = vld [vmem:[%s2562 + $0x79] sm:$0xff]
      %v6891 = vld [vmem:[%s2562 + $0x81] sm:$0xff]
      %v6892 = vld [vmem:[%s2562 + $0x91] sm:$0xff]
      %v6893 = vld [vmem:[%s2562 + $0x99] sm:$0xff]
      %v6894 = vld [vmem:[%s2562 + $0xa9] sm:$0xff]
      %v6895 = vld [vmem:[%s2562 + $0xb1] sm:$0xff]
      %v6896 = vld [vmem:[%s5872] sm:$0xff]
      %v6897 = vld [vmem:[%s5872 + $0x8] sm:$0xff]
      %v6898 = vld [vmem:[%s5872 + $0x10] sm:$0xff]
      %v6899 = vld [vmem:[%s5872 + $0x18] sm:$0xff]
      %v6900 = vld [vmem:[%s5872 + $0x20] sm:$0xff]
      %v6901 = vld [vmem:[%s5872 + $0x28] sm:$0xff]
      %v6902 = vld [vmem:[%s5872 + $0x30] sm:$0xff]
      %v6903 = vld [vmem:[%s5872 + $0x38] sm:$0xff]
      %v6904 = vld [vmem:[%s5872 + $0x40] sm:$0xff]
      %v6905 = vld [vmem:[%s5872 + $0x48] sm:$0xff]
      %v6906 = vld [vmem:[%s5872 + $0x50] sm:$0xff]
      %v6907 = vld [vmem:[%s5872 + $0x58] sm:$0xff]
      %v6908 = vld [vmem:[%s5872 + $0x60] sm:$0xff]
      %v6909 = vld [vmem:[%s5872 + $0x68] sm:$0xff]
      %v6910 = vld [vmem:[%s5872 + $0x70] sm:$0xff]
      %v6911 = vld [vmem:[%s5872 + $0x78] sm:$0xff]
      %6912 = vmatpush.msra.mxu0 %v6911
      %6913 = vmatpush.msra.mxu0 %v6910
      %6914 = vmatpush.msra.mxu0 %v6909
      %6915 = vmatpush.msra.mxu0 %v6908
      %6916 = vmatpush.msra.mxu0 %v6907
      %6917 = vmatpush.msra.mxu0 %v6906
      %6918 = vmatpush.msra.mxu0 %v6905
      %6919 = vmatpush.msra.mxu0 %v6904
      %6920 = vmatpush.msra.mxu0 %v6903
      %6921 = vmatpush.msra.mxu0 %v6902
      %6922 = vmatpush.msra.mxu0 %v6901
      %6923 = vmatpush.msra.mxu0 %v6900
      %6924 = vmatpush.msra.mxu0 %v6899
      %6925 = vmatpush.msra.mxu0 %v6898
      %6926 = vmatpush.msra.mxu0 %v6897
      %6927 = vmatpush.msra.mxu0 %v6896
      %6928 = vmatmul.f32.gmra.mxu0 %v6880
      %v6929 = vpop.f32.mrf.mxu0
      %v6930 = vadd.f32 0.0, %v6929
      %6931 = vmatmul.f32.gmra.mxu0 %v6881
      %v6932 = vpop.f32.mrf.mxu0
      %v6933 = vadd.f32 0.0, %v6932
      %6934 = vmatmul.f32.gmra.mxu0 %v6882
      %v6935 = vpop.f32.mrf.mxu0
      %v6936 = vadd.f32 0.0, %v6935
      %6937 = vmatmul.f32.gmra.mxu0 %v6883
      %v6938 = vpop.f32.mrf.mxu0
      %v6939 = vadd.f32 0.0, %v6938
      %6940 = vmatmul.f32.gmra.mxu0 %v6884
      %v6941 = vpop.f32.mrf.mxu0
      %v6942 = vadd.f32 0.0, %v6941
      %6943 = vmatmul.f32.gmra.mxu0 %v6885
      %v6944 = vpop.f32.mrf.mxu0
      %v6945 = vadd.f32 0.0, %v6944
      %6946 = vmatmul.f32.gmra.mxu0 %v6886
      %v6947 = vpop.f32.mrf.mxu0
      %v6948 = vadd.f32 0.0, %v6947
      %6949 = vmatmul.f32.gmra.mxu0 %v6887
      %v6950 = vpop.f32.mrf.mxu0
      %v6951 = vadd.f32 0.0, %v6950
      %6952 = vmatmul.f32.gmra.mxu0 %v6888
      %v6953 = vpop.f32.mrf.mxu0
      %v6954 = vadd.f32 0.0, %v6953
      %6955 = vmatmul.f32.gmra.mxu0 %v6889
      %v6956 = vpop.f32.mrf.mxu0
      %v6957 = vadd.f32 0.0, %v6956
      %6958 = vmatmul.f32.gmra.mxu0 %v6890
      %v6959 = vpop.f32.mrf.mxu0
      %v6960 = vadd.f32 0.0, %v6959
      %6961 = vmatmul.f32.gmra.mxu0 %v6891
      %v6962 = vpop.f32.mrf.mxu0
      %v6963 = vadd.f32 0.0, %v6962
      %6964 = vmatmul.f32.gmra.mxu0 %v6892
      %v6965 = vpop.f32.mrf.mxu0
      %v6966 = vadd.f32 0.0, %v6965
      %6967 = vmatmul.f32.gmra.mxu0 %v6893
      %v6968 = vpop.f32.mrf.mxu0
      %v6969 = vadd.f32 0.0, %v6968
      %6970 = vmatmul.f32.gmra.mxu0 %v6894
      %v6971 = vpop.f32.mrf.mxu0
      %v6972 = vadd.f32 0.0, %v6971
      %6973 = vmatmul.f32.gmra.mxu0 %v6895
      %v6974 = vpop.f32.mrf.mxu0
      %v6975 = vadd.f32 0.0, %v6974
      %6976 = vdwg.mxu0
      %v6977 = vadd.f32 %v6864, %v6930
      %v6978 = vadd.f32 %v6865, %v6933
      %v6979 = vadd.f32 %v6866, %v6936
      %v6980 = vadd.f32 %v6867, %v6939
      %v6981 = vadd.f32 %v6868, %v6942
      %v6982 = vadd.f32 %v6869, %v6945
      %v6983 = vadd.f32 %v6870, %v6948
      %v6984 = vadd.f32 %v6871, %v6951
      %v6985 = vadd.f32 %v6872, %v6954
      %v6986 = vadd.f32 %v6873, %v6957
      %v6987 = vadd.f32 %v6874, %v6960
      %v6988 = vadd.f32 %v6875, %v6963
      %v6989 = vadd.f32 %v6876, %v6966
      %v6990 = vadd.f32 %v6877, %v6969
      %v6991 = vadd.f32 %v6878, %v6972
      %v6992 = vadd.f32 %v6879, %v6975
      %v6993 = vld [vmem:[%s2562 + $0x2] sm:$0xff]
      %v6994 = vld [vmem:[%s2562 + $0xa] sm:$0xff]
      %v6995 = vld [vmem:[%s2562 + $0x1a] sm:$0xff]
      %v6996 = vld [vmem:[%s2562 + $0x22] sm:$0xff]
      %v6997 = vld [vmem:[%s2562 + $0x32] sm:$0xff]
      %v6998 = vld [vmem:[%s2562 + $0x3a] sm:$0xff]
      %v6999 = vld [vmem:[%s2562 + $0x4a] sm:$0xff]
      %v7000 = vld [vmem:[%s2562 + $0x52] sm:$0xff]
      %v7001 = vld [vmem:[%s2562 + $0x62] sm:$0xff]
      %v7002 = vld [vmem:[%s2562 + $0x6a] sm:$0xff]
      %v7003 = vld [vmem:[%s2562 + $0x7a] sm:$0xff]
      %v7004 = vld [vmem:[%s2562 + $0x82] sm:$0xff]
      %v7005 = vld [vmem:[%s2562 + $0x92] sm:$0xff]
      %v7006 = vld [vmem:[%s2562 + $0x9a] sm:$0xff]
      %v7007 = vld [vmem:[%s2562 + $0xaa] sm:$0xff]
      %v7008 = vld [vmem:[%s2562 + $0xb2] sm:$0xff]
      %v7009 = vld [vmem:[%s5986] sm:$0xff]
      %v7010 = vld [vmem:[%s5986 + $0x8] sm:$0xff]
      %v7011 = vld [vmem:[%s5986 + $0x10] sm:$0xff]
      %v7012 = vld [vmem:[%s5986 + $0x18] sm:$0xff]
      %v7013 = vld [vmem:[%s5986 + $0x20] sm:$0xff]
      %v7014 = vld [vmem:[%s5986 + $0x28] sm:$0xff]
      %v7015 = vld [vmem:[%s5986 + $0x30] sm:$0xff]
      %v7016 = vld [vmem:[%s5986 + $0x38] sm:$0xff]
      %v7017 = vld [vmem:[%s5986 + $0x40] sm:$0xff]
      %v7018 = vld [vmem:[%s5986 + $0x48] sm:$0xff]
      %v7019 = vld [vmem:[%s5986 + $0x50] sm:$0xff]
      %v7020 = vld [vmem:[%s5986 + $0x58] sm:$0xff]
      %v7021 = vld [vmem:[%s5986 + $0x60] sm:$0xff]
      %v7022 = vld [vmem:[%s5986 + $0x68] sm:$0xff]
      %v7023 = vld [vmem:[%s5986 + $0x70] sm:$0xff]
      %v7024 = vld [vmem:[%s5986 + $0x78] sm:$0xff]
      %7025 = vmatpush.msra.mxu0 %v7024
      %7026 = vmatpush.msra.mxu0 %v7023
      %7027 = vmatpush.msra.mxu0 %v7022
      %7028 = vmatpush.msra.mxu0 %v7021
      %7029 = vmatpush.msra.mxu0 %v7020
      %7030 = vmatpush.msra.mxu0 %v7019
      %7031 = vmatpush.msra.mxu0 %v7018
      %7032 = vmatpush.msra.mxu0 %v7017
      %7033 = vmatpush.msra.mxu0 %v7016
      %7034 = vmatpush.msra.mxu0 %v7015
      %7035 = vmatpush.msra.mxu0 %v7014
      %7036 = vmatpush.msra.mxu0 %v7013
      %7037 = vmatpush.msra.mxu0 %v7012
      %7038 = vmatpush.msra.mxu0 %v7011
      %7039 = vmatpush.msra.mxu0 %v7010
      %7040 = vmatpush.msra.mxu0 %v7009
      %7041 = vmatmul.f32.gmra.mxu0 %v6993
      %v7042 = vpop.f32.mrf.mxu0
      %v7043 = vadd.f32 0.0, %v7042
      %7044 = vmatmul.f32.gmra.mxu0 %v6994
      %v7045 = vpop.f32.mrf.mxu0
      %v7046 = vadd.f32 0.0, %v7045
      %7047 = vmatmul.f32.gmra.mxu0 %v6995
      %v7048 = vpop.f32.mrf.mxu0
      %v7049 = vadd.f32 0.0, %v7048
      %7050 = vmatmul.f32.gmra.mxu0 %v6996
      %v7051 = vpop.f32.mrf.mxu0
      %v7052 = vadd.f32 0.0, %v7051
      %7053 = vmatmul.f32.gmra.mxu0 %v6997
      %v7054 = vpop.f32.mrf.mxu0
      %v7055 = vadd.f32 0.0, %v7054
      %7056 = vmatmul.f32.gmra.mxu0 %v6998
      %v7057 = vpop.f32.mrf.mxu0
      %v7058 = vadd.f32 0.0, %v7057
      %7059 = vmatmul.f32.gmra.mxu0 %v6999
      %v7060 = vpop.f32.mrf.mxu0
      %v7061 = vadd.f32 0.0, %v7060
      %7062 = vmatmul.f32.gmra.mxu0 %v7000
      %v7063 = vpop.f32.mrf.mxu0
      %v7064 = vadd.f32 0.0, %v7063
      %7065 = vmatmul.f32.gmra.mxu0 %v7001
      %v7066 = vpop.f32.mrf.mxu0
      %v7067 = vadd.f32 0.0, %v7066
      %7068 = vmatmul.f32.gmra.mxu0 %v7002
      %v7069 = vpop.f32.mrf.mxu0
      %v7070 = vadd.f32 0.0, %v7069
      %7071 = vmatmul.f32.gmra.mxu0 %v7003
      %v7072 = vpop.f32.mrf.mxu0
      %v7073 = vadd.f32 0.0, %v7072
      %7074 = vmatmul.f32.gmra.mxu0 %v7004
      %v7075 = vpop.f32.mrf.mxu0
      %v7076 = vadd.f32 0.0, %v7075
      %7077 = vmatmul.f32.gmra.mxu0 %v7005
      %v7078 = vpop.f32.mrf.mxu0
      %v7079 = vadd.f32 0.0, %v7078
      %7080 = vmatmul.f32.gmra.mxu0 %v7006
      %v7081 = vpop.f32.mrf.mxu0
      %v7082 = vadd.f32 0.0, %v7081
      %7083 = vmatmul.f32.gmra.mxu0 %v7007
      %v7084 = vpop.f32.mrf.mxu0
      %v7085 = vadd.f32 0.0, %v7084
      %7086 = vmatmul.f32.gmra.mxu0 %v7008
      %v7087 = vpop.f32.mrf.mxu0
      %v7088 = vadd.f32 0.0, %v7087
      %7089 = vdwg.mxu0
      %v7090 = vadd.f32 %v6977, %v7043
      %v7091 = vadd.f32 %v6978, %v7046
      %v7092 = vadd.f32 %v6979, %v7049
      %v7093 = vadd.f32 %v6980, %v7052
      %v7094 = vadd.f32 %v6981, %v7055
      %v7095 = vadd.f32 %v6982, %v7058
      %v7096 = vadd.f32 %v6983, %v7061
      %v7097 = vadd.f32 %v6984, %v7064
      %v7098 = vadd.f32 %v6985, %v7067
      %v7099 = vadd.f32 %v6986, %v7070
      %v7100 = vadd.f32 %v6987, %v7073
      %v7101 = vadd.f32 %v6988, %v7076
      %v7102 = vadd.f32 %v6989, %v7079
      %v7103 = vadd.f32 %v6990, %v7082
      %v7104 = vadd.f32 %v6991, %v7085
      %v7105 = vadd.f32 %v6992, %v7088
      %v7106 = vld [vmem:[%s6084] sm:$0x1]
      %v7108 = vperm.slane %v7106, 0
      %v7110 = vadd.f32 %v7090, %v7108
      %v7111 = vadd.f32 %v7091, %v7108
      %v7112 = vadd.f32 %v7092, %v7108
      %v7113 = vadd.f32 %v7093, %v7108
      %v7114 = vadd.f32 %v7094, %v7108
      %v7115 = vadd.f32 %v7095, %v7108
      %v7116 = vadd.f32 %v7096, %v7108
      %v7117 = vadd.f32 %v7097, %v7108
      %v7118 = vadd.f32 %v7098, %v7108
      %v7119 = vadd.f32 %v7099, %v7108
      %v7120 = vadd.f32 %v7100, %v7108
      %v7121 = vadd.f32 %v7101, %v7108
      %v7122 = vadd.f32 %v7102, %v7108
      %v7123 = vadd.f32 %v7103, %v7108
      %v7124 = vadd.f32 %v7104, %v7108
      %v7125 = vadd.f32 %v7105, %v7108
      %s7126 = scalar_lea.vmem [#allocation4], 128
      %7127 = vst [vmem:[%s7126] sm:$0xff] %v7110
      %7128 = vst [vmem:[%s7126 + $0x8] sm:$0xff] %v7111
      %7129 = vst [vmem:[%s7126 + $0x10] sm:$0xff] %v7112
      %7130 = vst [vmem:[%s7126 + $0x18] sm:$0xff] %v7113
      %7131 = vst [vmem:[%s7126 + $0x20] sm:$0xff] %v7114
      %7132 = vst [vmem:[%s7126 + $0x28] sm:$0xff] %v7115
      %7133 = vst [vmem:[%s7126 + $0x30] sm:$0xff] %v7116
      %7134 = vst [vmem:[%s7126 + $0x38] sm:$0xff] %v7117
      %7135 = vst [vmem:[%s7126 + $0x40] sm:$0xff] %v7118
      %7136 = vst [vmem:[%s7126 + $0x48] sm:$0xff] %v7119
      %7137 = vst [vmem:[%s7126 + $0x50] sm:$0xff] %v7120
      %7138 = vst [vmem:[%s7126 + $0x58] sm:$0xff] %v7121
      %7139 = vst [vmem:[%s7126 + $0x60] sm:$0xff] %v7122
      %7140 = vst [vmem:[%s7126 + $0x68] sm:$0xff] %v7123
      %7141 = vst [vmem:[%s7126 + $0x70] sm:$0xff] %v7124
      %7142 = vst [vmem:[%s7126 + $0x78] sm:$0xff] %v7125
      %v7143 = vld [vmem:[#allocation4] sm:$0xff]
      %v7144 = vld [vmem:[#allocation4 + $0x8] sm:$0xff]
      %v7145 = vld [vmem:[#allocation4 + $0x10] sm:$0xff]
      %v7146 = vld [vmem:[#allocation4 + $0x18] sm:$0xff]
      %v7147 = vld [vmem:[#allocation4 + $0x20] sm:$0xff]
      %v7148 = vld [vmem:[#allocation4 + $0x28] sm:$0xff]
      %v7149 = vld [vmem:[#allocation4 + $0x30] sm:$0xff]
      %v7150 = vld [vmem:[#allocation4 + $0x38] sm:$0xff]
      %v7151 = vld [vmem:[#allocation4 + $0x40] sm:$0xff]
      %v7152 = vld [vmem:[#allocation4 + $0x48] sm:$0xff]
      %v7153 = vld [vmem:[#allocation4 + $0x50] sm:$0xff]
      %v7154 = vld [vmem:[#allocation4 + $0x58] sm:$0xff]
      %v7155 = vld [vmem:[#allocation4 + $0x60] sm:$0xff]
      %v7156 = vld [vmem:[#allocation4 + $0x68] sm:$0xff]
      %v7157 = vld [vmem:[#allocation4 + $0x70] sm:$0xff]
      %v7158 = vld [vmem:[#allocation4 + $0x78] sm:$0xff]
      %v7159 = vadd.f32 %v7143, %v7144
      %v7160 = vadd.f32 %v7159, %v7145
      %v7161 = vadd.f32 %v7160, %v7146
      %v7162 = vadd.f32 %v7161, %v7147
      %v7163 = vadd.f32 %v7162, %v7148
      %v7164 = vadd.f32 %v7163, %v7149
      %v7165 = vadd.f32 %v7164, %v7150
      %v7166 = vadd.f32 %v7165, %v7151
      %v7167 = vadd.f32 %v7166, %v7152
      %v7168 = vadd.f32 %v7167, %v7153
      %v7169 = vadd.f32 %v7168, %v7154
      %v7170 = vadd.f32 %v7169, %v7155
      %v7171 = vadd.f32 %v7170, %v7156
      %v7172 = vadd.f32 %v7171, %v7157
      %v7173 = vadd.f32 %v7172, %v7158
      %v7174 = vrot.slane %v7173, 4
      %v7175 = vadd.f32 %v7173, %v7174
      %v7176 = vrot.slane %v7175, 2
      %v7177 = vadd.f32 %v7175, %v7176
      %v7178 = vrot.slane %v7177, 1
      %v7179 = vadd.f32 %v7177, %v7178
      %v7180 = vadd.f32 %v7179, 0.0
      %v7181 = vld [vmem:[%s671] sm:$0xff]
      %v7182 = vld [vmem:[%s671 + $0x8] sm:$0xff]
      %v7183 = vld [vmem:[%s671 + $0x10] sm:$0xff]
      %v7184 = vld [vmem:[%s671 + $0x18] sm:$0xff]
      %v7185 = vld [vmem:[%s671 + $0x20] sm:$0xff]
      %v7186 = vld [vmem:[%s671 + $0x28] sm:$0xff]
      %v7187 = vld [vmem:[%s671 + $0x30] sm:$0xff]
      %v7188 = vld [vmem:[%s671 + $0x38] sm:$0xff]
      %v7189 = vld [vmem:[%s671 + $0x40] sm:$0xff]
      %v7190 = vld [vmem:[%s671 + $0x48] sm:$0xff]
      %v7191 = vld [vmem:[%s671 + $0x50] sm:$0xff]
      %v7192 = vld [vmem:[%s671 + $0x58] sm:$0xff]
      %v7193 = vld [vmem:[%s671 + $0x60] sm:$0xff]
      %v7194 = vld [vmem:[%s671 + $0x68] sm:$0xff]
      %v7195 = vld [vmem:[%s671 + $0x70] sm:$0xff]
      %v7196 = vld [vmem:[%s671 + $0x78] sm:$0xff]
      %v7197 = vadd.f32 %v7181, %v7182
      %v7198 = vadd.f32 %v7197, %v7183
      %v7199 = vadd.f32 %v7198, %v7184
      %v7200 = vadd.f32 %v7199, %v7185
      %v7201 = vadd.f32 %v7200, %v7186
      %v7202 = vadd.f32 %v7201, %v7187
      %v7203 = vadd.f32 %v7202, %v7188
      %v7204 = vadd.f32 %v7203, %v7189
      %v7205 = vadd.f32 %v7204, %v7190
      %v7206 = vadd.f32 %v7205, %v7191
      %v7207 = vadd.f32 %v7206, %v7192
      %v7208 = vadd.f32 %v7207, %v7193
      %v7209 = vadd.f32 %v7208, %v7194
      %v7210 = vadd.f32 %v7209, %v7195
      %v7211 = vadd.f32 %v7210, %v7196
      %v7212 = vrot.slane %v7211, 4
      %v7213 = vadd.f32 %v7211, %v7212
      %v7214 = vrot.slane %v7213, 2
      %v7215 = vadd.f32 %v7213, %v7214
      %v7216 = vrot.slane %v7215, 1
      %v7217 = vadd.f32 %v7215, %v7216
      %v7218 = vadd.f32 %v7217, 0.0
      %v7219 = vld [vmem:[%s7126] sm:$0xff]
      %v7220 = vld [vmem:[%s7126 + $0x8] sm:$0xff]
      %v7221 = vld [vmem:[%s7126 + $0x10] sm:$0xff]
      %v7222 = vld [vmem:[%s7126 + $0x18] sm:$0xff]
      %v7223 = vld [vmem:[%s7126 + $0x20] sm:$0xff]
      %v7224 = vld [vmem:[%s7126 + $0x28] sm:$0xff]
      %v7225 = vld [vmem:[%s7126 + $0x30] sm:$0xff]
      %v7226 = vld [vmem:[%s7126 + $0x38] sm:$0xff]
      %v7227 = vld [vmem:[%s7126 + $0x40] sm:$0xff]
      %v7228 = vld [vmem:[%s7126 + $0x48] sm:$0xff]
      %v7229 = vld [vmem:[%s7126 + $0x50] sm:$0xff]
      %v7230 = vld [vmem:[%s7126 + $0x58] sm:$0xff]
      %v7231 = vld [vmem:[%s7126 + $0x60] sm:$0xff]
      %v7232 = vld [vmem:[%s7126 + $0x68] sm:$0xff]
      %v7233 = vld [vmem:[%s7126 + $0x70] sm:$0xff]
      %v7234 = vld [vmem:[%s7126 + $0x78] sm:$0xff]
      %v7235 = vadd.f32 %v7219, %v7220
      %v7236 = vadd.f32 %v7235, %v7221
      %v7237 = vadd.f32 %v7236, %v7222
      %v7238 = vadd.f32 %v7237, %v7223
      %v7239 = vadd.f32 %v7238, %v7224
      %v7240 = vadd.f32 %v7239, %v7225
      %v7241 = vadd.f32 %v7240, %v7226
      %v7242 = vadd.f32 %v7241, %v7227
      %v7243 = vadd.f32 %v7242, %v7228
      %v7244 = vadd.f32 %v7243, %v7229
      %v7245 = vadd.f32 %v7244, %v7230
      %v7246 = vadd.f32 %v7245, %v7231
      %v7247 = vadd.f32 %v7246, %v7232
      %v7248 = vadd.f32 %v7247, %v7233
      %v7249 = vadd.f32 %v7248, %v7234
      %v7250 = vrot.slane %v7249, 4
      %v7251 = vadd.f32 %v7249, %v7250
      %v7252 = vrot.slane %v7251, 2
      %v7253 = vadd.f32 %v7251, %v7252
      %v7254 = vrot.slane %v7253, 1
      %v7255 = vadd.f32 %v7253, %v7254
      %v7256 = vadd.f32 %v7180, %v7255
      %s7257 = scalar_lea.vmem %s671, 128
      %v7258 = vld [vmem:[%s7257] sm:$0xff]
      %v7259 = vld [vmem:[%s7257 + $0x8] sm:$0xff]
      %v7260 = vld [vmem:[%s7257 + $0x10] sm:$0xff]
      %v7261 = vld [vmem:[%s7257 + $0x18] sm:$0xff]
      %v7262 = vld [vmem:[%s7257 + $0x20] sm:$0xff]
      %v7263 = vld [vmem:[%s7257 + $0x28] sm:$0xff]
      %v7264 = vld [vmem:[%s7257 + $0x30] sm:$0xff]
      %v7265 = vld [vmem:[%s7257 + $0x38] sm:$0xff]
      %v7266 = vld [vmem:[%s7257 + $0x40] sm:$0xff]
      %v7267 = vld [vmem:[%s7257 + $0x48] sm:$0xff]
      %v7268 = vld [vmem:[%s7257 + $0x50] sm:$0xff]
      %v7269 = vld [vmem:[%s7257 + $0x58] sm:$0xff]
      %v7270 = vld [vmem:[%s7257 + $0x60] sm:$0xff]
      %v7271 = vld [vmem:[%s7257 + $0x68] sm:$0xff]
      %v7272 = vld [vmem:[%s7257 + $0x70] sm:$0xff]
      %v7273 = vld [vmem:[%s7257 + $0x78] sm:$0xff]
      %v7274 = vadd.f32 %v7258, %v7259
      %v7275 = vadd.f32 %v7274, %v7260
      %v7276 = vadd.f32 %v7275, %v7261
      %v7277 = vadd.f32 %v7276, %v7262
      %v7278 = vadd.f32 %v7277, %v7263
      %v7279 = vadd.f32 %v7278, %v7264
      %v7280 = vadd.f32 %v7279, %v7265
      %v7281 = vadd.f32 %v7280, %v7266
      %v7282 = vadd.f32 %v7281, %v7267
      %v7283 = vadd.f32 %v7282, %v7268
      %v7284 = vadd.f32 %v7283, %v7269
      %v7285 = vadd.f32 %v7284, %v7270
      %v7286 = vadd.f32 %v7285, %v7271
      %v7287 = vadd.f32 %v7286, %v7272
      %v7288 = vadd.f32 %v7287, %v7273
      %v7289 = vrot.slane %v7288, 4
      %v7290 = vadd.f32 %v7288, %v7289
      %v7291 = vrot.slane %v7290, 2
      %v7292 = vadd.f32 %v7290, %v7291
      %v7293 = vrot.slane %v7292, 1
      %v7294 = vadd.f32 %v7292, %v7293
      %v7295 = vadd.f32 %v7218, %v7294
      %v7296 = vmul.f32 %v7256, 0.00390625
      %v7297 = vmul.f32 %v7295, 0.00390625
      %v7298 = vld [vmem:[%s4] sm:$0xff]
      %v7299 = vld [vmem:[%s4 + $0x8] sm:$0xff]
      %v7300 = vld [vmem:[%s4 + $0x10] sm:$0xff]
      %v7301 = vld [vmem:[%s4 + $0x18] sm:$0xff]
      %v7302 = vld [vmem:[%s4 + $0x20] sm:$0xff]
      %v7303 = vld [vmem:[%s4 + $0x28] sm:$0xff]
      %v7304 = vld [vmem:[%s4 + $0x30] sm:$0xff]
      %v7305 = vld [vmem:[%s4 + $0x38] sm:$0xff]
      %v7306 = vld [vmem:[%s4 + $0x40] sm:$0xff]
      %v7307 = vld [vmem:[%s4 + $0x48] sm:$0xff]
      %v7308 = vld [vmem:[%s4 + $0x50] sm:$0xff]
      %v7309 = vld [vmem:[%s4 + $0x58] sm:$0xff]
      %v7310 = vld [vmem:[%s4 + $0x60] sm:$0xff]
      %v7311 = vld [vmem:[%s4 + $0x68] sm:$0xff]
      %v7312 = vld [vmem:[%s4 + $0x70] sm:$0xff]
      %v7313 = vld [vmem:[%s4 + $0x78] sm:$0xff]
      %v7314 = vld [vmem:[%s5] sm:$0x1]
      %7315 = vmatpush.msra.mxu0 %v7313
      %7316 = vmatpush.msra.mxu0 %v7312
      %7317 = vmatpush.msra.mxu0 %v7311
      %7318 = vmatpush.msra.mxu0 %v7310
      %7319 = vmatpush.msra.mxu0 %v7309
      %7320 = vmatpush.msra.mxu0 %v7308
      %7321 = vmatpush.msra.mxu0 %v7307
      %7322 = vmatpush.msra.mxu0 %v7306
      %7323 = vmatpush.msra.mxu0 %v7305
      %7324 = vmatpush.msra.mxu0 %v7304
      %7325 = vmatpush.msra.mxu0 %v7303
      %7326 = vmatpush.msra.mxu0 %v7302
      %7327 = vmatpush.msra.mxu0 %v7301
      %7328 = vmatpush.msra.mxu0 %v7300
      %7329 = vmatpush.msra.mxu0 %v7299
      %7330 = vmatpush.msra.mxu0 %v7298
      %7331 = vmatmul.f32.gmra.mxu0 %v7296
      %v7332 = vpop.f32.mrf.mxu0
      %v7333 = vadd.f32 %v7314, %v7332
      %7334 = vdwg.mxu0
      %v7335 = vmax.f32 %v7333, 0.0
      %v7336 = vld [vmem:[%s6] sm:$0xff]
      %v7337 = vld [vmem:[%s6 + $0x8] sm:$0xff]
      %v7338 = vld [vmem:[%s6 + $0x10] sm:$0xff]
      %v7339 = vld [vmem:[%s6 + $0x18] sm:$0xff]
      %v7340 = vld [vmem:[%s6 + $0x20] sm:$0xff]
      %v7341 = vld [vmem:[%s6 + $0x28] sm:$0xff]
      %v7342 = vld [vmem:[%s6 + $0x30] sm:$0xff]
      %v7343 = vld [vmem:[%s6 + $0x38] sm:$0xff]
      %v7344 = vld [vmem:[%s6 + $0x40] sm:$0xff]
      %v7345 = vld [vmem:[%s6 + $0x48] sm:$0xff]
      %v7346 = vld [vmem:[%s6 + $0x50] sm:$0xff]
      %v7347 = vld [vmem:[%s6 + $0x58] sm:$0xff]
      %v7348 = vld [vmem:[%s6 + $0x60] sm:$0xff]
      %v7349 = vld [vmem:[%s6 + $0x68] sm:$0xff]
      %v7350 = vld [vmem:[%s6 + $0x70] sm:$0xff]
      %v7351 = vld [vmem:[%s6 + $0x78] sm:$0xff]
      %v7352 = vld [vmem:[%s7] sm:$0x1]
      %7353 = vmatpush.msra.mxu0 %v7351
      %7354 = vmatpush.msra.mxu0 %v7350
      %7355 = vmatpush.msra.mxu0 %v7349
      %7356 = vmatpush.msra.mxu0 %v7348
      %7357 = vmatpush.msra.mxu0 %v7347
      %7358 = vmatpush.msra.mxu0 %v7346
      %7359 = vmatpush.msra.mxu0 %v7345
      %7360 = vmatpush.msra.mxu0 %v7344
      %7361 = vmatpush.msra.mxu0 %v7343
      %7362 = vmatpush.msra.mxu0 %v7342
      %7363 = vmatpush.msra.mxu0 %v7341
      %7364 = vmatpush.msra.mxu0 %v7340
      %7365 = vmatpush.msra.mxu0 %v7339
      %7366 = vmatpush.msra.mxu0 %v7338
      %7367 = vmatpush.msra.mxu0 %v7337
      %7368 = vmatpush.msra.mxu0 %v7336
      %7369 = vmatmul.f32.gmra.mxu0 %v7335
      %v7370 = vpop.f32.mrf.mxu0
      %v7371 = vadd.f32 %v7352, %v7370
      %7372 = vdwg.mxu0
      %v7373 = vxor.u32 %v7371, 2147483648
      %v7374 = vmul.f32 %v7373, 1.442695
      %v7375 = vpow.pop %v7374
      %v7376 = vadd.f32 %v7375, 1.0
      %v7377 = vrcp.pop %v7376
      %v7378 = vmul.f32 %v7376, %v7377
      %v7379 = vsub.f32 1.0, %v7378
      %v7380 = vmul.f32 %v7377, %v7379
      %v7381 = vadd.f32 %v7377, %v7380
      %vm7382 = vweird.f32 %v7376
      %vm7383 = vweird.f32 %v7377
      %vm7384 = vmor %vm7382, %vm7383
      %v7385 = vsel %vm7384, %v7377, %v7381
      %v7386 = vand.u32 2147483647, %v7376
      %vm7387 = vcmp.eq.f32.partialorder %v7386, 8.507059e+37
      %v7388 = vand.u32 %v7376, 2147483648
      %v7389 = vor.u32 1.1754944e-38, %v7388
      %v7390 = vsel %vm7387, %v7389, %v7385
      %v7391 = vmul.f32 1.0, %v7390
      %v7392 = vld [vmem:[%s8] sm:$0xff]
      %v7393 = vld [vmem:[%s8 + $0x8] sm:$0xff]
      %v7394 = vld [vmem:[%s8 + $0x10] sm:$0xff]
      %v7395 = vld [vmem:[%s8 + $0x18] sm:$0xff]
      %v7396 = vld [vmem:[%s8 + $0x20] sm:$0xff]
      %v7397 = vld [vmem:[%s8 + $0x28] sm:$0xff]
      %v7398 = vld [vmem:[%s8 + $0x30] sm:$0xff]
      %v7399 = vld [vmem:[%s8 + $0x38] sm:$0xff]
      %v7400 = vld [vmem:[%s8 + $0x40] sm:$0xff]
      %v7401 = vld [vmem:[%s8 + $0x48] sm:$0xff]
      %v7402 = vld [vmem:[%s8 + $0x50] sm:$0xff]
      %v7403 = vld [vmem:[%s8 + $0x58] sm:$0xff]
      %v7404 = vld [vmem:[%s8 + $0x60] sm:$0xff]
      %v7405 = vld [vmem:[%s8 + $0x68] sm:$0xff]
      %v7406 = vld [vmem:[%s8 + $0x70] sm:$0xff]
      %v7407 = vld [vmem:[%s8 + $0x78] sm:$0xff]
      %v7408 = vld [vmem:[%s9] sm:$0x1]
      %7409 = vmatpush.msra.mxu0 %v7407
      %7410 = vmatpush.msra.mxu0 %v7406
      %7411 = vmatpush.msra.mxu0 %v7405
      %7412 = vmatpush.msra.mxu0 %v7404
      %7413 = vmatpush.msra.mxu0 %v7403
      %7414 = vmatpush.msra.mxu0 %v7402
      %7415 = vmatpush.msra.mxu0 %v7401
      %7416 = vmatpush.msra.mxu0 %v7400
      %7417 = vmatpush.msra.mxu0 %v7399
      %7418 = vmatpush.msra.mxu0 %v7398
      %7419 = vmatpush.msra.mxu0 %v7397
      %7420 = vmatpush.msra.mxu0 %v7396
      %7421 = vmatpush.msra.mxu0 %v7395
      %7422 = vmatpush.msra.mxu0 %v7394
      %7423 = vmatpush.msra.mxu0 %v7393
      %7424 = vmatpush.msra.mxu0 %v7392
      %7425 = vmatmul.f32.gmra.mxu0 %v7297
      %v7426 = vpop.f32.mrf.mxu0
      %v7427 = vadd.f32 %v7408, %v7426
      %7428 = vdwg.mxu0
      %v7429 = vmax.f32 %v7427, 0.0
      %v7430 = vld [vmem:[%s10] sm:$0xff]
      %v7431 = vld [vmem:[%s10 + $0x8] sm:$0xff]
      %v7432 = vld [vmem:[%s10 + $0x10] sm:$0xff]
      %v7433 = vld [vmem:[%s10 + $0x18] sm:$0xff]
      %v7434 = vld [vmem:[%s10 + $0x20] sm:$0xff]
      %v7435 = vld [vmem:[%s10 + $0x28] sm:$0xff]
      %v7436 = vld [vmem:[%s10 + $0x30] sm:$0xff]
      %v7437 = vld [vmem:[%s10 + $0x38] sm:$0xff]
      %v7438 = vld [vmem:[%s10 + $0x40] sm:$0xff]
      %v7439 = vld [vmem:[%s10 + $0x48] sm:$0xff]
      %v7440 = vld [vmem:[%s10 + $0x50] sm:$0xff]
      %v7441 = vld [vmem:[%s10 + $0x58] sm:$0xff]
      %v7442 = vld [vmem:[%s10 + $0x60] sm:$0xff]
      %v7443 = vld [vmem:[%s10 + $0x68] sm:$0xff]
      %v7444 = vld [vmem:[%s10 + $0x70] sm:$0xff]
      %v7445 = vld [vmem:[%s10 + $0x78] sm:$0xff]
      %v7446 = vld [vmem:[%s11] sm:$0x1]
      %7447 = vmatpush.msra.mxu0 %v7445
      %7448 = vmatpush.msra.mxu0 %v7444
      %7449 = vmatpush.msra.mxu0 %v7443
      %7450 = vmatpush.msra.mxu0 %v7442
      %7451 = vmatpush.msra.mxu0 %v7441
      %7452 = vmatpush.msra.mxu0 %v7440
      %7453 = vmatpush.msra.mxu0 %v7439
      %7454 = vmatpush.msra.mxu0 %v7438
      %7455 = vmatpush.msra.mxu0 %v7437
      %7456 = vmatpush.msra.mxu0 %v7436
      %7457 = vmatpush.msra.mxu0 %v7435
      %7458 = vmatpush.msra.mxu0 %v7434
      %7459 = vmatpush.msra.mxu0 %v7433
      %7460 = vmatpush.msra.mxu0 %v7432
      %7461 = vmatpush.msra.mxu0 %v7431
      %7462 = vmatpush.msra.mxu0 %v7430
      %7463 = vmatmul.f32.gmra.mxu0 %v7429
      %v7464 = vpop.f32.mrf.mxu0
      %v7465 = vadd.f32 %v7446, %v7464
      %7466 = vdwg.mxu0
      %v7467 = vxor.u32 %v7465, 2147483648
      %v7468 = vmul.f32 %v7467, 1.442695
      %v7469 = vpow.pop %v7468
      %v7470 = vadd.f32 %v7469, 1.0
      %v7471 = vrcp.pop %v7470
      %v7472 = vmul.f32 %v7470, %v7471
      %v7473 = vsub.f32 1.0, %v7472
      %v7474 = vmul.f32 %v7471, %v7473
      %v7475 = vadd.f32 %v7471, %v7474
      %vm7476 = vweird.f32 %v7470
      %vm7477 = vweird.f32 %v7471
      %vm7478 = vmor %vm7476, %vm7477
      %v7479 = vsel %vm7478, %v7471, %v7475
      %v7480 = vand.u32 2147483647, %v7470
      %vm7481 = vcmp.eq.f32.partialorder %v7480, 8.507059e+37
      %v7482 = vand.u32 %v7470, 2147483648
      %v7483 = vor.u32 1.1754944e-38, %v7482
      %v7484 = vsel %vm7481, %v7483, %v7479
      %v7485 = vmul.f32 1.0, %v7484
      %v7486 = vld [vmem:[%s12] sm:$0xff]
      %v7487 = vld [vmem:[%s12 + $0x8] sm:$0xff]
      %v7488 = vld [vmem:[%s12 + $0x10] sm:$0xff]
      %v7489 = vld [vmem:[%s12 + $0x18] sm:$0xff]
      %v7490 = vld [vmem:[%s12 + $0x20] sm:$0xff]
      %v7491 = vld [vmem:[%s12 + $0x28] sm:$0xff]
      %v7492 = vld [vmem:[%s12 + $0x30] sm:$0xff]
      %v7493 = vld [vmem:[%s12 + $0x38] sm:$0xff]
      %v7494 = vld [vmem:[%s12 + $0x40] sm:$0xff]
      %v7495 = vld [vmem:[%s12 + $0x48] sm:$0xff]
      %v7496 = vld [vmem:[%s12 + $0x50] sm:$0xff]
      %v7497 = vld [vmem:[%s12 + $0x58] sm:$0xff]
      %v7498 = vld [vmem:[%s12 + $0x60] sm:$0xff]
      %v7499 = vld [vmem:[%s12 + $0x68] sm:$0xff]
      %v7500 = vld [vmem:[%s12 + $0x70] sm:$0xff]
      %v7501 = vld [vmem:[%s12 + $0x78] sm:$0xff]
      %v7502 = vperm.slane %v7391, 0
      %v7503 = vmul.f32 %v7143, %v7502
      %v7504 = vmul.f32 %v7144, %v7502
      %v7505 = vmul.f32 %v7145, %v7502
      %v7506 = vmul.f32 %v7146, %v7502
      %v7507 = vmul.f32 %v7147, %v7502
      %v7508 = vmul.f32 %v7148, %v7502
      %v7509 = vmul.f32 %v7149, %v7502
      %v7510 = vmul.f32 %v7150, %v7502
      %v7511 = vmul.f32 %v7151, %v7502
      %v7512 = vmul.f32 %v7152, %v7502
      %v7513 = vmul.f32 %v7153, %v7502
      %v7514 = vmul.f32 %v7154, %v7502
      %v7515 = vmul.f32 %v7155, %v7502
      %v7516 = vmul.f32 %v7156, %v7502
      %v7517 = vmul.f32 %v7157, %v7502
      %v7518 = vmul.f32 %v7158, %v7502
      %v7519 = vld [vmem:[%s13] sm:$0xff]
      %v7520 = vld [vmem:[%s13 + $0x8] sm:$0xff]
      %v7521 = vld [vmem:[%s13 + $0x10] sm:$0xff]
      %v7522 = vld [vmem:[%s13 + $0x18] sm:$0xff]
      %v7523 = vld [vmem:[%s13 + $0x20] sm:$0xff]
      %v7524 = vld [vmem:[%s13 + $0x28] sm:$0xff]
      %v7525 = vld [vmem:[%s13 + $0x30] sm:$0xff]
      %v7526 = vld [vmem:[%s13 + $0x38] sm:$0xff]
      %v7527 = vld [vmem:[%s13 + $0x40] sm:$0xff]
      %v7528 = vld [vmem:[%s13 + $0x48] sm:$0xff]
      %v7529 = vld [vmem:[%s13 + $0x50] sm:$0xff]
      %v7530 = vld [vmem:[%s13 + $0x58] sm:$0xff]
      %v7531 = vld [vmem:[%s13 + $0x60] sm:$0xff]
      %v7532 = vld [vmem:[%s13 + $0x68] sm:$0xff]
      %v7533 = vld [vmem:[%s13 + $0x70] sm:$0xff]
      %v7534 = vld [vmem:[%s13 + $0x78] sm:$0xff]
      %7535 = vmatpush.msra.mxu0 %v7534
      %7536 = vmatpush.msra.mxu0 %v7533
      %7537 = vmatpush.msra.mxu0 %v7532
      %7538 = vmatpush.msra.mxu0 %v7531
      %7539 = vmatpush.msra.mxu0 %v7530
      %7540 = vmatpush.msra.mxu0 %v7529
      %7541 = vmatpush.msra.mxu0 %v7528
      %7542 = vmatpush.msra.mxu0 %v7527
      %7543 = vmatpush.msra.mxu0 %v7526
      %7544 = vmatpush.msra.mxu0 %v7525
      %7545 = vmatpush.msra.mxu0 %v7524
      %7546 = vmatpush.msra.mxu0 %v7523
      %7547 = vmatpush.msra.mxu0 %v7522
      %7548 = vmatpush.msra.mxu0 %v7521
      %7549 = vmatpush.msra.mxu0 %v7520
      %7550 = vmatpush.msra.mxu0 %v7519
      %7551 = vmatmul.f32.gmra.mxu0 %v7503
      %v7552 = vpop.f32.mrf.mxu0
      %v7553 = vadd.f32 0.0, %v7552
      %7554 = vmatmul.f32.gmra.mxu0 %v7504
      %v7555 = vpop.f32.mrf.mxu0
      %v7556 = vadd.f32 0.0, %v7555
      %7557 = vmatmul.f32.gmra.mxu0 %v7505
      %v7558 = vpop.f32.mrf.mxu0
      %v7559 = vadd.f32 0.0, %v7558
      %7560 = vmatmul.f32.gmra.mxu0 %v7506
      %v7561 = vpop.f32.mrf.mxu0
      %v7562 = vadd.f32 0.0, %v7561
      %7563 = vmatmul.f32.gmra.mxu0 %v7507
      %v7564 = vpop.f32.mrf.mxu0
      %v7565 = vadd.f32 0.0, %v7564
      %7566 = vmatmul.f32.gmra.mxu0 %v7508
      %v7567 = vpop.f32.mrf.mxu0
      %v7568 = vadd.f32 0.0, %v7567
      %7569 = vmatmul.f32.gmra.mxu0 %v7509
      %v7570 = vpop.f32.mrf.mxu0
      %v7571 = vadd.f32 0.0, %v7570
      %7572 = vmatmul.f32.gmra.mxu0 %v7510
      %v7573 = vpop.f32.mrf.mxu0
      %v7574 = vadd.f32 0.0, %v7573
      %7575 = vmatmul.f32.gmra.mxu0 %v7511
      %v7576 = vpop.f32.mrf.mxu0
      %v7577 = vadd.f32 0.0, %v7576
      %7578 = vmatmul.f32.gmra.mxu0 %v7512
      %v7579 = vpop.f32.mrf.mxu0
      %v7580 = vadd.f32 0.0, %v7579
      %7581 = vmatmul.f32.gmra.mxu0 %v7513
      %v7582 = vpop.f32.mrf.mxu0
      %v7583 = vadd.f32 0.0, %v7582
      %7584 = vmatmul.f32.gmra.mxu0 %v7514
      %v7585 = vpop.f32.mrf.mxu0
      %v7586 = vadd.f32 0.0, %v7585
      %7587 = vmatmul.f32.gmra.mxu0 %v7515
      %v7588 = vpop.f32.mrf.mxu0
      %v7589 = vadd.f32 0.0, %v7588
      %7590 = vmatmul.f32.gmra.mxu0 %v7516
      %v7591 = vpop.f32.mrf.mxu0
      %v7592 = vadd.f32 0.0, %v7591
      %7593 = vmatmul.f32.gmra.mxu0 %v7517
      %v7594 = vpop.f32.mrf.mxu0
      %v7595 = vadd.f32 0.0, %v7594
      %7596 = vmatmul.f32.gmra.mxu0 %v7518
      %v7597 = vpop.f32.mrf.mxu0
      %v7598 = vadd.f32 0.0, %v7597
      %7599 = vdwg.mxu0
      %7600 = vmatpush.msra.mxu0 %v7501
      %7601 = vmatpush.msra.mxu0 %v7500
      %7602 = vmatpush.msra.mxu0 %v7499
      %7603 = vmatpush.msra.mxu0 %v7498
      %7604 = vmatpush.msra.mxu0 %v7497
      %7605 = vmatpush.msra.mxu0 %v7496
      %7606 = vmatpush.msra.mxu0 %v7495
      %7607 = vmatpush.msra.mxu0 %v7494
      %7608 = vmatpush.msra.mxu0 %v7493
      %7609 = vmatpush.msra.mxu0 %v7492
      %7610 = vmatpush.msra.mxu0 %v7491
      %7611 = vmatpush.msra.mxu0 %v7490
      %7612 = vmatpush.msra.mxu0 %v7489
      %7613 = vmatpush.msra.mxu0 %v7488
      %7614 = vmatpush.msra.mxu0 %v7487
      %7615 = vmatpush.msra.mxu0 %v7486
      %7616 = vmatmul.f32.gmra.mxu0 %v7181
      %v7617 = vpop.f32.mrf.mxu0
      %v7618 = vadd.f32 %v7553, %v7617
      %7619 = vmatmul.f32.gmra.mxu0 %v7182
      %v7620 = vpop.f32.mrf.mxu0
      %v7621 = vadd.f32 %v7556, %v7620
      %7622 = vmatmul.f32.gmra.mxu0 %v7183
      %v7623 = vpop.f32.mrf.mxu0
      %v7624 = vadd.f32 %v7559, %v7623
      %7625 = vmatmul.f32.gmra.mxu0 %v7184
      %v7626 = vpop.f32.mrf.mxu0
      %v7627 = vadd.f32 %v7562, %v7626
      %7628 = vmatmul.f32.gmra.mxu0 %v7185
      %v7629 = vpop.f32.mrf.mxu0
      %v7630 = vadd.f32 %v7565, %v7629
      %7631 = vmatmul.f32.gmra.mxu0 %v7186
      %v7632 = vpop.f32.mrf.mxu0
      %v7633 = vadd.f32 %v7568, %v7632
      %7634 = vmatmul.f32.gmra.mxu0 %v7187
      %v7635 = vpop.f32.mrf.mxu0
      %v7636 = vadd.f32 %v7571, %v7635
      %7637 = vmatmul.f32.gmra.mxu0 %v7188
      %v7638 = vpop.f32.mrf.mxu0
      %v7639 = vadd.f32 %v7574, %v7638
      %7640 = vmatmul.f32.gmra.mxu0 %v7189
      %v7641 = vpop.f32.mrf.mxu0
      %v7642 = vadd.f32 %v7577, %v7641
      %7643 = vmatmul.f32.gmra.mxu0 %v7190
      %v7644 = vpop.f32.mrf.mxu0
      %v7645 = vadd.f32 %v7580, %v7644
      %7646 = vmatmul.f32.gmra.mxu0 %v7191
      %v7647 = vpop.f32.mrf.mxu0
      %v7648 = vadd.f32 %v7583, %v7647
      %7649 = vmatmul.f32.gmra.mxu0 %v7192
      %v7650 = vpop.f32.mrf.mxu0
      %v7651 = vadd.f32 %v7586, %v7650
      %7652 = vmatmul.f32.gmra.mxu0 %v7193
      %v7653 = vpop.f32.mrf.mxu0
      %v7654 = vadd.f32 %v7589, %v7653
      %7655 = vmatmul.f32.gmra.mxu0 %v7194
      %v7656 = vpop.f32.mrf.mxu0
      %v7657 = vadd.f32 %v7592, %v7656
      %7658 = vmatmul.f32.gmra.mxu0 %v7195
      %v7659 = vpop.f32.mrf.mxu0
      %v7660 = vadd.f32 %v7595, %v7659
      %7661 = vmatmul.f32.gmra.mxu0 %v7196
      %v7662 = vpop.f32.mrf.mxu0
      %v7663 = vadd.f32 %v7598, %v7662
      %7664 = vdwg.mxu0
      %v7665 = vld [vmem:[%s14] sm:$0x1]
      %v7667 = vperm.slane %v7665, 0
      %v7669 = vadd.f32 %v7618, %v7667
      %v7670 = vadd.f32 %v7621, %v7667
      %v7671 = vadd.f32 %v7624, %v7667
      %v7672 = vadd.f32 %v7627, %v7667
      %v7673 = vadd.f32 %v7630, %v7667
      %v7674 = vadd.f32 %v7633, %v7667
      %v7675 = vadd.f32 %v7636, %v7667
      %v7676 = vadd.f32 %v7639, %v7667
      %v7677 = vadd.f32 %v7642, %v7667
      %v7678 = vadd.f32 %v7645, %v7667
      %v7679 = vadd.f32 %v7648, %v7667
      %v7680 = vadd.f32 %v7651, %v7667
      %v7681 = vadd.f32 %v7654, %v7667
      %v7682 = vadd.f32 %v7657, %v7667
      %v7683 = vadd.f32 %v7660, %v7667
      %v7684 = vadd.f32 %v7663, %v7667
      %v7685 = vld [vmem:[%s15] sm:$0xff]
      %v7686 = vld [vmem:[%s15 + $0x8] sm:$0xff]
      %v7687 = vld [vmem:[%s15 + $0x10] sm:$0xff]
      %v7688 = vld [vmem:[%s15 + $0x18] sm:$0xff]
      %v7689 = vld [vmem:[%s15 + $0x20] sm:$0xff]
      %v7690 = vld [vmem:[%s15 + $0x28] sm:$0xff]
      %v7691 = vld [vmem:[%s15 + $0x30] sm:$0xff]
      %v7692 = vld [vmem:[%s15 + $0x38] sm:$0xff]
      %v7693 = vld [vmem:[%s15 + $0x40] sm:$0xff]
      %v7694 = vld [vmem:[%s15 + $0x48] sm:$0xff]
      %v7695 = vld [vmem:[%s15 + $0x50] sm:$0xff]
      %v7696 = vld [vmem:[%s15 + $0x58] sm:$0xff]
      %v7697 = vld [vmem:[%s15 + $0x60] sm:$0xff]
      %v7698 = vld [vmem:[%s15 + $0x68] sm:$0xff]
      %v7699 = vld [vmem:[%s15 + $0x70] sm:$0xff]
      %v7700 = vld [vmem:[%s15 + $0x78] sm:$0xff]
      %v7701 = vperm.slane %v7485, 0
      %v7702 = vmul.f32 %v7181, %v7701
      %v7703 = vmul.f32 %v7182, %v7701
      %v7704 = vmul.f32 %v7183, %v7701
      %v7705 = vmul.f32 %v7184, %v7701
      %v7706 = vmul.f32 %v7185, %v7701
      %v7707 = vmul.f32 %v7186, %v7701
      %v7708 = vmul.f32 %v7187, %v7701
      %v7709 = vmul.f32 %v7188, %v7701
      %v7710 = vmul.f32 %v7189, %v7701
      %v7711 = vmul.f32 %v7190, %v7701
      %v7712 = vmul.f32 %v7191, %v7701
      %v7713 = vmul.f32 %v7192, %v7701
      %v7714 = vmul.f32 %v7193, %v7701
      %v7715 = vmul.f32 %v7194, %v7701
      %v7716 = vmul.f32 %v7195, %v7701
      %v7717 = vmul.f32 %v7196, %v7701
      %v7718 = vld [vmem:[%s16] sm:$0xff]
      %v7719 = vld [vmem:[%s16 + $0x8] sm:$0xff]
      %v7720 = vld [vmem:[%s16 + $0x10] sm:$0xff]
      %v7721 = vld [vmem:[%s16 + $0x18] sm:$0xff]
      %v7722 = vld [vmem:[%s16 + $0x20] sm:$0xff]
      %v7723 = vld [vmem:[%s16 + $0x28] sm:$0xff]
      %v7724 = vld [vmem:[%s16 + $0x30] sm:$0xff]
      %v7725 = vld [vmem:[%s16 + $0x38] sm:$0xff]
      %v7726 = vld [vmem:[%s16 + $0x40] sm:$0xff]
      %v7727 = vld [vmem:[%s16 + $0x48] sm:$0xff]
      %v7728 = vld [vmem:[%s16 + $0x50] sm:$0xff]
      %v7729 = vld [vmem:[%s16 + $0x58] sm:$0xff]
      %v7730 = vld [vmem:[%s16 + $0x60] sm:$0xff]
      %v7731 = vld [vmem:[%s16 + $0x68] sm:$0xff]
      %v7732 = vld [vmem:[%s16 + $0x70] sm:$0xff]
      %v7733 = vld [vmem:[%s16 + $0x78] sm:$0xff]
      %7734 = vmatpush.msra.mxu0 %v7733
      %7735 = vmatpush.msra.mxu0 %v7732
      %7736 = vmatpush.msra.mxu0 %v7731
      %7737 = vmatpush.msra.mxu0 %v7730
      %7738 = vmatpush.msra.mxu0 %v7729
      %7739 = vmatpush.msra.mxu0 %v7728
      %7740 = vmatpush.msra.mxu0 %v7727
      %7741 = vmatpush.msra.mxu0 %v7726
      %7742 = vmatpush.msra.mxu0 %v7725
      %7743 = vmatpush.msra.mxu0 %v7724
      %7744 = vmatpush.msra.mxu0 %v7723
      %7745 = vmatpush.msra.mxu0 %v7722
      %7746 = vmatpush.msra.mxu0 %v7721
      %7747 = vmatpush.msra.mxu0 %v7720
      %7748 = vmatpush.msra.mxu0 %v7719
      %7749 = vmatpush.msra.mxu0 %v7718
      %7750 = vmatmul.f32.gmra.mxu0 %v7702
      %v7751 = vpop.f32.mrf.mxu0
      %v7752 = vadd.f32 0.0, %v7751
      %7753 = vmatmul.f32.gmra.mxu0 %v7703
      %v7754 = vpop.f32.mrf.mxu0
      %v7755 = vadd.f32 0.0, %v7754
      %7756 = vmatmul.f32.gmra.mxu0 %v7704
      %v7757 = vpop.f32.mrf.mxu0
      %v7758 = vadd.f32 0.0, %v7757
      %7759 = vmatmul.f32.gmra.mxu0 %v7705
      %v7760 = vpop.f32.mrf.mxu0
      %v7761 = vadd.f32 0.0, %v7760
      %7762 = vmatmul.f32.gmra.mxu0 %v7706
      %v7763 = vpop.f32.mrf.mxu0
      %v7764 = vadd.f32 0.0, %v7763
      %7765 = vmatmul.f32.gmra.mxu0 %v7707
      %v7766 = vpop.f32.mrf.mxu0
      %v7767 = vadd.f32 0.0, %v7766
      %7768 = vmatmul.f32.gmra.mxu0 %v7708
      %v7769 = vpop.f32.mrf.mxu0
      %v7770 = vadd.f32 0.0, %v7769
      %7771 = vmatmul.f32.gmra.mxu0 %v7709
      %v7772 = vpop.f32.mrf.mxu0
      %v7773 = vadd.f32 0.0, %v7772
      %7774 = vmatmul.f32.gmra.mxu0 %v7710
      %v7775 = vpop.f32.mrf.mxu0
      %v7776 = vadd.f32 0.0, %v7775
      %7777 = vmatmul.f32.gmra.mxu0 %v7711
      %v7778 = vpop.f32.mrf.mxu0
      %v7779 = vadd.f32 0.0, %v7778
      %7780 = vmatmul.f32.gmra.mxu0 %v7712
      %v7781 = vpop.f32.mrf.mxu0
      %v7782 = vadd.f32 0.0, %v7781
      %7783 = vmatmul.f32.gmra.mxu0 %v7713
      %v7784 = vpop.f32.mrf.mxu0
      %v7785 = vadd.f32 0.0, %v7784
      %7786 = vmatmul.f32.gmra.mxu0 %v7714
      %v7787 = vpop.f32.mrf.mxu0
      %v7788 = vadd.f32 0.0, %v7787
      %7789 = vmatmul.f32.gmra.mxu0 %v7715
      %v7790 = vpop.f32.mrf.mxu0
      %v7791 = vadd.f32 0.0, %v7790
      %7792 = vmatmul.f32.gmra.mxu0 %v7716
      %v7793 = vpop.f32.mrf.mxu0
      %v7794 = vadd.f32 0.0, %v7793
      %7795 = vmatmul.f32.gmra.mxu0 %v7717
      %v7796 = vpop.f32.mrf.mxu0
      %v7797 = vadd.f32 0.0, %v7796
      %7798 = vdwg.mxu0
      %7799 = vmatpush.msra.mxu0 %v7700
      %7800 = vmatpush.msra.mxu0 %v7699
      %7801 = vmatpush.msra.mxu0 %v7698
      %7802 = vmatpush.msra.mxu0 %v7697
      %7803 = vmatpush.msra.mxu0 %v7696
      %7804 = vmatpush.msra.mxu0 %v7695
      %7805 = vmatpush.msra.mxu0 %v7694
      %7806 = vmatpush.msra.mxu0 %v7693
      %7807 = vmatpush.msra.mxu0 %v7692
      %7808 = vmatpush.msra.mxu0 %v7691
      %7809 = vmatpush.msra.mxu0 %v7690
      %7810 = vmatpush.msra.mxu0 %v7689
      %7811 = vmatpush.msra.mxu0 %v7688
      %7812 = vmatpush.msra.mxu0 %v7687
      %7813 = vmatpush.msra.mxu0 %v7686
      %7814 = vmatpush.msra.mxu0 %v7685
      %7815 = vmatmul.f32.gmra.mxu0 %v7143
      %v7816 = vpop.f32.mrf.mxu0
      %v7817 = vadd.f32 %v7752, %v7816
      %7818 = vmatmul.f32.gmra.mxu0 %v7144
      %v7819 = vpop.f32.mrf.mxu0
      %v7820 = vadd.f32 %v7755, %v7819
      %7821 = vmatmul.f32.gmra.mxu0 %v7145
      %v7822 = vpop.f32.mrf.mxu0
      %v7823 = vadd.f32 %v7758, %v7822
      %7824 = vmatmul.f32.gmra.mxu0 %v7146
      %v7825 = vpop.f32.mrf.mxu0
      %v7826 = vadd.f32 %v7761, %v7825
      %7827 = vmatmul.f32.gmra.mxu0 %v7147
      %v7828 = vpop.f32.mrf.mxu0
      %v7829 = vadd.f32 %v7764, %v7828
      %7830 = vmatmul.f32.gmra.mxu0 %v7148
      %v7831 = vpop.f32.mrf.mxu0
      %v7832 = vadd.f32 %v7767, %v7831
      %7833 = vmatmul.f32.gmra.mxu0 %v7149
      %v7834 = vpop.f32.mrf.mxu0
      %v7835 = vadd.f32 %v7770, %v7834
      %7836 = vmatmul.f32.gmra.mxu0 %v7150
      %v7837 = vpop.f32.mrf.mxu0
      %v7838 = vadd.f32 %v7773, %v7837
      %7839 = vmatmul.f32.gmra.mxu0 %v7151
      %v7840 = vpop.f32.mrf.mxu0
      %v7841 = vadd.f32 %v7776, %v7840
      %7842 = vmatmul.f32.gmra.mxu0 %v7152
      %v7843 = vpop.f32.mrf.mxu0
      %v7844 = vadd.f32 %v7779, %v7843
      %7845 = vmatmul.f32.gmra.mxu0 %v7153
      %v7846 = vpop.f32.mrf.mxu0
      %v7847 = vadd.f32 %v7782, %v7846
      %7848 = vmatmul.f32.gmra.mxu0 %v7154
      %v7849 = vpop.f32.mrf.mxu0
      %v7850 = vadd.f32 %v7785, %v7849
      %7851 = vmatmul.f32.gmra.mxu0 %v7155
      %v7852 = vpop.f32.mrf.mxu0
      %v7853 = vadd.f32 %v7788, %v7852
      %7854 = vmatmul.f32.gmra.mxu0 %v7156
      %v7855 = vpop.f32.mrf.mxu0
      %v7856 = vadd.f32 %v7791, %v7855
      %7857 = vmatmul.f32.gmra.mxu0 %v7157
      %v7858 = vpop.f32.mrf.mxu0
      %v7859 = vadd.f32 %v7794, %v7858
      %7860 = vmatmul.f32.gmra.mxu0 %v7158
      %v7861 = vpop.f32.mrf.mxu0
      %v7862 = vadd.f32 %v7797, %v7861
      %7863 = vdwg.mxu0
      %v7864 = vld [vmem:[%s17] sm:$0x1]
      %v7866 = vperm.slane %v7864, 0
      %v7868 = vadd.f32 %v7817, %v7866
      %v7869 = vadd.f32 %v7820, %v7866
      %v7870 = vadd.f32 %v7823, %v7866
      %v7871 = vadd.f32 %v7826, %v7866
      %v7872 = vadd.f32 %v7829, %v7866
      %v7873 = vadd.f32 %v7832, %v7866
      %v7874 = vadd.f32 %v7835, %v7866
      %v7875 = vadd.f32 %v7838, %v7866
      %v7876 = vadd.f32 %v7841, %v7866
      %v7877 = vadd.f32 %v7844, %v7866
      %v7878 = vadd.f32 %v7847, %v7866
      %v7879 = vadd.f32 %v7850, %v7866
      %v7880 = vadd.f32 %v7853, %v7866
      %v7881 = vadd.f32 %v7856, %v7866
      %v7882 = vadd.f32 %v7859, %v7866
      %v7883 = vadd.f32 %v7862, %v7866
      %v7884 = vld [vmem:[%s18] sm:$0xff]
      %v7885 = vld [vmem:[%s18 + $0x8] sm:$0xff]
      %v7886 = vld [vmem:[%s18 + $0x10] sm:$0xff]
      %v7887 = vld [vmem:[%s18 + $0x18] sm:$0xff]
      %v7888 = vld [vmem:[%s18 + $0x20] sm:$0xff]
      %v7889 = vld [vmem:[%s18 + $0x28] sm:$0xff]
      %v7890 = vld [vmem:[%s18 + $0x30] sm:$0xff]
      %v7891 = vld [vmem:[%s18 + $0x38] sm:$0xff]
      %v7892 = vld [vmem:[%s18 + $0x40] sm:$0xff]
      %v7893 = vld [vmem:[%s18 + $0x48] sm:$0xff]
      %v7894 = vld [vmem:[%s18 + $0x50] sm:$0xff]
      %v7895 = vld [vmem:[%s18 + $0x58] sm:$0xff]
      %v7896 = vld [vmem:[%s18 + $0x60] sm:$0xff]
      %v7897 = vld [vmem:[%s18 + $0x68] sm:$0xff]
      %v7898 = vld [vmem:[%s18 + $0x70] sm:$0xff]
      %v7899 = vld [vmem:[%s18 + $0x78] sm:$0xff]
      %v7900 = vld [vmem:[%s19] sm:$0xff]
      %v7901 = vld [vmem:[%s19 + $0x8] sm:$0xff]
      %v7902 = vld [vmem:[%s19 + $0x10] sm:$0xff]
      %v7903 = vld [vmem:[%s19 + $0x18] sm:$0xff]
      %v7904 = vld [vmem:[%s19 + $0x20] sm:$0xff]
      %v7905 = vld [vmem:[%s19 + $0x28] sm:$0xff]
      %v7906 = vld [vmem:[%s19 + $0x30] sm:$0xff]
      %v7907 = vld [vmem:[%s19 + $0x38] sm:$0xff]
      %v7908 = vld [vmem:[%s19 + $0x40] sm:$0xff]
      %v7909 = vld [vmem:[%s19 + $0x48] sm:$0xff]
      %v7910 = vld [vmem:[%s19 + $0x50] sm:$0xff]
      %v7911 = vld [vmem:[%s19 + $0x58] sm:$0xff]
      %v7912 = vld [vmem:[%s19 + $0x60] sm:$0xff]
      %v7913 = vld [vmem:[%s19 + $0x68] sm:$0xff]
      %v7914 = vld [vmem:[%s19 + $0x70] sm:$0xff]
      %v7915 = vld [vmem:[%s19 + $0x78] sm:$0xff]
      %7916 = vmatpush.msra.mxu0 %v7915
      %7917 = vmatpush.msra.mxu0 %v7914
      %7918 = vmatpush.msra.mxu0 %v7913
      %7919 = vmatpush.msra.mxu0 %v7912
      %7920 = vmatpush.msra.mxu0 %v7911
      %7921 = vmatpush.msra.mxu0 %v7910
      %7922 = vmatpush.msra.mxu0 %v7909
      %7923 = vmatpush.msra.mxu0 %v7908
      %7924 = vmatpush.msra.mxu0 %v7907
      %7925 = vmatpush.msra.mxu0 %v7906
      %7926 = vmatpush.msra.mxu0 %v7905
      %7927 = vmatpush.msra.mxu0 %v7904
      %7928 = vmatpush.msra.mxu0 %v7903
      %7929 = vmatpush.msra.mxu0 %v7902
      %7930 = vmatpush.msra.mxu0 %v7901
      %7931 = vmatpush.msra.mxu0 %v7900
      %7932 = vmatmul.f32.gmra.mxu0 %v7868
      %v7933 = vpop.f32.mrf.mxu0
      %v7934 = vadd.f32 0.0, %v7933
      %7935 = vmatmul.f32.gmra.mxu0 %v7869
      %v7936 = vpop.f32.mrf.mxu0
      %v7937 = vadd.f32 0.0, %v7936
      %7938 = vmatmul.f32.gmra.mxu0 %v7870
      %v7939 = vpop.f32.mrf.mxu0
      %v7940 = vadd.f32 0.0, %v7939
      %7941 = vmatmul.f32.gmra.mxu0 %v7871
      %v7942 = vpop.f32.mrf.mxu0
      %v7943 = vadd.f32 0.0, %v7942
      %7944 = vmatmul.f32.gmra.mxu0 %v7872
      %v7945 = vpop.f32.mrf.mxu0
      %v7946 = vadd.f32 0.0, %v7945
      %7947 = vmatmul.f32.gmra.mxu0 %v7873
      %v7948 = vpop.f32.mrf.mxu0
      %v7949 = vadd.f32 0.0, %v7948
      %7950 = vmatmul.f32.gmra.mxu0 %v7874
      %v7951 = vpop.f32.mrf.mxu0
      %v7952 = vadd.f32 0.0, %v7951
      %7953 = vmatmul.f32.gmra.mxu0 %v7875
      %v7954 = vpop.f32.mrf.mxu0
      %v7955 = vadd.f32 0.0, %v7954
      %7956 = vmatmul.f32.gmra.mxu0 %v7876
      %v7957 = vpop.f32.mrf.mxu0
      %v7958 = vadd.f32 0.0, %v7957
      %7959 = vmatmul.f32.gmra.mxu0 %v7877
      %v7960 = vpop.f32.mrf.mxu0
      %v7961 = vadd.f32 0.0, %v7960
      %7962 = vmatmul.f32.gmra.mxu0 %v7878
      %v7963 = vpop.f32.mrf.mxu0
      %v7964 = vadd.f32 0.0, %v7963
      %7965 = vmatmul.f32.gmra.mxu0 %v7879
      %v7966 = vpop.f32.mrf.mxu0
      %v7967 = vadd.f32 0.0, %v7966
      %7968 = vmatmul.f32.gmra.mxu0 %v7880
      %v7969 = vpop.f32.mrf.mxu0
      %v7970 = vadd.f32 0.0, %v7969
      %7971 = vmatmul.f32.gmra.mxu0 %v7881
      %v7972 = vpop.f32.mrf.mxu0
      %v7973 = vadd.f32 0.0, %v7972
      %7974 = vmatmul.f32.gmra.mxu0 %v7882
      %v7975 = vpop.f32.mrf.mxu0
      %v7976 = vadd.f32 0.0, %v7975
      %7977 = vmatmul.f32.gmra.mxu0 %v7883
      %v7978 = vpop.f32.mrf.mxu0
      %v7979 = vadd.f32 0.0, %v7978
      %7980 = vdwg.mxu0
      %7981 = vmatpush.msra.mxu0 %v7899
      %7982 = vmatpush.msra.mxu0 %v7898
      %7983 = vmatpush.msra.mxu0 %v7897
      %7984 = vmatpush.msra.mxu0 %v7896
      %7985 = vmatpush.msra.mxu0 %v7895
      %7986 = vmatpush.msra.mxu0 %v7894
      %7987 = vmatpush.msra.mxu0 %v7893
      %7988 = vmatpush.msra.mxu0 %v7892
      %7989 = vmatpush.msra.mxu0 %v7891
      %7990 = vmatpush.msra.mxu0 %v7890
      %7991 = vmatpush.msra.mxu0 %v7889
      %7992 = vmatpush.msra.mxu0 %v7888
      %7993 = vmatpush.msra.mxu0 %v7887
      %7994 = vmatpush.msra.mxu0 %v7886
      %7995 = vmatpush.msra.mxu0 %v7885
      %7996 = vmatpush.msra.mxu0 %v7884
      %7997 = vmatmul.f32.gmra.mxu0 %v7669
      %v7998 = vpop.f32.mrf.mxu0
      %v7999 = vadd.f32 %v7934, %v7998
      %8000 = vmatmul.f32.gmra.mxu0 %v7670
      %v8001 = vpop.f32.mrf.mxu0
      %v8002 = vadd.f32 %v7937, %v8001
      %8003 = vmatmul.f32.gmra.mxu0 %v7671
      %v8004 = vpop.f32.mrf.mxu0
      %v8005 = vadd.f32 %v7940, %v8004
      %8006 = vmatmul.f32.gmra.mxu0 %v7672
      %v8007 = vpop.f32.mrf.mxu0
      %v8008 = vadd.f32 %v7943, %v8007
      %8009 = vmatmul.f32.gmra.mxu0 %v7673
      %v8010 = vpop.f32.mrf.mxu0
      %v8011 = vadd.f32 %v7946, %v8010
      %8012 = vmatmul.f32.gmra.mxu0 %v7674
      %v8013 = vpop.f32.mrf.mxu0
      %v8014 = vadd.f32 %v7949, %v8013
      %8015 = vmatmul.f32.gmra.mxu0 %v7675
      %v8016 = vpop.f32.mrf.mxu0
      %v8017 = vadd.f32 %v7952, %v8016
      %8018 = vmatmul.f32.gmra.mxu0 %v7676
      %v8019 = vpop.f32.mrf.mxu0
      %v8020 = vadd.f32 %v7955, %v8019
      %8021 = vmatmul.f32.gmra.mxu0 %v7677
      %v8022 = vpop.f32.mrf.mxu0
      %v8023 = vadd.f32 %v7958, %v8022
      %8024 = vmatmul.f32.gmra.mxu0 %v7678
      %v8025 = vpop.f32.mrf.mxu0
      %v8026 = vadd.f32 %v7961, %v8025
      %8027 = vmatmul.f32.gmra.mxu0 %v7679
      %v8028 = vpop.f32.mrf.mxu0
      %v8029 = vadd.f32 %v7964, %v8028
      %8030 = vmatmul.f32.gmra.mxu0 %v7680
      %v8031 = vpop.f32.mrf.mxu0
      %v8032 = vadd.f32 %v7967, %v8031
      %8033 = vmatmul.f32.gmra.mxu0 %v7681
      %v8034 = vpop.f32.mrf.mxu0
      %v8035 = vadd.f32 %v7970, %v8034
      %8036 = vmatmul.f32.gmra.mxu0 %v7682
      %v8037 = vpop.f32.mrf.mxu0
      %v8038 = vadd.f32 %v7973, %v8037
      %8039 = vmatmul.f32.gmra.mxu0 %v7683
      %v8040 = vpop.f32.mrf.mxu0
      %v8041 = vadd.f32 %v7976, %v8040
      %8042 = vmatmul.f32.gmra.mxu0 %v7684
      %v8043 = vpop.f32.mrf.mxu0
      %v8044 = vadd.f32 %v7979, %v8043
      %8045 = vdwg.mxu0
      %v8046 = vld [vmem:[%s20] sm:$0x1]
      %v8048 = vperm.slane %v8046, 0
      %v8050 = vadd.f32 %v7999, %v8048
      %v8051 = vadd.f32 %v8002, %v8048
      %v8052 = vadd.f32 %v8005, %v8048
      %v8053 = vadd.f32 %v8008, %v8048
      %v8054 = vadd.f32 %v8011, %v8048
      %v8055 = vadd.f32 %v8014, %v8048
      %v8056 = vadd.f32 %v8017, %v8048
      %v8057 = vadd.f32 %v8020, %v8048
      %v8058 = vadd.f32 %v8023, %v8048
      %v8059 = vadd.f32 %v8026, %v8048
      %v8060 = vadd.f32 %v8029, %v8048
      %v8061 = vadd.f32 %v8032, %v8048
      %v8062 = vadd.f32 %v8035, %v8048
      %v8063 = vadd.f32 %v8038, %v8048
      %v8064 = vadd.f32 %v8041, %v8048
      %v8065 = vadd.f32 %v8044, %v8048
      %8066 = vst [vmem:[%s676] sm:$0xff] %v8050
      %8067 = vst [vmem:[%s676 + $0x8] sm:$0xff] %v8051
      %8068 = vst [vmem:[%s676 + $0x10] sm:$0xff] %v8052
      %8069 = vst [vmem:[%s676 + $0x18] sm:$0xff] %v8053
      %8070 = vst [vmem:[%s676 + $0x20] sm:$0xff] %v8054
      %8071 = vst [vmem:[%s676 + $0x28] sm:$0xff] %v8055
      %8072 = vst [vmem:[%s676 + $0x30] sm:$0xff] %v8056
      %8073 = vst [vmem:[%s676 + $0x38] sm:$0xff] %v8057
      %8074 = vst [vmem:[%s676 + $0x40] sm:$0xff] %v8058
      %8075 = vst [vmem:[%s676 + $0x48] sm:$0xff] %v8059
      %8076 = vst [vmem:[%s676 + $0x50] sm:$0xff] %v8060
      %8077 = vst [vmem:[%s676 + $0x58] sm:$0xff] %v8061
      %8078 = vst [vmem:[%s676 + $0x60] sm:$0xff] %v8062
      %8079 = vst [vmem:[%s676 + $0x68] sm:$0xff] %v8063
      %8080 = vst [vmem:[%s676 + $0x70] sm:$0xff] %v8064
      %8081 = vst [vmem:[%s676 + $0x78] sm:$0xff] %v8065
      %v8082 = vld [vmem:[%s7126] sm:$0xff]
      %v8083 = vld [vmem:[%s7126 + $0x8] sm:$0xff]
      %v8084 = vld [vmem:[%s7126 + $0x10] sm:$0xff]
      %v8085 = vld [vmem:[%s7126 + $0x18] sm:$0xff]
      %v8086 = vld [vmem:[%s7126 + $0x20] sm:$0xff]
      %v8087 = vld [vmem:[%s7126 + $0x28] sm:$0xff]
      %v8088 = vld [vmem:[%s7126 + $0x30] sm:$0xff]
      %v8089 = vld [vmem:[%s7126 + $0x38] sm:$0xff]
      %v8090 = vld [vmem:[%s7126 + $0x40] sm:$0xff]
      %v8091 = vld [vmem:[%s7126 + $0x48] sm:$0xff]
      %v8092 = vld [vmem:[%s7126 + $0x50] sm:$0xff]
      %v8093 = vld [vmem:[%s7126 + $0x58] sm:$0xff]
      %v8094 = vld [vmem:[%s7126 + $0x60] sm:$0xff]
      %v8095 = vld [vmem:[%s7126 + $0x68] sm:$0xff]
      %v8096 = vld [vmem:[%s7126 + $0x70] sm:$0xff]
      %v8097 = vld [vmem:[%s7126 + $0x78] sm:$0xff]
      %v8098 = vld [vmem:[%s7257] sm:$0xff]
      %v8099 = vld [vmem:[%s7257 + $0x8] sm:$0xff]
      %v8100 = vld [vmem:[%s7257 + $0x10] sm:$0xff]
      %v8101 = vld [vmem:[%s7257 + $0x18] sm:$0xff]
      %v8102 = vld [vmem:[%s7257 + $0x20] sm:$0xff]
      %v8103 = vld [vmem:[%s7257 + $0x28] sm:$0xff]
      %v8104 = vld [vmem:[%s7257 + $0x30] sm:$0xff]
      %v8105 = vld [vmem:[%s7257 + $0x38] sm:$0xff]
      %v8106 = vld [vmem:[%s7257 + $0x40] sm:$0xff]
      %v8107 = vld [vmem:[%s7257 + $0x48] sm:$0xff]
      %v8108 = vld [vmem:[%s7257 + $0x50] sm:$0xff]
      %v8109 = vld [vmem:[%s7257 + $0x58] sm:$0xff]
      %v8110 = vld [vmem:[%s7257 + $0x60] sm:$0xff]
      %v8111 = vld [vmem:[%s7257 + $0x68] sm:$0xff]
      %v8112 = vld [vmem:[%s7257 + $0x70] sm:$0xff]
      %v8113 = vld [vmem:[%s7257 + $0x78] sm:$0xff]
      %v8114 = vld [vmem:[%s12] sm:$0xff]
      %v8115 = vld [vmem:[%s12 + $0x8] sm:$0xff]
      %v8116 = vld [vmem:[%s12 + $0x10] sm:$0xff]
      %v8117 = vld [vmem:[%s12 + $0x18] sm:$0xff]
      %v8118 = vld [vmem:[%s12 + $0x20] sm:$0xff]
      %v8119 = vld [vmem:[%s12 + $0x28] sm:$0xff]
      %v8120 = vld [vmem:[%s12 + $0x30] sm:$0xff]
      %v8121 = vld [vmem:[%s12 + $0x38] sm:$0xff]
      %v8122 = vld [vmem:[%s12 + $0x40] sm:$0xff]
      %v8123 = vld [vmem:[%s12 + $0x48] sm:$0xff]
      %v8124 = vld [vmem:[%s12 + $0x50] sm:$0xff]
      %v8125 = vld [vmem:[%s12 + $0x58] sm:$0xff]
      %v8126 = vld [vmem:[%s12 + $0x60] sm:$0xff]
      %v8127 = vld [vmem:[%s12 + $0x68] sm:$0xff]
      %v8128 = vld [vmem:[%s12 + $0x70] sm:$0xff]
      %v8129 = vld [vmem:[%s12 + $0x78] sm:$0xff]
      %v8130 = vmul.f32 %v8082, %v7502
      %v8131 = vmul.f32 %v8083, %v7502
      %v8132 = vmul.f32 %v8084, %v7502
      %v8133 = vmul.f32 %v8085, %v7502
      %v8134 = vmul.f32 %v8086, %v7502
      %v8135 = vmul.f32 %v8087, %v7502
      %v8136 = vmul.f32 %v8088, %v7502
      %v8137 = vmul.f32 %v8089, %v7502
      %v8138 = vmul.f32 %v8090, %v7502
      %v8139 = vmul.f32 %v8091, %v7502
      %v8140 = vmul.f32 %v8092, %v7502
      %v8141 = vmul.f32 %v8093, %v7502
      %v8142 = vmul.f32 %v8094, %v7502
      %v8143 = vmul.f32 %v8095, %v7502
      %v8144 = vmul.f32 %v8096, %v7502
      %v8145 = vmul.f32 %v8097, %v7502
      %v8146 = vld [vmem:[%s13] sm:$0xff]
      %v8147 = vld [vmem:[%s13 + $0x8] sm:$0xff]
      %v8148 = vld [vmem:[%s13 + $0x10] sm:$0xff]
      %v8149 = vld [vmem:[%s13 + $0x18] sm:$0xff]
      %v8150 = vld [vmem:[%s13 + $0x20] sm:$0xff]
      %v8151 = vld [vmem:[%s13 + $0x28] sm:$0xff]
      %v8152 = vld [vmem:[%s13 + $0x30] sm:$0xff]
      %v8153 = vld [vmem:[%s13 + $0x38] sm:$0xff]
      %v8154 = vld [vmem:[%s13 + $0x40] sm:$0xff]
      %v8155 = vld [vmem:[%s13 + $0x48] sm:$0xff]
      %v8156 = vld [vmem:[%s13 + $0x50] sm:$0xff]
      %v8157 = vld [vmem:[%s13 + $0x58] sm:$0xff]
      %v8158 = vld [vmem:[%s13 + $0x60] sm:$0xff]
      %v8159 = vld [vmem:[%s13 + $0x68] sm:$0xff]
      %v8160 = vld [vmem:[%s13 + $0x70] sm:$0xff]
      %v8161 = vld [vmem:[%s13 + $0x78] sm:$0xff]
      %8162 = vmatpush.msra.mxu0 %v8161
      %8163 = vmatpush.msra.mxu0 %v8160
      %8164 = vmatpush.msra.mxu0 %v8159
      %8165 = vmatpush.msra.mxu0 %v8158
      %8166 = vmatpush.msra.mxu0 %v8157
      %8167 = vmatpush.msra.mxu0 %v8156
      %8168 = vmatpush.msra.mxu0 %v8155
      %8169 = vmatpush.msra.mxu0 %v8154
      %8170 = vmatpush.msra.mxu0 %v8153
      %8171 = vmatpush.msra.mxu0 %v8152
      %8172 = vmatpush.msra.mxu0 %v8151
      %8173 = vmatpush.msra.mxu0 %v8150
      %8174 = vmatpush.msra.mxu0 %v8149
      %8175 = vmatpush.msra.mxu0 %v8148
      %8176 = vmatpush.msra.mxu0 %v8147
      %8177 = vmatpush.msra.mxu0 %v8146
      %8178 = vmatmul.f32.gmra.mxu0 %v8130
      %v8179 = vpop.f32.mrf.mxu0
      %v8180 = vadd.f32 0.0, %v8179
      %8181 = vmatmul.f32.gmra.mxu0 %v8131
      %v8182 = vpop.f32.mrf.mxu0
      %v8183 = vadd.f32 0.0, %v8182
      %8184 = vmatmul.f32.gmra.mxu0 %v8132
      %v8185 = vpop.f32.mrf.mxu0
      %v8186 = vadd.f32 0.0, %v8185
      %8187 = vmatmul.f32.gmra.mxu0 %v8133
      %v8188 = vpop.f32.mrf.mxu0
      %v8189 = vadd.f32 0.0, %v8188
      %8190 = vmatmul.f32.gmra.mxu0 %v8134
      %v8191 = vpop.f32.mrf.mxu0
      %v8192 = vadd.f32 0.0, %v8191
      %8193 = vmatmul.f32.gmra.mxu0 %v8135
      %v8194 = vpop.f32.mrf.mxu0
      %v8195 = vadd.f32 0.0, %v8194
      %8196 = vmatmul.f32.gmra.mxu0 %v8136
      %v8197 = vpop.f32.mrf.mxu0
      %v8198 = vadd.f32 0.0, %v8197
      %8199 = vmatmul.f32.gmra.mxu0 %v8137
      %v8200 = vpop.f32.mrf.mxu0
      %v8201 = vadd.f32 0.0, %v8200
      %8202 = vmatmul.f32.gmra.mxu0 %v8138
      %v8203 = vpop.f32.mrf.mxu0
      %v8204 = vadd.f32 0.0, %v8203
      %8205 = vmatmul.f32.gmra.mxu0 %v8139
      %v8206 = vpop.f32.mrf.mxu0
      %v8207 = vadd.f32 0.0, %v8206
      %8208 = vmatmul.f32.gmra.mxu0 %v8140
      %v8209 = vpop.f32.mrf.mxu0
      %v8210 = vadd.f32 0.0, %v8209
      %8211 = vmatmul.f32.gmra.mxu0 %v8141
      %v8212 = vpop.f32.mrf.mxu0
      %v8213 = vadd.f32 0.0, %v8212
      %8214 = vmatmul.f32.gmra.mxu0 %v8142
      %v8215 = vpop.f32.mrf.mxu0
      %v8216 = vadd.f32 0.0, %v8215
      %8217 = vmatmul.f32.gmra.mxu0 %v8143
      %v8218 = vpop.f32.mrf.mxu0
      %v8219 = vadd.f32 0.0, %v8218
      %8220 = vmatmul.f32.gmra.mxu0 %v8144
      %v8221 = vpop.f32.mrf.mxu0
      %v8222 = vadd.f32 0.0, %v8221
      %8223 = vmatmul.f32.gmra.mxu0 %v8145
      %v8224 = vpop.f32.mrf.mxu0
      %v8225 = vadd.f32 0.0, %v8224
      %8226 = vdwg.mxu0
      %8227 = vmatpush.msra.mxu0 %v8129
      %8228 = vmatpush.msra.mxu0 %v8128
      %8229 = vmatpush.msra.mxu0 %v8127
      %8230 = vmatpush.msra.mxu0 %v8126
      %8231 = vmatpush.msra.mxu0 %v8125
      %8232 = vmatpush.msra.mxu0 %v8124
      %8233 = vmatpush.msra.mxu0 %v8123
      %8234 = vmatpush.msra.mxu0 %v8122
      %8235 = vmatpush.msra.mxu0 %v8121
      %8236 = vmatpush.msra.mxu0 %v8120
      %8237 = vmatpush.msra.mxu0 %v8119
      %8238 = vmatpush.msra.mxu0 %v8118
      %8239 = vmatpush.msra.mxu0 %v8117
      %8240 = vmatpush.msra.mxu0 %v8116
      %8241 = vmatpush.msra.mxu0 %v8115
      %8242 = vmatpush.msra.mxu0 %v8114
      %8243 = vmatmul.f32.gmra.mxu0 %v8098
      %v8244 = vpop.f32.mrf.mxu0
      %v8245 = vadd.f32 %v8180, %v8244
      %8246 = vmatmul.f32.gmra.mxu0 %v8099
      %v8247 = vpop.f32.mrf.mxu0
      %v8248 = vadd.f32 %v8183, %v8247
      %8249 = vmatmul.f32.gmra.mxu0 %v8100
      %v8250 = vpop.f32.mrf.mxu0
      %v8251 = vadd.f32 %v8186, %v8250
      %8252 = vmatmul.f32.gmra.mxu0 %v8101
      %v8253 = vpop.f32.mrf.mxu0
      %v8254 = vadd.f32 %v8189, %v8253
      %8255 = vmatmul.f32.gmra.mxu0 %v8102
      %v8256 = vpop.f32.mrf.mxu0
      %v8257 = vadd.f32 %v8192, %v8256
      %8258 = vmatmul.f32.gmra.mxu0 %v8103
      %v8259 = vpop.f32.mrf.mxu0
      %v8260 = vadd.f32 %v8195, %v8259
      %8261 = vmatmul.f32.gmra.mxu0 %v8104
      %v8262 = vpop.f32.mrf.mxu0
      %v8263 = vadd.f32 %v8198, %v8262
      %8264 = vmatmul.f32.gmra.mxu0 %v8105
      %v8265 = vpop.f32.mrf.mxu0
      %v8266 = vadd.f32 %v8201, %v8265
      %8267 = vmatmul.f32.gmra.mxu0 %v8106
      %v8268 = vpop.f32.mrf.mxu0
      %v8269 = vadd.f32 %v8204, %v8268
      %8270 = vmatmul.f32.gmra.mxu0 %v8107
      %v8271 = vpop.f32.mrf.mxu0
      %v8272 = vadd.f32 %v8207, %v8271
      %8273 = vmatmul.f32.gmra.mxu0 %v8108
      %v8274 = vpop.f32.mrf.mxu0
      %v8275 = vadd.f32 %v8210, %v8274
      %8276 = vmatmul.f32.gmra.mxu0 %v8109
      %v8277 = vpop.f32.mrf.mxu0
      %v8278 = vadd.f32 %v8213, %v8277
      %8279 = vmatmul.f32.gmra.mxu0 %v8110
      %v8280 = vpop.f32.mrf.mxu0
      %v8281 = vadd.f32 %v8216, %v8280
      %8282 = vmatmul.f32.gmra.mxu0 %v8111
      %v8283 = vpop.f32.mrf.mxu0
      %v8284 = vadd.f32 %v8219, %v8283
      %8285 = vmatmul.f32.gmra.mxu0 %v8112
      %v8286 = vpop.f32.mrf.mxu0
      %v8287 = vadd.f32 %v8222, %v8286
      %8288 = vmatmul.f32.gmra.mxu0 %v8113
      %v8289 = vpop.f32.mrf.mxu0
      %v8290 = vadd.f32 %v8225, %v8289
      %8291 = vdwg.mxu0
      %v8292 = vld [vmem:[%s14] sm:$0x1]
      %v8294 = vperm.slane %v8292, 0
      %v8296 = vadd.f32 %v8245, %v8294
      %v8297 = vadd.f32 %v8248, %v8294
      %v8298 = vadd.f32 %v8251, %v8294
      %v8299 = vadd.f32 %v8254, %v8294
      %v8300 = vadd.f32 %v8257, %v8294
      %v8301 = vadd.f32 %v8260, %v8294
      %v8302 = vadd.f32 %v8263, %v8294
      %v8303 = vadd.f32 %v8266, %v8294
      %v8304 = vadd.f32 %v8269, %v8294
      %v8305 = vadd.f32 %v8272, %v8294
      %v8306 = vadd.f32 %v8275, %v8294
      %v8307 = vadd.f32 %v8278, %v8294
      %v8308 = vadd.f32 %v8281, %v8294
      %v8309 = vadd.f32 %v8284, %v8294
      %v8310 = vadd.f32 %v8287, %v8294
      %v8311 = vadd.f32 %v8290, %v8294
      %v8312 = vld [vmem:[%s15] sm:$0xff]
      %v8313 = vld [vmem:[%s15 + $0x8] sm:$0xff]
      %v8314 = vld [vmem:[%s15 + $0x10] sm:$0xff]
      %v8315 = vld [vmem:[%s15 + $0x18] sm:$0xff]
      %v8316 = vld [vmem:[%s15 + $0x20] sm:$0xff]
      %v8317 = vld [vmem:[%s15 + $0x28] sm:$0xff]
      %v8318 = vld [vmem:[%s15 + $0x30] sm:$0xff]
      %v8319 = vld [vmem:[%s15 + $0x38] sm:$0xff]
      %v8320 = vld [vmem:[%s15 + $0x40] sm:$0xff]
      %v8321 = vld [vmem:[%s15 + $0x48] sm:$0xff]
      %v8322 = vld [vmem:[%s15 + $0x50] sm:$0xff]
      %v8323 = vld [vmem:[%s15 + $0x58] sm:$0xff]
      %v8324 = vld [vmem:[%s15 + $0x60] sm:$0xff]
      %v8325 = vld [vmem:[%s15 + $0x68] sm:$0xff]
      %v8326 = vld [vmem:[%s15 + $0x70] sm:$0xff]
      %v8327 = vld [vmem:[%s15 + $0x78] sm:$0xff]
      %v8328 = vmul.f32 %v8098, %v7701
      %v8329 = vmul.f32 %v8099, %v7701
      %v8330 = vmul.f32 %v8100, %v7701
      %v8331 = vmul.f32 %v8101, %v7701
      %v8332 = vmul.f32 %v8102, %v7701
      %v8333 = vmul.f32 %v8103, %v7701
      %v8334 = vmul.f32 %v8104, %v7701
      %v8335 = vmul.f32 %v8105, %v7701
      %v8336 = vmul.f32 %v8106, %v7701
      %v8337 = vmul.f32 %v8107, %v7701
      %v8338 = vmul.f32 %v8108, %v7701
      %v8339 = vmul.f32 %v8109, %v7701
      %v8340 = vmul.f32 %v8110, %v7701
      %v8341 = vmul.f32 %v8111, %v7701
      %v8342 = vmul.f32 %v8112, %v7701
      %v8343 = vmul.f32 %v8113, %v7701
      %v8344 = vld [vmem:[%s16] sm:$0xff]
      %v8345 = vld [vmem:[%s16 + $0x8] sm:$0xff]
      %v8346 = vld [vmem:[%s16 + $0x10] sm:$0xff]
      %v8347 = vld [vmem:[%s16 + $0x18] sm:$0xff]
      %v8348 = vld [vmem:[%s16 + $0x20] sm:$0xff]
      %v8349 = vld [vmem:[%s16 + $0x28] sm:$0xff]
      %v8350 = vld [vmem:[%s16 + $0x30] sm:$0xff]
      %v8351 = vld [vmem:[%s16 + $0x38] sm:$0xff]
      %v8352 = vld [vmem:[%s16 + $0x40] sm:$0xff]
      %v8353 = vld [vmem:[%s16 + $0x48] sm:$0xff]
      %v8354 = vld [vmem:[%s16 + $0x50] sm:$0xff]
      %v8355 = vld [vmem:[%s16 + $0x58] sm:$0xff]
      %v8356 = vld [vmem:[%s16 + $0x60] sm:$0xff]
      %v8357 = vld [vmem:[%s16 + $0x68] sm:$0xff]
      %v8358 = vld [vmem:[%s16 + $0x70] sm:$0xff]
      %v8359 = vld [vmem:[%s16 + $0x78] sm:$0xff]
      %8360 = vmatpush.msra.mxu0 %v8359
      %8361 = vmatpush.msra.mxu0 %v8358
      %8362 = vmatpush.msra.mxu0 %v8357
      %8363 = vmatpush.msra.mxu0 %v8356
      %8364 = vmatpush.msra.mxu0 %v8355
      %8365 = vmatpush.msra.mxu0 %v8354
      %8366 = vmatpush.msra.mxu0 %v8353
      %8367 = vmatpush.msra.mxu0 %v8352
      %8368 = vmatpush.msra.mxu0 %v8351
      %8369 = vmatpush.msra.mxu0 %v8350
      %8370 = vmatpush.msra.mxu0 %v8349
      %8371 = vmatpush.msra.mxu0 %v8348
      %8372 = vmatpush.msra.mxu0 %v8347
      %8373 = vmatpush.msra.mxu0 %v8346
      %8374 = vmatpush.msra.mxu0 %v8345
      %8375 = vmatpush.msra.mxu0 %v8344
      %8376 = vmatmul.f32.gmra.mxu0 %v8328
      %v8377 = vpop.f32.mrf.mxu0
      %v8378 = vadd.f32 0.0, %v8377
      %8379 = vmatmul.f32.gmra.mxu0 %v8329
      %v8380 = vpop.f32.mrf.mxu0
      %v8381 = vadd.f32 0.0, %v8380
      %8382 = vmatmul.f32.gmra.mxu0 %v8330
      %v8383 = vpop.f32.mrf.mxu0
      %v8384 = vadd.f32 0.0, %v8383
      %8385 = vmatmul.f32.gmra.mxu0 %v8331
      %v8386 = vpop.f32.mrf.mxu0
      %v8387 = vadd.f32 0.0, %v8386
      %8388 = vmatmul.f32.gmra.mxu0 %v8332
      %v8389 = vpop.f32.mrf.mxu0
      %v8390 = vadd.f32 0.0, %v8389
      %8391 = vmatmul.f32.gmra.mxu0 %v8333
      %v8392 = vpop.f32.mrf.mxu0
      %v8393 = vadd.f32 0.0, %v8392
      %8394 = vmatmul.f32.gmra.mxu0 %v8334
      %v8395 = vpop.f32.mrf.mxu0
      %v8396 = vadd.f32 0.0, %v8395
      %8397 = vmatmul.f32.gmra.mxu0 %v8335
      %v8398 = vpop.f32.mrf.mxu0
      %v8399 = vadd.f32 0.0, %v8398
      %8400 = vmatmul.f32.gmra.mxu0 %v8336
      %v8401 = vpop.f32.mrf.mxu0
      %v8402 = vadd.f32 0.0, %v8401
      %8403 = vmatmul.f32.gmra.mxu0 %v8337
      %v8404 = vpop.f32.mrf.mxu0
      %v8405 = vadd.f32 0.0, %v8404
      %8406 = vmatmul.f32.gmra.mxu0 %v8338
      %v8407 = vpop.f32.mrf.mxu0
      %v8408 = vadd.f32 0.0, %v8407
      %8409 = vmatmul.f32.gmra.mxu0 %v8339
      %v8410 = vpop.f32.mrf.mxu0
      %v8411 = vadd.f32 0.0, %v8410
      %8412 = vmatmul.f32.gmra.mxu0 %v8340
      %v8413 = vpop.f32.mrf.mxu0
      %v8414 = vadd.f32 0.0, %v8413
      %8415 = vmatmul.f32.gmra.mxu0 %v8341
      %v8416 = vpop.f32.mrf.mxu0
      %v8417 = vadd.f32 0.0, %v8416
      %8418 = vmatmul.f32.gmra.mxu0 %v8342
      %v8419 = vpop.f32.mrf.mxu0
      %v8420 = vadd.f32 0.0, %v8419
      %8421 = vmatmul.f32.gmra.mxu0 %v8343
      %v8422 = vpop.f32.mrf.mxu0
      %v8423 = vadd.f32 0.0, %v8422
      %8424 = vdwg.mxu0
      %8425 = vmatpush.msra.mxu0 %v8327
      %8426 = vmatpush.msra.mxu0 %v8326
      %8427 = vmatpush.msra.mxu0 %v8325
      %8428 = vmatpush.msra.mxu0 %v8324
      %8429 = vmatpush.msra.mxu0 %v8323
      %8430 = vmatpush.msra.mxu0 %v8322
      %8431 = vmatpush.msra.mxu0 %v8321
      %8432 = vmatpush.msra.mxu0 %v8320
      %8433 = vmatpush.msra.mxu0 %v8319
      %8434 = vmatpush.msra.mxu0 %v8318
      %8435 = vmatpush.msra.mxu0 %v8317
      %8436 = vmatpush.msra.mxu0 %v8316
      %8437 = vmatpush.msra.mxu0 %v8315
      %8438 = vmatpush.msra.mxu0 %v8314
      %8439 = vmatpush.msra.mxu0 %v8313
      %8440 = vmatpush.msra.mxu0 %v8312
      %8441 = vmatmul.f32.gmra.mxu0 %v8082
      %v8442 = vpop.f32.mrf.mxu0
      %v8443 = vadd.f32 %v8378, %v8442
      %8444 = vmatmul.f32.gmra.mxu0 %v8083
      %v8445 = vpop.f32.mrf.mxu0
      %v8446 = vadd.f32 %v8381, %v8445
      %8447 = vmatmul.f32.gmra.mxu0 %v8084
      %v8448 = vpop.f32.mrf.mxu0
      %v8449 = vadd.f32 %v8384, %v8448
      %8450 = vmatmul.f32.gmra.mxu0 %v8085
      %v8451 = vpop.f32.mrf.mxu0
      %v8452 = vadd.f32 %v8387, %v8451
      %8453 = vmatmul.f32.gmra.mxu0 %v8086
      %v8454 = vpop.f32.mrf.mxu0
      %v8455 = vadd.f32 %v8390, %v8454
      %8456 = vmatmul.f32.gmra.mxu0 %v8087
      %v8457 = vpop.f32.mrf.mxu0
      %v8458 = vadd.f32 %v8393, %v8457
      %8459 = vmatmul.f32.gmra.mxu0 %v8088
      %v8460 = vpop.f32.mrf.mxu0
      %v8461 = vadd.f32 %v8396, %v8460
      %8462 = vmatmul.f32.gmra.mxu0 %v8089
      %v8463 = vpop.f32.mrf.mxu0
      %v8464 = vadd.f32 %v8399, %v8463
      %8465 = vmatmul.f32.gmra.mxu0 %v8090
      %v8466 = vpop.f32.mrf.mxu0
      %v8467 = vadd.f32 %v8402, %v8466
      %8468 = vmatmul.f32.gmra.mxu0 %v8091
      %v8469 = vpop.f32.mrf.mxu0
      %v8470 = vadd.f32 %v8405, %v8469
      %8471 = vmatmul.f32.gmra.mxu0 %v8092
      %v8472 = vpop.f32.mrf.mxu0
      %v8473 = vadd.f32 %v8408, %v8472
      %8474 = vmatmul.f32.gmra.mxu0 %v8093
      %v8475 = vpop.f32.mrf.mxu0
      %v8476 = vadd.f32 %v8411, %v8475
      %8477 = vmatmul.f32.gmra.mxu0 %v8094
      %v8478 = vpop.f32.mrf.mxu0
      %v8479 = vadd.f32 %v8414, %v8478
      %8480 = vmatmul.f32.gmra.mxu0 %v8095
      %v8481 = vpop.f32.mrf.mxu0
      %v8482 = vadd.f32 %v8417, %v8481
      %8483 = vmatmul.f32.gmra.mxu0 %v8096
      %v8484 = vpop.f32.mrf.mxu0
      %v8485 = vadd.f32 %v8420, %v8484
      %8486 = vmatmul.f32.gmra.mxu0 %v8097
      %v8487 = vpop.f32.mrf.mxu0
      %v8488 = vadd.f32 %v8423, %v8487
      %8489 = vdwg.mxu0
      %v8490 = vld [vmem:[%s17] sm:$0x1]
      %v8492 = vperm.slane %v8490, 0
      %v8494 = vadd.f32 %v8443, %v8492
      %v8495 = vadd.f32 %v8446, %v8492
      %v8496 = vadd.f32 %v8449, %v8492
      %v8497 = vadd.f32 %v8452, %v8492
      %v8498 = vadd.f32 %v8455, %v8492
      %v8499 = vadd.f32 %v8458, %v8492
      %v8500 = vadd.f32 %v8461, %v8492
      %v8501 = vadd.f32 %v8464, %v8492
      %v8502 = vadd.f32 %v8467, %v8492
      %v8503 = vadd.f32 %v8470, %v8492
      %v8504 = vadd.f32 %v8473, %v8492
      %v8505 = vadd.f32 %v8476, %v8492
      %v8506 = vadd.f32 %v8479, %v8492
      %v8507 = vadd.f32 %v8482, %v8492
      %v8508 = vadd.f32 %v8485, %v8492
      %v8509 = vadd.f32 %v8488, %v8492
      %v8510 = vld [vmem:[%s18] sm:$0xff]
      %v8511 = vld [vmem:[%s18 + $0x8] sm:$0xff]
      %v8512 = vld [vmem:[%s18 + $0x10] sm:$0xff]
      %v8513 = vld [vmem:[%s18 + $0x18] sm:$0xff]
      %v8514 = vld [vmem:[%s18 + $0x20] sm:$0xff]
      %v8515 = vld [vmem:[%s18 + $0x28] sm:$0xff]
      %v8516 = vld [vmem:[%s18 + $0x30] sm:$0xff]
      %v8517 = vld [vmem:[%s18 + $0x38] sm:$0xff]
      %v8518 = vld [vmem:[%s18 + $0x40] sm:$0xff]
      %v8519 = vld [vmem:[%s18 + $0x48] sm:$0xff]
      %v8520 = vld [vmem:[%s18 + $0x50] sm:$0xff]
      %v8521 = vld [vmem:[%s18 + $0x58] sm:$0xff]
      %v8522 = vld [vmem:[%s18 + $0x60] sm:$0xff]
      %v8523 = vld [vmem:[%s18 + $0x68] sm:$0xff]
      %v8524 = vld [vmem:[%s18 + $0x70] sm:$0xff]
      %v8525 = vld [vmem:[%s18 + $0x78] sm:$0xff]
      %v8526 = vld [vmem:[%s19] sm:$0xff]
      %v8527 = vld [vmem:[%s19 + $0x8] sm:$0xff]
      %v8528 = vld [vmem:[%s19 + $0x10] sm:$0xff]
      %v8529 = vld [vmem:[%s19 + $0x18] sm:$0xff]
      %v8530 = vld [vmem:[%s19 + $0x20] sm:$0xff]
      %v8531 = vld [vmem:[%s19 + $0x28] sm:$0xff]
      %v8532 = vld [vmem:[%s19 + $0x30] sm:$0xff]
      %v8533 = vld [vmem:[%s19 + $0x38] sm:$0xff]
      %v8534 = vld [vmem:[%s19 + $0x40] sm:$0xff]
      %v8535 = vld [vmem:[%s19 + $0x48] sm:$0xff]
      %v8536 = vld [vmem:[%s19 + $0x50] sm:$0xff]
      %v8537 = vld [vmem:[%s19 + $0x58] sm:$0xff]
      %v8538 = vld [vmem:[%s19 + $0x60] sm:$0xff]
      %v8539 = vld [vmem:[%s19 + $0x68] sm:$0xff]
      %v8540 = vld [vmem:[%s19 + $0x70] sm:$0xff]
      %v8541 = vld [vmem:[%s19 + $0x78] sm:$0xff]
      %8542 = vmatpush.msra.mxu0 %v8541
      %8543 = vmatpush.msra.mxu0 %v8540
      %8544 = vmatpush.msra.mxu0 %v8539
      %8545 = vmatpush.msra.mxu0 %v8538
      %8546 = vmatpush.msra.mxu0 %v8537
      %8547 = vmatpush.msra.mxu0 %v8536
      %8548 = vmatpush.msra.mxu0 %v8535
      %8549 = vmatpush.msra.mxu0 %v8534
      %8550 = vmatpush.msra.mxu0 %v8533
      %8551 = vmatpush.msra.mxu0 %v8532
      %8552 = vmatpush.msra.mxu0 %v8531
      %8553 = vmatpush.msra.mxu0 %v8530
      %8554 = vmatpush.msra.mxu0 %v8529
      %8555 = vmatpush.msra.mxu0 %v8528
      %8556 = vmatpush.msra.mxu0 %v8527
      %8557 = vmatpush.msra.mxu0 %v8526
      %8558 = vmatmul.f32.gmra.mxu0 %v8494
      %v8559 = vpop.f32.mrf.mxu0
      %v8560 = vadd.f32 0.0, %v8559
      %8561 = vmatmul.f32.gmra.mxu0 %v8495
      %v8562 = vpop.f32.mrf.mxu0
      %v8563 = vadd.f32 0.0, %v8562
      %8564 = vmatmul.f32.gmra.mxu0 %v8496
      %v8565 = vpop.f32.mrf.mxu0
      %v8566 = vadd.f32 0.0, %v8565
      %8567 = vmatmul.f32.gmra.mxu0 %v8497
      %v8568 = vpop.f32.mrf.mxu0
      %v8569 = vadd.f32 0.0, %v8568
      %8570 = vmatmul.f32.gmra.mxu0 %v8498
      %v8571 = vpop.f32.mrf.mxu0
      %v8572 = vadd.f32 0.0, %v8571
      %8573 = vmatmul.f32.gmra.mxu0 %v8499
      %v8574 = vpop.f32.mrf.mxu0
      %v8575 = vadd.f32 0.0, %v8574
      %8576 = vmatmul.f32.gmra.mxu0 %v8500
      %v8577 = vpop.f32.mrf.mxu0
      %v8578 = vadd.f32 0.0, %v8577
      %8579 = vmatmul.f32.gmra.mxu0 %v8501
      %v8580 = vpop.f32.mrf.mxu0
      %v8581 = vadd.f32 0.0, %v8580
      %8582 = vmatmul.f32.gmra.mxu0 %v8502
      %v8583 = vpop.f32.mrf.mxu0
      %v8584 = vadd.f32 0.0, %v8583
      %8585 = vmatmul.f32.gmra.mxu0 %v8503
      %v8586 = vpop.f32.mrf.mxu0
      %v8587 = vadd.f32 0.0, %v8586
      %8588 = vmatmul.f32.gmra.mxu0 %v8504
      %v8589 = vpop.f32.mrf.mxu0
      %v8590 = vadd.f32 0.0, %v8589
      %8591 = vmatmul.f32.gmra.mxu0 %v8505
      %v8592 = vpop.f32.mrf.mxu0
      %v8593 = vadd.f32 0.0, %v8592
      %8594 = vmatmul.f32.gmra.mxu0 %v8506
      %v8595 = vpop.f32.mrf.mxu0
      %v8596 = vadd.f32 0.0, %v8595
      %8597 = vmatmul.f32.gmra.mxu0 %v8507
      %v8598 = vpop.f32.mrf.mxu0
      %v8599 = vadd.f32 0.0, %v8598
      %8600 = vmatmul.f32.gmra.mxu0 %v8508
      %v8601 = vpop.f32.mrf.mxu0
      %v8602 = vadd.f32 0.0, %v8601
      %8603 = vmatmul.f32.gmra.mxu0 %v8509
      %v8604 = vpop.f32.mrf.mxu0
      %v8605 = vadd.f32 0.0, %v8604
      %8606 = vdwg.mxu0
      %8607 = vmatpush.msra.mxu0 %v8525
      %8608 = vmatpush.msra.mxu0 %v8524
      %8609 = vmatpush.msra.mxu0 %v8523
      %8610 = vmatpush.msra.mxu0 %v8522
      %8611 = vmatpush.msra.mxu0 %v8521
      %8612 = vmatpush.msra.mxu0 %v8520
      %8613 = vmatpush.msra.mxu0 %v8519
      %8614 = vmatpush.msra.mxu0 %v8518
      %8615 = vmatpush.msra.mxu0 %v8517
      %8616 = vmatpush.msra.mxu0 %v8516
      %8617 = vmatpush.msra.mxu0 %v8515
      %8618 = vmatpush.msra.mxu0 %v8514
      %8619 = vmatpush.msra.mxu0 %v8513
      %8620 = vmatpush.msra.mxu0 %v8512
      %8621 = vmatpush.msra.mxu0 %v8511
      %8622 = vmatpush.msra.mxu0 %v8510
      %8623 = vmatmul.f32.gmra.mxu0 %v8296
      %v8624 = vpop.f32.mrf.mxu0
      %v8625 = vadd.f32 %v8560, %v8624
      %8626 = vmatmul.f32.gmra.mxu0 %v8297
      %v8627 = vpop.f32.mrf.mxu0
      %v8628 = vadd.f32 %v8563, %v8627
      %8629 = vmatmul.f32.gmra.mxu0 %v8298
      %v8630 = vpop.f32.mrf.mxu0
      %v8631 = vadd.f32 %v8566, %v8630
      %8632 = vmatmul.f32.gmra.mxu0 %v8299
      %v8633 = vpop.f32.mrf.mxu0
      %v8634 = vadd.f32 %v8569, %v8633
      %8635 = vmatmul.f32.gmra.mxu0 %v8300
      %v8636 = vpop.f32.mrf.mxu0
      %v8637 = vadd.f32 %v8572, %v8636
      %8638 = vmatmul.f32.gmra.mxu0 %v8301
      %v8639 = vpop.f32.mrf.mxu0
      %v8640 = vadd.f32 %v8575, %v8639
      %8641 = vmatmul.f32.gmra.mxu0 %v8302
      %v8642 = vpop.f32.mrf.mxu0
      %v8643 = vadd.f32 %v8578, %v8642
      %8644 = vmatmul.f32.gmra.mxu0 %v8303
      %v8645 = vpop.f32.mrf.mxu0
      %v8646 = vadd.f32 %v8581, %v8645
      %8647 = vmatmul.f32.gmra.mxu0 %v8304
      %v8648 = vpop.f32.mrf.mxu0
      %v8649 = vadd.f32 %v8584, %v8648
      %8650 = vmatmul.f32.gmra.mxu0 %v8305
      %v8651 = vpop.f32.mrf.mxu0
      %v8652 = vadd.f32 %v8587, %v8651
      %8653 = vmatmul.f32.gmra.mxu0 %v8306
      %v8654 = vpop.f32.mrf.mxu0
      %v8655 = vadd.f32 %v8590, %v8654
      %8656 = vmatmul.f32.gmra.mxu0 %v8307
      %v8657 = vpop.f32.mrf.mxu0
      %v8658 = vadd.f32 %v8593, %v8657
      %8659 = vmatmul.f32.gmra.mxu0 %v8308
      %v8660 = vpop.f32.mrf.mxu0
      %v8661 = vadd.f32 %v8596, %v8660
      %8662 = vmatmul.f32.gmra.mxu0 %v8309
      %v8663 = vpop.f32.mrf.mxu0
      %v8664 = vadd.f32 %v8599, %v8663
      %8665 = vmatmul.f32.gmra.mxu0 %v8310
      %v8666 = vpop.f32.mrf.mxu0
      %v8667 = vadd.f32 %v8602, %v8666
      %8668 = vmatmul.f32.gmra.mxu0 %v8311
      %v8669 = vpop.f32.mrf.mxu0
      %v8670 = vadd.f32 %v8605, %v8669
      %8671 = vdwg.mxu0
      %v8672 = vld [vmem:[%s20] sm:$0x1]
      %v8674 = vperm.slane %v8672, 0
      %v8676 = vadd.f32 %v8625, %v8674
      %v8677 = vadd.f32 %v8628, %v8674
      %v8678 = vadd.f32 %v8631, %v8674
      %v8679 = vadd.f32 %v8634, %v8674
      %v8680 = vadd.f32 %v8637, %v8674
      %v8681 = vadd.f32 %v8640, %v8674
      %v8682 = vadd.f32 %v8643, %v8674
      %v8683 = vadd.f32 %v8646, %v8674
      %v8684 = vadd.f32 %v8649, %v8674
      %v8685 = vadd.f32 %v8652, %v8674
      %v8686 = vadd.f32 %v8655, %v8674
      %v8687 = vadd.f32 %v8658, %v8674
      %v8688 = vadd.f32 %v8661, %v8674
      %v8689 = vadd.f32 %v8664, %v8674
      %v8690 = vadd.f32 %v8667, %v8674
      %v8691 = vadd.f32 %v8670, %v8674
      %s8692 = scalar_lea.vmem %s676, 128
      %8693 = vst [vmem:[%s8692] sm:$0xff] %v8676
      %8694 = vst [vmem:[%s8692 + $0x8] sm:$0xff] %v8677
      %8695 = vst [vmem:[%s8692 + $0x10] sm:$0xff] %v8678
      %8696 = vst [vmem:[%s8692 + $0x18] sm:$0xff] %v8679
      %8697 = vst [vmem:[%s8692 + $0x20] sm:$0xff] %v8680
      %8698 = vst [vmem:[%s8692 + $0x28] sm:$0xff] %v8681
      %8699 = vst [vmem:[%s8692 + $0x30] sm:$0xff] %v8682
      %8700 = vst [vmem:[%s8692 + $0x38] sm:$0xff] %v8683
      %8701 = vst [vmem:[%s8692 + $0x40] sm:$0xff] %v8684
      %8702 = vst [vmem:[%s8692 + $0x48] sm:$0xff] %v8685
      %8703 = vst [vmem:[%s8692 + $0x50] sm:$0xff] %v8686
      %8704 = vst [vmem:[%s8692 + $0x58] sm:$0xff] %v8687
      %8705 = vst [vmem:[%s8692 + $0x60] sm:$0xff] %v8688
      %8706 = vst [vmem:[%s8692 + $0x68] sm:$0xff] %v8689
      %8707 = vst [vmem:[%s8692 + $0x70] sm:$0xff] %v8690
      %8708 = vst [vmem:[%s8692 + $0x78] sm:$0xff] %v8691
      %p8709 = scmp.lt.s32.totalorder %s32, 1
      %s8710 = scalar_select %p8709, %s32, 1
      %s8711 = smul.addr %s8710, 32
      %s8712 = smul.addr %s8711, 8
      %s8713 = scalar_lea.vmem %s21, %s8712
      // Predicated region
      $region105: #{dcablock_forward.1} parent=103 // pred_check
        %p8714 = pneg %p501
      $region106: #{dcablock_forward.1} parent=103 // pred_check_branch
        %8716 = sbr.rel (%p8714) target = $region108
      $region107: #{dcablock_forward.1} parent=103 // pred_region
        _
      $region108: #{dcablock_forward.1} parent=103 // pred_fallthru
        _
    $region104: #{dcablock_forward.1} parent=5 // pred_fallthru
      _
    %p8717 = scmp.le.s32.totalorder 2, %s27
    // Predicated region
    $region109: #{dcablock_forward.1} parent=5 // pred_check
      %p8718 = pneg %p8717
    $region110: #{dcablock_forward.1} parent=5 // pred_check_branch
      %8720 = sbr.rel (%p8718) target = $region112
    $region111: #{dcablock_forward.1} parent=5 // pred_region
      %s8721 = ssub.s32 %s27, 2
      // Predicated region
      $region113: #{dcablock_forward.1} parent=111 // pred_check
        %p8722 = pneg %p507
      $region114: #{dcablock_forward.1} parent=111 // pred_check_branch
        %8724 = sbr.rel (%p8722) target = $region116
      $region115: #{dcablock_forward.1} parent=111 // pred_region
        %p8725 = scmp.lt.s32.totalorder %s33, 1
        %s8726 = scalar_select %p8725, %s33, 1
        %s8727 = smul.addr %s8726, 32
        %s8728 = smul.addr %s8727, 8
        %s8729 = scalar_lea.vmem %s21, %s8728
      $region116: #{dcablock_forward.1} parent=111 // pred_fallthru
        _
    $region112: #{dcablock_forward.1} parent=5 // pred_fallthru
      _
  $region6: #{dcablock_forward.1} parent=0 // loop_footer
    %s31 = sadd.s32 1, %s27
  $region7: #{dcablock_forward.1} parent=0 // loop_footer_branch
    %26 = sbr.rel target = $region3
  $region8: #{dcablock_forward.1} parent=0 // loop_exit
    _

</llo_original>
